<compile_context>
chip_gen: v7x
topology: tpu7x:2x2x1
jax: 0.10.0
libtpu: 0.0.40
codegen_flags: <defaults>
</compile_context>

<pallas_src>
import jax
import jax.numpy as jnp
from jax import lax
from jax.experimental import pallas as pl
from jax.experimental.pallas import tpu as pltpu

T = 2          # recurrence steps inside RecurrentConv
EPS = 1e-5     # BatchNorm eps
OFF = 16       # interior column offset in the padded scratch (bf16 sublane tile)


# ----------------------------------------------------------------------------
# Pallas kernel: one batch element per grid step, everything resident in VMEM.
# ----------------------------------------------------------------------------
def _rconv_kernel(x_ref, w_ref, scale_ref, shift_ref, out_ref, pad_ref):
    H, W, C = x_ref.shape[1], x_ref.shape[2], x_ref.shape[3]
    Wp = pad_ref.shape[1]

    # Zero the halo as aligned pieces: 16-wide column strips on either side of
    # the interior (they cover the 1-pixel left/right halo columns) plus the
    # top/bottom halo rows.  The interior is fully rewritten before every conv,
    # so this is the only initialisation the scratch needs.  Done every grid
    # step (cheap, aligned stores) because scratch is per-core and the
    # "parallel" batch axis may be sharded across TensorCores on multi-TC parts.
    pad_ref[:, 0:OFF, :] = jnp.zeros((H + 2, OFF, C), jnp.bfloat16)
    pad_ref[:, OFF + W:Wp, :] = jnp.zeros((H + 2, Wp - OFF - W, C), jnp.bfloat16)
    pad_ref[0:1, OFF:OFF + W, :] = jnp.zeros((1, W, C), jnp.bfloat16)
    pad_ref[H + 1:H + 2, OFF:OFF + W, :] = jnp.zeros((1, W, C), jnp.bfloat16)

    # Hoist grid-invariant loads out of the (unrolled) conv calls.
    w_dy = [w_ref[dy] for dy in range(3)]      # 3 x (3*C, C)  bf16, dense K
    scale = scale_ref[...]                     # (1, C)        f32
    shift = shift_ref[...]                     # (1, C)        f32

    def conv_bn_relu():
        # 3x3 conv over the bf16 padded buffer as 3 accumulating matmuls,
        # one per kernel row (dy), each with dense K = 3*C (no zero columns).
        acc = None
        for dy in range(3):
            slab = pad_ref[dy:dy + H, :, :]                          # (H, Wp, C) bf16
            taps = [slab[:, OFF - 1 + dx:OFF - 1 + dx + W, :]        # dx shifts
                    for dx in range(3)]
            patch = jnp.concatenate(taps, axis=-1).reshape(H * W, 3 * C)
            d = jnp.dot(patch, w_dy[dy], preferred_element_type=jnp.float32)
            acc = d if acc is None else acc + d
        y = jnp.maximum(acc * scale + shift, 0.0)   # folded bias + BN, ReLU (f32)
        return y.reshape(H, W, C)

    x_bf = x_ref[0]                              # (H, W, C) bf16
    x_f32 = x_bf.astype(jnp.float32)

    # x1 = conv(x)
    pad_ref[1:H + 1, OFF:OFF + W, :] = x_bf
    y = conv_bn_relu()
    # x1 = conv(x + x1), t times   (recurrent add kept in f32)
    for _ in range(T):
        pad_ref[1:H + 1, OFF:OFF + W, :] = (x_f32 + y).astype(jnp.bfloat16)
        y = conv_bn_relu()

    out_ref[0] = y.astype(out_ref.dtype)


# ----------------------------------------------------------------------------
# Wrapper: parameter folding / packing + pallas_call
# ----------------------------------------------------------------------------
def recurrent_conv(x_nchw, params):
    N, C, H, W = x_nchw.shape
    # NHWC bf16 input, channel-dense (no Cp padding in the wrapper).
    x = jnp.transpose(x_nchw, (0, 2, 3, 1)).astype(jnp.bfloat16)

    # Fold conv bias + BN running stats into per-channel scale/shift (f32).
    scale = params["gamma"] / jnp.sqrt(params["var"] + EPS)
    shift = (params["bias"] - params["mean"]) * scale + params["beta"]
    scale = scale.reshape(1, C).astype(jnp.float32)
    shift = shift.reshape(1, C).astype(jnp.float32)

    # HWIO (3,3,C,C) -> (3, 3*C, C): one dense-K weight slab per kernel row,
    # row order (dx-major, then ci) matching the in-kernel tap concat order.
    w_packed = params["w3"].reshape(3, 3 * C, C).astype(jnp.bfloat16)

    Wp = OFF + W + OFF   # interior at columns [OFF, OFF+W); halo inside strips

    n_conv = 1 + T
    cost = pl.CostEstimate(
        flops=int(2 * N * n_conv * H * W * 9 * C * C),
        transcendentals=0,
        bytes_accessed=int(N * H * W * C * (2 + 4)          # bf16 in + f32 out
                           + 9 * C * C * 2                  # bf16 weights
                           + 2 * C * 4),                    # scale/shift
    )

    fn = pl.pallas_call(
        _rconv_kernel,
        out_shape=jax.ShapeDtypeStruct((N, H, W, C), jnp.float32),
        grid_spec=pltpu.PrefetchScalarGridSpec(
            num_scalar_prefetch=0,
            grid=(N,),
            in_specs=[
                pl.BlockSpec((1, H, W, C), lambda n: (n, 0, 0, 0)),
                # grid-invariant weight / scale / shift blocks
                pl.BlockSpec((3, 3 * C, C), lambda n: (0, 0, 0)),
                pl.BlockSpec((1, C), lambda n: (0, 0)),
                pl.BlockSpec((1, C), lambda n: (0, 0)),
            ],
            out_specs=pl.BlockSpec((1, H, W, C), lambda n: (n, 0, 0, 0)),
            scratch_shapes=[pltpu.VMEM((H + 2, Wp, C), jnp.bfloat16)],
        ),
        compiler_params=pltpu.CompilerParams(
            dimension_semantics=("parallel",),      # N>=2 feeds both v7x TCs
            vmem_limit_bytes=32 * 1024 * 1024),
        cost_estimate=cost,
    )
    out = fn(x, w_packed, scale, shift)
    return jnp.transpose(out, (0, 3, 1, 2))          # back to NCHW


# ----------------------------------------------------------------------------
# Pure-JAX reference (NHWC) for a correctness check
# ----------------------------------------------------------------------------
def reference_forward(x_nchw, p):
    x = jnp.transpose(x_nchw, (0, 2, 3, 1)).astype(jnp.float32)

    def conv_bn_relu(z):
        c = lax.conv_general_dilated(
            z, p["w3"], (1, 1), "SAME",
            dimension_numbers=("NHWC", "HWIO", "NHWC")) + p["bias"]
        c = (c - p["mean"]) * p["gamma"] / jnp.sqrt(p["var"] + EPS) + p["beta"]
        return jnp.maximum(c, 0.0)

    y = conv_bn_relu(x)
    for _ in range(T):
        y = conv_bn_relu(x + y)
    return jnp.transpose(y, (0, 3, 1, 2))


# ----------------------------------------------------------------------------
# Deterministic parameter construction
# ----------------------------------------------------------------------------
def make_params(key, c):
    ks = jax.random.split(key, 6)
    p = {
        "w3": jax.random.normal(ks[0], (3, 3, c, c)) * 0.1,      # HWIO
        "bias": jax.random.normal(ks[1], (c,)) * 0.05,
        "gamma": jax.random.uniform(ks[2], (c,), minval=0.8, maxval=1.2),
        "beta": jax.random.normal(ks[3], (c,)) * 0.05,
        "mean": jax.random.normal(ks[4], (c,)) * 0.05,
        "var": jax.random.uniform(ks[5], (c,), minval=0.5, maxval=1.5),
    }
    return {k: v.astype(jnp.float32) for k, v in p.items()}


if __name__ == "__main__":
    key = jax.random.PRNGKey(0)
    k_x, k_p = jax.random.split(key)

    N, C, H, W = 2, 8, 16, 16
    x = jax.random.normal(k_x, (N, C, H, W), dtype=jnp.float32)   # NCHW input
    params = make_params(k_p, C)

    out = jax.block_until_ready(jax.jit(recurrent_conv)(x, params))
    ref = jax.block_until_ready(reference_forward(x, params))

    assert out.shape == (N, C, H, W), out.shape
    max_err = float(jnp.max(jnp.abs(out - ref)))
    # bf16 input / matmul operands (f32 accumulation) -> modest tolerance.
    assert bool(jnp.allclose(out, ref, atol=5e-2, rtol=5e-2)), max_err

    print("KERNEL_OK")
</pallas_src>

<mosaic_0001>
module attributes {stable_mosaic.version = 11 : i64} {
  func.func @_rconv_kernel(%arg0: i32, %arg1: memref<1x16x16x8xbf16, #tpu.memory_space<vmem>>, %arg2: memref<3x24x8xbf16, #tpu.memory_space<vmem>>, %arg3: memref<1x8xf32, #tpu.memory_space<vmem>>, %arg4: memref<1x8xf32, #tpu.memory_space<vmem>>, %arg5: memref<1x16x16x8xf32, #tpu.memory_space<vmem>>, %arg6: memref<18x48x8xbf16, #tpu.memory_space<vmem>>) attributes {dimension_semantics = [#tpu.dimension_semantics<parallel>], iteration_bounds = array<i64: 2>, scalar_prefetch = 0 : i64, scratch_operands = 1 : i64, tpu.core_type = #tpu.core_type<tc>, window_params = [{transform_indices = @transform_0, window_bounds = array<i64: 1, 16, 16, 8>}, {pipeline_mode = #tpu.pipeline_mode<synchronous>, transform_indices = @transform_1, window_bounds = array<i64: 3, 24, 8>}, {pipeline_mode = #tpu.pipeline_mode<synchronous>, transform_indices = @transform_2, window_bounds = array<i64: 1, 8>}, {pipeline_mode = #tpu.pipeline_mode<synchronous>, transform_indices = @transform_3, window_bounds = array<i64: 1, 8>}, {transform_indices = @transform_4, window_bounds = array<i64: 1, 16, 16, 8>}]} {
    %cst = arith.constant 0.000000e+00 : bf16
    %0 = vector.broadcast %cst : bf16 to vector<18x16x8xbf16>
    %c0 = arith.constant 0 : index
    %c0_0 = arith.constant 0 : index
    %c0_1 = arith.constant 0 : index
    %1 = vector.load %arg6[%c0, %c0_0, %c0_1] : memref<18x48x8xbf16, #tpu.memory_space<vmem>>, vector<18x16x8xbf16>
    tpu.vector_store %arg6[%c0, %c0_0, %c0_1], %0 {strides = array<i32>} : memref<18x48x8xbf16, #tpu.memory_space<vmem>>, vector<18x16x8xbf16>,
    %cst_2 = arith.constant 0.000000e+00 : bf16
    %2 = vector.broadcast %cst_2 : bf16 to vector<18x16x8xbf16>
    %c0_3 = arith.constant 0 : index
    %c32 = arith.constant 32 : index
    %c0_4 = arith.constant 0 : index
    %3 = vector.load %arg6[%c0_3, %c32, %c0_4] : memref<18x48x8xbf16, #tpu.memory_space<vmem>>, vector<18x16x8xbf16>
    tpu.vector_store %arg6[%c0_3, %c32, %c0_4], %2 {strides = array<i32>} : memref<18x48x8xbf16, #tpu.memory_space<vmem>>, vector<18x16x8xbf16>,
    %cst_5 = arith.constant 0.000000e+00 : bf16
    %4 = vector.broadcast %cst_5 : bf16 to vector<1x16x8xbf16>
    %c0_6 = arith.constant 0 : index
    %c16 = arith.constant 16 : index
    %c0_7 = arith.constant 0 : index
    %5 = vector.load %arg6[%c0_6, %c16, %c0_7] : memref<18x48x8xbf16, #tpu.memory_space<vmem>>, vector<1x16x8xbf16>
    tpu.vector_store %arg6[%c0_6, %c16, %c0_7], %4 {strides = array<i32>} : memref<18x48x8xbf16, #tpu.memory_space<vmem>>, vector<1x16x8xbf16>,
    %cst_8 = arith.constant 0.000000e+00 : bf16
    %6 = vector.broadcast %cst_8 : bf16 to vector<1x16x8xbf16>
    %c17 = arith.constant 17 : index
    %c16_9 = arith.constant 16 : index
    %c0_10 = arith.constant 0 : index
    %7 = vector.load %arg6[%c17, %c16_9, %c0_10] : memref<18x48x8xbf16, #tpu.memory_space<vmem>>, vector<1x16x8xbf16>
    tpu.vector_store %arg6[%c17, %c16_9, %c0_10], %6 {strides = array<i32>} : memref<18x48x8xbf16, #tpu.memory_space<vmem>>, vector<1x16x8xbf16>,
    %c0_11 = arith.constant 0 : index
    %c0_12 = arith.constant 0 : index
    %c0_13 = arith.constant 0 : index
    %8 = vector.load %arg2[%c0_11, %c0_12, %c0_13] : memref<3x24x8xbf16, #tpu.memory_space<vmem>>, vector<1x24x8xbf16>
    %9 = vector.shape_cast %8 : vector<1x24x8xbf16> to vector<24x8xbf16>
    %c1 = arith.constant 1 : index
    %c0_14 = arith.constant 0 : index
    %c0_15 = arith.constant 0 : index
    %10 = vector.load %arg2[%c1, %c0_14, %c0_15] : memref<3x24x8xbf16, #tpu.memory_space<vmem>>, vector<1x24x8xbf16>
    %11 = vector.shape_cast %10 : vector<1x24x8xbf16> to vector<24x8xbf16>
    %c2 = arith.constant 2 : index
    %c0_16 = arith.constant 0 : index
    %c0_17 = arith.constant 0 : index
    %12 = vector.load %arg2[%c2, %c0_16, %c0_17] : memref<3x24x8xbf16, #tpu.memory_space<vmem>>, vector<1x24x8xbf16>
    %13 = vector.shape_cast %12 : vector<1x24x8xbf16> to vector<24x8xbf16>
    %c0_18 = arith.constant 0 : index
    %c0_19 = arith.constant 0 : index
    %14 = vector.load %arg3[%c0_18, %c0_19] : memref<1x8xf32, #tpu.memory_space<vmem>>, vector<1x8xf32>
    %c0_20 = arith.constant 0 : index
    %c0_21 = arith.constant 0 : index
    %15 = vector.load %arg4[%c0_20, %c0_21] : memref<1x8xf32, #tpu.memory_space<vmem>>, vector<1x8xf32>
    %c0_22 = arith.constant 0 : index
    %c0_23 = arith.constant 0 : index
    %c0_24 = arith.constant 0 : index
    %c0_25 = arith.constant 0 : index
    %16 = vector.load %arg1[%c0_22, %c0_23, %c0_24, %c0_25] : memref<1x16x16x8xbf16, #tpu.memory_space<vmem>>, vector<1x16x16x8xbf16>
    %17 = vector.shape_cast %16 : vector<1x16x16x8xbf16> to vector<16x16x8xbf16>
    %18 = arith.extf %17 : vector<16x16x8xbf16> to vector<16x16x8xf32>
    %c1_26 = arith.constant 1 : index
    %c16_27 = arith.constant 16 : index
    %c0_28 = arith.constant 0 : index
    %19 = vector.load %arg6[%c1_26, %c16_27, %c0_28] : memref<18x48x8xbf16, #tpu.memory_space<vmem>>, vector<16x16x8xbf16>
    tpu.vector_store %arg6[%c1_26, %c16_27, %c0_28], %17 {strides = array<i32>} : memref<18x48x8xbf16, #tpu.memory_space<vmem>>, vector<16x16x8xbf16>,
    %c0_29 = arith.constant 0 : index
    %c0_30 = arith.constant 0 : index
    %c0_31 = arith.constant 0 : index
    %20 = vector.load %arg6[%c0_29, %c0_30, %c0_31] : memref<18x48x8xbf16, #tpu.memory_space<vmem>>, vector<16x48x8xbf16>
    %21 = vector.extract_strided_slice %20 {offsets = [0, 15, 0], sizes = [16, 16, 8], strides = [1, 1, 1]} : vector<16x48x8xbf16> to vector<16x16x8xbf16>
    %22 = vector.extract_strided_slice %20 {offsets = [0, 16, 0], sizes = [16, 16, 8], strides = [1, 1, 1]} : vector<16x48x8xbf16> to vector<16x16x8xbf16>
    %23 = vector.extract_strided_slice %20 {offsets = [0, 17, 0], sizes = [16, 16, 8], strides = [1, 1, 1]} : vector<16x48x8xbf16> to vector<16x16x8xbf16>
    %24 = tpu.concatenate %21, %22, %23 in 2 : vector<16x16x8xbf16>, vector<16x16x8xbf16>, vector<16x16x8xbf16> -> vector<16x16x24xbf16>
    %25 = vector.shape_cast %24 : vector<16x16x24xbf16> to vector<256x24xbf16>
    %cst_32 = arith.constant dense<0.000000e+00> : vector<256x8xf32>
    %26 = tpu.matmul %25, %9, %cst_32 {dimension_numbers = #tpu.dot_dimension_numbers<[1], [0], [0], [1], [0, 0, 1, 1], [], []>} : vector<256x24xbf16>, vector<24x8xbf16>, vector<256x8xf32> -> vector<256x8xf32>
    %c1_33 = arith.constant 1 : index
    %c0_34 = arith.constant 0 : index
    %c0_35 = arith.constant 0 : index
    %27 = vector.load %arg6[%c1_33, %c0_34, %c0_35] : memref<18x48x8xbf16, #tpu.memory_space<vmem>>, vector<16x48x8xbf16>
    %28 = vector.extract_strided_slice %27 {offsets = [0, 15, 0], sizes = [16, 16, 8], strides = [1, 1, 1]} : vector<16x48x8xbf16> to vector<16x16x8xbf16>
    %29 = vector.extract_strided_slice %27 {offsets = [0, 16, 0], sizes = [16, 16, 8], strides = [1, 1, 1]} : vector<16x48x8xbf16> to vector<16x16x8xbf16>
    %30 = vector.extract_strided_slice %27 {offsets = [0, 17, 0], sizes = [16, 16, 8], strides = [1, 1, 1]} : vector<16x48x8xbf16> to vector<16x16x8xbf16>
    %31 = tpu.concatenate %28, %29, %30 in 2 : vector<16x16x8xbf16>, vector<16x16x8xbf16>, vector<16x16x8xbf16> -> vector<16x16x24xbf16>
    %32 = vector.shape_cast %31 : vector<16x16x24xbf16> to vector<256x24xbf16>
    %cst_36 = arith.constant dense<0.000000e+00> : vector<256x8xf32>
    %33 = tpu.matmul %32, %11, %cst_36 {dimension_numbers = #tpu.dot_dimension_numbers<[1], [0], [0], [1], [0, 0, 1, 1], [], []>} : vector<256x24xbf16>, vector<24x8xbf16>, vector<256x8xf32> -> vector<256x8xf32>
    %34 = arith.addf %26, %33 : vector<256x8xf32>
    %c2_37 = arith.constant 2 : index
    %c0_38 = arith.constant 0 : index
    %c0_39 = arith.constant 0 : index
    %35 = vector.load %arg6[%c2_37, %c0_38, %c0_39] : memref<18x48x8xbf16, #tpu.memory_space<vmem>>, vector<16x48x8xbf16>
    %36 = vector.extract_strided_slice %35 {offsets = [0, 15, 0], sizes = [16, 16, 8], strides = [1, 1, 1]} : vector<16x48x8xbf16> to vector<16x16x8xbf16>
    %37 = vector.extract_strided_slice %35 {offsets = [0, 16, 0], sizes = [16, 16, 8], strides = [1, 1, 1]} : vector<16x48x8xbf16> to vector<16x16x8xbf16>
    %38 = vector.extract_strided_slice %35 {offsets = [0, 17, 0], sizes = [16, 16, 8], strides = [1, 1, 1]} : vector<16x48x8xbf16> to vector<16x16x8xbf16>
    %39 = tpu.concatenate %36, %37, %38 in 2 : vector<16x16x8xbf16>, vector<16x16x8xbf16>, vector<16x16x8xbf16> -> vector<16x16x24xbf16>
    %40 = vector.shape_cast %39 : vector<16x16x24xbf16> to vector<256x24xbf16>
    %cst_40 = arith.constant dense<0.000000e+00> : vector<256x8xf32>
    %41 = tpu.matmul %40, %13, %cst_40 {dimension_numbers = #tpu.dot_dimension_numbers<[1], [0], [0], [1], [0, 0, 1, 1], [], []>} : vector<256x24xbf16>, vector<24x8xbf16>, vector<256x8xf32> -> vector<256x8xf32>
    %42 = arith.addf %34, %41 : vector<256x8xf32>
    %43 = vector.broadcast %14 : vector<1x8xf32> to vector<256x8xf32>
    %44 = arith.mulf %42, %43 : vector<256x8xf32>
    %45 = vector.broadcast %15 : vector<1x8xf32> to vector<256x8xf32>
    %46 = arith.addf %44, %45 : vector<256x8xf32>
    %cst_41 = arith.constant 0.000000e+00 : f32
    %47 = vector.broadcast %cst_41 : f32 to vector<256x8xf32>
    %48 = arith.maximumf %46, %47 : vector<256x8xf32>
    %49 = vector.shape_cast %48 : vector<256x8xf32> to vector<16x16x8xf32>
    %50 = arith.addf %18, %49 : vector<16x16x8xf32>
    %51 = arith.truncf %50 : vector<16x16x8xf32> to vector<16x16x8xbf16>
    %c1_42 = arith.constant 1 : index
    %c16_43 = arith.constant 16 : index
    %c0_44 = arith.constant 0 : index
    %52 = vector.load %arg6[%c1_42, %c16_43, %c0_44] : memref<18x48x8xbf16, #tpu.memory_space<vmem>>, vector<16x16x8xbf16>
    tpu.vector_store %arg6[%c1_42, %c16_43, %c0_44], %51 {strides = array<i32>} : memref<18x48x8xbf16, #tpu.memory_space<vmem>>, vector<16x16x8xbf16>,
    %c0_45 = arith.constant 0 : index
    %c0_46 = arith.constant 0 : index
    %c0_47 = arith.constant 0 : index
    %53 = vector.load %arg6[%c0_45, %c0_46, %c0_47] : memref<18x48x8xbf16, #tpu.memory_space<vmem>>, vector<16x48x8xbf16>
    %54 = vector.extract_strided_slice %53 {offsets = [0, 15, 0], sizes = [16, 16, 8], strides = [1, 1, 1]} : vector<16x48x8xbf16> to vector<16x16x8xbf16>
    %55 = vector.extract_strided_slice %53 {offsets = [0, 16, 0], sizes = [16, 16, 8], strides = [1, 1, 1]} : vector<16x48x8xbf16> to vector<16x16x8xbf16>
    %56 = vector.extract_strided_slice %53 {offsets = [0, 17, 0], sizes = [16, 16, 8], strides = [1, 1, 1]} : vector<16x48x8xbf16> to vector<16x16x8xbf16>
    %57 = tpu.concatenate %54, %55, %56 in 2 : vector<16x16x8xbf16>, vector<16x16x8xbf16>, vector<16x16x8xbf16> -> vector<16x16x24xbf16>
    %58 = vector.shape_cast %57 : vector<16x16x24xbf16> to vector<256x24xbf16>
    %cst_48 = arith.constant dense<0.000000e+00> : vector<256x8xf32>
    %59 = tpu.matmul %58, %9, %cst_48 {dimension_numbers = #tpu.dot_dimension_numbers<[1], [0], [0], [1], [0, 0, 1, 1], [], []>} : vector<256x24xbf16>, vector<24x8xbf16>, vector<256x8xf32> -> vector<256x8xf32>
    %c1_49 = arith.constant 1 : index
    %c0_50 = arith.constant 0 : index
    %c0_51 = arith.constant 0 : index
    %60 = vector.load %arg6[%c1_49, %c0_50, %c0_51] : memref<18x48x8xbf16, #tpu.memory_space<vmem>>, vector<16x48x8xbf16>
    %61 = vector.extract_strided_slice %60 {offsets = [0, 15, 0], sizes = [16, 16, 8], strides = [1, 1, 1]} : vector<16x48x8xbf16> to vector<16x16x8xbf16>
    %62 = vector.extract_strided_slice %60 {offsets = [0, 16, 0], sizes = [16, 16, 8], strides = [1, 1, 1]} : vector<16x48x8xbf16> to vector<16x16x8xbf16>
    %63 = vector.extract_strided_slice %60 {offsets = [0, 17, 0], sizes = [16, 16, 8], strides = [1, 1, 1]} : vector<16x48x8xbf16> to vector<16x16x8xbf16>
    %64 = tpu.concatenate %61, %62, %63 in 2 : vector<16x16x8xbf16>, vector<16x16x8xbf16>, vector<16x16x8xbf16> -> vector<16x16x24xbf16>
    %65 = vector.shape_cast %64 : vector<16x16x24xbf16> to vector<256x24xbf16>
    %cst_52 = arith.constant dense<0.000000e+00> : vector<256x8xf32>
    %66 = tpu.matmul %65, %11, %cst_52 {dimension_numbers = #tpu.dot_dimension_numbers<[1], [0], [0], [1], [0, 0, 1, 1], [], []>} : vector<256x24xbf16>, vector<24x8xbf16>, vector<256x8xf32> -> vector<256x8xf32>
    %67 = arith.addf %59, %66 : vector<256x8xf32>
    %c2_53 = arith.constant 2 : index
    %c0_54 = arith.constant 0 : index
    %c0_55 = arith.constant 0 : index
    %68 = vector.load %arg6[%c2_53, %c0_54, %c0_55] : memref<18x48x8xbf16, #tpu.memory_space<vmem>>, vector<16x48x8xbf16>
    %69 = vector.extract_strided_slice %68 {offsets = [0, 15, 0], sizes = [16, 16, 8], strides = [1, 1, 1]} : vector<16x48x8xbf16> to vector<16x16x8xbf16>
    %70 = vector.extract_strided_slice %68 {offsets = [0, 16, 0], sizes = [16, 16, 8], strides = [1, 1, 1]} : vector<16x48x8xbf16> to vector<16x16x8xbf16>
    %71 = vector.extract_strided_slice %68 {offsets = [0, 17, 0], sizes = [16, 16, 8], strides = [1, 1, 1]} : vector<16x48x8xbf16> to vector<16x16x8xbf16>
    %72 = tpu.concatenate %69, %70, %71 in 2 : vector<16x16x8xbf16>, vector<16x16x8xbf16>, vector<16x16x8xbf16> -> vector<16x16x24xbf16>
    %73 = vector.shape_cast %72 : vector<16x16x24xbf16> to vector<256x24xbf16>
    %cst_56 = arith.constant dense<0.000000e+00> : vector<256x8xf32>
    %74 = tpu.matmul %73, %13, %cst_56 {dimension_numbers = #tpu.dot_dimension_numbers<[1], [0], [0], [1], [0, 0, 1, 1], [], []>} : vector<256x24xbf16>, vector<24x8xbf16>, vector<256x8xf32> -> vector<256x8xf32>
    %75 = arith.addf %67, %74 : vector<256x8xf32>
    %76 = vector.broadcast %14 : vector<1x8xf32> to vector<256x8xf32>
    %77 = arith.mulf %75, %76 : vector<256x8xf32>
    %78 = vector.broadcast %15 : vector<1x8xf32> to vector<256x8xf32>
    %79 = arith.addf %77, %78 : vector<256x8xf32>
    %cst_57 = arith.constant 0.000000e+00 : f32
    %80 = vector.broadcast %cst_57 : f32 to vector<256x8xf32>
    %81 = arith.maximumf %79, %80 : vector<256x8xf32>
    %82 = vector.shape_cast %81 : vector<256x8xf32> to vector<16x16x8xf32>
    %83 = arith.addf %18, %82 : vector<16x16x8xf32>
    %84 = arith.truncf %83 : vector<16x16x8xf32> to vector<16x16x8xbf16>
    %c1_58 = arith.constant 1 : index
    %c16_59 = arith.constant 16 : index
    %c0_60 = arith.constant 0 : index
    %85 = vector.load %arg6[%c1_58, %c16_59, %c0_60] : memref<18x48x8xbf16, #tpu.memory_space<vmem>>, vector<16x16x8xbf16>
    tpu.vector_store %arg6[%c1_58, %c16_59, %c0_60], %84 {strides = array<i32>} : memref<18x48x8xbf16, #tpu.memory_space<vmem>>, vector<16x16x8xbf16>,
    %c0_61 = arith.constant 0 : index
    %c0_62 = arith.constant 0 : index
    %c0_63 = arith.constant 0 : index
    %86 = vector.load %arg6[%c0_61, %c0_62, %c0_63] : memref<18x48x8xbf16, #tpu.memory_space<vmem>>, vector<16x48x8xbf16>
    %87 = vector.extract_strided_slice %86 {offsets = [0, 15, 0], sizes = [16, 16, 8], strides = [1, 1, 1]} : vector<16x48x8xbf16> to vector<16x16x8xbf16>
    %88 = vector.extract_strided_slice %86 {offsets = [0, 16, 0], sizes = [16, 16, 8], strides = [1, 1, 1]} : vector<16x48x8xbf16> to vector<16x16x8xbf16>
    %89 = vector.extract_strided_slice %86 {offsets = [0, 17, 0], sizes = [16, 16, 8], strides = [1, 1, 1]} : vector<16x48x8xbf16> to vector<16x16x8xbf16>
    %90 = tpu.concatenate %87, %88, %89 in 2 : vector<16x16x8xbf16>, vector<16x16x8xbf16>, vector<16x16x8xbf16> -> vector<16x16x24xbf16>
    %91 = vector.shape_cast %90 : vector<16x16x24xbf16> to vector<256x24xbf16>
    %cst_64 = arith.constant dense<0.000000e+00> : vector<256x8xf32>
    %92 = tpu.matmul %91, %9, %cst_64 {dimension_numbers = #tpu.dot_dimension_numbers<[1], [0], [0], [1], [0, 0, 1, 1], [], []>} : vector<256x24xbf16>, vector<24x8xbf16>, vector<256x8xf32> -> vector<256x8xf32>
    %c1_65 = arith.constant 1 : index
    %c0_66 = arith.constant 0 : index
    %c0_67 = arith.constant 0 : index
    %93 = vector.load %arg6[%c1_65, %c0_66, %c0_67] : memref<18x48x8xbf16, #tpu.memory_space<vmem>>, vector<16x48x8xbf16>
    %94 = vector.extract_strided_slice %93 {offsets = [0, 15, 0], sizes = [16, 16, 8], strides = [1, 1, 1]} : vector<16x48x8xbf16> to vector<16x16x8xbf16>
    %95 = vector.extract_strided_slice %93 {offsets = [0, 16, 0], sizes = [16, 16, 8], strides = [1, 1, 1]} : vector<16x48x8xbf16> to vector<16x16x8xbf16>
    %96 = vector.extract_strided_slice %93 {offsets = [0, 17, 0], sizes = [16, 16, 8], strides = [1, 1, 1]} : vector<16x48x8xbf16> to vector<16x16x8xbf16>
    %97 = tpu.concatenate %94, %95, %96 in 2 : vector<16x16x8xbf16>, vector<16x16x8xbf16>, vector<16x16x8xbf16> -> vector<16x16x24xbf16>
    %98 = vector.shape_cast %97 : vector<16x16x24xbf16> to vector<256x24xbf16>
    %cst_68 = arith.constant dense<0.000000e+00> : vector<256x8xf32>
    %99 = tpu.matmul %98, %11, %cst_68 {dimension_numbers = #tpu.dot_dimension_numbers<[1], [0], [0], [1], [0, 0, 1, 1], [], []>} : vector<256x24xbf16>, vector<24x8xbf16>, vector<256x8xf32> -> vector<256x8xf32>
    %100 = arith.addf %92, %99 : vector<256x8xf32>
    %c2_69 = arith.constant 2 : index
    %c0_70 = arith.constant 0 : index
    %c0_71 = arith.constant 0 : index
    %101 = vector.load %arg6[%c2_69, %c0_70, %c0_71] : memref<18x48x8xbf16, #tpu.memory_space<vmem>>, vector<16x48x8xbf16>
    %102 = vector.extract_strided_slice %101 {offsets = [0, 15, 0], sizes = [16, 16, 8], strides = [1, 1, 1]} : vector<16x48x8xbf16> to vector<16x16x8xbf16>
    %103 = vector.extract_strided_slice %101 {offsets = [0, 16, 0], sizes = [16, 16, 8], strides = [1, 1, 1]} : vector<16x48x8xbf16> to vector<16x16x8xbf16>
    %104 = vector.extract_strided_slice %101 {offsets = [0, 17, 0], sizes = [16, 16, 8], strides = [1, 1, 1]} : vector<16x48x8xbf16> to vector<16x16x8xbf16>
    %105 = tpu.concatenate %102, %103, %104 in 2 : vector<16x16x8xbf16>, vector<16x16x8xbf16>, vector<16x16x8xbf16> -> vector<16x16x24xbf16>
    %106 = vector.shape_cast %105 : vector<16x16x24xbf16> to vector<256x24xbf16>
    %cst_72 = arith.constant dense<0.000000e+00> : vector<256x8xf32>
    %107 = tpu.matmul %106, %13, %cst_72 {dimension_numbers = #tpu.dot_dimension_numbers<[1], [0], [0], [1], [0, 0, 1, 1], [], []>} : vector<256x24xbf16>, vector<24x8xbf16>, vector<256x8xf32> -> vector<256x8xf32>
    %108 = arith.addf %100, %107 : vector<256x8xf32>
    %109 = vector.broadcast %14 : vector<1x8xf32> to vector<256x8xf32>
    %110 = arith.mulf %108, %109 : vector<256x8xf32>
    %111 = vector.broadcast %15 : vector<1x8xf32> to vector<256x8xf32>
    %112 = arith.addf %110, %111 : vector<256x8xf32>
    %cst_73 = arith.constant 0.000000e+00 : f32
    %113 = vector.broadcast %cst_73 : f32 to vector<256x8xf32>
    %114 = arith.maximumf %112, %113 : vector<256x8xf32>
    %115 = vector.shape_cast %114 : vector<256x8xf32> to vector<16x16x8xf32>
    %c0_74 = arith.constant 0 : index
    %c0_75 = arith.constant 0 : index
    %c0_76 = arith.constant 0 : index
    %c0_77 = arith.constant 0 : index
    %116 = vector.load %arg5[%c0_74, %c0_75, %c0_76, %c0_77] : memref<1x16x16x8xf32, #tpu.memory_space<vmem>>, vector<1x16x16x8xf32>
    %117 = vector.shape_cast %116 : vector<1x16x16x8xf32> to vector<16x16x8xf32>
    %118 = vector.shape_cast %115 : vector<16x16x8xf32> to vector<1x16x16x8xf32>
    tpu.vector_store %arg5[%c0_74, %c0_75, %c0_76, %c0_77], %118 {strides = array<i32>} : memref<1x16x16x8xf32, #tpu.memory_space<vmem>>, vector<1x16x16x8xf32>,
    return
  }
  func.func @transform_0(%arg0: i32) -> (i32, i32, i32, i32) {
    %c0_i32 = arith.constant 0 : i32
    %c0_i32_0 = arith.constant 0 : i32
    %c0_i32_1 = arith.constant 0 : i32
    %c0_i32_2 = arith.constant 0 : i32
    return %arg0, %c0_i32, %c0_i32_0, %c0_i32_1 : i32, i32, i32, i32
  }
  func.func @transform_1(%arg0: i32) -> (i32, i32, i32) {
    %c0_i32 = arith.constant 0 : i32
    %c0_i32_0 = arith.constant 0 : i32
    %c0_i32_1 = arith.constant 0 : i32
    %c0_i32_2 = arith.constant 0 : i32
    return %c0_i32, %c0_i32_0, %c0_i32_1 : i32, i32, i32
  }
  func.func @transform_2(%arg0: i32) -> (i32, i32) {
    %c0_i32 = arith.constant 0 : i32
    %c0_i32_0 = arith.constant 0 : i32
    %c0_i32_1 = arith.constant 0 : i32
    return %c0_i32, %c0_i32_0 : i32, i32
  }
  func.func @transform_3(%arg0: i32) -> (i32, i32) {
    %c0_i32 = arith.constant 0 : i32
    %c0_i32_0 = arith.constant 0 : i32
    %c0_i32_1 = arith.constant 0 : i32
    return %c0_i32, %c0_i32_0 : i32, i32
  }
  func.func @transform_4(%arg0: i32) -> (i32, i32, i32, i32) {
    %c0_i32 = arith.constant 0 : i32
    %c0_i32_0 = arith.constant 0 : i32
    %c0_i32_1 = arith.constant 0 : i32
    %c0_i32_2 = arith.constant 0 : i32
    return %arg0, %c0_i32, %c0_i32_0, %c0_i32_1 : i32, i32, i32, i32
  }
}

</mosaic_0001>

<llo_original>
// kernel: recurrent_conv.1
$region0: #{recurrent_conv.1}
  #allocation0 [shape = 'u32[]', space=smem, size = 0x4, offset = 0x4, fixed_abs, tag = 'smem constant byte address 0x4 - core index']
  #allocation1 [shape = 'u32[144,128]{1,0:T(1,128)}', space=vmem, size = 0x12000, scoped, tag = 'internal scratch']
  #allocation2 [shape = 'bf16[18,48,8]{2,1,0:T(16,128)(2,1)}', space=vmem, size = 0x36000, scoped, tag = 'scratch operand']
  %s0 = inlined_call_operand.vmem [shape: bf16[2,16,16,8], index: 0, kind: input, shape index: {}]
  %s1 = inlined_call_operand.vmem [shape: bf16[3,24,8], index: 1, kind: input, shape index: {}]
  %s2 = inlined_call_operand.vmem [shape: f32[1,8], index: 2, kind: input, shape index: {}]
  %s3 = inlined_call_operand.vmem [shape: f32[1,8], index: 3, kind: input, shape index: {}]
  %s4 = inlined_call_operand.vmem [shape: f32[2,16,16,8], index: 4, kind: output, shape index: {}]
  %s5 = sld [smem:[#allocation0]]
  $region49: #{recurrent_conv.1} parent=0
    _
  %s7 = ssub.s32 1, %s5
  %s8 = scalar_select 0, %s7, %s5
  loop: start=0, step=1, limit=4
  $region2: #{recurrent_conv.1} parent=0 // loop_pre_header
    _
  $region3: #{recurrent_conv.1} parent=0 // loop_header
    %s10 = sphi 0, %s14
    %p11 = scmp.ge.s32.totalorder %s10, 4
    %s20 = sphi 0, %s22
    %s23 = sphi 0, %s20
    %s24 = sphi 0, %s23
    %s40 = sphi 0, %s24
    %s44 = sphi 0, %s44
    %s46 = sphi 0, %s44
    %s47 = sphi 0, %s46
    %s61 = sphi 0, %s47
    %s65 = sphi 0, %s65
    %s67 = sphi 0, %s65
    %s68 = sphi 0, %s67
    %s82 = sphi 0, %s68
    %s86 = sphi 0, %s86
    %s88 = sphi 0, %s86
    %s89 = sphi 0, %s88
    %s103 = sphi 0, %s89
    %s109 = sphi 0, %s111
    %s112 = sphi 0, %s109
    %s113 = sphi 0, %s112
    %s129 = sphi 0, %s113
  $region4: #{recurrent_conv.1} parent=0 // loop_header_branch
    %13 = sbr.rel (%p11) target = $region8
  $region5: #{recurrent_conv.1} parent=0 // loop_body
    %s15 = ssub.s32 %s10, 1
    %s16 = ssub.s32 %s10, 2
    %s17 = sadd.s32 %s10, 1
    %s18 = ssub.s32 %s10, %s17
    %p19 = scmp.eq.s32.totalorder %s18, 0
    %s21 = sadd.s32 %s20, 1
    %s22 = scalar_select %p19, %s20, %s21
    %p25 = pneg %p19
    %p26 = scmp.eq.s32.totalorder %s10, 1
    %p27 = por %p25, %p26
    %p28 = scmp.ne.s32.totalorder %s20, %s23
    %p29 = scmp.eq.s32.totalorder %s10, 0
    %p30 = por %p28, %p29
    %p31 = scmp.ne.s32.totalorder %s20, %s23
    %p32 = scmp.eq.s32.totalorder %s15, 1
    %p33 = por %p31, %p32
    %p34 = scmp.ne.s32.totalorder %s23, %s24
    %p35 = scmp.eq.s32.totalorder %s15, 0
    %p36 = por %p34, %p35
    %p37 = scmp.ne.s32.totalorder %s23, %s24
    %p38 = scmp.eq.s32.totalorder %s16, 1
    %p39 = por %p37, %p38
    %p41 = scmp.ne.s32.totalorder %s24, %s40
    %p42 = scmp.eq.s32.totalorder %s16, 0
    %p43 = por %p41, %p42
    %s45 = sadd.s32 %s44, 1
    %p48 = scmp.eq.s32.totalorder %s10, 1
    %p49 = scmp.ne.s32.totalorder %s44, %s46
    %p50 = scmp.eq.s32.totalorder %s10, 0
    %p51 = por %p49, %p50
    %p52 = scmp.ne.s32.totalorder %s44, %s46
    %p53 = scmp.eq.s32.totalorder %s15, 1
    %p54 = por %p52, %p53
    %p55 = scmp.ne.s32.totalorder %s46, %s47
    %p56 = scmp.eq.s32.totalorder %s15, 0
    %p57 = por %p55, %p56
    %p58 = scmp.ne.s32.totalorder %s46, %s47
    %p59 = scmp.eq.s32.totalorder %s16, 1
    %p60 = por %p58, %p59
    %p62 = scmp.ne.s32.totalorder %s47, %s61
    %p63 = scmp.eq.s32.totalorder %s16, 0
    %p64 = por %p62, %p63
    %s66 = sadd.s32 %s65, 1
    %p69 = scmp.eq.s32.totalorder %s10, 1
    %p70 = scmp.ne.s32.totalorder %s65, %s67
    %p71 = scmp.eq.s32.totalorder %s10, 0
    %p72 = por %p70, %p71
    %p73 = scmp.ne.s32.totalorder %s65, %s67
    %p74 = scmp.eq.s32.totalorder %s15, 1
    %p75 = por %p73, %p74
    %p76 = scmp.ne.s32.totalorder %s67, %s68
    %p77 = scmp.eq.s32.totalorder %s15, 0
    %p78 = por %p76, %p77
    %p79 = scmp.ne.s32.totalorder %s67, %s68
    %p80 = scmp.eq.s32.totalorder %s16, 1
    %p81 = por %p79, %p80
    %p83 = scmp.ne.s32.totalorder %s68, %s82
    %p84 = scmp.eq.s32.totalorder %s16, 0
    %p85 = por %p83, %p84
    %s87 = sadd.s32 %s86, 1
    %p90 = scmp.eq.s32.totalorder %s10, 1
    %p91 = scmp.ne.s32.totalorder %s86, %s88
    %p92 = scmp.eq.s32.totalorder %s10, 0
    %p93 = por %p91, %p92
    %p94 = scmp.ne.s32.totalorder %s86, %s88
    %p95 = scmp.eq.s32.totalorder %s15, 1
    %p96 = por %p94, %p95
    %p97 = scmp.ne.s32.totalorder %s88, %s89
    %p98 = scmp.eq.s32.totalorder %s15, 0
    %p99 = por %p97, %p98
    %p100 = scmp.ne.s32.totalorder %s88, %s89
    %p101 = scmp.eq.s32.totalorder %s16, 1
    %p102 = por %p100, %p101
    %p104 = scmp.ne.s32.totalorder %s89, %s103
    %p105 = scmp.eq.s32.totalorder %s16, 0
    %p106 = por %p104, %p105
    %s107 = ssub.s32 %s10, %s17
    %p108 = scmp.eq.s32.totalorder %s107, 0
    %s110 = sadd.s32 %s109, 1
    %s111 = scalar_select %p108, %s109, %s110
    %p114 = pneg %p108
    %p115 = scmp.eq.s32.totalorder %s10, 1
    %p116 = por %p114, %p115
    %p117 = scmp.ne.s32.totalorder %s109, %s112
    %p118 = scmp.eq.s32.totalorder %s10, 0
    %p119 = por %p117, %p118
    %p120 = scmp.ne.s32.totalorder %s109, %s112
    %p121 = scmp.eq.s32.totalorder %s15, 1
    %p122 = por %p120, %p121
    %p123 = scmp.ne.s32.totalorder %s112, %s113
    %p124 = scmp.eq.s32.totalorder %s15, 0
    %p125 = por %p123, %p124
    %p126 = scmp.ne.s32.totalorder %s112, %s113
    %p127 = scmp.eq.s32.totalorder %s16, 1
    %p128 = por %p126, %p127
    %p130 = scmp.ne.s32.totalorder %s113, %s129
    %p131 = scmp.eq.s32.totalorder %s16, 0
    %p132 = por %p130, %p131
    %p133 = scmp.le.s32.totalorder 1, %s10
    %p134 = scmp.lt.s32.totalorder %s10, 3
    %p135 = pnand %p133, %p134
    %p136 = pneg %p135
    // Predicated region
    $region9: #{recurrent_conv.1} parent=5 // pred_check
      _
    $region10: #{recurrent_conv.1} parent=5 // pred_check_branch
      %138 = sbr.rel (%p135) target = $region12
    $region11: #{recurrent_conv.1} parent=5 // pred_region
      %s139 = ssub.s32 %s10, 1
      // Predicated region
      $region13: #{recurrent_conv.1} parent=11 // pred_check
        %p140 = pneg %p57
      $region14: #{recurrent_conv.1} parent=11 // pred_check_branch
        %142 = sbr.rel (%p140) target = $region16
      $region15: #{recurrent_conv.1} parent=11 // pred_region
        _
      $region16: #{recurrent_conv.1} parent=11 // pred_fallthru
        _
      // Predicated region
      $region17: #{recurrent_conv.1} parent=11 // pred_check
        %p143 = pneg %p78
      $region18: #{recurrent_conv.1} parent=11 // pred_check_branch
        %145 = sbr.rel (%p143) target = $region20
      $region19: #{recurrent_conv.1} parent=11 // pred_region
        _
      $region20: #{recurrent_conv.1} parent=11 // pred_fallthru
        _
      // Predicated region
      $region21: #{recurrent_conv.1} parent=11 // pred_check
        %p146 = pneg %p99
      $region22: #{recurrent_conv.1} parent=11 // pred_check_branch
        %148 = sbr.rel (%p146) target = $region24
      $region23: #{recurrent_conv.1} parent=11 // pred_region
        _
      $region24: #{recurrent_conv.1} parent=11 // pred_fallthru
        _
    $region12: #{recurrent_conv.1} parent=5 // pred_fallthru
      _
    %p149 = scmp.lt.s32.totalorder %s10, 2
    // Predicated region
    $region25: #{recurrent_conv.1} parent=5 // pred_check
      %p150 = pneg %p149
    $region26: #{recurrent_conv.1} parent=5 // pred_check_branch
      %152 = sbr.rel (%p150) target = $region28
    $region27: #{recurrent_conv.1} parent=5 // pred_region
      // Predicated region
      $region29: #{recurrent_conv.1} parent=27 // pred_check
        %p153 = pneg %p30
      $region30: #{recurrent_conv.1} parent=27 // pred_check_branch
        %155 = sbr.rel (%p153) target = $region32
      $region31: #{recurrent_conv.1} parent=27 // pred_region
        %p156 = scmp.lt.s32.totalorder %s10, 1
        %s157 = scalar_select %p156, %s10, 1
        %s158 = smul.addr %s157, 32
        %s159 = smul.addr %s158, 4
        %s160 = scalar_lea.vmem %s0, %s159
      $region32: #{recurrent_conv.1} parent=27 // pred_fallthru
        _
    $region28: #{recurrent_conv.1} parent=5 // pred_fallthru
      _
    %p161 = scmp.le.s32.totalorder 1, %s10
    %p162 = scmp.lt.s32.totalorder %s10, 3
    %p163 = pnand %p161, %p162
    %p164 = pneg %p163
    // Predicated region
    $region33: #{recurrent_conv.1} parent=5 // pred_check
      _
    $region34: #{recurrent_conv.1} parent=5 // pred_check_branch
      %166 = sbr.rel (%p163) target = $region36
    $region35: #{recurrent_conv.1} parent=5 // pred_region
      %s167 = ssub.s32 %s10, 1
      %p168 = scmp.lt.s32.totalorder %s15, 1
      %s169 = scalar_select %p168, %s15, 1
      %s170 = smul.addr %s169, 32
      %s171 = smul.addr %s170, 4
      %s172 = scalar_lea.vmem %s0, %s171
      %p173 = pneg %p36
      %p174 = pneg %p33
      %p175 = pneg %p57
      %p176 = pneg %p54
      %p177 = pneg %p78
      %p178 = pneg %p75
      %p179 = pneg %p99
      %p180 = pneg %p96
      %p181 = pneg %p125
      %p182 = pneg %p122
      %p183 = scmp.lt.s32.totalorder %s15, 1
      %s184 = scalar_select %p183, %s15, 1
      %s185 = smul.addr %s184, 32
      %s186 = smul.addr %s185, 8
      %s187 = scalar_lea.vmem %s4, %s186
      %p188 = scmp.lt.s32.totalorder %s15, 1
      %s189 = scalar_select %p188, %s15, 1
      %s190 = smul.addr %s189, 32
      %s191 = smul.addr %s190, 4
      %s192 = scalar_lea.vmem %s0, %s191
      %p193 = scmp.lt.s32.totalorder %s15, 1
      %s194 = scalar_select %p193, %s15, 1
      %s195 = smul.addr %s194, 32
      %s196 = smul.addr %s195, 8
      %s197 = scalar_lea.vmem %s4, %s196
      %vm199 = vcmask 64512
      %200 = vst.msk [vmem:[#allocation2] sm:$0xff] %vm199, 0
      %201 = vst.msk [vmem:[#allocation2 + $0x18] sm:$0xff] %vm199, 0
      %202 = vst.msk [vmem:[#allocation2 + $0x30] sm:$0xff] %vm199, 0
      %203 = vst.msk [vmem:[#allocation2 + $0x48] sm:$0xff] %vm199, 0
      %204 = vst.msk [vmem:[#allocation2 + $0x60] sm:$0xff] %vm199, 0
      %205 = vst.msk [vmem:[#allocation2 + $0x78] sm:$0xff] %vm199, 0
      %206 = vst.msk [vmem:[#allocation2 + $0x90] sm:$0xff] %vm199, 0
      %207 = vst.msk [vmem:[#allocation2 + $0xa8] sm:$0xff] %vm199, 0
      %208 = vst.msk [vmem:[#allocation2 + $0xc0] sm:$0xff] %vm199, 0
      %209 = vst.msk [vmem:[#allocation2 + $0xd8] sm:$0xff] %vm199, 0
      %210 = vst.msk [vmem:[#allocation2 + $0xf0] sm:$0xff] %vm199, 0
      %211 = vst.msk [vmem:[#allocation2 + $0x108] sm:$0xff] %vm199, 0
      %212 = vst.msk [vmem:[#allocation2 + $0x120] sm:$0xff] %vm199, 0
      %213 = vst.msk [vmem:[#allocation2 + $0x138] sm:$0xff] %vm199, 0
      %214 = vst.msk [vmem:[#allocation2 + $0x150] sm:$0xff] %vm199, 0
      %215 = vst.msk [vmem:[#allocation2 + $0x168] sm:$0xff] %vm199, 0
      %216 = vst.msk [vmem:[#allocation2 + $0x180] sm:$0xff] %vm199, 0
      %217 = vst.msk [vmem:[#allocation2 + $0x198] sm:$0xff] %vm199, 0
      %218 = vst.msk [vmem:[#allocation2 + $0x10] sm:$0xff] %vm199, 0
      %219 = vst.msk [vmem:[#allocation2 + $0x28] sm:$0xff] %vm199, 0
      %220 = vst.msk [vmem:[#allocation2 + $0x40] sm:$0xff] %vm199, 0
      %221 = vst.msk [vmem:[#allocation2 + $0x58] sm:$0xff] %vm199, 0
      %222 = vst.msk [vmem:[#allocation2 + $0x70] sm:$0xff] %vm199, 0
      %223 = vst.msk [vmem:[#allocation2 + $0x88] sm:$0xff] %vm199, 0
      %224 = vst.msk [vmem:[#allocation2 + $0xa0] sm:$0xff] %vm199, 0
      %225 = vst.msk [vmem:[#allocation2 + $0xb8] sm:$0xff] %vm199, 0
      %226 = vst.msk [vmem:[#allocation2 + $0xd0] sm:$0xff] %vm199, 0
      %227 = vst.msk [vmem:[#allocation2 + $0xe8] sm:$0xff] %vm199, 0
      %228 = vst.msk [vmem:[#allocation2 + $0x100] sm:$0xff] %vm199, 0
      %229 = vst.msk [vmem:[#allocation2 + $0x118] sm:$0xff] %vm199, 0
      %230 = vst.msk [vmem:[#allocation2 + $0x130] sm:$0xff] %vm199, 0
      %231 = vst.msk [vmem:[#allocation2 + $0x148] sm:$0xff] %vm199, 0
      %232 = vst.msk [vmem:[#allocation2 + $0x160] sm:$0xff] %vm199, 0
      %233 = vst.msk [vmem:[#allocation2 + $0x178] sm:$0xff] %vm199, 0
      %234 = vst.msk [vmem:[#allocation2 + $0x190] sm:$0xff] %vm199, 0
      %235 = vst.msk [vmem:[#allocation2 + $0x1a8] sm:$0xff] %vm199, 0
      %236 = vst.msk [vmem:[#allocation2 + $0x8] sm:$0xff] %vm199, 0
      %s237 = scalar_lea.vmem [#allocation2], 408
      %238 = vst.msk [vmem:[%s237 + $0x8] sm:$0xff] %vm199, 0
      %v239 = vld [vmem:[%s1] sm:$0xf]
      %v240 = vld [vmem:[%s1 + $0x4] sm:$0xf]
      %v241 = vld [vmem:[%s1 + $0x8] sm:$0xf]
      %s242 = scalar_lea.vmem %s1, 12
      %v243 = vld [vmem:[%s242] sm:$0xf]
      %v244 = vld [vmem:[%s242 + $0x4] sm:$0xf]
      %v245 = vld [vmem:[%s242 + $0x8] sm:$0xf]
      %s246 = scalar_lea.vmem %s1, 24
      %v247 = vld [vmem:[%s246] sm:$0xf]
      %v248 = vld [vmem:[%s246 + $0x4] sm:$0xf]
      %v249 = vld [vmem:[%s246 + $0x8] sm:$0xf]
      %v250 = vld [vmem:[%s2] sm:$0x1]
      %v251 = vld [vmem:[%s3] sm:$0x1]
      %v252 = vld [vmem:[%s192] sm:$0xf]
      %v253 = vld [vmem:[%s192 + $0x4] sm:$0xf]
      %v254 = vld [vmem:[%s192 + $0x8] sm:$0xf]
      %v255 = vld [vmem:[%s192 + $0xc] sm:$0xf]
      %v256 = vld [vmem:[%s192 + $0x10] sm:$0xf]
      %v257 = vld [vmem:[%s192 + $0x14] sm:$0xf]
      %v258 = vld [vmem:[%s192 + $0x18] sm:$0xf]
      %v259 = vld [vmem:[%s192 + $0x1c] sm:$0xf]
      %v260 = vld [vmem:[%s192 + $0x20] sm:$0xf]
      %v261 = vld [vmem:[%s192 + $0x24] sm:$0xf]
      %v262 = vld [vmem:[%s192 + $0x28] sm:$0xf]
      %v263 = vld [vmem:[%s192 + $0x2c] sm:$0xf]
      %v264 = vld [vmem:[%s192 + $0x30] sm:$0xf]
      %v265 = vld [vmem:[%s192 + $0x34] sm:$0xf]
      %v266 = vld [vmem:[%s192 + $0x38] sm:$0xf]
      %v267 = vld [vmem:[%s192 + $0x3c] sm:$0xf]
      %v268 = vld [vmem:[%s192 + $0x40] sm:$0xf]
      %v269 = vld [vmem:[%s192 + $0x44] sm:$0xf]
      %v270 = vld [vmem:[%s192 + $0x48] sm:$0xf]
      %v271 = vld [vmem:[%s192 + $0x4c] sm:$0xf]
      %v272 = vld [vmem:[%s192 + $0x50] sm:$0xf]
      %v273 = vld [vmem:[%s192 + $0x54] sm:$0xf]
      %v274 = vld [vmem:[%s192 + $0x58] sm:$0xf]
      %v275 = vld [vmem:[%s192 + $0x5c] sm:$0xf]
      %v276 = vld [vmem:[%s192 + $0x60] sm:$0xf]
      %v277 = vld [vmem:[%s192 + $0x64] sm:$0xf]
      %v278 = vld [vmem:[%s192 + $0x68] sm:$0xf]
      %v279 = vld [vmem:[%s192 + $0x6c] sm:$0xf]
      %v280 = vld [vmem:[%s192 + $0x70] sm:$0xf]
      %v281 = vld [vmem:[%s192 + $0x74] sm:$0xf]
      %v282 = vld [vmem:[%s192 + $0x78] sm:$0xf]
      %v283 = vld [vmem:[%s192 + $0x7c] sm:$0xf]
      %v284 = vunpack.c.l.bf16 %v252
      %v285 = vunpack.c.l.bf16 %v253
      %v286 = vunpack.c.l.bf16 %v254
      %v287 = vunpack.c.l.bf16 %v255
      %v288 = vunpack.c.l.bf16 %v256
      %v289 = vunpack.c.l.bf16 %v257
      %v290 = vunpack.c.l.bf16 %v258
      %v291 = vunpack.c.l.bf16 %v259
      %v292 = vunpack.c.l.bf16 %v260
      %v293 = vunpack.c.l.bf16 %v261
      %v294 = vunpack.c.l.bf16 %v262
      %v295 = vunpack.c.l.bf16 %v263
      %v296 = vunpack.c.l.bf16 %v264
      %v297 = vunpack.c.l.bf16 %v265
      %v298 = vunpack.c.l.bf16 %v266
      %v299 = vunpack.c.l.bf16 %v267
      %v300 = vunpack.c.l.bf16 %v268
      %v301 = vunpack.c.l.bf16 %v269
      %v302 = vunpack.c.l.bf16 %v270
      %v303 = vunpack.c.l.bf16 %v271
      %v304 = vunpack.c.l.bf16 %v272
      %v305 = vunpack.c.l.bf16 %v273
      %v306 = vunpack.c.l.bf16 %v274
      %v307 = vunpack.c.l.bf16 %v275
      %v308 = vunpack.c.l.bf16 %v276
      %v309 = vunpack.c.l.bf16 %v277
      %v310 = vunpack.c.l.bf16 %v278
      %v311 = vunpack.c.l.bf16 %v279
      %v312 = vunpack.c.l.bf16 %v280
      %v313 = vunpack.c.l.bf16 %v281
      %v314 = vunpack.c.l.bf16 %v282
      %v315 = vunpack.c.l.bf16 %v283
      %v348 = vunpack.c.l.b16 %v252
      %v349 = vunpack.c.l.b16 %v253
      %v350 = vunpack.c.l.b16 %v254
      %v351 = vunpack.c.l.b16 %v255
      %v352 = vunpack.c.l.b16 %v256
      %v353 = vunpack.c.l.b16 %v257
      %v354 = vunpack.c.l.b16 %v258
      %v355 = vunpack.c.l.b16 %v259
      %v356 = vunpack.c.l.b16 %v260
      %v357 = vunpack.c.l.b16 %v261
      %v358 = vunpack.c.l.b16 %v262
      %v359 = vunpack.c.l.b16 %v263
      %v360 = vunpack.c.l.b16 %v264
      %v361 = vunpack.c.l.b16 %v265
      %v362 = vunpack.c.l.b16 %v266
      %v363 = vunpack.c.l.b16 %v267
      %v364 = vunpack.c.l.b16 %v268
      %v365 = vunpack.c.l.b16 %v269
      %v366 = vunpack.c.l.b16 %v270
      %v367 = vunpack.c.l.b16 %v271
      %v368 = vunpack.c.l.b16 %v272
      %v369 = vunpack.c.l.b16 %v273
      %v370 = vunpack.c.l.b16 %v274
      %v371 = vunpack.c.l.b16 %v275
      %v372 = vunpack.c.l.b16 %v276
      %v373 = vunpack.c.l.b16 %v277
      %v374 = vunpack.c.l.b16 %v278
      %v375 = vunpack.c.l.b16 %v279
      %v376 = vunpack.c.l.b16 %v280
      %v377 = vunpack.c.l.b16 %v281
      %v378 = vunpack.c.l.b16 %v282
      %v379 = vunpack.c.l.b16 %v283
      %v380 = vpack.c.b16 %v349, %v348
      %v381 = vpack.c.b16 %v351, %v350
      %v382 = vpack.c.b16 %v353, %v352
      %v383 = vpack.c.b16 %v355, %v354
      %v384 = vpack.c.b16 %v357, %v356
      %v385 = vpack.c.b16 %v359, %v358
      %v386 = vpack.c.b16 %v361, %v360
      %v387 = vpack.c.b16 %v363, %v362
      %v388 = vpack.c.b16 %v365, %v364
      %v389 = vpack.c.b16 %v367, %v366
      %v390 = vpack.c.b16 %v369, %v368
      %v391 = vpack.c.b16 %v371, %v370
      %v392 = vpack.c.b16 %v373, %v372
      %v393 = vpack.c.b16 %v375, %v374
      %v394 = vpack.c.b16 %v377, %v376
      %v395 = vpack.c.b16 %v379, %v378
      %s412 = scalar_lea.vmem [#allocation2], 24
      %413 = vst.msk [vmem:[%s412 + $0x8] sm:$0xff] %vm199, %v380
      %414 = vst.msk [vmem:[%s412 + $0x20] sm:$0xff] %vm199, %v381
      %415 = vst.msk [vmem:[%s412 + $0x38] sm:$0xff] %vm199, %v382
      %416 = vst.msk [vmem:[%s412 + $0x50] sm:$0xff] %vm199, %v383
      %417 = vst.msk [vmem:[%s412 + $0x68] sm:$0xff] %vm199, %v384
      %418 = vst.msk [vmem:[%s412 + $0x80] sm:$0xff] %vm199, %v385
      %419 = vst.msk [vmem:[%s412 + $0x98] sm:$0xff] %vm199, %v386
      %420 = vst.msk [vmem:[%s412 + $0xb0] sm:$0xff] %vm199, %v387
      %421 = vst.msk [vmem:[%s412 + $0xc8] sm:$0xff] %vm199, %v388
      %422 = vst.msk [vmem:[%s412 + $0xe0] sm:$0xff] %vm199, %v389
      %423 = vst.msk [vmem:[%s412 + $0xf8] sm:$0xff] %vm199, %v390
      %424 = vst.msk [vmem:[%s412 + $0x110] sm:$0xff] %vm199, %v391
      %425 = vst.msk [vmem:[%s412 + $0x128] sm:$0xff] %vm199, %v392
      %426 = vst.msk [vmem:[%s412 + $0x140] sm:$0xff] %vm199, %v393
      %427 = vst.msk [vmem:[%s412 + $0x158] sm:$0xff] %vm199, %v394
      %428 = vst.msk [vmem:[%s412 + $0x170] sm:$0xff] %vm199, %v395
      %v429 = vld [vmem:[#allocation2] sm:$0xff]
      %v430 = vld [vmem:[#allocation2 + $0x8] sm:$0xff]
      %v431 = vld [vmem:[#allocation2 + $0x10] sm:$0xff]
      %v432 = vld [vmem:[#allocation2 + $0x18] sm:$0xff]
      %v433 = vld [vmem:[#allocation2 + $0x20] sm:$0xff]
      %v434 = vld [vmem:[#allocation2 + $0x28] sm:$0xff]
      %v435 = vld [vmem:[#allocation2 + $0x30] sm:$0xff]
      %v436 = vld [vmem:[#allocation2 + $0x38] sm:$0xff]
      %v437 = vld [vmem:[#allocation2 + $0x40] sm:$0xff]
      %v438 = vld [vmem:[#allocation2 + $0x48] sm:$0xff]
      %v439 = vld [vmem:[#allocation2 + $0x50] sm:$0xff]
      %v440 = vld [vmem:[#allocation2 + $0x58] sm:$0xff]
      %v441 = vld [vmem:[#allocation2 + $0x60] sm:$0xff]
      %v442 = vld [vmem:[#allocation2 + $0x68] sm:$0xff]
      %v443 = vld [vmem:[#allocation2 + $0x70] sm:$0xff]
      %v444 = vld [vmem:[#allocation2 + $0x78] sm:$0xff]
      %v445 = vld [vmem:[#allocation2 + $0x80] sm:$0xff]
      %v446 = vld [vmem:[#allocation2 + $0x88] sm:$0xff]
      %v447 = vld [vmem:[#allocation2 + $0x90] sm:$0xff]
      %v448 = vld [vmem:[#allocation2 + $0x98] sm:$0xff]
      %v449 = vld [vmem:[#allocation2 + $0xa0] sm:$0xff]
      %v450 = vld [vmem:[#allocation2 + $0xa8] sm:$0xff]
      %v451 = vld [vmem:[#allocation2 + $0xb0] sm:$0xff]
      %v452 = vld [vmem:[#allocation2 + $0xb8] sm:$0xff]
      %v453 = vld [vmem:[#allocation2 + $0xc0] sm:$0xff]
      %v454 = vld [vmem:[#allocation2 + $0xc8] sm:$0xff]
      %v455 = vld [vmem:[#allocation2 + $0xd0] sm:$0xff]
      %v456 = vld [vmem:[#allocation2 + $0xd8] sm:$0xff]
      %v457 = vld [vmem:[#allocation2 + $0xe0] sm:$0xff]
      %v458 = vld [vmem:[#allocation2 + $0xe8] sm:$0xff]
      %v459 = vld [vmem:[#allocation2 + $0xf0] sm:$0xff]
      %v460 = vld [vmem:[#allocation2 + $0xf8] sm:$0xff]
      %v461 = vld [vmem:[#allocation2 + $0x100] sm:$0xff]
      %v462 = vld [vmem:[#allocation2 + $0x108] sm:$0xff]
      %v463 = vld [vmem:[#allocation2 + $0x110] sm:$0xff]
      %v464 = vld [vmem:[#allocation2 + $0x118] sm:$0xff]
      %v465 = vld [vmem:[#allocation2 + $0x120] sm:$0xff]
      %v466 = vld [vmem:[#allocation2 + $0x128] sm:$0xff]
      %v467 = vld [vmem:[#allocation2 + $0x130] sm:$0xff]
      %v468 = vld [vmem:[#allocation2 + $0x138] sm:$0xff]
      %v469 = vld [vmem:[#allocation2 + $0x140] sm:$0xff]
      %v470 = vld [vmem:[#allocation2 + $0x148] sm:$0xff]
      %v471 = vld [vmem:[#allocation2 + $0x150] sm:$0xff]
      %v472 = vld [vmem:[#allocation2 + $0x158] sm:$0xff]
      %v473 = vld [vmem:[#allocation2 + $0x160] sm:$0xff]
      %v474 = vld [vmem:[#allocation2 + $0x168] sm:$0xff]
      %v475 = vld [vmem:[#allocation2 + $0x170] sm:$0xff]
      %v476 = vld [vmem:[#allocation2 + $0x178] sm:$0xff]
      %v478 = vshll.u32 %v430, 16
      %v480 = vrot.slane %v478, 1
      %v481 = vshrl.u32 %v430, 16
      %v483 = vor.u32 %v481, %v480
      %v485 = vshll.u32 %v433, 16
      %v487 = vrot.slane %v485, 1
      %v488 = vshrl.u32 %v433, 16
      %v490 = vor.u32 %v488, %v487
      %v492 = vshll.u32 %v436, 16
      %v494 = vrot.slane %v492, 1
      %v495 = vshrl.u32 %v436, 16
      %v497 = vor.u32 %v495, %v494
      %v499 = vshll.u32 %v439, 16
      %v501 = vrot.slane %v499, 1
      %v502 = vshrl.u32 %v439, 16
      %v504 = vor.u32 %v502, %v501
      %v506 = vshll.u32 %v442, 16
      %v508 = vrot.slane %v506, 1
      %v509 = vshrl.u32 %v442, 16
      %v511 = vor.u32 %v509, %v508
      %v513 = vshll.u32 %v445, 16
      %v515 = vrot.slane %v513, 1
      %v516 = vshrl.u32 %v445, 16
      %v518 = vor.u32 %v516, %v515
      %v520 = vshll.u32 %v448, 16
      %v522 = vrot.slane %v520, 1
      %v523 = vshrl.u32 %v448, 16
      %v525 = vor.u32 %v523, %v522
      %v527 = vshll.u32 %v451, 16
      %v529 = vrot.slane %v527, 1
      %v530 = vshrl.u32 %v451, 16
      %v532 = vor.u32 %v530, %v529
      %v534 = vshll.u32 %v454, 16
      %v536 = vrot.slane %v534, 1
      %v537 = vshrl.u32 %v454, 16
      %v539 = vor.u32 %v537, %v536
      %v541 = vshll.u32 %v457, 16
      %v543 = vrot.slane %v541, 1
      %v544 = vshrl.u32 %v457, 16
      %v546 = vor.u32 %v544, %v543
      %v548 = vshll.u32 %v460, 16
      %v550 = vrot.slane %v548, 1
      %v551 = vshrl.u32 %v460, 16
      %v553 = vor.u32 %v551, %v550
      %v555 = vshll.u32 %v463, 16
      %v557 = vrot.slane %v555, 1
      %v558 = vshrl.u32 %v463, 16
      %v560 = vor.u32 %v558, %v557
      %v562 = vshll.u32 %v466, 16
      %v564 = vrot.slane %v562, 1
      %v565 = vshrl.u32 %v466, 16
      %v567 = vor.u32 %v565, %v564
      %v569 = vshll.u32 %v469, 16
      %v571 = vrot.slane %v569, 1
      %v572 = vshrl.u32 %v469, 16
      %v574 = vor.u32 %v572, %v571
      %v576 = vshll.u32 %v472, 16
      %v578 = vrot.slane %v576, 1
      %v579 = vshrl.u32 %v472, 16
      %v581 = vor.u32 %v579, %v578
      %v583 = vshll.u32 %v475, 16
      %v585 = vrot.slane %v583, 1
      %v586 = vshrl.u32 %v475, 16
      %v588 = vor.u32 %v586, %v585
      %589 = vrot.lane.b32.xlu0 %v480, 8
      %v590 = vpop.permute.xlu0 %589
      %591 = vrot.lane.b32.xlu0 %v483, 8
      %v592 = vpop.permute.xlu0 %591
      %593 = vrot.lane.b32.xlu0 %v487, 8
      %v594 = vpop.permute.xlu0 %593
      %595 = vrot.lane.b32.xlu0 %v490, 8
      %v596 = vpop.permute.xlu0 %595
      %597 = vrot.lane.b32.xlu0 %v494, 8
      %v598 = vpop.permute.xlu0 %597
      %599 = vrot.lane.b32.xlu0 %v497, 8
      %v600 = vpop.permute.xlu0 %599
      %601 = vrot.lane.b32.xlu0 %v501, 8
      %v602 = vpop.permute.xlu0 %601
      %603 = vrot.lane.b32.xlu0 %v504, 8
      %v604 = vpop.permute.xlu0 %603
      %605 = vrot.lane.b32.xlu0 %v508, 8
      %v606 = vpop.permute.xlu0 %605
      %607 = vrot.lane.b32.xlu0 %v511, 8
      %v608 = vpop.permute.xlu0 %607
      %609 = vrot.lane.b32.xlu0 %v515, 8
      %v610 = vpop.permute.xlu0 %609
      %611 = vrot.lane.b32.xlu0 %v518, 8
      %v612 = vpop.permute.xlu0 %611
      %613 = vrot.lane.b32.xlu0 %v522, 8
      %v614 = vpop.permute.xlu0 %613
      %615 = vrot.lane.b32.xlu0 %v525, 8
      %v616 = vpop.permute.xlu0 %615
      %617 = vrot.lane.b32.xlu0 %v529, 8
      %v618 = vpop.permute.xlu0 %617
      %619 = vrot.lane.b32.xlu0 %v532, 8
      %v620 = vpop.permute.xlu0 %619
      %621 = vrot.lane.b32.xlu0 %v536, 8
      %v622 = vpop.permute.xlu0 %621
      %623 = vrot.lane.b32.xlu0 %v539, 8
      %v624 = vpop.permute.xlu0 %623
      %625 = vrot.lane.b32.xlu0 %v543, 8
      %v626 = vpop.permute.xlu0 %625
      %627 = vrot.lane.b32.xlu0 %v546, 8
      %v628 = vpop.permute.xlu0 %627
      %629 = vrot.lane.b32.xlu0 %v550, 8
      %v630 = vpop.permute.xlu0 %629
      %631 = vrot.lane.b32.xlu0 %v553, 8
      %v632 = vpop.permute.xlu0 %631
      %633 = vrot.lane.b32.xlu0 %v557, 8
      %v634 = vpop.permute.xlu0 %633
      %635 = vrot.lane.b32.xlu0 %v560, 8
      %v636 = vpop.permute.xlu0 %635
      %637 = vrot.lane.b32.xlu0 %v564, 8
      %v638 = vpop.permute.xlu0 %637
      %639 = vrot.lane.b32.xlu0 %v567, 8
      %v640 = vpop.permute.xlu0 %639
      %641 = vrot.lane.b32.xlu0 %v571, 8
      %v642 = vpop.permute.xlu0 %641
      %643 = vrot.lane.b32.xlu0 %v574, 8
      %v644 = vpop.permute.xlu0 %643
      %645 = vrot.lane.b32.xlu0 %v578, 8
      %v646 = vpop.permute.xlu0 %645
      %647 = vrot.lane.b32.xlu0 %v581, 8
      %v648 = vpop.permute.xlu0 %647
      %649 = vrot.lane.b32.xlu0 %v585, 8
      %v650 = vpop.permute.xlu0 %649
      %651 = vrot.lane.b32.xlu0 %v588, 8
      %v652 = vpop.permute.xlu0 %651
      %vm685 = vcmask 1046528
      %v686 = vrot.slane %v430, 1
      %v687 = vrot.slane %v431, 1
      %v688 = vsel %vm685, %v686, %v687
      %v689 = vrot.slane %v433, 1
      %v690 = vrot.slane %v434, 1
      %v691 = vsel %vm685, %v689, %v690
      %v692 = vrot.slane %v436, 1
      %v693 = vrot.slane %v437, 1
      %v694 = vsel %vm685, %v692, %v693
      %v695 = vrot.slane %v439, 1
      %v696 = vrot.slane %v440, 1
      %v697 = vsel %vm685, %v695, %v696
      %v698 = vrot.slane %v442, 1
      %v699 = vrot.slane %v443, 1
      %v700 = vsel %vm685, %v698, %v699
      %v701 = vrot.slane %v445, 1
      %v702 = vrot.slane %v446, 1
      %v703 = vsel %vm685, %v701, %v702
      %v704 = vrot.slane %v448, 1
      %v705 = vrot.slane %v449, 1
      %v706 = vsel %vm685, %v704, %v705
      %v707 = vrot.slane %v451, 1
      %v708 = vrot.slane %v452, 1
      %v709 = vsel %vm685, %v707, %v708
      %v710 = vrot.slane %v454, 1
      %v711 = vrot.slane %v455, 1
      %v712 = vsel %vm685, %v710, %v711
      %v713 = vrot.slane %v457, 1
      %v714 = vrot.slane %v458, 1
      %v715 = vsel %vm685, %v713, %v714
      %v716 = vrot.slane %v460, 1
      %v717 = vrot.slane %v461, 1
      %v718 = vsel %vm685, %v716, %v717
      %v719 = vrot.slane %v463, 1
      %v720 = vrot.slane %v464, 1
      %v721 = vsel %vm685, %v719, %v720
      %v722 = vrot.slane %v466, 1
      %v723 = vrot.slane %v467, 1
      %v724 = vsel %vm685, %v722, %v723
      %v725 = vrot.slane %v469, 1
      %v726 = vrot.slane %v470, 1
      %v727 = vsel %vm685, %v725, %v726
      %v728 = vrot.slane %v472, 1
      %v729 = vrot.slane %v473, 1
      %v730 = vsel %vm685, %v728, %v729
      %v731 = vrot.slane %v475, 1
      %v732 = vrot.slane %v476, 1
      %v733 = vsel %vm685, %v731, %v732
      %734 = vrot.lane.b32.xlu0 %v686, 16
      %v735 = vpop.permute.xlu0 %734
      %736 = vrot.lane.b32.xlu0 %v688, 16
      %v737 = vpop.permute.xlu0 %736
      %738 = vrot.lane.b32.xlu0 %v689, 16
      %v739 = vpop.permute.xlu0 %738
      %740 = vrot.lane.b32.xlu0 %v691, 16
      %v741 = vpop.permute.xlu0 %740
      %742 = vrot.lane.b32.xlu0 %v692, 16
      %v743 = vpop.permute.xlu0 %742
      %744 = vrot.lane.b32.xlu0 %v694, 16
      %v745 = vpop.permute.xlu0 %744
      %746 = vrot.lane.b32.xlu0 %v695, 16
      %v747 = vpop.permute.xlu0 %746
      %748 = vrot.lane.b32.xlu0 %v697, 16
      %v749 = vpop.permute.xlu0 %748
      %750 = vrot.lane.b32.xlu0 %v698, 16
      %v751 = vpop.permute.xlu0 %750
      %752 = vrot.lane.b32.xlu0 %v700, 16
      %v753 = vpop.permute.xlu0 %752
      %754 = vrot.lane.b32.xlu0 %v701, 16
      %v755 = vpop.permute.xlu0 %754
      %756 = vrot.lane.b32.xlu0 %v703, 16
      %v757 = vpop.permute.xlu0 %756
      %758 = vrot.lane.b32.xlu0 %v704, 16
      %v759 = vpop.permute.xlu0 %758
      %760 = vrot.lane.b32.xlu0 %v706, 16
      %v761 = vpop.permute.xlu0 %760
      %762 = vrot.lane.b32.xlu0 %v707, 16
      %v763 = vpop.permute.xlu0 %762
      %764 = vrot.lane.b32.xlu0 %v709, 16
      %v765 = vpop.permute.xlu0 %764
      %766 = vrot.lane.b32.xlu0 %v710, 16
      %v767 = vpop.permute.xlu0 %766
      %768 = vrot.lane.b32.xlu0 %v712, 16
      %v769 = vpop.permute.xlu0 %768
      %770 = vrot.lane.b32.xlu0 %v713, 16
      %v771 = vpop.permute.xlu0 %770
      %772 = vrot.lane.b32.xlu0 %v715, 16
      %v773 = vpop.permute.xlu0 %772
      %774 = vrot.lane.b32.xlu0 %v716, 16
      %v775 = vpop.permute.xlu0 %774
      %776 = vrot.lane.b32.xlu0 %v718, 16
      %v777 = vpop.permute.xlu0 %776
      %778 = vrot.lane.b32.xlu0 %v719, 16
      %v779 = vpop.permute.xlu0 %778
      %780 = vrot.lane.b32.xlu0 %v721, 16
      %v781 = vpop.permute.xlu0 %780
      %782 = vrot.lane.b32.xlu0 %v722, 16
      %v783 = vpop.permute.xlu0 %782
      %784 = vrot.lane.b32.xlu0 %v724, 16
      %v785 = vpop.permute.xlu0 %784
      %786 = vrot.lane.b32.xlu0 %v725, 16
      %v787 = vpop.permute.xlu0 %786
      %788 = vrot.lane.b32.xlu0 %v727, 16
      %v789 = vpop.permute.xlu0 %788
      %790 = vrot.lane.b32.xlu0 %v728, 16
      %v791 = vpop.permute.xlu0 %790
      %792 = vrot.lane.b32.xlu0 %v730, 16
      %v793 = vpop.permute.xlu0 %792
      %794 = vrot.lane.b32.xlu0 %v731, 16
      %v795 = vpop.permute.xlu0 %794
      %796 = vrot.lane.b32.xlu0 %v733, 16
      %v797 = vpop.permute.xlu0 %796
      %v800 = vsel %vm199, %v429, %v590
      %v802 = vsel %vm199, %v430, %v592
      %v805 = vsel %vm199, %v432, %v594
      %v807 = vsel %vm199, %v433, %v596
      %v810 = vsel %vm199, %v435, %v598
      %v812 = vsel %vm199, %v436, %v600
      %v815 = vsel %vm199, %v438, %v602
      %v817 = vsel %vm199, %v439, %v604
      %v820 = vsel %vm199, %v441, %v606
      %v822 = vsel %vm199, %v442, %v608
      %v825 = vsel %vm199, %v444, %v610
      %v827 = vsel %vm199, %v445, %v612
      %v830 = vsel %vm199, %v447, %v614
      %v832 = vsel %vm199, %v448, %v616
      %v835 = vsel %vm199, %v450, %v618
      %v837 = vsel %vm199, %v451, %v620
      %v840 = vsel %vm199, %v453, %v622
      %v842 = vsel %vm199, %v454, %v624
      %v845 = vsel %vm199, %v456, %v626
      %v847 = vsel %vm199, %v457, %v628
      %v850 = vsel %vm199, %v459, %v630
      %v852 = vsel %vm199, %v460, %v632
      %v855 = vsel %vm199, %v462, %v634
      %v857 = vsel %vm199, %v463, %v636
      %v860 = vsel %vm199, %v465, %v638
      %v862 = vsel %vm199, %v466, %v640
      %v865 = vsel %vm199, %v468, %v642
      %v867 = vsel %vm199, %v469, %v644
      %v870 = vsel %vm199, %v471, %v646
      %v872 = vsel %vm199, %v472, %v648
      %v875 = vsel %vm199, %v474, %v650
      %v877 = vsel %vm199, %v475, %v652
      %vm878 = vcmask 130048
      %v880 = vsel %vm878, %v800, %v735
      %v882 = vsel %vm878, %v802, %v737
      %v884 = vsel %vm878, %v805, %v739
      %v886 = vsel %vm878, %v807, %v741
      %v888 = vsel %vm878, %v810, %v743
      %v890 = vsel %vm878, %v812, %v745
      %v892 = vsel %vm878, %v815, %v747
      %v894 = vsel %vm878, %v817, %v749
      %v896 = vsel %vm878, %v820, %v751
      %v898 = vsel %vm878, %v822, %v753
      %v900 = vsel %vm878, %v825, %v755
      %v902 = vsel %vm878, %v827, %v757
      %v904 = vsel %vm878, %v830, %v759
      %v906 = vsel %vm878, %v832, %v761
      %v908 = vsel %vm878, %v835, %v763
      %v910 = vsel %vm878, %v837, %v765
      %v912 = vsel %vm878, %v840, %v767
      %v914 = vsel %vm878, %v842, %v769
      %v916 = vsel %vm878, %v845, %v771
      %v918 = vsel %vm878, %v847, %v773
      %v920 = vsel %vm878, %v850, %v775
      %v922 = vsel %vm878, %v852, %v777
      %v924 = vsel %vm878, %v855, %v779
      %v926 = vsel %vm878, %v857, %v781
      %v928 = vsel %vm878, %v860, %v783
      %v930 = vsel %vm878, %v862, %v785
      %v932 = vsel %vm878, %v865, %v787
      %v934 = vsel %vm878, %v867, %v789
      %v936 = vsel %vm878, %v870, %v791
      %v938 = vsel %vm878, %v872, %v793
      %v940 = vsel %vm878, %v875, %v795
      %v942 = vsel %vm878, %v877, %v797
      %vm943 = vsmask.f32 256
      %v944 = vshrl.u32 %v880, 16
      %v946 = vrot.slane %v944, 7
      %v947 = vshrl.u32 %v882, 16
      %v949 = vrot.slane %v947, 7
      %v950 = vshll.u32 %v882, 16
      %v952 = vor.u32 %v949, %v950
      %v953 = vsel %vm943, %v946, %v952
      %v954 = vshrl.u32 %v884, 16
      %v956 = vrot.slane %v954, 7
      %v957 = vshrl.u32 %v886, 16
      %v959 = vrot.slane %v957, 7
      %v960 = vshll.u32 %v886, 16
      %v962 = vor.u32 %v959, %v960
      %v963 = vsel %vm943, %v956, %v962
      %v964 = vshrl.u32 %v888, 16
      %v966 = vrot.slane %v964, 7
      %v967 = vshrl.u32 %v890, 16
      %v969 = vrot.slane %v967, 7
      %v970 = vshll.u32 %v890, 16
      %v972 = vor.u32 %v969, %v970
      %v973 = vsel %vm943, %v966, %v972
      %v974 = vshrl.u32 %v892, 16
      %v976 = vrot.slane %v974, 7
      %v977 = vshrl.u32 %v894, 16
      %v979 = vrot.slane %v977, 7
      %v980 = vshll.u32 %v894, 16
      %v982 = vor.u32 %v979, %v980
      %v983 = vsel %vm943, %v976, %v982
      %v984 = vshrl.u32 %v896, 16
      %v986 = vrot.slane %v984, 7
      %v987 = vshrl.u32 %v898, 16
      %v989 = vrot.slane %v987, 7
      %v990 = vshll.u32 %v898, 16
      %v992 = vor.u32 %v989, %v990
      %v993 = vsel %vm943, %v986, %v992
      %v994 = vshrl.u32 %v900, 16
      %v996 = vrot.slane %v994, 7
      %v997 = vshrl.u32 %v902, 16
      %v999 = vrot.slane %v997, 7
      %v1000 = vshll.u32 %v902, 16
      %v1002 = vor.u32 %v999, %v1000
      %v1003 = vsel %vm943, %v996, %v1002
      %v1004 = vshrl.u32 %v904, 16
      %v1006 = vrot.slane %v1004, 7
      %v1007 = vshrl.u32 %v906, 16
      %v1009 = vrot.slane %v1007, 7
      %v1010 = vshll.u32 %v906, 16
      %v1012 = vor.u32 %v1009, %v1010
      %v1013 = vsel %vm943, %v1006, %v1012
      %v1014 = vshrl.u32 %v908, 16
      %v1016 = vrot.slane %v1014, 7
      %v1017 = vshrl.u32 %v910, 16
      %v1019 = vrot.slane %v1017, 7
      %v1020 = vshll.u32 %v910, 16
      %v1022 = vor.u32 %v1019, %v1020
      %v1023 = vsel %vm943, %v1016, %v1022
      %v1024 = vshrl.u32 %v912, 16
      %v1026 = vrot.slane %v1024, 7
      %v1027 = vshrl.u32 %v914, 16
      %v1029 = vrot.slane %v1027, 7
      %v1030 = vshll.u32 %v914, 16
      %v1032 = vor.u32 %v1029, %v1030
      %v1033 = vsel %vm943, %v1026, %v1032
      %v1034 = vshrl.u32 %v916, 16
      %v1036 = vrot.slane %v1034, 7
      %v1037 = vshrl.u32 %v918, 16
      %v1039 = vrot.slane %v1037, 7
      %v1040 = vshll.u32 %v918, 16
      %v1042 = vor.u32 %v1039, %v1040
      %v1043 = vsel %vm943, %v1036, %v1042
      %v1044 = vshrl.u32 %v920, 16
      %v1046 = vrot.slane %v1044, 7
      %v1047 = vshrl.u32 %v922, 16
      %v1049 = vrot.slane %v1047, 7
      %v1050 = vshll.u32 %v922, 16
      %v1052 = vor.u32 %v1049, %v1050
      %v1053 = vsel %vm943, %v1046, %v1052
      %v1054 = vshrl.u32 %v924, 16
      %v1056 = vrot.slane %v1054, 7
      %v1057 = vshrl.u32 %v926, 16
      %v1059 = vrot.slane %v1057, 7
      %v1060 = vshll.u32 %v926, 16
      %v1062 = vor.u32 %v1059, %v1060
      %v1063 = vsel %vm943, %v1056, %v1062
      %v1064 = vshrl.u32 %v928, 16
      %v1066 = vrot.slane %v1064, 7
      %v1067 = vshrl.u32 %v930, 16
      %v1069 = vrot.slane %v1067, 7
      %v1070 = vshll.u32 %v930, 16
      %v1072 = vor.u32 %v1069, %v1070
      %v1073 = vsel %vm943, %v1066, %v1072
      %v1074 = vshrl.u32 %v932, 16
      %v1076 = vrot.slane %v1074, 7
      %v1077 = vshrl.u32 %v934, 16
      %v1079 = vrot.slane %v1077, 7
      %v1080 = vshll.u32 %v934, 16
      %v1082 = vor.u32 %v1079, %v1080
      %v1083 = vsel %vm943, %v1076, %v1082
      %v1084 = vshrl.u32 %v936, 16
      %v1086 = vrot.slane %v1084, 7
      %v1087 = vshrl.u32 %v938, 16
      %v1089 = vrot.slane %v1087, 7
      %v1090 = vshll.u32 %v938, 16
      %v1092 = vor.u32 %v1089, %v1090
      %v1093 = vsel %vm943, %v1086, %v1092
      %v1094 = vshrl.u32 %v940, 16
      %v1096 = vrot.slane %v1094, 7
      %v1097 = vshrl.u32 %v942, 16
      %v1099 = vrot.slane %v1097, 7
      %v1100 = vshll.u32 %v942, 16
      %v1102 = vor.u32 %v1099, %v1100
      %v1103 = vsel %vm943, %v1096, %v1102
      %v1104 = vld [vmem:[%s412] sm:$0xff]
      %v1105 = vld [vmem:[%s412 + $0x8] sm:$0xff]
      %v1106 = vld [vmem:[%s412 + $0x10] sm:$0xff]
      %v1107 = vld [vmem:[%s412 + $0x18] sm:$0xff]
      %v1108 = vld [vmem:[%s412 + $0x20] sm:$0xff]
      %v1109 = vld [vmem:[%s412 + $0x28] sm:$0xff]
      %v1110 = vld [vmem:[%s412 + $0x30] sm:$0xff]
      %v1111 = vld [vmem:[%s412 + $0x38] sm:$0xff]
      %v1112 = vld [vmem:[%s412 + $0x40] sm:$0xff]
      %v1113 = vld [vmem:[%s412 + $0x48] sm:$0xff]
      %v1114 = vld [vmem:[%s412 + $0x50] sm:$0xff]
      %v1115 = vld [vmem:[%s412 + $0x58] sm:$0xff]
      %v1116 = vld [vmem:[%s412 + $0x60] sm:$0xff]
      %v1117 = vld [vmem:[%s412 + $0x68] sm:$0xff]
      %v1118 = vld [vmem:[%s412 + $0x70] sm:$0xff]
      %v1119 = vld [vmem:[%s412 + $0x78] sm:$0xff]
      %v1120 = vld [vmem:[%s412 + $0x80] sm:$0xff]
      %v1121 = vld [vmem:[%s412 + $0x88] sm:$0xff]
      %v1122 = vld [vmem:[%s412 + $0x90] sm:$0xff]
      %v1123 = vld [vmem:[%s412 + $0x98] sm:$0xff]
      %v1124 = vld [vmem:[%s412 + $0xa0] sm:$0xff]
      %v1125 = vld [vmem:[%s412 + $0xa8] sm:$0xff]
      %v1126 = vld [vmem:[%s412 + $0xb0] sm:$0xff]
      %v1127 = vld [vmem:[%s412 + $0xb8] sm:$0xff]
      %v1128 = vld [vmem:[%s412 + $0xc0] sm:$0xff]
      %v1129 = vld [vmem:[%s412 + $0xc8] sm:$0xff]
      %v1130 = vld [vmem:[%s412 + $0xd0] sm:$0xff]
      %v1131 = vld [vmem:[%s412 + $0xd8] sm:$0xff]
      %v1132 = vld [vmem:[%s412 + $0xe0] sm:$0xff]
      %v1133 = vld [vmem:[%s412 + $0xe8] sm:$0xff]
      %v1134 = vld [vmem:[%s412 + $0xf0] sm:$0xff]
      %v1135 = vld [vmem:[%s412 + $0xf8] sm:$0xff]
      %v1136 = vld [vmem:[%s412 + $0x100] sm:$0xff]
      %v1137 = vld [vmem:[%s412 + $0x108] sm:$0xff]
      %v1138 = vld [vmem:[%s412 + $0x110] sm:$0xff]
      %v1139 = vld [vmem:[%s412 + $0x118] sm:$0xff]
      %v1140 = vld [vmem:[%s412 + $0x120] sm:$0xff]
      %v1141 = vld [vmem:[%s412 + $0x128] sm:$0xff]
      %v1142 = vld [vmem:[%s412 + $0x130] sm:$0xff]
      %v1143 = vld [vmem:[%s412 + $0x138] sm:$0xff]
      %v1144 = vld [vmem:[%s412 + $0x140] sm:$0xff]
      %v1145 = vld [vmem:[%s412 + $0x148] sm:$0xff]
      %v1146 = vld [vmem:[%s412 + $0x150] sm:$0xff]
      %v1147 = vld [vmem:[%s412 + $0x158] sm:$0xff]
      %v1148 = vld [vmem:[%s412 + $0x160] sm:$0xff]
      %v1149 = vld [vmem:[%s412 + $0x168] sm:$0xff]
      %v1150 = vld [vmem:[%s412 + $0x170] sm:$0xff]
      %v1151 = vld [vmem:[%s412 + $0x178] sm:$0xff]
      %v1153 = vshll.u32 %v1105, 16
      %v1155 = vrot.slane %v1153, 1
      %v1156 = vshrl.u32 %v1105, 16
      %v1158 = vor.u32 %v1156, %v1155
      %v1160 = vshll.u32 %v1108, 16
      %v1162 = vrot.slane %v1160, 1
      %v1163 = vshrl.u32 %v1108, 16
      %v1165 = vor.u32 %v1163, %v1162
      %v1167 = vshll.u32 %v1111, 16
      %v1169 = vrot.slane %v1167, 1
      %v1170 = vshrl.u32 %v1111, 16
      %v1172 = vor.u32 %v1170, %v1169
      %v1174 = vshll.u32 %v1114, 16
      %v1176 = vrot.slane %v1174, 1
      %v1177 = vshrl.u32 %v1114, 16
      %v1179 = vor.u32 %v1177, %v1176
      %v1181 = vshll.u32 %v1117, 16
      %v1183 = vrot.slane %v1181, 1
      %v1184 = vshrl.u32 %v1117, 16
      %v1186 = vor.u32 %v1184, %v1183
      %v1188 = vshll.u32 %v1120, 16
      %v1190 = vrot.slane %v1188, 1
      %v1191 = vshrl.u32 %v1120, 16
      %v1193 = vor.u32 %v1191, %v1190
      %v1195 = vshll.u32 %v1123, 16
      %v1197 = vrot.slane %v1195, 1
      %v1198 = vshrl.u32 %v1123, 16
      %v1200 = vor.u32 %v1198, %v1197
      %v1202 = vshll.u32 %v1126, 16
      %v1204 = vrot.slane %v1202, 1
      %v1205 = vshrl.u32 %v1126, 16
      %v1207 = vor.u32 %v1205, %v1204
      %v1209 = vshll.u32 %v1129, 16
      %v1211 = vrot.slane %v1209, 1
      %v1212 = vshrl.u32 %v1129, 16
      %v1214 = vor.u32 %v1212, %v1211
      %v1216 = vshll.u32 %v1132, 16
      %v1218 = vrot.slane %v1216, 1
      %v1219 = vshrl.u32 %v1132, 16
      %v1221 = vor.u32 %v1219, %v1218
      %v1223 = vshll.u32 %v1135, 16
      %v1225 = vrot.slane %v1223, 1
      %v1226 = vshrl.u32 %v1135, 16
      %v1228 = vor.u32 %v1226, %v1225
      %v1230 = vshll.u32 %v1138, 16
      %v1232 = vrot.slane %v1230, 1
      %v1233 = vshrl.u32 %v1138, 16
      %v1235 = vor.u32 %v1233, %v1232
      %v1237 = vshll.u32 %v1141, 16
      %v1239 = vrot.slane %v1237, 1
      %v1240 = vshrl.u32 %v1141, 16
      %v1242 = vor.u32 %v1240, %v1239
      %v1244 = vshll.u32 %v1144, 16
      %v1246 = vrot.slane %v1244, 1
      %v1247 = vshrl.u32 %v1144, 16
      %v1249 = vor.u32 %v1247, %v1246
      %v1251 = vshll.u32 %v1147, 16
      %v1253 = vrot.slane %v1251, 1
      %v1254 = vshrl.u32 %v1147, 16
      %v1256 = vor.u32 %v1254, %v1253
      %v1258 = vshll.u32 %v1150, 16
      %v1260 = vrot.slane %v1258, 1
      %v1261 = vshrl.u32 %v1150, 16
      %v1263 = vor.u32 %v1261, %v1260
      %1264 = vrot.lane.b32.xlu0 %v1155, 8
      %v1265 = vpop.permute.xlu0 %1264
      %1266 = vrot.lane.b32.xlu0 %v1158, 8
      %v1267 = vpop.permute.xlu0 %1266
      %1268 = vrot.lane.b32.xlu0 %v1162, 8
      %v1269 = vpop.permute.xlu0 %1268
      %1270 = vrot.lane.b32.xlu0 %v1165, 8
      %v1271 = vpop.permute.xlu0 %1270
      %1272 = vrot.lane.b32.xlu0 %v1169, 8
      %v1273 = vpop.permute.xlu0 %1272
      %1274 = vrot.lane.b32.xlu0 %v1172, 8
      %v1275 = vpop.permute.xlu0 %1274
      %1276 = vrot.lane.b32.xlu0 %v1176, 8
      %v1277 = vpop.permute.xlu0 %1276
      %1278 = vrot.lane.b32.xlu0 %v1179, 8
      %v1279 = vpop.permute.xlu0 %1278
      %1280 = vrot.lane.b32.xlu0 %v1183, 8
      %v1281 = vpop.permute.xlu0 %1280
      %1282 = vrot.lane.b32.xlu0 %v1186, 8
      %v1283 = vpop.permute.xlu0 %1282
      %1284 = vrot.lane.b32.xlu0 %v1190, 8
      %v1285 = vpop.permute.xlu0 %1284
      %1286 = vrot.lane.b32.xlu0 %v1193, 8
      %v1287 = vpop.permute.xlu0 %1286
      %1288 = vrot.lane.b32.xlu0 %v1197, 8
      %v1289 = vpop.permute.xlu0 %1288
      %1290 = vrot.lane.b32.xlu0 %v1200, 8
      %v1291 = vpop.permute.xlu0 %1290
      %1292 = vrot.lane.b32.xlu0 %v1204, 8
      %v1293 = vpop.permute.xlu0 %1292
      %1294 = vrot.lane.b32.xlu0 %v1207, 8
      %v1295 = vpop.permute.xlu0 %1294
      %1296 = vrot.lane.b32.xlu0 %v1211, 8
      %v1297 = vpop.permute.xlu0 %1296
      %1298 = vrot.lane.b32.xlu0 %v1214, 8
      %v1299 = vpop.permute.xlu0 %1298
      %1300 = vrot.lane.b32.xlu0 %v1218, 8
      %v1301 = vpop.permute.xlu0 %1300
      %1302 = vrot.lane.b32.xlu0 %v1221, 8
      %v1303 = vpop.permute.xlu0 %1302
      %1304 = vrot.lane.b32.xlu0 %v1225, 8
      %v1305 = vpop.permute.xlu0 %1304
      %1306 = vrot.lane.b32.xlu0 %v1228, 8
      %v1307 = vpop.permute.xlu0 %1306
      %1308 = vrot.lane.b32.xlu0 %v1232, 8
      %v1309 = vpop.permute.xlu0 %1308
      %1310 = vrot.lane.b32.xlu0 %v1235, 8
      %v1311 = vpop.permute.xlu0 %1310
      %1312 = vrot.lane.b32.xlu0 %v1239, 8
      %v1313 = vpop.permute.xlu0 %1312
      %1314 = vrot.lane.b32.xlu0 %v1242, 8
      %v1315 = vpop.permute.xlu0 %1314
      %1316 = vrot.lane.b32.xlu0 %v1246, 8
      %v1317 = vpop.permute.xlu0 %1316
      %1318 = vrot.lane.b32.xlu0 %v1249, 8
      %v1319 = vpop.permute.xlu0 %1318
      %1320 = vrot.lane.b32.xlu0 %v1253, 8
      %v1321 = vpop.permute.xlu0 %1320
      %1322 = vrot.lane.b32.xlu0 %v1256, 8
      %v1323 = vpop.permute.xlu0 %1322
      %1324 = vrot.lane.b32.xlu0 %v1260, 8
      %v1325 = vpop.permute.xlu0 %1324
      %1326 = vrot.lane.b32.xlu0 %v1263, 8
      %v1327 = vpop.permute.xlu0 %1326
      %v1360 = vrot.slane %v1105, 1
      %v1361 = vrot.slane %v1106, 1
      %v1362 = vsel %vm685, %v1360, %v1361
      %v1363 = vrot.slane %v1108, 1
      %v1364 = vrot.slane %v1109, 1
      %v1365 = vsel %vm685, %v1363, %v1364
      %v1366 = vrot.slane %v1111, 1
      %v1367 = vrot.slane %v1112, 1
      %v1368 = vsel %vm685, %v1366, %v1367
      %v1369 = vrot.slane %v1114, 1
      %v1370 = vrot.slane %v1115, 1
      %v1371 = vsel %vm685, %v1369, %v1370
      %v1372 = vrot.slane %v1117, 1
      %v1373 = vrot.slane %v1118, 1
      %v1374 = vsel %vm685, %v1372, %v1373
      %v1375 = vrot.slane %v1120, 1
      %v1376 = vrot.slane %v1121, 1
      %v1377 = vsel %vm685, %v1375, %v1376
      %v1378 = vrot.slane %v1123, 1
      %v1379 = vrot.slane %v1124, 1
      %v1380 = vsel %vm685, %v1378, %v1379
      %v1381 = vrot.slane %v1126, 1
      %v1382 = vrot.slane %v1127, 1
      %v1383 = vsel %vm685, %v1381, %v1382
      %v1384 = vrot.slane %v1129, 1
      %v1385 = vrot.slane %v1130, 1
      %v1386 = vsel %vm685, %v1384, %v1385
      %v1387 = vrot.slane %v1132, 1
      %v1388 = vrot.slane %v1133, 1
      %v1389 = vsel %vm685, %v1387, %v1388
      %v1390 = vrot.slane %v1135, 1
      %v1391 = vrot.slane %v1136, 1
      %v1392 = vsel %vm685, %v1390, %v1391
      %v1393 = vrot.slane %v1138, 1
      %v1394 = vrot.slane %v1139, 1
      %v1395 = vsel %vm685, %v1393, %v1394
      %v1396 = vrot.slane %v1141, 1
      %v1397 = vrot.slane %v1142, 1
      %v1398 = vsel %vm685, %v1396, %v1397
      %v1399 = vrot.slane %v1144, 1
      %v1400 = vrot.slane %v1145, 1
      %v1401 = vsel %vm685, %v1399, %v1400
      %v1402 = vrot.slane %v1147, 1
      %v1403 = vrot.slane %v1148, 1
      %v1404 = vsel %vm685, %v1402, %v1403
      %v1405 = vrot.slane %v1150, 1
      %v1406 = vrot.slane %v1151, 1
      %v1407 = vsel %vm685, %v1405, %v1406
      %1408 = vrot.lane.b32.xlu0 %v1360, 16
      %v1409 = vpop.permute.xlu0 %1408
      %1410 = vrot.lane.b32.xlu0 %v1362, 16
      %v1411 = vpop.permute.xlu0 %1410
      %1412 = vrot.lane.b32.xlu0 %v1363, 16
      %v1413 = vpop.permute.xlu0 %1412
      %1414 = vrot.lane.b32.xlu0 %v1365, 16
      %v1415 = vpop.permute.xlu0 %1414
      %1416 = vrot.lane.b32.xlu0 %v1366, 16
      %v1417 = vpop.permute.xlu0 %1416
      %1418 = vrot.lane.b32.xlu0 %v1368, 16
      %v1419 = vpop.permute.xlu0 %1418
      %1420 = vrot.lane.b32.xlu0 %v1369, 16
      %v1421 = vpop.permute.xlu0 %1420
      %1422 = vrot.lane.b32.xlu0 %v1371, 16
      %v1423 = vpop.permute.xlu0 %1422
      %1424 = vrot.lane.b32.xlu0 %v1372, 16
      %v1425 = vpop.permute.xlu0 %1424
      %1426 = vrot.lane.b32.xlu0 %v1374, 16
      %v1427 = vpop.permute.xlu0 %1426
      %1428 = vrot.lane.b32.xlu0 %v1375, 16
      %v1429 = vpop.permute.xlu0 %1428
      %1430 = vrot.lane.b32.xlu0 %v1377, 16
      %v1431 = vpop.permute.xlu0 %1430
      %1432 = vrot.lane.b32.xlu0 %v1378, 16
      %v1433 = vpop.permute.xlu0 %1432
      %1434 = vrot.lane.b32.xlu0 %v1380, 16
      %v1435 = vpop.permute.xlu0 %1434
      %1436 = vrot.lane.b32.xlu0 %v1381, 16
      %v1437 = vpop.permute.xlu0 %1436
      %1438 = vrot.lane.b32.xlu0 %v1383, 16
      %v1439 = vpop.permute.xlu0 %1438
      %1440 = vrot.lane.b32.xlu0 %v1384, 16
      %v1441 = vpop.permute.xlu0 %1440
      %1442 = vrot.lane.b32.xlu0 %v1386, 16
      %v1443 = vpop.permute.xlu0 %1442
      %1444 = vrot.lane.b32.xlu0 %v1387, 16
      %v1445 = vpop.permute.xlu0 %1444
      %1446 = vrot.lane.b32.xlu0 %v1389, 16
      %v1447 = vpop.permute.xlu0 %1446
      %1448 = vrot.lane.b32.xlu0 %v1390, 16
      %v1449 = vpop.permute.xlu0 %1448
      %1450 = vrot.lane.b32.xlu0 %v1392, 16
      %v1451 = vpop.permute.xlu0 %1450
      %1452 = vrot.lane.b32.xlu0 %v1393, 16
      %v1453 = vpop.permute.xlu0 %1452
      %1454 = vrot.lane.b32.xlu0 %v1395, 16
      %v1455 = vpop.permute.xlu0 %1454
      %1456 = vrot.lane.b32.xlu0 %v1396, 16
      %v1457 = vpop.permute.xlu0 %1456
      %1458 = vrot.lane.b32.xlu0 %v1398, 16
      %v1459 = vpop.permute.xlu0 %1458
      %1460 = vrot.lane.b32.xlu0 %v1399, 16
      %v1461 = vpop.permute.xlu0 %1460
      %1462 = vrot.lane.b32.xlu0 %v1401, 16
      %v1463 = vpop.permute.xlu0 %1462
      %1464 = vrot.lane.b32.xlu0 %v1402, 16
      %v1465 = vpop.permute.xlu0 %1464
      %1466 = vrot.lane.b32.xlu0 %v1404, 16
      %v1467 = vpop.permute.xlu0 %1466
      %1468 = vrot.lane.b32.xlu0 %v1405, 16
      %v1469 = vpop.permute.xlu0 %1468
      %1470 = vrot.lane.b32.xlu0 %v1407, 16
      %v1471 = vpop.permute.xlu0 %1470
      %v1474 = vsel %vm199, %v1104, %v1265
      %v1476 = vsel %vm199, %v1105, %v1267
      %v1479 = vsel %vm199, %v1107, %v1269
      %v1481 = vsel %vm199, %v1108, %v1271
      %v1484 = vsel %vm199, %v1110, %v1273
      %v1486 = vsel %vm199, %v1111, %v1275
      %v1489 = vsel %vm199, %v1113, %v1277
      %v1491 = vsel %vm199, %v1114, %v1279
      %v1494 = vsel %vm199, %v1116, %v1281
      %v1496 = vsel %vm199, %v1117, %v1283
      %v1499 = vsel %vm199, %v1119, %v1285
      %v1501 = vsel %vm199, %v1120, %v1287
      %v1504 = vsel %vm199, %v1122, %v1289
      %v1506 = vsel %vm199, %v1123, %v1291
      %v1509 = vsel %vm199, %v1125, %v1293
      %v1511 = vsel %vm199, %v1126, %v1295
      %v1514 = vsel %vm199, %v1128, %v1297
      %v1516 = vsel %vm199, %v1129, %v1299
      %v1519 = vsel %vm199, %v1131, %v1301
      %v1521 = vsel %vm199, %v1132, %v1303
      %v1524 = vsel %vm199, %v1134, %v1305
      %v1526 = vsel %vm199, %v1135, %v1307
      %v1529 = vsel %vm199, %v1137, %v1309
      %v1531 = vsel %vm199, %v1138, %v1311
      %v1534 = vsel %vm199, %v1140, %v1313
      %v1536 = vsel %vm199, %v1141, %v1315
      %v1539 = vsel %vm199, %v1143, %v1317
      %v1541 = vsel %vm199, %v1144, %v1319
      %v1544 = vsel %vm199, %v1146, %v1321
      %v1546 = vsel %vm199, %v1147, %v1323
      %v1549 = vsel %vm199, %v1149, %v1325
      %v1551 = vsel %vm199, %v1150, %v1327
      %v1553 = vsel %vm878, %v1474, %v1409
      %v1555 = vsel %vm878, %v1476, %v1411
      %v1557 = vsel %vm878, %v1479, %v1413
      %v1559 = vsel %vm878, %v1481, %v1415
      %v1561 = vsel %vm878, %v1484, %v1417
      %v1563 = vsel %vm878, %v1486, %v1419
      %v1565 = vsel %vm878, %v1489, %v1421
      %v1567 = vsel %vm878, %v1491, %v1423
      %v1569 = vsel %vm878, %v1494, %v1425
      %v1571 = vsel %vm878, %v1496, %v1427
      %v1573 = vsel %vm878, %v1499, %v1429
      %v1575 = vsel %vm878, %v1501, %v1431
      %v1577 = vsel %vm878, %v1504, %v1433
      %v1579 = vsel %vm878, %v1506, %v1435
      %v1581 = vsel %vm878, %v1509, %v1437
      %v1583 = vsel %vm878, %v1511, %v1439
      %v1585 = vsel %vm878, %v1514, %v1441
      %v1587 = vsel %vm878, %v1516, %v1443
      %v1589 = vsel %vm878, %v1519, %v1445
      %v1591 = vsel %vm878, %v1521, %v1447
      %v1593 = vsel %vm878, %v1524, %v1449
      %v1595 = vsel %vm878, %v1526, %v1451
      %v1597 = vsel %vm878, %v1529, %v1453
      %v1599 = vsel %vm878, %v1531, %v1455
      %v1601 = vsel %vm878, %v1534, %v1457
      %v1603 = vsel %vm878, %v1536, %v1459
      %v1605 = vsel %vm878, %v1539, %v1461
      %v1607 = vsel %vm878, %v1541, %v1463
      %v1609 = vsel %vm878, %v1544, %v1465
      %v1611 = vsel %vm878, %v1546, %v1467
      %v1613 = vsel %vm878, %v1549, %v1469
      %v1615 = vsel %vm878, %v1551, %v1471
      %v1616 = vshrl.u32 %v1553, 16
      %v1618 = vrot.slane %v1616, 7
      %v1619 = vshrl.u32 %v1555, 16
      %v1621 = vrot.slane %v1619, 7
      %v1622 = vshll.u32 %v1555, 16
      %v1624 = vor.u32 %v1621, %v1622
      %v1625 = vsel %vm943, %v1618, %v1624
      %v1626 = vshrl.u32 %v1557, 16
      %v1628 = vrot.slane %v1626, 7
      %v1629 = vshrl.u32 %v1559, 16
      %v1631 = vrot.slane %v1629, 7
      %v1632 = vshll.u32 %v1559, 16
      %v1634 = vor.u32 %v1631, %v1632
      %v1635 = vsel %vm943, %v1628, %v1634
      %v1636 = vshrl.u32 %v1561, 16
      %v1638 = vrot.slane %v1636, 7
      %v1639 = vshrl.u32 %v1563, 16
      %v1641 = vrot.slane %v1639, 7
      %v1642 = vshll.u32 %v1563, 16
      %v1644 = vor.u32 %v1641, %v1642
      %v1645 = vsel %vm943, %v1638, %v1644
      %v1646 = vshrl.u32 %v1565, 16
      %v1648 = vrot.slane %v1646, 7
      %v1649 = vshrl.u32 %v1567, 16
      %v1651 = vrot.slane %v1649, 7
      %v1652 = vshll.u32 %v1567, 16
      %v1654 = vor.u32 %v1651, %v1652
      %v1655 = vsel %vm943, %v1648, %v1654
      %v1656 = vshrl.u32 %v1569, 16
      %v1658 = vrot.slane %v1656, 7
      %v1659 = vshrl.u32 %v1571, 16
      %v1661 = vrot.slane %v1659, 7
      %v1662 = vshll.u32 %v1571, 16
      %v1664 = vor.u32 %v1661, %v1662
      %v1665 = vsel %vm943, %v1658, %v1664
      %v1666 = vshrl.u32 %v1573, 16
      %v1668 = vrot.slane %v1666, 7
      %v1669 = vshrl.u32 %v1575, 16
      %v1671 = vrot.slane %v1669, 7
      %v1672 = vshll.u32 %v1575, 16
      %v1674 = vor.u32 %v1671, %v1672
      %v1675 = vsel %vm943, %v1668, %v1674
      %v1676 = vshrl.u32 %v1577, 16
      %v1678 = vrot.slane %v1676, 7
      %v1679 = vshrl.u32 %v1579, 16
      %v1681 = vrot.slane %v1679, 7
      %v1682 = vshll.u32 %v1579, 16
      %v1684 = vor.u32 %v1681, %v1682
      %v1685 = vsel %vm943, %v1678, %v1684
      %v1686 = vshrl.u32 %v1581, 16
      %v1688 = vrot.slane %v1686, 7
      %v1689 = vshrl.u32 %v1583, 16
      %v1691 = vrot.slane %v1689, 7
      %v1692 = vshll.u32 %v1583, 16
      %v1694 = vor.u32 %v1691, %v1692
      %v1695 = vsel %vm943, %v1688, %v1694
      %v1696 = vshrl.u32 %v1585, 16
      %v1698 = vrot.slane %v1696, 7
      %v1699 = vshrl.u32 %v1587, 16
      %v1701 = vrot.slane %v1699, 7
      %v1702 = vshll.u32 %v1587, 16
      %v1704 = vor.u32 %v1701, %v1702
      %v1705 = vsel %vm943, %v1698, %v1704
      %v1706 = vshrl.u32 %v1589, 16
      %v1708 = vrot.slane %v1706, 7
      %v1709 = vshrl.u32 %v1591, 16
      %v1711 = vrot.slane %v1709, 7
      %v1712 = vshll.u32 %v1591, 16
      %v1714 = vor.u32 %v1711, %v1712
      %v1715 = vsel %vm943, %v1708, %v1714
      %v1716 = vshrl.u32 %v1593, 16
      %v1718 = vrot.slane %v1716, 7
      %v1719 = vshrl.u32 %v1595, 16
      %v1721 = vrot.slane %v1719, 7
      %v1722 = vshll.u32 %v1595, 16
      %v1724 = vor.u32 %v1721, %v1722
      %v1725 = vsel %vm943, %v1718, %v1724
      %v1726 = vshrl.u32 %v1597, 16
      %v1728 = vrot.slane %v1726, 7
      %v1729 = vshrl.u32 %v1599, 16
      %v1731 = vrot.slane %v1729, 7
      %v1732 = vshll.u32 %v1599, 16
      %v1734 = vor.u32 %v1731, %v1732
      %v1735 = vsel %vm943, %v1728, %v1734
      %v1736 = vshrl.u32 %v1601, 16
      %v1738 = vrot.slane %v1736, 7
      %v1739 = vshrl.u32 %v1603, 16
      %v1741 = vrot.slane %v1739, 7
      %v1742 = vshll.u32 %v1603, 16
      %v1744 = vor.u32 %v1741, %v1742
      %v1745 = vsel %vm943, %v1738, %v1744
      %v1746 = vshrl.u32 %v1605, 16
      %v1748 = vrot.slane %v1746, 7
      %v1749 = vshrl.u32 %v1607, 16
      %v1751 = vrot.slane %v1749, 7
      %v1752 = vshll.u32 %v1607, 16
      %v1754 = vor.u32 %v1751, %v1752
      %v1755 = vsel %vm943, %v1748, %v1754
      %v1756 = vshrl.u32 %v1609, 16
      %v1758 = vrot.slane %v1756, 7
      %v1759 = vshrl.u32 %v1611, 16
      %v1761 = vrot.slane %v1759, 7
      %v1762 = vshll.u32 %v1611, 16
      %v1764 = vor.u32 %v1761, %v1762
      %v1765 = vsel %vm943, %v1758, %v1764
      %v1766 = vshrl.u32 %v1613, 16
      %v1768 = vrot.slane %v1766, 7
      %v1769 = vshrl.u32 %v1615, 16
      %v1771 = vrot.slane %v1769, 7
      %v1772 = vshll.u32 %v1615, 16
      %v1774 = vor.u32 %v1771, %v1772
      %v1775 = vsel %vm943, %v1768, %v1774
      %v1779 = vunpack.c.l.b16 %v243
      %v1780 = vunpack.c.l.b16 %v244
      %v1781 = vunpack.c.l.b16 %v245
      %v1782 = vpack.c.b16 %v1780, %v1779
      %v1783 = vpack.c.b16 %v1781, %v1781
      %vm1785 = vcmask 195584
      %v1787 = vsel %vm1785, %v1625, 0
      %v1790 = vsel %vm1785, %v1635, 0
      %v1793 = vsel %vm1785, %v1645, 0
      %v1796 = vsel %vm1785, %v1655, 0
      %v1799 = vsel %vm1785, %v1665, 0
      %v1802 = vsel %vm1785, %v1675, 0
      %v1805 = vsel %vm1785, %v1685, 0
      %v1808 = vsel %vm1785, %v1695, 0
      %v1811 = vsel %vm1785, %v1705, 0
      %v1814 = vsel %vm1785, %v1715, 0
      %v1817 = vsel %vm1785, %v1725, 0
      %v1820 = vsel %vm1785, %v1735, 0
      %v1823 = vsel %vm1785, %v1745, 0
      %v1826 = vsel %vm1785, %v1755, 0
      %v1829 = vsel %vm1785, %v1765, 0
      %v1832 = vsel %vm1785, %v1775, 0
      %vm1834 = vcmask 1043456
      %v1836 = vsel %vm1834, %v1783, 0
      %1838 = vmatprep.subr.bf16.mxu0 0
      %1839 = vmatpush1.bf16.msra.mxu0 %v1782
      %1840 = vmatprep.subr.bf16.mxu0 0
      %1841 = vmatpush1.bf16.msra.mxu0 %v1836
      %1842 = vmatprep.subr.bf16.mxu0 0
      %1843 = vmatpush1.bf16.msra.mxu0 0
      %1844 = vmatprep.subr.bf16.mxu0 0
      %1845 = vmatpush1.bf16.msra.mxu0 0
      %1846 = vmatprep.subr.bf16.mxu0 0
      %1847 = vmatpush1.bf16.msra.mxu0 0
      %1848 = vmatprep.subr.bf16.mxu0 0
      %1849 = vmatpush1.bf16.msra.mxu0 0
      %1850 = vmatprep.subr.bf16.mxu0 0
      %1851 = vmatpush1.bf16.msra.mxu0 0
      %1852 = vmatprep.subr.bf16.mxu0 0
      %1853 = vmatpush1.bf16.msra.mxu0 0
      %1854 = vmatprep.subr.bf16.mxu0 0
      %1855 = vmatpush1.bf16.msra.mxu0 0
      %1856 = vmatprep.subr.bf16.mxu0 0
      %1857 = vmatpush1.bf16.msra.mxu0 0
      %1858 = vmatprep.subr.bf16.mxu0 0
      %1859 = vmatpush1.bf16.msra.mxu0 0
      %1860 = vmatprep.subr.bf16.mxu0 0
      %1861 = vmatpush1.bf16.msra.mxu0 0
      %1862 = vmatprep.subr.bf16.mxu0 0
      %1863 = vmatpush1.bf16.msra.mxu0 0
      %1864 = vmatprep.subr.bf16.mxu0 0
      %1865 = vmatpush1.bf16.msra.mxu0 0
      %1866 = vmatprep.subr.bf16.mxu0 0
      %1867 = vmatpush1.bf16.msra.mxu0 0
      %1868 = vmatprep.subr.bf16.mxu0 0
      %1869 = vmatpush1.bf16.msra.mxu0 0
      %1870 = vmatprep.mubr.bf16.mxu0 0
      %1871 = vmatmul.mubr.bf16.gmra.mrb[0].mxu0 %v1787
      %v1872 = vpop.f32.mrb[0].mxu0
      %v1873 = vadd.f32 0.0, %v1872
      %v1874 = vpop.f32.mrb[0].mxu0
      %v1875 = vpop.f32.mrb[0].mxu0
      %v1876 = vadd.f32 0.0, %v1875
      %v1877 = vpop.f32.mrb[0].mxu0
      %1878 = vmatprep.mubr.bf16.mxu0 0
      %1879 = vmatmul.mubr.bf16.gmra.mrb[0].mxu0 %v1790
      %v1880 = vpop.f32.mrb[0].mxu0
      %v1881 = vadd.f32 0.0, %v1880
      %v1882 = vpop.f32.mrb[0].mxu0
      %v1883 = vpop.f32.mrb[0].mxu0
      %v1884 = vadd.f32 0.0, %v1883
      %v1885 = vpop.f32.mrb[0].mxu0
      %1886 = vmatprep.mubr.bf16.mxu0 0
      %1887 = vmatmul.mubr.bf16.gmra.mrb[0].mxu0 %v1793
      %v1888 = vpop.f32.mrb[0].mxu0
      %v1889 = vadd.f32 0.0, %v1888
      %v1890 = vpop.f32.mrb[0].mxu0
      %v1891 = vpop.f32.mrb[0].mxu0
      %v1892 = vadd.f32 0.0, %v1891
      %v1893 = vpop.f32.mrb[0].mxu0
      %1894 = vmatprep.mubr.bf16.mxu0 0
      %1895 = vmatmul.mubr.bf16.gmra.mrb[0].mxu0 %v1796
      %v1896 = vpop.f32.mrb[0].mxu0
      %v1897 = vadd.f32 0.0, %v1896
      %v1898 = vpop.f32.mrb[0].mxu0
      %v1899 = vpop.f32.mrb[0].mxu0
      %v1900 = vadd.f32 0.0, %v1899
      %v1901 = vpop.f32.mrb[0].mxu0
      %1902 = vmatprep.mubr.bf16.mxu0 0
      %1903 = vmatmul.mubr.bf16.gmra.mrb[0].mxu0 %v1799
      %v1904 = vpop.f32.mrb[0].mxu0
      %v1905 = vadd.f32 0.0, %v1904
      %v1906 = vpop.f32.mrb[0].mxu0
      %v1907 = vpop.f32.mrb[0].mxu0
      %v1908 = vadd.f32 0.0, %v1907
      %v1909 = vpop.f32.mrb[0].mxu0
      %1910 = vmatprep.mubr.bf16.mxu0 0
      %1911 = vmatmul.mubr.bf16.gmra.mrb[0].mxu0 %v1802
      %v1912 = vpop.f32.mrb[0].mxu0
      %v1913 = vadd.f32 0.0, %v1912
      %v1914 = vpop.f32.mrb[0].mxu0
      %v1915 = vpop.f32.mrb[0].mxu0
      %v1916 = vadd.f32 0.0, %v1915
      %v1917 = vpop.f32.mrb[0].mxu0
      %1918 = vmatprep.mubr.bf16.mxu0 0
      %1919 = vmatmul.mubr.bf16.gmra.mrb[0].mxu0 %v1805
      %v1920 = vpop.f32.mrb[0].mxu0
      %v1921 = vadd.f32 0.0, %v1920
      %v1922 = vpop.f32.mrb[0].mxu0
      %v1923 = vpop.f32.mrb[0].mxu0
      %v1924 = vadd.f32 0.0, %v1923
      %v1925 = vpop.f32.mrb[0].mxu0
      %1926 = vmatprep.mubr.bf16.mxu0 0
      %1927 = vmatmul.mubr.bf16.gmra.mrb[0].mxu0 %v1808
      %v1928 = vpop.f32.mrb[0].mxu0
      %v1929 = vadd.f32 0.0, %v1928
      %v1930 = vpop.f32.mrb[0].mxu0
      %v1931 = vpop.f32.mrb[0].mxu0
      %v1932 = vadd.f32 0.0, %v1931
      %v1933 = vpop.f32.mrb[0].mxu0
      %1934 = vmatprep.mubr.bf16.mxu0 0
      %1935 = vmatmul.mubr.bf16.gmra.mrb[0].mxu0 %v1811
      %v1936 = vpop.f32.mrb[0].mxu0
      %v1937 = vadd.f32 0.0, %v1936
      %v1938 = vpop.f32.mrb[0].mxu0
      %v1939 = vpop.f32.mrb[0].mxu0
      %v1940 = vadd.f32 0.0, %v1939
      %v1941 = vpop.f32.mrb[0].mxu0
      %1942 = vmatprep.mubr.bf16.mxu0 0
      %1943 = vmatmul.mubr.bf16.gmra.mrb[0].mxu0 %v1814
      %v1944 = vpop.f32.mrb[0].mxu0
      %v1945 = vadd.f32 0.0, %v1944
      %v1946 = vpop.f32.mrb[0].mxu0
      %v1947 = vpop.f32.mrb[0].mxu0
      %v1948 = vadd.f32 0.0, %v1947
      %v1949 = vpop.f32.mrb[0].mxu0
      %1950 = vmatprep.mubr.bf16.mxu0 0
      %1951 = vmatmul.mubr.bf16.gmra.mrb[0].mxu0 %v1817
      %v1952 = vpop.f32.mrb[0].mxu0
      %v1953 = vadd.f32 0.0, %v1952
      %v1954 = vpop.f32.mrb[0].mxu0
      %v1955 = vpop.f32.mrb[0].mxu0
      %v1956 = vadd.f32 0.0, %v1955
      %v1957 = vpop.f32.mrb[0].mxu0
      %1958 = vmatprep.mubr.bf16.mxu0 0
      %1959 = vmatmul.mubr.bf16.gmra.mrb[0].mxu0 %v1820
      %v1960 = vpop.f32.mrb[0].mxu0
      %v1961 = vadd.f32 0.0, %v1960
      %v1962 = vpop.f32.mrb[0].mxu0
      %v1963 = vpop.f32.mrb[0].mxu0
      %v1964 = vadd.f32 0.0, %v1963
      %v1965 = vpop.f32.mrb[0].mxu0
      %1966 = vmatprep.mubr.bf16.mxu0 0
      %1967 = vmatmul.mubr.bf16.gmra.mrb[0].mxu0 %v1823
      %v1968 = vpop.f32.mrb[0].mxu0
      %v1969 = vadd.f32 0.0, %v1968
      %v1970 = vpop.f32.mrb[0].mxu0
      %v1971 = vpop.f32.mrb[0].mxu0
      %v1972 = vadd.f32 0.0, %v1971
      %v1973 = vpop.f32.mrb[0].mxu0
      %1974 = vmatprep.mubr.bf16.mxu0 0
      %1975 = vmatmul.mubr.bf16.gmra.mrb[0].mxu0 %v1826
      %v1976 = vpop.f32.mrb[0].mxu0
      %v1977 = vadd.f32 0.0, %v1976
      %v1978 = vpop.f32.mrb[0].mxu0
      %v1979 = vpop.f32.mrb[0].mxu0
      %v1980 = vadd.f32 0.0, %v1979
      %v1981 = vpop.f32.mrb[0].mxu0
      %1982 = vmatprep.mubr.bf16.mxu0 0
      %1983 = vmatmul.mubr.bf16.gmra.mrb[0].mxu0 %v1829
      %v1984 = vpop.f32.mrb[0].mxu0
      %v1985 = vadd.f32 0.0, %v1984
      %v1986 = vpop.f32.mrb[0].mxu0
      %v1987 = vpop.f32.mrb[0].mxu0
      %v1988 = vadd.f32 0.0, %v1987
      %v1989 = vpop.f32.mrb[0].mxu0
      %1990 = vmatprep.mubr.bf16.mxu0 0
      %1991 = vmatmul.mubr.bf16.gmra.mrb[0].mxu0 %v1832
      %v1992 = vpop.f32.mrb[0].mxu0
      %v1993 = vadd.f32 0.0, %v1992
      %v1994 = vpop.f32.mrb[0].mxu0
      %v1995 = vpop.f32.mrb[0].mxu0
      %v1996 = vadd.f32 0.0, %v1995
      %v1997 = vpop.f32.mrb[0].mxu0
      %1998 = vdwg.mxu0
      %v2002 = vunpack.c.l.b16 %v239
      %v2003 = vunpack.c.l.b16 %v240
      %v2004 = vunpack.c.l.b16 %v241
      %v2005 = vpack.c.b16 %v2003, %v2002
      %v2006 = vpack.c.b16 %v2004, %v2004
      %v2009 = vsel %vm1785, %v953, 0
      %v2012 = vsel %vm1785, %v963, 0
      %v2015 = vsel %vm1785, %v973, 0
      %v2018 = vsel %vm1785, %v983, 0
      %v2021 = vsel %vm1785, %v993, 0
      %v2024 = vsel %vm1785, %v1003, 0
      %v2027 = vsel %vm1785, %v1013, 0
      %v2030 = vsel %vm1785, %v1023, 0
      %v2033 = vsel %vm1785, %v1033, 0
      %v2036 = vsel %vm1785, %v1043, 0
      %v2039 = vsel %vm1785, %v1053, 0
      %v2042 = vsel %vm1785, %v1063, 0
      %v2045 = vsel %vm1785, %v1073, 0
      %v2048 = vsel %vm1785, %v1083, 0
      %v2051 = vsel %vm1785, %v1093, 0
      %v2054 = vsel %vm1785, %v1103, 0
      %v2057 = vsel %vm1834, %v2006, 0
      %2059 = vmatprep.subr.bf16.mxu0 0
      %2060 = vmatpush1.bf16.msra.mxu0 %v2005
      %2061 = vmatprep.subr.bf16.mxu0 0
      %2062 = vmatpush1.bf16.msra.mxu0 %v2057
      %2063 = vmatprep.subr.bf16.mxu0 0
      %2064 = vmatpush1.bf16.msra.mxu0 0
      %2065 = vmatprep.subr.bf16.mxu0 0
      %2066 = vmatpush1.bf16.msra.mxu0 0
      %2067 = vmatprep.subr.bf16.mxu0 0
      %2068 = vmatpush1.bf16.msra.mxu0 0
      %2069 = vmatprep.subr.bf16.mxu0 0
      %2070 = vmatpush1.bf16.msra.mxu0 0
      %2071 = vmatprep.subr.bf16.mxu0 0
      %2072 = vmatpush1.bf16.msra.mxu0 0
      %2073 = vmatprep.subr.bf16.mxu0 0
      %2074 = vmatpush1.bf16.msra.mxu0 0
      %2075 = vmatprep.subr.bf16.mxu0 0
      %2076 = vmatpush1.bf16.msra.mxu0 0
      %2077 = vmatprep.subr.bf16.mxu0 0
      %2078 = vmatpush1.bf16.msra.mxu0 0
      %2079 = vmatprep.subr.bf16.mxu0 0
      %2080 = vmatpush1.bf16.msra.mxu0 0
      %2081 = vmatprep.subr.bf16.mxu0 0
      %2082 = vmatpush1.bf16.msra.mxu0 0
      %2083 = vmatprep.subr.bf16.mxu0 0
      %2084 = vmatpush1.bf16.msra.mxu0 0
      %2085 = vmatprep.subr.bf16.mxu0 0
      %2086 = vmatpush1.bf16.msra.mxu0 0
      %2087 = vmatprep.subr.bf16.mxu0 0
      %2088 = vmatpush1.bf16.msra.mxu0 0
      %2089 = vmatprep.subr.bf16.mxu0 0
      %2090 = vmatpush1.bf16.msra.mxu0 0
      %2091 = vmatprep.mubr.bf16.mxu0 0
      %2092 = vmatmul.mubr.bf16.gmra.mrb[0].mxu0 %v2009
      %v2093 = vpop.f32.mrb[0].mxu0
      %v2094 = vadd.f32 %v1873, %v2093
      %v2095 = vpop.f32.mrb[0].mxu0
      %v2096 = vpop.f32.mrb[0].mxu0
      %v2097 = vadd.f32 %v1876, %v2096
      %v2098 = vpop.f32.mrb[0].mxu0
      %2099 = vmatprep.mubr.bf16.mxu0 0
      %2100 = vmatmul.mubr.bf16.gmra.mrb[0].mxu0 %v2012
      %v2101 = vpop.f32.mrb[0].mxu0
      %v2102 = vadd.f32 %v1881, %v2101
      %v2103 = vpop.f32.mrb[0].mxu0
      %v2104 = vpop.f32.mrb[0].mxu0
      %v2105 = vadd.f32 %v1884, %v2104
      %v2106 = vpop.f32.mrb[0].mxu0
      %2107 = vmatprep.mubr.bf16.mxu0 0
      %2108 = vmatmul.mubr.bf16.gmra.mrb[0].mxu0 %v2015
      %v2109 = vpop.f32.mrb[0].mxu0
      %v2110 = vadd.f32 %v1889, %v2109
      %v2111 = vpop.f32.mrb[0].mxu0
      %v2112 = vpop.f32.mrb[0].mxu0
      %v2113 = vadd.f32 %v1892, %v2112
      %v2114 = vpop.f32.mrb[0].mxu0
      %2115 = vmatprep.mubr.bf16.mxu0 0
      %2116 = vmatmul.mubr.bf16.gmra.mrb[0].mxu0 %v2018
      %v2117 = vpop.f32.mrb[0].mxu0
      %v2118 = vadd.f32 %v1897, %v2117
      %v2119 = vpop.f32.mrb[0].mxu0
      %v2120 = vpop.f32.mrb[0].mxu0
      %v2121 = vadd.f32 %v1900, %v2120
      %v2122 = vpop.f32.mrb[0].mxu0
      %2123 = vmatprep.mubr.bf16.mxu0 0
      %2124 = vmatmul.mubr.bf16.gmra.mrb[0].mxu0 %v2021
      %v2125 = vpop.f32.mrb[0].mxu0
      %v2126 = vadd.f32 %v1905, %v2125
      %v2127 = vpop.f32.mrb[0].mxu0
      %v2128 = vpop.f32.mrb[0].mxu0
      %v2129 = vadd.f32 %v1908, %v2128
      %v2130 = vpop.f32.mrb[0].mxu0
      %2131 = vmatprep.mubr.bf16.mxu0 0
      %2132 = vmatmul.mubr.bf16.gmra.mrb[0].mxu0 %v2024
      %v2133 = vpop.f32.mrb[0].mxu0
      %v2134 = vadd.f32 %v1913, %v2133
      %v2135 = vpop.f32.mrb[0].mxu0
      %v2136 = vpop.f32.mrb[0].mxu0
      %v2137 = vadd.f32 %v1916, %v2136
      %v2138 = vpop.f32.mrb[0].mxu0
      %2139 = vmatprep.mubr.bf16.mxu0 0
      %2140 = vmatmul.mubr.bf16.gmra.mrb[0].mxu0 %v2027
      %v2141 = vpop.f32.mrb[0].mxu0
      %v2142 = vadd.f32 %v1921, %v2141
      %v2143 = vpop.f32.mrb[0].mxu0
      %v2144 = vpop.f32.mrb[0].mxu0
      %v2145 = vadd.f32 %v1924, %v2144
      %v2146 = vpop.f32.mrb[0].mxu0
      %2147 = vmatprep.mubr.bf16.mxu0 0
      %2148 = vmatmul.mubr.bf16.gmra.mrb[0].mxu0 %v2030
      %v2149 = vpop.f32.mrb[0].mxu0
      %v2150 = vadd.f32 %v1929, %v2149
      %v2151 = vpop.f32.mrb[0].mxu0
      %v2152 = vpop.f32.mrb[0].mxu0
      %v2153 = vadd.f32 %v1932, %v2152
      %v2154 = vpop.f32.mrb[0].mxu0
      %2155 = vmatprep.mubr.bf16.mxu0 0
      %2156 = vmatmul.mubr.bf16.gmra.mrb[0].mxu0 %v2033
      %v2157 = vpop.f32.mrb[0].mxu0
      %v2158 = vadd.f32 %v1937, %v2157
      %v2159 = vpop.f32.mrb[0].mxu0
      %v2160 = vpop.f32.mrb[0].mxu0
      %v2161 = vadd.f32 %v1940, %v2160
      %v2162 = vpop.f32.mrb[0].mxu0
      %2163 = vmatprep.mubr.bf16.mxu0 0
      %2164 = vmatmul.mubr.bf16.gmra.mrb[0].mxu0 %v2036
      %v2165 = vpop.f32.mrb[0].mxu0
      %v2166 = vadd.f32 %v1945, %v2165
      %v2167 = vpop.f32.mrb[0].mxu0
      %v2168 = vpop.f32.mrb[0].mxu0
      %v2169 = vadd.f32 %v1948, %v2168
      %v2170 = vpop.f32.mrb[0].mxu0
      %2171 = vmatprep.mubr.bf16.mxu0 0
      %2172 = vmatmul.mubr.bf16.gmra.mrb[0].mxu0 %v2039
      %v2173 = vpop.f32.mrb[0].mxu0
      %v2174 = vadd.f32 %v1953, %v2173
      %v2175 = vpop.f32.mrb[0].mxu0
      %v2176 = vpop.f32.mrb[0].mxu0
      %v2177 = vadd.f32 %v1956, %v2176
      %v2178 = vpop.f32.mrb[0].mxu0
      %2179 = vmatprep.mubr.bf16.mxu0 0
      %2180 = vmatmul.mubr.bf16.gmra.mrb[0].mxu0 %v2042
      %v2181 = vpop.f32.mrb[0].mxu0
      %v2182 = vadd.f32 %v1961, %v2181
      %v2183 = vpop.f32.mrb[0].mxu0
      %v2184 = vpop.f32.mrb[0].mxu0
      %v2185 = vadd.f32 %v1964, %v2184
      %v2186 = vpop.f32.mrb[0].mxu0
      %2187 = vmatprep.mubr.bf16.mxu0 0
      %2188 = vmatmul.mubr.bf16.gmra.mrb[0].mxu0 %v2045
      %v2189 = vpop.f32.mrb[0].mxu0
      %v2190 = vadd.f32 %v1969, %v2189
      %v2191 = vpop.f32.mrb[0].mxu0
      %v2192 = vpop.f32.mrb[0].mxu0
      %v2193 = vadd.f32 %v1972, %v2192
      %v2194 = vpop.f32.mrb[0].mxu0
      %2195 = vmatprep.mubr.bf16.mxu0 0
      %2196 = vmatmul.mubr.bf16.gmra.mrb[0].mxu0 %v2048
      %v2197 = vpop.f32.mrb[0].mxu0
      %v2198 = vadd.f32 %v1977, %v2197
      %v2199 = vpop.f32.mrb[0].mxu0
      %v2200 = vpop.f32.mrb[0].mxu0
      %v2201 = vadd.f32 %v1980, %v2200
      %v2202 = vpop.f32.mrb[0].mxu0
      %2203 = vmatprep.mubr.bf16.mxu0 0
      %2204 = vmatmul.mubr.bf16.gmra.mrb[0].mxu0 %v2051
      %v2205 = vpop.f32.mrb[0].mxu0
      %v2206 = vadd.f32 %v1985, %v2205
      %v2207 = vpop.f32.mrb[0].mxu0
      %v2208 = vpop.f32.mrb[0].mxu0
      %v2209 = vadd.f32 %v1988, %v2208
      %v2210 = vpop.f32.mrb[0].mxu0
      %2211 = vmatprep.mubr.bf16.mxu0 0
      %2212 = vmatmul.mubr.bf16.gmra.mrb[0].mxu0 %v2054
      %v2213 = vpop.f32.mrb[0].mxu0
      %v2214 = vadd.f32 %v1993, %v2213
      %v2215 = vpop.f32.mrb[0].mxu0
      %v2216 = vpop.f32.mrb[0].mxu0
      %v2217 = vadd.f32 %v1996, %v2216
      %v2218 = vpop.f32.mrb[0].mxu0
      %2219 = vdwg.mxu0
      %s2220 = scalar_lea.vmem [#allocation2], 48
      %v2221 = vld [vmem:[%s2220] sm:$0xff]
      %v2222 = vld [vmem:[%s2220 + $0x8] sm:$0xff]
      %v2223 = vld [vmem:[%s2220 + $0x10] sm:$0xff]
      %v2224 = vld [vmem:[%s2220 + $0x18] sm:$0xff]
      %v2225 = vld [vmem:[%s2220 + $0x20] sm:$0xff]
      %v2226 = vld [vmem:[%s2220 + $0x28] sm:$0xff]
      %v2227 = vld [vmem:[%s2220 + $0x30] sm:$0xff]
      %v2228 = vld [vmem:[%s2220 + $0x38] sm:$0xff]
      %v2229 = vld [vmem:[%s2220 + $0x40] sm:$0xff]
      %v2230 = vld [vmem:[%s2220 + $0x48] sm:$0xff]
      %v2231 = vld [vmem:[%s2220 + $0x50] sm:$0xff]
      %v2232 = vld [vmem:[%s2220 + $0x58] sm:$0xff]
      %v2233 = vld [vmem:[%s2220 + $0x60] sm:$0xff]
      %v2234 = vld [vmem:[%s2220 + $0x68] sm:$0xff]
      %v2235 = vld [vmem:[%s2220 + $0x70] sm:$0xff]
      %v2236 = vld [vmem:[%s2220 + $0x78] sm:$0xff]
      %v2237 = vld [vmem:[%s2220 + $0x80] sm:$0xff]
      %v2238 = vld [vmem:[%s2220 + $0x88] sm:$0xff]
      %v2239 = vld [vmem:[%s2220 + $0x90] sm:$0xff]
      %v2240 = vld [vmem:[%s2220 + $0x98] sm:$0xff]
      %v2241 = vld [vmem:[%s2220 + $0xa0] sm:$0xff]
      %v2242 = vld [vmem:[%s2220 + $0xa8] sm:$0xff]
      %v2243 = vld [vmem:[%s2220 + $0xb0] sm:$0xff]
      %v2244 = vld [vmem:[%s2220 + $0xb8] sm:$0xff]
      %v2245 = vld [vmem:[%s2220 + $0xc0] sm:$0xff]
      %v2246 = vld [vmem:[%s2220 + $0xc8] sm:$0xff]
      %v2247 = vld [vmem:[%s2220 + $0xd0] sm:$0xff]
      %v2248 = vld [vmem:[%s2220 + $0xd8] sm:$0xff]
      %v2249 = vld [vmem:[%s2220 + $0xe0] sm:$0xff]
      %v2250 = vld [vmem:[%s2220 + $0xe8] sm:$0xff]
      %v2251 = vld [vmem:[%s2220 + $0xf0] sm:$0xff]
      %v2252 = vld [vmem:[%s2220 + $0xf8] sm:$0xff]
      %v2253 = vld [vmem:[%s2220 + $0x100] sm:$0xff]
      %v2254 = vld [vmem:[%s2220 + $0x108] sm:$0xff]
      %v2255 = vld [vmem:[%s2220 + $0x110] sm:$0xff]
      %v2256 = vld [vmem:[%s2220 + $0x118] sm:$0xff]
      %v2257 = vld [vmem:[%s2220 + $0x120] sm:$0xff]
      %v2258 = vld [vmem:[%s2220 + $0x128] sm:$0xff]
      %v2259 = vld [vmem:[%s2220 + $0x130] sm:$0xff]
      %v2260 = vld [vmem:[%s2220 + $0x138] sm:$0xff]
      %v2261 = vld [vmem:[%s2220 + $0x140] sm:$0xff]
      %v2262 = vld [vmem:[%s2220 + $0x148] sm:$0xff]
      %v2263 = vld [vmem:[%s2220 + $0x150] sm:$0xff]
      %v2264 = vld [vmem:[%s2220 + $0x158] sm:$0xff]
      %v2265 = vld [vmem:[%s2220 + $0x160] sm:$0xff]
      %v2266 = vld [vmem:[%s2220 + $0x168] sm:$0xff]
      %v2267 = vld [vmem:[%s2220 + $0x170] sm:$0xff]
      %v2268 = vld [vmem:[%s2220 + $0x178] sm:$0xff]
      %v2270 = vshll.u32 %v2222, 16
      %v2272 = vrot.slane %v2270, 1
      %v2273 = vshrl.u32 %v2222, 16
      %v2275 = vor.u32 %v2273, %v2272
      %v2277 = vshll.u32 %v2225, 16
      %v2279 = vrot.slane %v2277, 1
      %v2280 = vshrl.u32 %v2225, 16
      %v2282 = vor.u32 %v2280, %v2279
      %v2284 = vshll.u32 %v2228, 16
      %v2286 = vrot.slane %v2284, 1
      %v2287 = vshrl.u32 %v2228, 16
      %v2289 = vor.u32 %v2287, %v2286
      %v2291 = vshll.u32 %v2231, 16
      %v2293 = vrot.slane %v2291, 1
      %v2294 = vshrl.u32 %v2231, 16
      %v2296 = vor.u32 %v2294, %v2293
      %v2298 = vshll.u32 %v2234, 16
      %v2300 = vrot.slane %v2298, 1
      %v2301 = vshrl.u32 %v2234, 16
      %v2303 = vor.u32 %v2301, %v2300
      %v2305 = vshll.u32 %v2237, 16
      %v2307 = vrot.slane %v2305, 1
      %v2308 = vshrl.u32 %v2237, 16
      %v2310 = vor.u32 %v2308, %v2307
      %v2312 = vshll.u32 %v2240, 16
      %v2314 = vrot.slane %v2312, 1
      %v2315 = vshrl.u32 %v2240, 16
      %v2317 = vor.u32 %v2315, %v2314
      %v2319 = vshll.u32 %v2243, 16
      %v2321 = vrot.slane %v2319, 1
      %v2322 = vshrl.u32 %v2243, 16
      %v2324 = vor.u32 %v2322, %v2321
      %v2326 = vshll.u32 %v2246, 16
      %v2328 = vrot.slane %v2326, 1
      %v2329 = vshrl.u32 %v2246, 16
      %v2331 = vor.u32 %v2329, %v2328
      %v2333 = vshll.u32 %v2249, 16
      %v2335 = vrot.slane %v2333, 1
      %v2336 = vshrl.u32 %v2249, 16
      %v2338 = vor.u32 %v2336, %v2335
      %v2340 = vshll.u32 %v2252, 16
      %v2342 = vrot.slane %v2340, 1
      %v2343 = vshrl.u32 %v2252, 16
      %v2345 = vor.u32 %v2343, %v2342
      %v2347 = vshll.u32 %v2255, 16
      %v2349 = vrot.slane %v2347, 1
      %v2350 = vshrl.u32 %v2255, 16
      %v2352 = vor.u32 %v2350, %v2349
      %v2354 = vshll.u32 %v2258, 16
      %v2356 = vrot.slane %v2354, 1
      %v2357 = vshrl.u32 %v2258, 16
      %v2359 = vor.u32 %v2357, %v2356
      %v2361 = vshll.u32 %v2261, 16
      %v2363 = vrot.slane %v2361, 1
      %v2364 = vshrl.u32 %v2261, 16
      %v2366 = vor.u32 %v2364, %v2363
      %v2368 = vshll.u32 %v2264, 16
      %v2370 = vrot.slane %v2368, 1
      %v2371 = vshrl.u32 %v2264, 16
      %v2373 = vor.u32 %v2371, %v2370
      %v2375 = vshll.u32 %v2267, 16
      %v2377 = vrot.slane %v2375, 1
      %v2378 = vshrl.u32 %v2267, 16
      %v2380 = vor.u32 %v2378, %v2377
      %2381 = vrot.lane.b32.xlu0 %v2272, 8
      %v2382 = vpop.permute.xlu0 %2381
      %2383 = vrot.lane.b32.xlu0 %v2275, 8
      %v2384 = vpop.permute.xlu0 %2383
      %2385 = vrot.lane.b32.xlu0 %v2279, 8
      %v2386 = vpop.permute.xlu0 %2385
      %2387 = vrot.lane.b32.xlu0 %v2282, 8
      %v2388 = vpop.permute.xlu0 %2387
      %2389 = vrot.lane.b32.xlu0 %v2286, 8
      %v2390 = vpop.permute.xlu0 %2389
      %2391 = vrot.lane.b32.xlu0 %v2289, 8
      %v2392 = vpop.permute.xlu0 %2391
      %2393 = vrot.lane.b32.xlu0 %v2293, 8
      %v2394 = vpop.permute.xlu0 %2393
      %2395 = vrot.lane.b32.xlu0 %v2296, 8
      %v2396 = vpop.permute.xlu0 %2395
      %2397 = vrot.lane.b32.xlu0 %v2300, 8
      %v2398 = vpop.permute.xlu0 %2397
      %2399 = vrot.lane.b32.xlu0 %v2303, 8
      %v2400 = vpop.permute.xlu0 %2399
      %2401 = vrot.lane.b32.xlu0 %v2307, 8
      %v2402 = vpop.permute.xlu0 %2401
      %2403 = vrot.lane.b32.xlu0 %v2310, 8
      %v2404 = vpop.permute.xlu0 %2403
      %2405 = vrot.lane.b32.xlu0 %v2314, 8
      %v2406 = vpop.permute.xlu0 %2405
      %2407 = vrot.lane.b32.xlu0 %v2317, 8
      %v2408 = vpop.permute.xlu0 %2407
      %2409 = vrot.lane.b32.xlu0 %v2321, 8
      %v2410 = vpop.permute.xlu0 %2409
      %2411 = vrot.lane.b32.xlu0 %v2324, 8
      %v2412 = vpop.permute.xlu0 %2411
      %2413 = vrot.lane.b32.xlu0 %v2328, 8
      %v2414 = vpop.permute.xlu0 %2413
      %2415 = vrot.lane.b32.xlu0 %v2331, 8
      %v2416 = vpop.permute.xlu0 %2415
      %2417 = vrot.lane.b32.xlu0 %v2335, 8
      %v2418 = vpop.permute.xlu0 %2417
      %2419 = vrot.lane.b32.xlu0 %v2338, 8
      %v2420 = vpop.permute.xlu0 %2419
      %2421 = vrot.lane.b32.xlu0 %v2342, 8
      %v2422 = vpop.permute.xlu0 %2421
      %2423 = vrot.lane.b32.xlu0 %v2345, 8
      %v2424 = vpop.permute.xlu0 %2423
      %2425 = vrot.lane.b32.xlu0 %v2349, 8
      %v2426 = vpop.permute.xlu0 %2425
      %2427 = vrot.lane.b32.xlu0 %v2352, 8
      %v2428 = vpop.permute.xlu0 %2427
      %2429 = vrot.lane.b32.xlu0 %v2356, 8
      %v2430 = vpop.permute.xlu0 %2429
      %2431 = vrot.lane.b32.xlu0 %v2359, 8
      %v2432 = vpop.permute.xlu0 %2431
      %2433 = vrot.lane.b32.xlu0 %v2363, 8
      %v2434 = vpop.permute.xlu0 %2433
      %2435 = vrot.lane.b32.xlu0 %v2366, 8
      %v2436 = vpop.permute.xlu0 %2435
      %2437 = vrot.lane.b32.xlu0 %v2370, 8
      %v2438 = vpop.permute.xlu0 %2437
      %2439 = vrot.lane.b32.xlu0 %v2373, 8
      %v2440 = vpop.permute.xlu0 %2439
      %2441 = vrot.lane.b32.xlu0 %v2377, 8
      %v2442 = vpop.permute.xlu0 %2441
      %2443 = vrot.lane.b32.xlu0 %v2380, 8
      %v2444 = vpop.permute.xlu0 %2443
      %v2477 = vrot.slane %v2222, 1
      %v2478 = vrot.slane %v2223, 1
      %v2479 = vsel %vm685, %v2477, %v2478
      %v2480 = vrot.slane %v2225, 1
      %v2481 = vrot.slane %v2226, 1
      %v2482 = vsel %vm685, %v2480, %v2481
      %v2483 = vrot.slane %v2228, 1
      %v2484 = vrot.slane %v2229, 1
      %v2485 = vsel %vm685, %v2483, %v2484
      %v2486 = vrot.slane %v2231, 1
      %v2487 = vrot.slane %v2232, 1
      %v2488 = vsel %vm685, %v2486, %v2487
      %v2489 = vrot.slane %v2234, 1
      %v2490 = vrot.slane %v2235, 1
      %v2491 = vsel %vm685, %v2489, %v2490
      %v2492 = vrot.slane %v2237, 1
      %v2493 = vrot.slane %v2238, 1
      %v2494 = vsel %vm685, %v2492, %v2493
      %v2495 = vrot.slane %v2240, 1
      %v2496 = vrot.slane %v2241, 1
      %v2497 = vsel %vm685, %v2495, %v2496
      %v2498 = vrot.slane %v2243, 1
      %v2499 = vrot.slane %v2244, 1
      %v2500 = vsel %vm685, %v2498, %v2499
      %v2501 = vrot.slane %v2246, 1
      %v2502 = vrot.slane %v2247, 1
      %v2503 = vsel %vm685, %v2501, %v2502
      %v2504 = vrot.slane %v2249, 1
      %v2505 = vrot.slane %v2250, 1
      %v2506 = vsel %vm685, %v2504, %v2505
      %v2507 = vrot.slane %v2252, 1
      %v2508 = vrot.slane %v2253, 1
      %v2509 = vsel %vm685, %v2507, %v2508
      %v2510 = vrot.slane %v2255, 1
      %v2511 = vrot.slane %v2256, 1
      %v2512 = vsel %vm685, %v2510, %v2511
      %v2513 = vrot.slane %v2258, 1
      %v2514 = vrot.slane %v2259, 1
      %v2515 = vsel %vm685, %v2513, %v2514
      %v2516 = vrot.slane %v2261, 1
      %v2517 = vrot.slane %v2262, 1
      %v2518 = vsel %vm685, %v2516, %v2517
      %v2519 = vrot.slane %v2264, 1
      %v2520 = vrot.slane %v2265, 1
      %v2521 = vsel %vm685, %v2519, %v2520
      %v2522 = vrot.slane %v2267, 1
      %v2523 = vrot.slane %v2268, 1
      %v2524 = vsel %vm685, %v2522, %v2523
      %2525 = vrot.lane.b32.xlu0 %v2477, 16
      %v2526 = vpop.permute.xlu0 %2525
      %2527 = vrot.lane.b32.xlu0 %v2479, 16
      %v2528 = vpop.permute.xlu0 %2527
      %2529 = vrot.lane.b32.xlu0 %v2480, 16
      %v2530 = vpop.permute.xlu0 %2529
      %2531 = vrot.lane.b32.xlu0 %v2482, 16
      %v2532 = vpop.permute.xlu0 %2531
      %2533 = vrot.lane.b32.xlu0 %v2483, 16
      %v2534 = vpop.permute.xlu0 %2533
      %2535 = vrot.lane.b32.xlu0 %v2485, 16
      %v2536 = vpop.permute.xlu0 %2535
      %2537 = vrot.lane.b32.xlu0 %v2486, 16
      %v2538 = vpop.permute.xlu0 %2537
      %2539 = vrot.lane.b32.xlu0 %v2488, 16
      %v2540 = vpop.permute.xlu0 %2539
      %2541 = vrot.lane.b32.xlu0 %v2489, 16
      %v2542 = vpop.permute.xlu0 %2541
      %2543 = vrot.lane.b32.xlu0 %v2491, 16
      %v2544 = vpop.permute.xlu0 %2543
      %2545 = vrot.lane.b32.xlu0 %v2492, 16
      %v2546 = vpop.permute.xlu0 %2545
      %2547 = vrot.lane.b32.xlu0 %v2494, 16
      %v2548 = vpop.permute.xlu0 %2547
      %2549 = vrot.lane.b32.xlu0 %v2495, 16
      %v2550 = vpop.permute.xlu0 %2549
      %2551 = vrot.lane.b32.xlu0 %v2497, 16
      %v2552 = vpop.permute.xlu0 %2551
      %2553 = vrot.lane.b32.xlu0 %v2498, 16
      %v2554 = vpop.permute.xlu0 %2553
      %2555 = vrot.lane.b32.xlu0 %v2500, 16
      %v2556 = vpop.permute.xlu0 %2555
      %2557 = vrot.lane.b32.xlu0 %v2501, 16
      %v2558 = vpop.permute.xlu0 %2557
      %2559 = vrot.lane.b32.xlu0 %v2503, 16
      %v2560 = vpop.permute.xlu0 %2559
      %2561 = vrot.lane.b32.xlu0 %v2504, 16
      %v2562 = vpop.permute.xlu0 %2561
      %2563 = vrot.lane.b32.xlu0 %v2506, 16
      %v2564 = vpop.permute.xlu0 %2563
      %2565 = vrot.lane.b32.xlu0 %v2507, 16
      %v2566 = vpop.permute.xlu0 %2565
      %2567 = vrot.lane.b32.xlu0 %v2509, 16
      %v2568 = vpop.permute.xlu0 %2567
      %2569 = vrot.lane.b32.xlu0 %v2510, 16
      %v2570 = vpop.permute.xlu0 %2569
      %2571 = vrot.lane.b32.xlu0 %v2512, 16
      %v2572 = vpop.permute.xlu0 %2571
      %2573 = vrot.lane.b32.xlu0 %v2513, 16
      %v2574 = vpop.permute.xlu0 %2573
      %2575 = vrot.lane.b32.xlu0 %v2515, 16
      %v2576 = vpop.permute.xlu0 %2575
      %2577 = vrot.lane.b32.xlu0 %v2516, 16
      %v2578 = vpop.permute.xlu0 %2577
      %2579 = vrot.lane.b32.xlu0 %v2518, 16
      %v2580 = vpop.permute.xlu0 %2579
      %2581 = vrot.lane.b32.xlu0 %v2519, 16
      %v2582 = vpop.permute.xlu0 %2581
      %2583 = vrot.lane.b32.xlu0 %v2521, 16
      %v2584 = vpop.permute.xlu0 %2583
      %2585 = vrot.lane.b32.xlu0 %v2522, 16
      %v2586 = vpop.permute.xlu0 %2585
      %2587 = vrot.lane.b32.xlu0 %v2524, 16
      %v2588 = vpop.permute.xlu0 %2587
      %v2591 = vsel %vm199, %v2221, %v2382
      %v2593 = vsel %vm199, %v2222, %v2384
      %v2596 = vsel %vm199, %v2224, %v2386
      %v2598 = vsel %vm199, %v2225, %v2388
      %v2601 = vsel %vm199, %v2227, %v2390
      %v2603 = vsel %vm199, %v2228, %v2392
      %v2606 = vsel %vm199, %v2230, %v2394
      %v2608 = vsel %vm199, %v2231, %v2396
      %v2611 = vsel %vm199, %v2233, %v2398
      %v2613 = vsel %vm199, %v2234, %v2400
      %v2616 = vsel %vm199, %v2236, %v2402
      %v2618 = vsel %vm199, %v2237, %v2404
      %v2621 = vsel %vm199, %v2239, %v2406
      %v2623 = vsel %vm199, %v2240, %v2408
      %v2626 = vsel %vm199, %v2242, %v2410
      %v2628 = vsel %vm199, %v2243, %v2412
      %v2631 = vsel %vm199, %v2245, %v2414
      %v2633 = vsel %vm199, %v2246, %v2416
      %v2636 = vsel %vm199, %v2248, %v2418
      %v2638 = vsel %vm199, %v2249, %v2420
      %v2641 = vsel %vm199, %v2251, %v2422
      %v2643 = vsel %vm199, %v2252, %v2424
      %v2646 = vsel %vm199, %v2254, %v2426
      %v2648 = vsel %vm199, %v2255, %v2428
      %v2651 = vsel %vm199, %v2257, %v2430
      %v2653 = vsel %vm199, %v2258, %v2432
      %v2656 = vsel %vm199, %v2260, %v2434
      %v2658 = vsel %vm199, %v2261, %v2436
      %v2661 = vsel %vm199, %v2263, %v2438
      %v2663 = vsel %vm199, %v2264, %v2440
      %v2666 = vsel %vm199, %v2266, %v2442
      %v2668 = vsel %vm199, %v2267, %v2444
      %v2670 = vsel %vm878, %v2591, %v2526
      %v2672 = vsel %vm878, %v2593, %v2528
      %v2674 = vsel %vm878, %v2596, %v2530
      %v2676 = vsel %vm878, %v2598, %v2532
      %v2678 = vsel %vm878, %v2601, %v2534
      %v2680 = vsel %vm878, %v2603, %v2536
      %v2682 = vsel %vm878, %v2606, %v2538
      %v2684 = vsel %vm878, %v2608, %v2540
      %v2686 = vsel %vm878, %v2611, %v2542
      %v2688 = vsel %vm878, %v2613, %v2544
      %v2690 = vsel %vm878, %v2616, %v2546
      %v2692 = vsel %vm878, %v2618, %v2548
      %v2694 = vsel %vm878, %v2621, %v2550
      %v2696 = vsel %vm878, %v2623, %v2552
      %v2698 = vsel %vm878, %v2626, %v2554
      %v2700 = vsel %vm878, %v2628, %v2556
      %v2702 = vsel %vm878, %v2631, %v2558
      %v2704 = vsel %vm878, %v2633, %v2560
      %v2706 = vsel %vm878, %v2636, %v2562
      %v2708 = vsel %vm878, %v2638, %v2564
      %v2710 = vsel %vm878, %v2641, %v2566
      %v2712 = vsel %vm878, %v2643, %v2568
      %v2714 = vsel %vm878, %v2646, %v2570
      %v2716 = vsel %vm878, %v2648, %v2572
      %v2718 = vsel %vm878, %v2651, %v2574
      %v2720 = vsel %vm878, %v2653, %v2576
      %v2722 = vsel %vm878, %v2656, %v2578
      %v2724 = vsel %vm878, %v2658, %v2580
      %v2726 = vsel %vm878, %v2661, %v2582
      %v2728 = vsel %vm878, %v2663, %v2584
      %v2730 = vsel %vm878, %v2666, %v2586
      %v2732 = vsel %vm878, %v2668, %v2588
      %v2733 = vshrl.u32 %v2670, 16
      %v2735 = vrot.slane %v2733, 7
      %v2736 = vshrl.u32 %v2672, 16
      %v2738 = vrot.slane %v2736, 7
      %v2739 = vshll.u32 %v2672, 16
      %v2741 = vor.u32 %v2738, %v2739
      %v2742 = vsel %vm943, %v2735, %v2741
      %v2743 = vshrl.u32 %v2674, 16
      %v2745 = vrot.slane %v2743, 7
      %v2746 = vshrl.u32 %v2676, 16
      %v2748 = vrot.slane %v2746, 7
      %v2749 = vshll.u32 %v2676, 16
      %v2751 = vor.u32 %v2748, %v2749
      %v2752 = vsel %vm943, %v2745, %v2751
      %v2753 = vshrl.u32 %v2678, 16
      %v2755 = vrot.slane %v2753, 7
      %v2756 = vshrl.u32 %v2680, 16
      %v2758 = vrot.slane %v2756, 7
      %v2759 = vshll.u32 %v2680, 16
      %v2761 = vor.u32 %v2758, %v2759
      %v2762 = vsel %vm943, %v2755, %v2761
      %v2763 = vshrl.u32 %v2682, 16
      %v2765 = vrot.slane %v2763, 7
      %v2766 = vshrl.u32 %v2684, 16
      %v2768 = vrot.slane %v2766, 7
      %v2769 = vshll.u32 %v2684, 16
      %v2771 = vor.u32 %v2768, %v2769
      %v2772 = vsel %vm943, %v2765, %v2771
      %v2773 = vshrl.u32 %v2686, 16
      %v2775 = vrot.slane %v2773, 7
      %v2776 = vshrl.u32 %v2688, 16
      %v2778 = vrot.slane %v2776, 7
      %v2779 = vshll.u32 %v2688, 16
      %v2781 = vor.u32 %v2778, %v2779
      %v2782 = vsel %vm943, %v2775, %v2781
      %v2783 = vshrl.u32 %v2690, 16
      %v2785 = vrot.slane %v2783, 7
      %v2786 = vshrl.u32 %v2692, 16
      %v2788 = vrot.slane %v2786, 7
      %v2789 = vshll.u32 %v2692, 16
      %v2791 = vor.u32 %v2788, %v2789
      %v2792 = vsel %vm943, %v2785, %v2791
      %v2793 = vshrl.u32 %v2694, 16
      %v2795 = vrot.slane %v2793, 7
      %v2796 = vshrl.u32 %v2696, 16
      %v2798 = vrot.slane %v2796, 7
      %v2799 = vshll.u32 %v2696, 16
      %v2801 = vor.u32 %v2798, %v2799
      %v2802 = vsel %vm943, %v2795, %v2801
      %v2803 = vshrl.u32 %v2698, 16
      %v2805 = vrot.slane %v2803, 7
      %v2806 = vshrl.u32 %v2700, 16
      %v2808 = vrot.slane %v2806, 7
      %v2809 = vshll.u32 %v2700, 16
      %v2811 = vor.u32 %v2808, %v2809
      %v2812 = vsel %vm943, %v2805, %v2811
      %v2813 = vshrl.u32 %v2702, 16
      %v2815 = vrot.slane %v2813, 7
      %v2816 = vshrl.u32 %v2704, 16
      %v2818 = vrot.slane %v2816, 7
      %v2819 = vshll.u32 %v2704, 16
      %v2821 = vor.u32 %v2818, %v2819
      %v2822 = vsel %vm943, %v2815, %v2821
      %v2823 = vshrl.u32 %v2706, 16
      %v2825 = vrot.slane %v2823, 7
      %v2826 = vshrl.u32 %v2708, 16
      %v2828 = vrot.slane %v2826, 7
      %v2829 = vshll.u32 %v2708, 16
      %v2831 = vor.u32 %v2828, %v2829
      %v2832 = vsel %vm943, %v2825, %v2831
      %v2833 = vshrl.u32 %v2710, 16
      %v2835 = vrot.slane %v2833, 7
      %v2836 = vshrl.u32 %v2712, 16
      %v2838 = vrot.slane %v2836, 7
      %v2839 = vshll.u32 %v2712, 16
      %v2841 = vor.u32 %v2838, %v2839
      %v2842 = vsel %vm943, %v2835, %v2841
      %v2843 = vshrl.u32 %v2714, 16
      %v2845 = vrot.slane %v2843, 7
      %v2846 = vshrl.u32 %v2716, 16
      %v2848 = vrot.slane %v2846, 7
      %v2849 = vshll.u32 %v2716, 16
      %v2851 = vor.u32 %v2848, %v2849
      %v2852 = vsel %vm943, %v2845, %v2851
      %v2853 = vshrl.u32 %v2718, 16
      %v2855 = vrot.slane %v2853, 7
      %v2856 = vshrl.u32 %v2720, 16
      %v2858 = vrot.slane %v2856, 7
      %v2859 = vshll.u32 %v2720, 16
      %v2861 = vor.u32 %v2858, %v2859
      %v2862 = vsel %vm943, %v2855, %v2861
      %v2863 = vshrl.u32 %v2722, 16
      %v2865 = vrot.slane %v2863, 7
      %v2866 = vshrl.u32 %v2724, 16
      %v2868 = vrot.slane %v2866, 7
      %v2869 = vshll.u32 %v2724, 16
      %v2871 = vor.u32 %v2868, %v2869
      %v2872 = vsel %vm943, %v2865, %v2871
      %v2873 = vshrl.u32 %v2726, 16
      %v2875 = vrot.slane %v2873, 7
      %v2876 = vshrl.u32 %v2728, 16
      %v2878 = vrot.slane %v2876, 7
      %v2879 = vshll.u32 %v2728, 16
      %v2881 = vor.u32 %v2878, %v2879
      %v2882 = vsel %vm943, %v2875, %v2881
      %v2883 = vshrl.u32 %v2730, 16
      %v2885 = vrot.slane %v2883, 7
      %v2886 = vshrl.u32 %v2732, 16
      %v2888 = vrot.slane %v2886, 7
      %v2889 = vshll.u32 %v2732, 16
      %v2891 = vor.u32 %v2888, %v2889
      %v2892 = vsel %vm943, %v2885, %v2891
      %v2896 = vunpack.c.l.b16 %v247
      %v2897 = vunpack.c.l.b16 %v248
      %v2898 = vunpack.c.l.b16 %v249
      %v2899 = vpack.c.b16 %v2897, %v2896
      %v2900 = vpack.c.b16 %v2898, %v2898
      %v2903 = vsel %vm1785, %v2742, 0
      %v2906 = vsel %vm1785, %v2752, 0
      %v2909 = vsel %vm1785, %v2762, 0
      %v2912 = vsel %vm1785, %v2772, 0
      %v2915 = vsel %vm1785, %v2782, 0
      %v2918 = vsel %vm1785, %v2792, 0
      %v2921 = vsel %vm1785, %v2802, 0
      %v2924 = vsel %vm1785, %v2812, 0
      %v2927 = vsel %vm1785, %v2822, 0
      %v2930 = vsel %vm1785, %v2832, 0
      %v2933 = vsel %vm1785, %v2842, 0
      %v2936 = vsel %vm1785, %v2852, 0
      %v2939 = vsel %vm1785, %v2862, 0
      %v2942 = vsel %vm1785, %v2872, 0
      %v2945 = vsel %vm1785, %v2882, 0
      %v2948 = vsel %vm1785, %v2892, 0
      %v2951 = vsel %vm1834, %v2900, 0
      %2953 = vmatprep.subr.bf16.mxu0 0
      %2954 = vmatpush1.bf16.msra.mxu0 %v2899
      %2955 = vmatprep.subr.bf16.mxu0 0
      %2956 = vmatpush1.bf16.msra.mxu0 %v2951
      %2957 = vmatprep.subr.bf16.mxu0 0
      %2958 = vmatpush1.bf16.msra.mxu0 0
      %2959 = vmatprep.subr.bf16.mxu0 0
      %2960 = vmatpush1.bf16.msra.mxu0 0
      %2961 = vmatprep.subr.bf16.mxu0 0
      %2962 = vmatpush1.bf16.msra.mxu0 0
      %2963 = vmatprep.subr.bf16.mxu0 0
      %2964 = vmatpush1.bf16.msra.mxu0 0
      %2965 = vmatprep.subr.bf16.mxu0 0
      %2966 = vmatpush1.bf16.msra.mxu0 0
      %2967 = vmatprep.subr.bf16.mxu0 0
      %2968 = vmatpush1.bf16.msra.mxu0 0
      %2969 = vmatprep.subr.bf16.mxu0 0
      %2970 = vmatpush1.bf16.msra.mxu0 0
      %2971 = vmatprep.subr.bf16.mxu0 0
      %2972 = vmatpush1.bf16.msra.mxu0 0
      %2973 = vmatprep.subr.bf16.mxu0 0
      %2974 = vmatpush1.bf16.msra.mxu0 0
      %2975 = vmatprep.subr.bf16.mxu0 0
      %2976 = vmatpush1.bf16.msra.mxu0 0
      %2977 = vmatprep.subr.bf16.mxu0 0
      %2978 = vmatpush1.bf16.msra.mxu0 0
      %2979 = vmatprep.subr.bf16.mxu0 0
      %2980 = vmatpush1.bf16.msra.mxu0 0
      %2981 = vmatprep.subr.bf16.mxu0 0
      %2982 = vmatpush1.bf16.msra.mxu0 0
      %2983 = vmatprep.subr.bf16.mxu0 0
      %2984 = vmatpush1.bf16.msra.mxu0 0
      %2985 = vmatprep.mubr.bf16.mxu0 0
      %2986 = vmatmul.mubr.bf16.gmra.mrb[0].mxu0 %v2903
      %v2987 = vpop.f32.mrb[0].mxu0
      %v2988 = vadd.f32 0.0, %v2987
      %v2989 = vpop.f32.mrb[0].mxu0
      %v2990 = vpop.f32.mrb[0].mxu0
      %v2991 = vadd.f32 0.0, %v2990
      %v2992 = vpop.f32.mrb[0].mxu0
      %2993 = vmatprep.mubr.bf16.mxu0 0
      %2994 = vmatmul.mubr.bf16.gmra.mrb[0].mxu0 %v2906
      %v2995 = vpop.f32.mrb[0].mxu0
      %v2996 = vadd.f32 0.0, %v2995
      %v2997 = vpop.f32.mrb[0].mxu0
      %v2998 = vpop.f32.mrb[0].mxu0
      %v2999 = vadd.f32 0.0, %v2998
      %v3000 = vpop.f32.mrb[0].mxu0
      %3001 = vmatprep.mubr.bf16.mxu0 0
      %3002 = vmatmul.mubr.bf16.gmra.mrb[0].mxu0 %v2909
      %v3003 = vpop.f32.mrb[0].mxu0
      %v3004 = vadd.f32 0.0, %v3003
      %v3005 = vpop.f32.mrb[0].mxu0
      %v3006 = vpop.f32.mrb[0].mxu0
      %v3007 = vadd.f32 0.0, %v3006
      %v3008 = vpop.f32.mrb[0].mxu0
      %3009 = vmatprep.mubr.bf16.mxu0 0
      %3010 = vmatmul.mubr.bf16.gmra.mrb[0].mxu0 %v2912
      %v3011 = vpop.f32.mrb[0].mxu0
      %v3012 = vadd.f32 0.0, %v3011
      %v3013 = vpop.f32.mrb[0].mxu0
      %v3014 = vpop.f32.mrb[0].mxu0
      %v3015 = vadd.f32 0.0, %v3014
      %v3016 = vpop.f32.mrb[0].mxu0
      %3017 = vmatprep.mubr.bf16.mxu0 0
      %3018 = vmatmul.mubr.bf16.gmra.mrb[0].mxu0 %v2915
      %v3019 = vpop.f32.mrb[0].mxu0
      %v3020 = vadd.f32 0.0, %v3019
      %v3021 = vpop.f32.mrb[0].mxu0
      %v3022 = vpop.f32.mrb[0].mxu0
      %v3023 = vadd.f32 0.0, %v3022
      %v3024 = vpop.f32.mrb[0].mxu0
      %3025 = vmatprep.mubr.bf16.mxu0 0
      %3026 = vmatmul.mubr.bf16.gmra.mrb[0].mxu0 %v2918
      %v3027 = vpop.f32.mrb[0].mxu0
      %v3028 = vadd.f32 0.0, %v3027
      %v3029 = vpop.f32.mrb[0].mxu0
      %v3030 = vpop.f32.mrb[0].mxu0
      %v3031 = vadd.f32 0.0, %v3030
      %v3032 = vpop.f32.mrb[0].mxu0
      %3033 = vmatprep.mubr.bf16.mxu0 0
      %3034 = vmatmul.mubr.bf16.gmra.mrb[0].mxu0 %v2921
      %v3035 = vpop.f32.mrb[0].mxu0
      %v3036 = vadd.f32 0.0, %v3035
      %v3037 = vpop.f32.mrb[0].mxu0
      %v3038 = vpop.f32.mrb[0].mxu0
      %v3039 = vadd.f32 0.0, %v3038
      %v3040 = vpop.f32.mrb[0].mxu0
      %3041 = vmatprep.mubr.bf16.mxu0 0
      %3042 = vmatmul.mubr.bf16.gmra.mrb[0].mxu0 %v2924
      %v3043 = vpop.f32.mrb[0].mxu0
      %v3044 = vadd.f32 0.0, %v3043
      %v3045 = vpop.f32.mrb[0].mxu0
      %v3046 = vpop.f32.mrb[0].mxu0
      %v3047 = vadd.f32 0.0, %v3046
      %v3048 = vpop.f32.mrb[0].mxu0
      %3049 = vmatprep.mubr.bf16.mxu0 0
      %3050 = vmatmul.mubr.bf16.gmra.mrb[0].mxu0 %v2927
      %v3051 = vpop.f32.mrb[0].mxu0
      %v3052 = vadd.f32 0.0, %v3051
      %v3053 = vpop.f32.mrb[0].mxu0
      %v3054 = vpop.f32.mrb[0].mxu0
      %v3055 = vadd.f32 0.0, %v3054
      %v3056 = vpop.f32.mrb[0].mxu0
      %3057 = vmatprep.mubr.bf16.mxu0 0
      %3058 = vmatmul.mubr.bf16.gmra.mrb[0].mxu0 %v2930
      %v3059 = vpop.f32.mrb[0].mxu0
      %v3060 = vadd.f32 0.0, %v3059
      %v3061 = vpop.f32.mrb[0].mxu0
      %v3062 = vpop.f32.mrb[0].mxu0
      %v3063 = vadd.f32 0.0, %v3062
      %v3064 = vpop.f32.mrb[0].mxu0
      %3065 = vmatprep.mubr.bf16.mxu0 0
      %3066 = vmatmul.mubr.bf16.gmra.mrb[0].mxu0 %v2933
      %v3067 = vpop.f32.mrb[0].mxu0
      %v3068 = vadd.f32 0.0, %v3067
      %v3069 = vpop.f32.mrb[0].mxu0
      %v3070 = vpop.f32.mrb[0].mxu0
      %v3071 = vadd.f32 0.0, %v3070
      %v3072 = vpop.f32.mrb[0].mxu0
      %3073 = vmatprep.mubr.bf16.mxu0 0
      %3074 = vmatmul.mubr.bf16.gmra.mrb[0].mxu0 %v2936
      %v3075 = vpop.f32.mrb[0].mxu0
      %v3076 = vadd.f32 0.0, %v3075
      %v3077 = vpop.f32.mrb[0].mxu0
      %v3078 = vpop.f32.mrb[0].mxu0
      %v3079 = vadd.f32 0.0, %v3078
      %v3080 = vpop.f32.mrb[0].mxu0
      %3081 = vmatprep.mubr.bf16.mxu0 0
      %3082 = vmatmul.mubr.bf16.gmra.mrb[0].mxu0 %v2939
      %v3083 = vpop.f32.mrb[0].mxu0
      %v3084 = vadd.f32 0.0, %v3083
      %v3085 = vpop.f32.mrb[0].mxu0
      %v3086 = vpop.f32.mrb[0].mxu0
      %v3087 = vadd.f32 0.0, %v3086
      %v3088 = vpop.f32.mrb[0].mxu0
      %3089 = vmatprep.mubr.bf16.mxu0 0
      %3090 = vmatmul.mubr.bf16.gmra.mrb[0].mxu0 %v2942
      %v3091 = vpop.f32.mrb[0].mxu0
      %v3092 = vadd.f32 0.0, %v3091
      %v3093 = vpop.f32.mrb[0].mxu0
      %v3094 = vpop.f32.mrb[0].mxu0
      %v3095 = vadd.f32 0.0, %v3094
      %v3096 = vpop.f32.mrb[0].mxu0
      %3097 = vmatprep.mubr.bf16.mxu0 0
      %3098 = vmatmul.mubr.bf16.gmra.mrb[0].mxu0 %v2945
      %v3099 = vpop.f32.mrb[0].mxu0
      %v3100 = vadd.f32 0.0, %v3099
      %v3101 = vpop.f32.mrb[0].mxu0
      %v3102 = vpop.f32.mrb[0].mxu0
      %v3103 = vadd.f32 0.0, %v3102
      %v3104 = vpop.f32.mrb[0].mxu0
      %3105 = vmatprep.mubr.bf16.mxu0 0
      %3106 = vmatmul.mubr.bf16.gmra.mrb[0].mxu0 %v2948
      %v3107 = vpop.f32.mrb[0].mxu0
      %v3108 = vadd.f32 0.0, %v3107
      %v3109 = vpop.f32.mrb[0].mxu0
      %v3110 = vpop.f32.mrb[0].mxu0
      %v3111 = vadd.f32 0.0, %v3110
      %v3112 = vpop.f32.mrb[0].mxu0
      %3113 = vdwg.mxu0
      %v3114 = vadd.f32 %v2094, %v2988
      %v3115 = vadd.f32 %v2097, %v2991
      %v3116 = vadd.f32 %v2102, %v2996
      %v3117 = vadd.f32 %v2105, %v2999
      %v3118 = vadd.f32 %v2110, %v3004
      %v3119 = vadd.f32 %v2113, %v3007
      %v3120 = vadd.f32 %v2118, %v3012
      %v3121 = vadd.f32 %v2121, %v3015
      %v3122 = vadd.f32 %v2126, %v3020
      %v3123 = vadd.f32 %v2129, %v3023
      %v3124 = vadd.f32 %v2134, %v3028
      %v3125 = vadd.f32 %v2137, %v3031
      %v3126 = vadd.f32 %v2142, %v3036
      %v3127 = vadd.f32 %v2145, %v3039
      %v3128 = vadd.f32 %v2150, %v3044
      %v3129 = vadd.f32 %v2153, %v3047
      %v3130 = vadd.f32 %v2158, %v3052
      %v3131 = vadd.f32 %v2161, %v3055
      %v3132 = vadd.f32 %v2166, %v3060
      %v3133 = vadd.f32 %v2169, %v3063
      %v3134 = vadd.f32 %v2174, %v3068
      %v3135 = vadd.f32 %v2177, %v3071
      %v3136 = vadd.f32 %v2182, %v3076
      %v3137 = vadd.f32 %v2185, %v3079
      %v3138 = vadd.f32 %v2190, %v3084
      %v3139 = vadd.f32 %v2193, %v3087
      %v3140 = vadd.f32 %v2198, %v3092
      %v3141 = vadd.f32 %v2201, %v3095
      %v3142 = vadd.f32 %v2206, %v3100
      %v3143 = vadd.f32 %v2209, %v3103
      %v3144 = vadd.f32 %v2214, %v3108
      %v3145 = vadd.f32 %v2217, %v3111
      %v3147 = vlaneseq
      %v3148 = vshrl.u32 %v3147, 7
      %v3149 = vsub.s32 0, %v3148
      %v3150 = vrot.slane %v250, %v3149
      %v3152 = vmul.f32 %v3114, %v3150
      %v3153 = vmul.f32 %v3115, %v3150
      %v3154 = vmul.f32 %v3116, %v3150
      %v3155 = vmul.f32 %v3117, %v3150
      %v3156 = vmul.f32 %v3118, %v3150
      %v3157 = vmul.f32 %v3119, %v3150
      %v3158 = vmul.f32 %v3120, %v3150
      %v3159 = vmul.f32 %v3121, %v3150
      %v3160 = vmul.f32 %v3122, %v3150
      %v3161 = vmul.f32 %v3123, %v3150
      %v3162 = vmul.f32 %v3124, %v3150
      %v3163 = vmul.f32 %v3125, %v3150
      %v3164 = vmul.f32 %v3126, %v3150
      %v3165 = vmul.f32 %v3127, %v3150
      %v3166 = vmul.f32 %v3128, %v3150
      %v3167 = vmul.f32 %v3129, %v3150
      %v3168 = vmul.f32 %v3130, %v3150
      %v3169 = vmul.f32 %v3131, %v3150
      %v3170 = vmul.f32 %v3132, %v3150
      %v3171 = vmul.f32 %v3133, %v3150
      %v3172 = vmul.f32 %v3134, %v3150
      %v3173 = vmul.f32 %v3135, %v3150
      %v3174 = vmul.f32 %v3136, %v3150
      %v3175 = vmul.f32 %v3137, %v3150
      %v3176 = vmul.f32 %v3138, %v3150
      %v3177 = vmul.f32 %v3139, %v3150
      %v3178 = vmul.f32 %v3140, %v3150
      %v3179 = vmul.f32 %v3141, %v3150
      %v3180 = vmul.f32 %v3142, %v3150
      %v3181 = vmul.f32 %v3143, %v3150
      %v3182 = vmul.f32 %v3144, %v3150
      %v3183 = vmul.f32 %v3145, %v3150
      %v3185 = vlaneseq
      %v3186 = vshrl.u32 %v3185, 7
      %v3187 = vsub.s32 0, %v3186
      %v3188 = vrot.slane %v251, %v3187
      %v3190 = vadd.f32 %v3152, %v3188
      %v3191 = vadd.f32 %v3153, %v3188
      %v3192 = vadd.f32 %v3154, %v3188
      %v3193 = vadd.f32 %v3155, %v3188
      %v3194 = vadd.f32 %v3156, %v3188
      %v3195 = vadd.f32 %v3157, %v3188
      %v3196 = vadd.f32 %v3158, %v3188
      %v3197 = vadd.f32 %v3159, %v3188
      %v3198 = vadd.f32 %v3160, %v3188
      %v3199 = vadd.f32 %v3161, %v3188
      %v3200 = vadd.f32 %v3162, %v3188
      %v3201 = vadd.f32 %v3163, %v3188
      %v3202 = vadd.f32 %v3164, %v3188
      %v3203 = vadd.f32 %v3165, %v3188
      %v3204 = vadd.f32 %v3166, %v3188
      %v3205 = vadd.f32 %v3167, %v3188
      %v3206 = vadd.f32 %v3168, %v3188
      %v3207 = vadd.f32 %v3169, %v3188
      %v3208 = vadd.f32 %v3170, %v3188
      %v3209 = vadd.f32 %v3171, %v3188
      %v3210 = vadd.f32 %v3172, %v3188
      %v3211 = vadd.f32 %v3173, %v3188
      %v3212 = vadd.f32 %v3174, %v3188
      %v3213 = vadd.f32 %v3175, %v3188
      %v3214 = vadd.f32 %v3176, %v3188
      %v3215 = vadd.f32 %v3177, %v3188
      %v3216 = vadd.f32 %v3178, %v3188
      %v3217 = vadd.f32 %v3179, %v3188
      %v3218 = vadd.f32 %v3180, %v3188
      %v3219 = vadd.f32 %v3181, %v3188
      %v3220 = vadd.f32 %v3182, %v3188
      %v3221 = vadd.f32 %v3183, %v3188
      %v3222 = vmax.f32 %v3190, 0.0
      %v3223 = vmax.f32 %v3191, 0.0
      %v3224 = vmax.f32 %v3192, 0.0
      %v3225 = vmax.f32 %v3193, 0.0
      %v3226 = vmax.f32 %v3194, 0.0
      %v3227 = vmax.f32 %v3195, 0.0
      %v3228 = vmax.f32 %v3196, 0.0
      %v3229 = vmax.f32 %v3197, 0.0
      %v3230 = vmax.f32 %v3198, 0.0
      %v3231 = vmax.f32 %v3199, 0.0
      %v3232 = vmax.f32 %v3200, 0.0
      %v3233 = vmax.f32 %v3201, 0.0
      %v3234 = vmax.f32 %v3202, 0.0
      %v3235 = vmax.f32 %v3203, 0.0
      %v3236 = vmax.f32 %v3204, 0.0
      %v3237 = vmax.f32 %v3205, 0.0
      %v3238 = vmax.f32 %v3206, 0.0
      %v3239 = vmax.f32 %v3207, 0.0
      %v3240 = vmax.f32 %v3208, 0.0
      %v3241 = vmax.f32 %v3209, 0.0
      %v3242 = vmax.f32 %v3210, 0.0
      %v3243 = vmax.f32 %v3211, 0.0
      %v3244 = vmax.f32 %v3212, 0.0
      %v3245 = vmax.f32 %v3213, 0.0
      %v3246 = vmax.f32 %v3214, 0.0
      %v3247 = vmax.f32 %v3215, 0.0
      %v3248 = vmax.f32 %v3216, 0.0
      %v3249 = vmax.f32 %v3217, 0.0
      %v3250 = vmax.f32 %v3218, 0.0
      %v3251 = vmax.f32 %v3219, 0.0
      %v3252 = vmax.f32 %v3220, 0.0
      %v3253 = vmax.f32 %v3221, 0.0
      %v3254 = vadd.f32 %v284, %v3222
      %v3255 = vadd.f32 %v285, %v3223
      %v3256 = vadd.f32 %v286, %v3224
      %v3257 = vadd.f32 %v287, %v3225
      %v3258 = vadd.f32 %v288, %v3226
      %v3259 = vadd.f32 %v289, %v3227
      %v3260 = vadd.f32 %v290, %v3228
      %v3261 = vadd.f32 %v291, %v3229
      %v3262 = vadd.f32 %v292, %v3230
      %v3263 = vadd.f32 %v293, %v3231
      %v3264 = vadd.f32 %v294, %v3232
      %v3265 = vadd.f32 %v295, %v3233
      %v3266 = vadd.f32 %v296, %v3234
      %v3267 = vadd.f32 %v297, %v3235
      %v3268 = vadd.f32 %v298, %v3236
      %v3269 = vadd.f32 %v299, %v3237
      %v3270 = vadd.f32 %v300, %v3238
      %v3271 = vadd.f32 %v301, %v3239
      %v3272 = vadd.f32 %v302, %v3240
      %v3273 = vadd.f32 %v303, %v3241
      %v3274 = vadd.f32 %v304, %v3242
      %v3275 = vadd.f32 %v305, %v3243
      %v3276 = vadd.f32 %v306, %v3244
      %v3277 = vadd.f32 %v307, %v3245
      %v3278 = vadd.f32 %v308, %v3246
      %v3279 = vadd.f32 %v309, %v3247
      %v3280 = vadd.f32 %v310, %v3248
      %v3281 = vadd.f32 %v311, %v3249
      %v3282 = vadd.f32 %v312, %v3250
      %v3283 = vadd.f32 %v313, %v3251
      %v3284 = vadd.f32 %v314, %v3252
      %v3285 = vadd.f32 %v315, %v3253
      %v3286 = vpack.c.bf16 %v3255, %v3254
      %v3287 = vpack.c.bf16 %v3257, %v3256
      %v3288 = vpack.c.bf16 %v3259, %v3258
      %v3289 = vpack.c.bf16 %v3261, %v3260
      %v3290 = vpack.c.bf16 %v3263, %v3262
      %v3291 = vpack.c.bf16 %v3265, %v3264
      %v3292 = vpack.c.bf16 %v3267, %v3266
      %v3293 = vpack.c.bf16 %v3269, %v3268
      %v3294 = vpack.c.bf16 %v3271, %v3270
      %v3295 = vpack.c.bf16 %v3273, %v3272
      %v3296 = vpack.c.bf16 %v3275, %v3274
      %v3297 = vpack.c.bf16 %v3277, %v3276
      %v3298 = vpack.c.bf16 %v3279, %v3278
      %v3299 = vpack.c.bf16 %v3281, %v3280
      %v3300 = vpack.c.bf16 %v3283, %v3282
      %v3301 = vpack.c.bf16 %v3285, %v3284
      %3302 = vst.msk [vmem:[%s412 + $0x8] sm:$0xff] %vm199, %v3286
      %3303 = vst.msk [vmem:[%s412 + $0x20] sm:$0xff] %vm199, %v3287
      %3304 = vst.msk [vmem:[%s412 + $0x38] sm:$0xff] %vm199, %v3288
      %3305 = vst.msk [vmem:[%s412 + $0x50] sm:$0xff] %vm199, %v3289
      %3306 = vst.msk [vmem:[%s412 + $0x68] sm:$0xff] %vm199, %v3290
      %3307 = vst.msk [vmem:[%s412 + $0x80] sm:$0xff] %vm199, %v3291
      %3308 = vst.msk [vmem:[%s412 + $0x98] sm:$0xff] %vm199, %v3292
      %3309 = vst.msk [vmem:[%s412 + $0xb0] sm:$0xff] %vm199, %v3293
      %3310 = vst.msk [vmem:[%s412 + $0xc8] sm:$0xff] %vm199, %v3294
      %3311 = vst.msk [vmem:[%s412 + $0xe0] sm:$0xff] %vm199, %v3295
      %3312 = vst.msk [vmem:[%s412 + $0xf8] sm:$0xff] %vm199, %v3296
      %3313 = vst.msk [vmem:[%s412 + $0x110] sm:$0xff] %vm199, %v3297
      %3314 = vst.msk [vmem:[%s412 + $0x128] sm:$0xff] %vm199, %v3298
      %3315 = vst.msk [vmem:[%s412 + $0x140] sm:$0xff] %vm199, %v3299
      %3316 = vst.msk [vmem:[%s412 + $0x158] sm:$0xff] %vm199, %v3300
      %3317 = vst.msk [vmem:[%s412 + $0x170] sm:$0xff] %vm199, %v3301
      %v3318 = vld [vmem:[#allocation2] sm:$0xff]
      %v3319 = vld [vmem:[#allocation2 + $0x8] sm:$0xff]
      %v3320 = vld [vmem:[#allocation2 + $0x10] sm:$0xff]
      %v3321 = vld [vmem:[#allocation2 + $0x18] sm:$0xff]
      %v3322 = vld [vmem:[#allocation2 + $0x20] sm:$0xff]
      %v3323 = vld [vmem:[#allocation2 + $0x28] sm:$0xff]
      %v3324 = vld [vmem:[#allocation2 + $0x30] sm:$0xff]
      %v3325 = vld [vmem:[#allocation2 + $0x38] sm:$0xff]
      %v3326 = vld [vmem:[#allocation2 + $0x40] sm:$0xff]
      %v3327 = vld [vmem:[#allocation2 + $0x48] sm:$0xff]
      %v3328 = vld [vmem:[#allocation2 + $0x50] sm:$0xff]
      %v3329 = vld [vmem:[#allocation2 + $0x58] sm:$0xff]
      %v3330 = vld [vmem:[#allocation2 + $0x60] sm:$0xff]
      %v3331 = vld [vmem:[#allocation2 + $0x68] sm:$0xff]
      %v3332 = vld [vmem:[#allocation2 + $0x70] sm:$0xff]
      %v3333 = vld [vmem:[#allocation2 + $0x78] sm:$0xff]
      %v3334 = vld [vmem:[#allocation2 + $0x80] sm:$0xff]
      %v3335 = vld [vmem:[#allocation2 + $0x88] sm:$0xff]
      %v3336 = vld [vmem:[#allocation2 + $0x90] sm:$0xff]
      %v3337 = vld [vmem:[#allocation2 + $0x98] sm:$0xff]
      %v3338 = vld [vmem:[#allocation2 + $0xa0] sm:$0xff]
      %v3339 = vld [vmem:[#allocation2 + $0xa8] sm:$0xff]
      %v3340 = vld [vmem:[#allocation2 + $0xb0] sm:$0xff]
      %v3341 = vld [vmem:[#allocation2 + $0xb8] sm:$0xff]
      %v3342 = vld [vmem:[#allocation2 + $0xc0] sm:$0xff]
      %v3343 = vld [vmem:[#allocation2 + $0xc8] sm:$0xff]
      %v3344 = vld [vmem:[#allocation2 + $0xd0] sm:$0xff]
      %v3345 = vld [vmem:[#allocation2 + $0xd8] sm:$0xff]
      %v3346 = vld [vmem:[#allocation2 + $0xe0] sm:$0xff]
      %v3347 = vld [vmem:[#allocation2 + $0xe8] sm:$0xff]
      %v3348 = vld [vmem:[#allocation2 + $0xf0] sm:$0xff]
      %v3349 = vld [vmem:[#allocation2 + $0xf8] sm:$0xff]
      %v3350 = vld [vmem:[#allocation2 + $0x100] sm:$0xff]
      %v3351 = vld [vmem:[#allocation2 + $0x108] sm:$0xff]
      %v3352 = vld [vmem:[#allocation2 + $0x110] sm:$0xff]
      %v3353 = vld [vmem:[#allocation2 + $0x118] sm:$0xff]
      %v3354 = vld [vmem:[#allocation2 + $0x120] sm:$0xff]
      %v3355 = vld [vmem:[#allocation2 + $0x128] sm:$0xff]
      %v3356 = vld [vmem:[#allocation2 + $0x130] sm:$0xff]
      %v3357 = vld [vmem:[#allocation2 + $0x138] sm:$0xff]
      %v3358 = vld [vmem:[#allocation2 + $0x140] sm:$0xff]
      %v3359 = vld [vmem:[#allocation2 + $0x148] sm:$0xff]
      %v3360 = vld [vmem:[#allocation2 + $0x150] sm:$0xff]
      %v3361 = vld [vmem:[#allocation2 + $0x158] sm:$0xff]
      %v3362 = vld [vmem:[#allocation2 + $0x160] sm:$0xff]
      %v3363 = vld [vmem:[#allocation2 + $0x168] sm:$0xff]
      %v3364 = vld [vmem:[#allocation2 + $0x170] sm:$0xff]
      %v3365 = vld [vmem:[#allocation2 + $0x178] sm:$0xff]
      %v3367 = vshll.u32 %v3319, 16
      %v3369 = vrot.slane %v3367, 1
      %v3370 = vshrl.u32 %v3319, 16
      %v3372 = vor.u32 %v3370, %v3369
      %v3374 = vshll.u32 %v3322, 16
      %v3376 = vrot.slane %v3374, 1
      %v3377 = vshrl.u32 %v3322, 16
      %v3379 = vor.u32 %v3377, %v3376
      %v3381 = vshll.u32 %v3325, 16
      %v3383 = vrot.slane %v3381, 1
      %v3384 = vshrl.u32 %v3325, 16
      %v3386 = vor.u32 %v3384, %v3383
      %v3388 = vshll.u32 %v3328, 16
      %v3390 = vrot.slane %v3388, 1
      %v3391 = vshrl.u32 %v3328, 16
      %v3393 = vor.u32 %v3391, %v3390
      %v3395 = vshll.u32 %v3331, 16
      %v3397 = vrot.slane %v3395, 1
      %v3398 = vshrl.u32 %v3331, 16
      %v3400 = vor.u32 %v3398, %v3397
      %v3402 = vshll.u32 %v3334, 16
      %v3404 = vrot.slane %v3402, 1
      %v3405 = vshrl.u32 %v3334, 16
      %v3407 = vor.u32 %v3405, %v3404
      %v3409 = vshll.u32 %v3337, 16
      %v3411 = vrot.slane %v3409, 1
      %v3412 = vshrl.u32 %v3337, 16
      %v3414 = vor.u32 %v3412, %v3411
      %v3416 = vshll.u32 %v3340, 16
      %v3418 = vrot.slane %v3416, 1
      %v3419 = vshrl.u32 %v3340, 16
      %v3421 = vor.u32 %v3419, %v3418
      %v3423 = vshll.u32 %v3343, 16
      %v3425 = vrot.slane %v3423, 1
      %v3426 = vshrl.u32 %v3343, 16
      %v3428 = vor.u32 %v3426, %v3425
      %v3430 = vshll.u32 %v3346, 16
      %v3432 = vrot.slane %v3430, 1
      %v3433 = vshrl.u32 %v3346, 16
      %v3435 = vor.u32 %v3433, %v3432
      %v3437 = vshll.u32 %v3349, 16
      %v3439 = vrot.slane %v3437, 1
      %v3440 = vshrl.u32 %v3349, 16
      %v3442 = vor.u32 %v3440, %v3439
      %v3444 = vshll.u32 %v3352, 16
      %v3446 = vrot.slane %v3444, 1
      %v3447 = vshrl.u32 %v3352, 16
      %v3449 = vor.u32 %v3447, %v3446
      %v3451 = vshll.u32 %v3355, 16
      %v3453 = vrot.slane %v3451, 1
      %v3454 = vshrl.u32 %v3355, 16
      %v3456 = vor.u32 %v3454, %v3453
      %v3458 = vshll.u32 %v3358, 16
      %v3460 = vrot.slane %v3458, 1
      %v3461 = vshrl.u32 %v3358, 16
      %v3463 = vor.u32 %v3461, %v3460
      %v3465 = vshll.u32 %v3361, 16
      %v3467 = vrot.slane %v3465, 1
      %v3468 = vshrl.u32 %v3361, 16
      %v3470 = vor.u32 %v3468, %v3467
      %v3472 = vshll.u32 %v3364, 16
      %v3474 = vrot.slane %v3472, 1
      %v3475 = vshrl.u32 %v3364, 16
      %v3477 = vor.u32 %v3475, %v3474
      %3478 = vrot.lane.b32.xlu0 %v3369, 8
      %v3479 = vpop.permute.xlu0 %3478
      %3480 = vrot.lane.b32.xlu0 %v3372, 8
      %v3481 = vpop.permute.xlu0 %3480
      %3482 = vrot.lane.b32.xlu0 %v3376, 8
      %v3483 = vpop.permute.xlu0 %3482
      %3484 = vrot.lane.b32.xlu0 %v3379, 8
      %v3485 = vpop.permute.xlu0 %3484
      %3486 = vrot.lane.b32.xlu0 %v3383, 8
      %v3487 = vpop.permute.xlu0 %3486
      %3488 = vrot.lane.b32.xlu0 %v3386, 8
      %v3489 = vpop.permute.xlu0 %3488
      %3490 = vrot.lane.b32.xlu0 %v3390, 8
      %v3491 = vpop.permute.xlu0 %3490
      %3492 = vrot.lane.b32.xlu0 %v3393, 8
      %v3493 = vpop.permute.xlu0 %3492
      %3494 = vrot.lane.b32.xlu0 %v3397, 8
      %v3495 = vpop.permute.xlu0 %3494
      %3496 = vrot.lane.b32.xlu0 %v3400, 8
      %v3497 = vpop.permute.xlu0 %3496
      %3498 = vrot.lane.b32.xlu0 %v3404, 8
      %v3499 = vpop.permute.xlu0 %3498
      %3500 = vrot.lane.b32.xlu0 %v3407, 8
      %v3501 = vpop.permute.xlu0 %3500
      %3502 = vrot.lane.b32.xlu0 %v3411, 8
      %v3503 = vpop.permute.xlu0 %3502
      %3504 = vrot.lane.b32.xlu0 %v3414, 8
      %v3505 = vpop.permute.xlu0 %3504
      %3506 = vrot.lane.b32.xlu0 %v3418, 8
      %v3507 = vpop.permute.xlu0 %3506
      %3508 = vrot.lane.b32.xlu0 %v3421, 8
      %v3509 = vpop.permute.xlu0 %3508
      %3510 = vrot.lane.b32.xlu0 %v3425, 8
      %v3511 = vpop.permute.xlu0 %3510
      %3512 = vrot.lane.b32.xlu0 %v3428, 8
      %v3513 = vpop.permute.xlu0 %3512
      %3514 = vrot.lane.b32.xlu0 %v3432, 8
      %v3515 = vpop.permute.xlu0 %3514
      %3516 = vrot.lane.b32.xlu0 %v3435, 8
      %v3517 = vpop.permute.xlu0 %3516
      %3518 = vrot.lane.b32.xlu0 %v3439, 8
      %v3519 = vpop.permute.xlu0 %3518
      %3520 = vrot.lane.b32.xlu0 %v3442, 8
      %v3521 = vpop.permute.xlu0 %3520
      %3522 = vrot.lane.b32.xlu0 %v3446, 8
      %v3523 = vpop.permute.xlu0 %3522
      %3524 = vrot.lane.b32.xlu0 %v3449, 8
      %v3525 = vpop.permute.xlu0 %3524
      %3526 = vrot.lane.b32.xlu0 %v3453, 8
      %v3527 = vpop.permute.xlu0 %3526
      %3528 = vrot.lane.b32.xlu0 %v3456, 8
      %v3529 = vpop.permute.xlu0 %3528
      %3530 = vrot.lane.b32.xlu0 %v3460, 8
      %v3531 = vpop.permute.xlu0 %3530
      %3532 = vrot.lane.b32.xlu0 %v3463, 8
      %v3533 = vpop.permute.xlu0 %3532
      %3534 = vrot.lane.b32.xlu0 %v3467, 8
      %v3535 = vpop.permute.xlu0 %3534
      %3536 = vrot.lane.b32.xlu0 %v3470, 8
      %v3537 = vpop.permute.xlu0 %3536
      %3538 = vrot.lane.b32.xlu0 %v3474, 8
      %v3539 = vpop.permute.xlu0 %3538
      %3540 = vrot.lane.b32.xlu0 %v3477, 8
      %v3541 = vpop.permute.xlu0 %3540
      %v3574 = vrot.slane %v3319, 1
      %v3575 = vrot.slane %v3320, 1
      %v3576 = vsel %vm685, %v3574, %v3575
      %v3577 = vrot.slane %v3322, 1
      %v3578 = vrot.slane %v3323, 1
      %v3579 = vsel %vm685, %v3577, %v3578
      %v3580 = vrot.slane %v3325, 1
      %v3581 = vrot.slane %v3326, 1
      %v3582 = vsel %vm685, %v3580, %v3581
      %v3583 = vrot.slane %v3328, 1
      %v3584 = vrot.slane %v3329, 1
      %v3585 = vsel %vm685, %v3583, %v3584
      %v3586 = vrot.slane %v3331, 1
      %v3587 = vrot.slane %v3332, 1
      %v3588 = vsel %vm685, %v3586, %v3587
      %v3589 = vrot.slane %v3334, 1
      %v3590 = vrot.slane %v3335, 1
      %v3591 = vsel %vm685, %v3589, %v3590
      %v3592 = vrot.slane %v3337, 1
      %v3593 = vrot.slane %v3338, 1
      %v3594 = vsel %vm685, %v3592, %v3593
      %v3595 = vrot.slane %v3340, 1
      %v3596 = vrot.slane %v3341, 1
      %v3597 = vsel %vm685, %v3595, %v3596
      %v3598 = vrot.slane %v3343, 1
      %v3599 = vrot.slane %v3344, 1
      %v3600 = vsel %vm685, %v3598, %v3599
      %v3601 = vrot.slane %v3346, 1
      %v3602 = vrot.slane %v3347, 1
      %v3603 = vsel %vm685, %v3601, %v3602
      %v3604 = vrot.slane %v3349, 1
      %v3605 = vrot.slane %v3350, 1
      %v3606 = vsel %vm685, %v3604, %v3605
      %v3607 = vrot.slane %v3352, 1
      %v3608 = vrot.slane %v3353, 1
      %v3609 = vsel %vm685, %v3607, %v3608
      %v3610 = vrot.slane %v3355, 1
      %v3611 = vrot.slane %v3356, 1
      %v3612 = vsel %vm685, %v3610, %v3611
      %v3613 = vrot.slane %v3358, 1
      %v3614 = vrot.slane %v3359, 1
      %v3615 = vsel %vm685, %v3613, %v3614
      %v3616 = vrot.slane %v3361, 1
      %v3617 = vrot.slane %v3362, 1
      %v3618 = vsel %vm685, %v3616, %v3617
      %v3619 = vrot.slane %v3364, 1
      %v3620 = vrot.slane %v3365, 1
      %v3621 = vsel %vm685, %v3619, %v3620
      %3622 = vrot.lane.b32.xlu0 %v3574, 16
      %v3623 = vpop.permute.xlu0 %3622
      %3624 = vrot.lane.b32.xlu0 %v3576, 16
      %v3625 = vpop.permute.xlu0 %3624
      %3626 = vrot.lane.b32.xlu0 %v3577, 16
      %v3627 = vpop.permute.xlu0 %3626
      %3628 = vrot.lane.b32.xlu0 %v3579, 16
      %v3629 = vpop.permute.xlu0 %3628
      %3630 = vrot.lane.b32.xlu0 %v3580, 16
      %v3631 = vpop.permute.xlu0 %3630
      %3632 = vrot.lane.b32.xlu0 %v3582, 16
      %v3633 = vpop.permute.xlu0 %3632
      %3634 = vrot.lane.b32.xlu0 %v3583, 16
      %v3635 = vpop.permute.xlu0 %3634
      %3636 = vrot.lane.b32.xlu0 %v3585, 16
      %v3637 = vpop.permute.xlu0 %3636
      %3638 = vrot.lane.b32.xlu0 %v3586, 16
      %v3639 = vpop.permute.xlu0 %3638
      %3640 = vrot.lane.b32.xlu0 %v3588, 16
      %v3641 = vpop.permute.xlu0 %3640
      %3642 = vrot.lane.b32.xlu0 %v3589, 16
      %v3643 = vpop.permute.xlu0 %3642
      %3644 = vrot.lane.b32.xlu0 %v3591, 16
      %v3645 = vpop.permute.xlu0 %3644
      %3646 = vrot.lane.b32.xlu0 %v3592, 16
      %v3647 = vpop.permute.xlu0 %3646
      %3648 = vrot.lane.b32.xlu0 %v3594, 16
      %v3649 = vpop.permute.xlu0 %3648
      %3650 = vrot.lane.b32.xlu0 %v3595, 16
      %v3651 = vpop.permute.xlu0 %3650
      %3652 = vrot.lane.b32.xlu0 %v3597, 16
      %v3653 = vpop.permute.xlu0 %3652
      %3654 = vrot.lane.b32.xlu0 %v3598, 16
      %v3655 = vpop.permute.xlu0 %3654
      %3656 = vrot.lane.b32.xlu0 %v3600, 16
      %v3657 = vpop.permute.xlu0 %3656
      %3658 = vrot.lane.b32.xlu0 %v3601, 16
      %v3659 = vpop.permute.xlu0 %3658
      %3660 = vrot.lane.b32.xlu0 %v3603, 16
      %v3661 = vpop.permute.xlu0 %3660
      %3662 = vrot.lane.b32.xlu0 %v3604, 16
      %v3663 = vpop.permute.xlu0 %3662
      %3664 = vrot.lane.b32.xlu0 %v3606, 16
      %v3665 = vpop.permute.xlu0 %3664
      %3666 = vrot.lane.b32.xlu0 %v3607, 16
      %v3667 = vpop.permute.xlu0 %3666
      %3668 = vrot.lane.b32.xlu0 %v3609, 16
      %v3669 = vpop.permute.xlu0 %3668
      %3670 = vrot.lane.b32.xlu0 %v3610, 16
      %v3671 = vpop.permute.xlu0 %3670
      %3672 = vrot.lane.b32.xlu0 %v3612, 16
      %v3673 = vpop.permute.xlu0 %3672
      %3674 = vrot.lane.b32.xlu0 %v3613, 16
      %v3675 = vpop.permute.xlu0 %3674
      %3676 = vrot.lane.b32.xlu0 %v3615, 16
      %v3677 = vpop.permute.xlu0 %3676
      %3678 = vrot.lane.b32.xlu0 %v3616, 16
      %v3679 = vpop.permute.xlu0 %3678
      %3680 = vrot.lane.b32.xlu0 %v3618, 16
      %v3681 = vpop.permute.xlu0 %3680
      %3682 = vrot.lane.b32.xlu0 %v3619, 16
      %v3683 = vpop.permute.xlu0 %3682
      %3684 = vrot.lane.b32.xlu0 %v3621, 16
      %v3685 = vpop.permute.xlu0 %3684
      %v3688 = vsel %vm199, %v3318, %v3479
      %v3690 = vsel %vm199, %v3319, %v3481
      %v3693 = vsel %vm199, %v3321, %v3483
      %v3695 = vsel %vm199, %v3322, %v3485
      %v3698 = vsel %vm199, %v3324, %v3487
      %v3700 = vsel %vm199, %v3325, %v3489
      %v3703 = vsel %vm199, %v3327, %v3491
      %v3705 = vsel %vm199, %v3328, %v3493
      %v3708 = vsel %vm199, %v3330, %v3495
      %v3710 = vsel %vm199, %v3331, %v3497
      %v3713 = vsel %vm199, %v3333, %v3499
      %v3715 = vsel %vm199, %v3334, %v3501
      %v3718 = vsel %vm199, %v3336, %v3503
      %v3720 = vsel %vm199, %v3337, %v3505
      %v3723 = vsel %vm199, %v3339, %v3507
      %v3725 = vsel %vm199, %v3340, %v3509
      %v3728 = vsel %vm199, %v3342, %v3511
      %v3730 = vsel %vm199, %v3343, %v3513
      %v3733 = vsel %vm199, %v3345, %v3515
      %v3735 = vsel %vm199, %v3346, %v3517
      %v3738 = vsel %vm199, %v3348, %v3519
      %v3740 = vsel %vm199, %v3349, %v3521
      %v3743 = vsel %vm199, %v3351, %v3523
      %v3745 = vsel %vm199, %v3352, %v3525
      %v3748 = vsel %vm199, %v3354, %v3527
      %v3750 = vsel %vm199, %v3355, %v3529
      %v3753 = vsel %vm199, %v3357, %v3531
      %v3755 = vsel %vm199, %v3358, %v3533
      %v3758 = vsel %vm199, %v3360, %v3535
      %v3760 = vsel %vm199, %v3361, %v3537
      %v3763 = vsel %vm199, %v3363, %v3539
      %v3765 = vsel %vm199, %v3364, %v3541
      %v3767 = vsel %vm878, %v3688, %v3623
      %v3769 = vsel %vm878, %v3690, %v3625
      %v3771 = vsel %vm878, %v3693, %v3627
      %v3773 = vsel %vm878, %v3695, %v3629
      %v3775 = vsel %vm878, %v3698, %v3631
      %v3777 = vsel %vm878, %v3700, %v3633
      %v3779 = vsel %vm878, %v3703, %v3635
      %v3781 = vsel %vm878, %v3705, %v3637
      %v3783 = vsel %vm878, %v3708, %v3639
      %v3785 = vsel %vm878, %v3710, %v3641
      %v3787 = vsel %vm878, %v3713, %v3643
      %v3789 = vsel %vm878, %v3715, %v3645
      %v3791 = vsel %vm878, %v3718, %v3647
      %v3793 = vsel %vm878, %v3720, %v3649
      %v3795 = vsel %vm878, %v3723, %v3651
      %v3797 = vsel %vm878, %v3725, %v3653
      %v3799 = vsel %vm878, %v3728, %v3655
      %v3801 = vsel %vm878, %v3730, %v3657
      %v3803 = vsel %vm878, %v3733, %v3659
      %v3805 = vsel %vm878, %v3735, %v3661
      %v3807 = vsel %vm878, %v3738, %v3663
      %v3809 = vsel %vm878, %v3740, %v3665
      %v3811 = vsel %vm878, %v3743, %v3667
      %v3813 = vsel %vm878, %v3745, %v3669
      %v3815 = vsel %vm878, %v3748, %v3671
      %v3817 = vsel %vm878, %v3750, %v3673
      %v3819 = vsel %vm878, %v3753, %v3675
      %v3821 = vsel %vm878, %v3755, %v3677
      %v3823 = vsel %vm878, %v3758, %v3679
      %v3825 = vsel %vm878, %v3760, %v3681
      %v3827 = vsel %vm878, %v3763, %v3683
      %v3829 = vsel %vm878, %v3765, %v3685
      %v3830 = vshrl.u32 %v3767, 16
      %v3832 = vrot.slane %v3830, 7
      %v3833 = vshrl.u32 %v3769, 16
      %v3835 = vrot.slane %v3833, 7
      %v3836 = vshll.u32 %v3769, 16
      %v3838 = vor.u32 %v3835, %v3836
      %v3839 = vsel %vm943, %v3832, %v3838
      %v3840 = vshrl.u32 %v3771, 16
      %v3842 = vrot.slane %v3840, 7
      %v3843 = vshrl.u32 %v3773, 16
      %v3845 = vrot.slane %v3843, 7
      %v3846 = vshll.u32 %v3773, 16
      %v3848 = vor.u32 %v3845, %v3846
      %v3849 = vsel %vm943, %v3842, %v3848
      %v3850 = vshrl.u32 %v3775, 16
      %v3852 = vrot.slane %v3850, 7
      %v3853 = vshrl.u32 %v3777, 16
      %v3855 = vrot.slane %v3853, 7
      %v3856 = vshll.u32 %v3777, 16
      %v3858 = vor.u32 %v3855, %v3856
      %v3859 = vsel %vm943, %v3852, %v3858
      %v3860 = vshrl.u32 %v3779, 16
      %v3862 = vrot.slane %v3860, 7
      %v3863 = vshrl.u32 %v3781, 16
      %v3865 = vrot.slane %v3863, 7
      %v3866 = vshll.u32 %v3781, 16
      %v3868 = vor.u32 %v3865, %v3866
      %v3869 = vsel %vm943, %v3862, %v3868
      %v3870 = vshrl.u32 %v3783, 16
      %v3872 = vrot.slane %v3870, 7
      %v3873 = vshrl.u32 %v3785, 16
      %v3875 = vrot.slane %v3873, 7
      %v3876 = vshll.u32 %v3785, 16
      %v3878 = vor.u32 %v3875, %v3876
      %v3879 = vsel %vm943, %v3872, %v3878
      %v3880 = vshrl.u32 %v3787, 16
      %v3882 = vrot.slane %v3880, 7
      %v3883 = vshrl.u32 %v3789, 16
      %v3885 = vrot.slane %v3883, 7
      %v3886 = vshll.u32 %v3789, 16
      %v3888 = vor.u32 %v3885, %v3886
      %v3889 = vsel %vm943, %v3882, %v3888
      %v3890 = vshrl.u32 %v3791, 16
      %v3892 = vrot.slane %v3890, 7
      %v3893 = vshrl.u32 %v3793, 16
      %v3895 = vrot.slane %v3893, 7
      %v3896 = vshll.u32 %v3793, 16
      %v3898 = vor.u32 %v3895, %v3896
      %v3899 = vsel %vm943, %v3892, %v3898
      %v3900 = vshrl.u32 %v3795, 16
      %v3902 = vrot.slane %v3900, 7
      %v3903 = vshrl.u32 %v3797, 16
      %v3905 = vrot.slane %v3903, 7
      %v3906 = vshll.u32 %v3797, 16
      %v3908 = vor.u32 %v3905, %v3906
      %v3909 = vsel %vm943, %v3902, %v3908
      %v3910 = vshrl.u32 %v3799, 16
      %v3912 = vrot.slane %v3910, 7
      %v3913 = vshrl.u32 %v3801, 16
      %v3915 = vrot.slane %v3913, 7
      %v3916 = vshll.u32 %v3801, 16
      %v3918 = vor.u32 %v3915, %v3916
      %v3919 = vsel %vm943, %v3912, %v3918
      %v3920 = vshrl.u32 %v3803, 16
      %v3922 = vrot.slane %v3920, 7
      %v3923 = vshrl.u32 %v3805, 16
      %v3925 = vrot.slane %v3923, 7
      %v3926 = vshll.u32 %v3805, 16
      %v3928 = vor.u32 %v3925, %v3926
      %v3929 = vsel %vm943, %v3922, %v3928
      %v3930 = vshrl.u32 %v3807, 16
      %v3932 = vrot.slane %v3930, 7
      %v3933 = vshrl.u32 %v3809, 16
      %v3935 = vrot.slane %v3933, 7
      %v3936 = vshll.u32 %v3809, 16
      %v3938 = vor.u32 %v3935, %v3936
      %v3939 = vsel %vm943, %v3932, %v3938
      %v3940 = vshrl.u32 %v3811, 16
      %v3942 = vrot.slane %v3940, 7
      %v3943 = vshrl.u32 %v3813, 16
      %v3945 = vrot.slane %v3943, 7
      %v3946 = vshll.u32 %v3813, 16
      %v3948 = vor.u32 %v3945, %v3946
      %v3949 = vsel %vm943, %v3942, %v3948
      %v3950 = vshrl.u32 %v3815, 16
      %v3952 = vrot.slane %v3950, 7
      %v3953 = vshrl.u32 %v3817, 16
      %v3955 = vrot.slane %v3953, 7
      %v3956 = vshll.u32 %v3817, 16
      %v3958 = vor.u32 %v3955, %v3956
      %v3959 = vsel %vm943, %v3952, %v3958
      %v3960 = vshrl.u32 %v3819, 16
      %v3962 = vrot.slane %v3960, 7
      %v3963 = vshrl.u32 %v3821, 16
      %v3965 = vrot.slane %v3963, 7
      %v3966 = vshll.u32 %v3821, 16
      %v3968 = vor.u32 %v3965, %v3966
      %v3969 = vsel %vm943, %v3962, %v3968
      %v3970 = vshrl.u32 %v3823, 16
      %v3972 = vrot.slane %v3970, 7
      %v3973 = vshrl.u32 %v3825, 16
      %v3975 = vrot.slane %v3973, 7
      %v3976 = vshll.u32 %v3825, 16
      %v3978 = vor.u32 %v3975, %v3976
      %v3979 = vsel %vm943, %v3972, %v3978
      %v3980 = vshrl.u32 %v3827, 16
      %v3982 = vrot.slane %v3980, 7
      %v3983 = vshrl.u32 %v3829, 16
      %v3985 = vrot.slane %v3983, 7
      %v3986 = vshll.u32 %v3829, 16
      %v3988 = vor.u32 %v3985, %v3986
      %v3989 = vsel %vm943, %v3982, %v3988
      %v3990 = vld [vmem:[%s412] sm:$0xff]
      %v3991 = vld [vmem:[%s412 + $0x8] sm:$0xff]
      %v3992 = vld [vmem:[%s412 + $0x10] sm:$0xff]
      %v3993 = vld [vmem:[%s412 + $0x18] sm:$0xff]
      %v3994 = vld [vmem:[%s412 + $0x20] sm:$0xff]
      %v3995 = vld [vmem:[%s412 + $0x28] sm:$0xff]
      %v3996 = vld [vmem:[%s412 + $0x30] sm:$0xff]
      %v3997 = vld [vmem:[%s412 + $0x38] sm:$0xff]
      %v3998 = vld [vmem:[%s412 + $0x40] sm:$0xff]
      %v3999 = vld [vmem:[%s412 + $0x48] sm:$0xff]
      %v4000 = vld [vmem:[%s412 + $0x50] sm:$0xff]
      %v4001 = vld [vmem:[%s412 + $0x58] sm:$0xff]
      %v4002 = vld [vmem:[%s412 + $0x60] sm:$0xff]
      %v4003 = vld [vmem:[%s412 + $0x68] sm:$0xff]
      %v4004 = vld [vmem:[%s412 + $0x70] sm:$0xff]
      %v4005 = vld [vmem:[%s412 + $0x78] sm:$0xff]
      %v4006 = vld [vmem:[%s412 + $0x80] sm:$0xff]
      %v4007 = vld [vmem:[%s412 + $0x88] sm:$0xff]
      %v4008 = vld [vmem:[%s412 + $0x90] sm:$0xff]
      %v4009 = vld [vmem:[%s412 + $0x98] sm:$0xff]
      %v4010 = vld [vmem:[%s412 + $0xa0] sm:$0xff]
      %v4011 = vld [vmem:[%s412 + $0xa8] sm:$0xff]
      %v4012 = vld [vmem:[%s412 + $0xb0] sm:$0xff]
      %v4013 = vld [vmem:[%s412 + $0xb8] sm:$0xff]
      %v4014 = vld [vmem:[%s412 + $0xc0] sm:$0xff]
      %v4015 = vld [vmem:[%s412 + $0xc8] sm:$0xff]
      %v4016 = vld [vmem:[%s412 + $0xd0] sm:$0xff]
      %v4017 = vld [vmem:[%s412 + $0xd8] sm:$0xff]
      %v4018 = vld [vmem:[%s412 + $0xe0] sm:$0xff]
      %v4019 = vld [vmem:[%s412 + $0xe8] sm:$0xff]
      %v4020 = vld [vmem:[%s412 + $0xf0] sm:$0xff]
      %v4021 = vld [vmem:[%s412 + $0xf8] sm:$0xff]
      %v4022 = vld [vmem:[%s412 + $0x100] sm:$0xff]
      %v4023 = vld [vmem:[%s412 + $0x108] sm:$0xff]
      %v4024 = vld [vmem:[%s412 + $0x110] sm:$0xff]
      %v4025 = vld [vmem:[%s412 + $0x118] sm:$0xff]
      %v4026 = vld [vmem:[%s412 + $0x120] sm:$0xff]
      %v4027 = vld [vmem:[%s412 + $0x128] sm:$0xff]
      %v4028 = vld [vmem:[%s412 + $0x130] sm:$0xff]
      %v4029 = vld [vmem:[%s412 + $0x138] sm:$0xff]
      %v4030 = vld [vmem:[%s412 + $0x140] sm:$0xff]
      %v4031 = vld [vmem:[%s412 + $0x148] sm:$0xff]
      %v4032 = vld [vmem:[%s412 + $0x150] sm:$0xff]
      %v4033 = vld [vmem:[%s412 + $0x158] sm:$0xff]
      %v4034 = vld [vmem:[%s412 + $0x160] sm:$0xff]
      %v4035 = vld [vmem:[%s412 + $0x168] sm:$0xff]
      %v4036 = vld [vmem:[%s412 + $0x170] sm:$0xff]
      %v4037 = vld [vmem:[%s412 + $0x178] sm:$0xff]
      %v4039 = vshll.u32 %v3991, 16
      %v4041 = vrot.slane %v4039, 1
      %v4042 = vshrl.u32 %v3991, 16
      %v4044 = vor.u32 %v4042, %v4041
      %v4046 = vshll.u32 %v3994, 16
      %v4048 = vrot.slane %v4046, 1
      %v4049 = vshrl.u32 %v3994, 16
      %v4051 = vor.u32 %v4049, %v4048
      %v4053 = vshll.u32 %v3997, 16
      %v4055 = vrot.slane %v4053, 1
      %v4056 = vshrl.u32 %v3997, 16
      %v4058 = vor.u32 %v4056, %v4055
      %v4060 = vshll.u32 %v4000, 16
      %v4062 = vrot.slane %v4060, 1
      %v4063 = vshrl.u32 %v4000, 16
      %v4065 = vor.u32 %v4063, %v4062
      %v4067 = vshll.u32 %v4003, 16
      %v4069 = vrot.slane %v4067, 1
      %v4070 = vshrl.u32 %v4003, 16
      %v4072 = vor.u32 %v4070, %v4069
      %v4074 = vshll.u32 %v4006, 16
      %v4076 = vrot.slane %v4074, 1
      %v4077 = vshrl.u32 %v4006, 16
      %v4079 = vor.u32 %v4077, %v4076
      %v4081 = vshll.u32 %v4009, 16
      %v4083 = vrot.slane %v4081, 1
      %v4084 = vshrl.u32 %v4009, 16
      %v4086 = vor.u32 %v4084, %v4083
      %v4088 = vshll.u32 %v4012, 16
      %v4090 = vrot.slane %v4088, 1
      %v4091 = vshrl.u32 %v4012, 16
      %v4093 = vor.u32 %v4091, %v4090
      %v4095 = vshll.u32 %v4015, 16
      %v4097 = vrot.slane %v4095, 1
      %v4098 = vshrl.u32 %v4015, 16
      %v4100 = vor.u32 %v4098, %v4097
      %v4102 = vshll.u32 %v4018, 16
      %v4104 = vrot.slane %v4102, 1
      %v4105 = vshrl.u32 %v4018, 16
      %v4107 = vor.u32 %v4105, %v4104
      %v4109 = vshll.u32 %v4021, 16
      %v4111 = vrot.slane %v4109, 1
      %v4112 = vshrl.u32 %v4021, 16
      %v4114 = vor.u32 %v4112, %v4111
      %v4116 = vshll.u32 %v4024, 16
      %v4118 = vrot.slane %v4116, 1
      %v4119 = vshrl.u32 %v4024, 16
      %v4121 = vor.u32 %v4119, %v4118
      %v4123 = vshll.u32 %v4027, 16
      %v4125 = vrot.slane %v4123, 1
      %v4126 = vshrl.u32 %v4027, 16
      %v4128 = vor.u32 %v4126, %v4125
      %v4130 = vshll.u32 %v4030, 16
      %v4132 = vrot.slane %v4130, 1
      %v4133 = vshrl.u32 %v4030, 16
      %v4135 = vor.u32 %v4133, %v4132
      %v4137 = vshll.u32 %v4033, 16
      %v4139 = vrot.slane %v4137, 1
      %v4140 = vshrl.u32 %v4033, 16
      %v4142 = vor.u32 %v4140, %v4139
      %v4144 = vshll.u32 %v4036, 16
      %v4146 = vrot.slane %v4144, 1
      %v4147 = vshrl.u32 %v4036, 16
      %v4149 = vor.u32 %v4147, %v4146
      %4150 = vrot.lane.b32.xlu0 %v4041, 8
      %v4151 = vpop.permute.xlu0 %4150
      %4152 = vrot.lane.b32.xlu0 %v4044, 8
      %v4153 = vpop.permute.xlu0 %4152
      %4154 = vrot.lane.b32.xlu0 %v4048, 8
      %v4155 = vpop.permute.xlu0 %4154
      %4156 = vrot.lane.b32.xlu0 %v4051, 8
      %v4157 = vpop.permute.xlu0 %4156
      %4158 = vrot.lane.b32.xlu0 %v4055, 8
      %v4159 = vpop.permute.xlu0 %4158
      %4160 = vrot.lane.b32.xlu0 %v4058, 8
      %v4161 = vpop.permute.xlu0 %4160
      %4162 = vrot.lane.b32.xlu0 %v4062, 8
      %v4163 = vpop.permute.xlu0 %4162
      %4164 = vrot.lane.b32.xlu0 %v4065, 8
      %v4165 = vpop.permute.xlu0 %4164
      %4166 = vrot.lane.b32.xlu0 %v4069, 8
      %v4167 = vpop.permute.xlu0 %4166
      %4168 = vrot.lane.b32.xlu0 %v4072, 8
      %v4169 = vpop.permute.xlu0 %4168
      %4170 = vrot.lane.b32.xlu0 %v4076, 8
      %v4171 = vpop.permute.xlu0 %4170
      %4172 = vrot.lane.b32.xlu0 %v4079, 8
      %v4173 = vpop.permute.xlu0 %4172
      %4174 = vrot.lane.b32.xlu0 %v4083, 8
      %v4175 = vpop.permute.xlu0 %4174
      %4176 = vrot.lane.b32.xlu0 %v4086, 8
      %v4177 = vpop.permute.xlu0 %4176
      %4178 = vrot.lane.b32.xlu0 %v4090, 8
      %v4179 = vpop.permute.xlu0 %4178
      %4180 = vrot.lane.b32.xlu0 %v4093, 8
      %v4181 = vpop.permute.xlu0 %4180
      %4182 = vrot.lane.b32.xlu0 %v4097, 8
      %v4183 = vpop.permute.xlu0 %4182
      %4184 = vrot.lane.b32.xlu0 %v4100, 8
      %v4185 = vpop.permute.xlu0 %4184
      %4186 = vrot.lane.b32.xlu0 %v4104, 8
      %v4187 = vpop.permute.xlu0 %4186
      %4188 = vrot.lane.b32.xlu0 %v4107, 8
      %v4189 = vpop.permute.xlu0 %4188
      %4190 = vrot.lane.b32.xlu0 %v4111, 8
      %v4191 = vpop.permute.xlu0 %4190
      %4192 = vrot.lane.b32.xlu0 %v4114, 8
      %v4193 = vpop.permute.xlu0 %4192
      %4194 = vrot.lane.b32.xlu0 %v4118, 8
      %v4195 = vpop.permute.xlu0 %4194
      %4196 = vrot.lane.b32.xlu0 %v4121, 8
      %v4197 = vpop.permute.xlu0 %4196
      %4198 = vrot.lane.b32.xlu0 %v4125, 8
      %v4199 = vpop.permute.xlu0 %4198
      %4200 = vrot.lane.b32.xlu0 %v4128, 8
      %v4201 = vpop.permute.xlu0 %4200
      %4202 = vrot.lane.b32.xlu0 %v4132, 8
      %v4203 = vpop.permute.xlu0 %4202
      %4204 = vrot.lane.b32.xlu0 %v4135, 8
      %v4205 = vpop.permute.xlu0 %4204
      %4206 = vrot.lane.b32.xlu0 %v4139, 8
      %v4207 = vpop.permute.xlu0 %4206
      %4208 = vrot.lane.b32.xlu0 %v4142, 8
      %v4209 = vpop.permute.xlu0 %4208
      %4210 = vrot.lane.b32.xlu0 %v4146, 8
      %v4211 = vpop.permute.xlu0 %4210
      %4212 = vrot.lane.b32.xlu0 %v4149, 8
      %v4213 = vpop.permute.xlu0 %4212
      %v4246 = vrot.slane %v3991, 1
      %v4247 = vrot.slane %v3992, 1
      %v4248 = vsel %vm685, %v4246, %v4247
      %v4249 = vrot.slane %v3994, 1
      %v4250 = vrot.slane %v3995, 1
      %v4251 = vsel %vm685, %v4249, %v4250
      %v4252 = vrot.slane %v3997, 1
      %v4253 = vrot.slane %v3998, 1
      %v4254 = vsel %vm685, %v4252, %v4253
      %v4255 = vrot.slane %v4000, 1
      %v4256 = vrot.slane %v4001, 1
      %v4257 = vsel %vm685, %v4255, %v4256
      %v4258 = vrot.slane %v4003, 1
      %v4259 = vrot.slane %v4004, 1
      %v4260 = vsel %vm685, %v4258, %v4259
      %v4261 = vrot.slane %v4006, 1
      %v4262 = vrot.slane %v4007, 1
      %v4263 = vsel %vm685, %v4261, %v4262
      %v4264 = vrot.slane %v4009, 1
      %v4265 = vrot.slane %v4010, 1
      %v4266 = vsel %vm685, %v4264, %v4265
      %v4267 = vrot.slane %v4012, 1
      %v4268 = vrot.slane %v4013, 1
      %v4269 = vsel %vm685, %v4267, %v4268
      %v4270 = vrot.slane %v4015, 1
      %v4271 = vrot.slane %v4016, 1
      %v4272 = vsel %vm685, %v4270, %v4271
      %v4273 = vrot.slane %v4018, 1
      %v4274 = vrot.slane %v4019, 1
      %v4275 = vsel %vm685, %v4273, %v4274
      %v4276 = vrot.slane %v4021, 1
      %v4277 = vrot.slane %v4022, 1
      %v4278 = vsel %vm685, %v4276, %v4277
      %v4279 = vrot.slane %v4024, 1
      %v4280 = vrot.slane %v4025, 1
      %v4281 = vsel %vm685, %v4279, %v4280
      %v4282 = vrot.slane %v4027, 1
      %v4283 = vrot.slane %v4028, 1
      %v4284 = vsel %vm685, %v4282, %v4283
      %v4285 = vrot.slane %v4030, 1
      %v4286 = vrot.slane %v4031, 1
      %v4287 = vsel %vm685, %v4285, %v4286
      %v4288 = vrot.slane %v4033, 1
      %v4289 = vrot.slane %v4034, 1
      %v4290 = vsel %vm685, %v4288, %v4289
      %v4291 = vrot.slane %v4036, 1
      %v4292 = vrot.slane %v4037, 1
      %v4293 = vsel %vm685, %v4291, %v4292
      %4294 = vrot.lane.b32.xlu0 %v4246, 16
      %v4295 = vpop.permute.xlu0 %4294
      %4296 = vrot.lane.b32.xlu0 %v4248, 16
      %v4297 = vpop.permute.xlu0 %4296
      %4298 = vrot.lane.b32.xlu0 %v4249, 16
      %v4299 = vpop.permute.xlu0 %4298
      %4300 = vrot.lane.b32.xlu0 %v4251, 16
      %v4301 = vpop.permute.xlu0 %4300
      %4302 = vrot.lane.b32.xlu0 %v4252, 16
      %v4303 = vpop.permute.xlu0 %4302
      %4304 = vrot.lane.b32.xlu0 %v4254, 16
      %v4305 = vpop.permute.xlu0 %4304
      %4306 = vrot.lane.b32.xlu0 %v4255, 16
      %v4307 = vpop.permute.xlu0 %4306
      %4308 = vrot.lane.b32.xlu0 %v4257, 16
      %v4309 = vpop.permute.xlu0 %4308
      %4310 = vrot.lane.b32.xlu0 %v4258, 16
      %v4311 = vpop.permute.xlu0 %4310
      %4312 = vrot.lane.b32.xlu0 %v4260, 16
      %v4313 = vpop.permute.xlu0 %4312
      %4314 = vrot.lane.b32.xlu0 %v4261, 16
      %v4315 = vpop.permute.xlu0 %4314
      %4316 = vrot.lane.b32.xlu0 %v4263, 16
      %v4317 = vpop.permute.xlu0 %4316
      %4318 = vrot.lane.b32.xlu0 %v4264, 16
      %v4319 = vpop.permute.xlu0 %4318
      %4320 = vrot.lane.b32.xlu0 %v4266, 16
      %v4321 = vpop.permute.xlu0 %4320
      %4322 = vrot.lane.b32.xlu0 %v4267, 16
      %v4323 = vpop.permute.xlu0 %4322
      %4324 = vrot.lane.b32.xlu0 %v4269, 16
      %v4325 = vpop.permute.xlu0 %4324
      %4326 = vrot.lane.b32.xlu0 %v4270, 16
      %v4327 = vpop.permute.xlu0 %4326
      %4328 = vrot.lane.b32.xlu0 %v4272, 16
      %v4329 = vpop.permute.xlu0 %4328
      %4330 = vrot.lane.b32.xlu0 %v4273, 16
      %v4331 = vpop.permute.xlu0 %4330
      %4332 = vrot.lane.b32.xlu0 %v4275, 16
      %v4333 = vpop.permute.xlu0 %4332
      %4334 = vrot.lane.b32.xlu0 %v4276, 16
      %v4335 = vpop.permute.xlu0 %4334
      %4336 = vrot.lane.b32.xlu0 %v4278, 16
      %v4337 = vpop.permute.xlu0 %4336
      %4338 = vrot.lane.b32.xlu0 %v4279, 16
      %v4339 = vpop.permute.xlu0 %4338
      %4340 = vrot.lane.b32.xlu0 %v4281, 16
      %v4341 = vpop.permute.xlu0 %4340
      %4342 = vrot.lane.b32.xlu0 %v4282, 16
      %v4343 = vpop.permute.xlu0 %4342
      %4344 = vrot.lane.b32.xlu0 %v4284, 16
      %v4345 = vpop.permute.xlu0 %4344
      %4346 = vrot.lane.b32.xlu0 %v4285, 16
      %v4347 = vpop.permute.xlu0 %4346
      %4348 = vrot.lane.b32.xlu0 %v4287, 16
      %v4349 = vpop.permute.xlu0 %4348
      %4350 = vrot.lane.b32.xlu0 %v4288, 16
      %v4351 = vpop.permute.xlu0 %4350
      %4352 = vrot.lane.b32.xlu0 %v4290, 16
      %v4353 = vpop.permute.xlu0 %4352
      %4354 = vrot.lane.b32.xlu0 %v4291, 16
      %v4355 = vpop.permute.xlu0 %4354
      %4356 = vrot.lane.b32.xlu0 %v4293, 16
      %v4357 = vpop.permute.xlu0 %4356
      %v4360 = vsel %vm199, %v3990, %v4151
      %v4362 = vsel %vm199, %v3991, %v4153
      %v4365 = vsel %vm199, %v3993, %v4155
      %v4367 = vsel %vm199, %v3994, %v4157
      %v4370 = vsel %vm199, %v3996, %v4159
      %v4372 = vsel %vm199, %v3997, %v4161
      %v4375 = vsel %vm199, %v3999, %v4163
      %v4377 = vsel %vm199, %v4000, %v4165
      %v4380 = vsel %vm199, %v4002, %v4167
      %v4382 = vsel %vm199, %v4003, %v4169
      %v4385 = vsel %vm199, %v4005, %v4171
      %v4387 = vsel %vm199, %v4006, %v4173
      %v4390 = vsel %vm199, %v4008, %v4175
      %v4392 = vsel %vm199, %v4009, %v4177
      %v4395 = vsel %vm199, %v4011, %v4179
      %v4397 = vsel %vm199, %v4012, %v4181
      %v4400 = vsel %vm199, %v4014, %v4183
      %v4402 = vsel %vm199, %v4015, %v4185
      %v4405 = vsel %vm199, %v4017, %v4187
      %v4407 = vsel %vm199, %v4018, %v4189
      %v4410 = vsel %vm199, %v4020, %v4191
      %v4412 = vsel %vm199, %v4021, %v4193
      %v4415 = vsel %vm199, %v4023, %v4195
      %v4417 = vsel %vm199, %v4024, %v4197
      %v4420 = vsel %vm199, %v4026, %v4199
      %v4422 = vsel %vm199, %v4027, %v4201
      %v4425 = vsel %vm199, %v4029, %v4203
      %v4427 = vsel %vm199, %v4030, %v4205
      %v4430 = vsel %vm199, %v4032, %v4207
      %v4432 = vsel %vm199, %v4033, %v4209
      %v4435 = vsel %vm199, %v4035, %v4211
      %v4437 = vsel %vm199, %v4036, %v4213
      %v4439 = vsel %vm878, %v4360, %v4295
      %v4441 = vsel %vm878, %v4362, %v4297
      %v4443 = vsel %vm878, %v4365, %v4299
      %v4445 = vsel %vm878, %v4367, %v4301
      %v4447 = vsel %vm878, %v4370, %v4303
      %v4449 = vsel %vm878, %v4372, %v4305
      %v4451 = vsel %vm878, %v4375, %v4307
      %v4453 = vsel %vm878, %v4377, %v4309
      %v4455 = vsel %vm878, %v4380, %v4311
      %v4457 = vsel %vm878, %v4382, %v4313
      %v4459 = vsel %vm878, %v4385, %v4315
      %v4461 = vsel %vm878, %v4387, %v4317
      %v4463 = vsel %vm878, %v4390, %v4319
      %v4465 = vsel %vm878, %v4392, %v4321
      %v4467 = vsel %vm878, %v4395, %v4323
      %v4469 = vsel %vm878, %v4397, %v4325
      %v4471 = vsel %vm878, %v4400, %v4327
      %v4473 = vsel %vm878, %v4402, %v4329
      %v4475 = vsel %vm878, %v4405, %v4331
      %v4477 = vsel %vm878, %v4407, %v4333
      %v4479 = vsel %vm878, %v4410, %v4335
      %v4481 = vsel %vm878, %v4412, %v4337
      %v4483 = vsel %vm878, %v4415, %v4339
      %v4485 = vsel %vm878, %v4417, %v4341
      %v4487 = vsel %vm878, %v4420, %v4343
      %v4489 = vsel %vm878, %v4422, %v4345
      %v4491 = vsel %vm878, %v4425, %v4347
      %v4493 = vsel %vm878, %v4427, %v4349
      %v4495 = vsel %vm878, %v4430, %v4351
      %v4497 = vsel %vm878, %v4432, %v4353
      %v4499 = vsel %vm878, %v4435, %v4355
      %v4501 = vsel %vm878, %v4437, %v4357
      %v4502 = vshrl.u32 %v4439, 16
      %v4504 = vrot.slane %v4502, 7
      %v4505 = vshrl.u32 %v4441, 16
      %v4507 = vrot.slane %v4505, 7
      %v4508 = vshll.u32 %v4441, 16
      %v4510 = vor.u32 %v4507, %v4508
      %v4511 = vsel %vm943, %v4504, %v4510
      %v4512 = vshrl.u32 %v4443, 16
      %v4514 = vrot.slane %v4512, 7
      %v4515 = vshrl.u32 %v4445, 16
      %v4517 = vrot.slane %v4515, 7
      %v4518 = vshll.u32 %v4445, 16
      %v4520 = vor.u32 %v4517, %v4518
      %v4521 = vsel %vm943, %v4514, %v4520
      %v4522 = vshrl.u32 %v4447, 16
      %v4524 = vrot.slane %v4522, 7
      %v4525 = vshrl.u32 %v4449, 16
      %v4527 = vrot.slane %v4525, 7
      %v4528 = vshll.u32 %v4449, 16
      %v4530 = vor.u32 %v4527, %v4528
      %v4531 = vsel %vm943, %v4524, %v4530
      %v4532 = vshrl.u32 %v4451, 16
      %v4534 = vrot.slane %v4532, 7
      %v4535 = vshrl.u32 %v4453, 16
      %v4537 = vrot.slane %v4535, 7
      %v4538 = vshll.u32 %v4453, 16
      %v4540 = vor.u32 %v4537, %v4538
      %v4541 = vsel %vm943, %v4534, %v4540
      %v4542 = vshrl.u32 %v4455, 16
      %v4544 = vrot.slane %v4542, 7
      %v4545 = vshrl.u32 %v4457, 16
      %v4547 = vrot.slane %v4545, 7
      %v4548 = vshll.u32 %v4457, 16
      %v4550 = vor.u32 %v4547, %v4548
      %v4551 = vsel %vm943, %v4544, %v4550
      %v4552 = vshrl.u32 %v4459, 16
      %v4554 = vrot.slane %v4552, 7
      %v4555 = vshrl.u32 %v4461, 16
      %v4557 = vrot.slane %v4555, 7
      %v4558 = vshll.u32 %v4461, 16
      %v4560 = vor.u32 %v4557, %v4558
      %v4561 = vsel %vm943, %v4554, %v4560
      %v4562 = vshrl.u32 %v4463, 16
      %v4564 = vrot.slane %v4562, 7
      %v4565 = vshrl.u32 %v4465, 16
      %v4567 = vrot.slane %v4565, 7
      %v4568 = vshll.u32 %v4465, 16
      %v4570 = vor.u32 %v4567, %v4568
      %v4571 = vsel %vm943, %v4564, %v4570
      %v4572 = vshrl.u32 %v4467, 16
      %v4574 = vrot.slane %v4572, 7
      %v4575 = vshrl.u32 %v4469, 16
      %v4577 = vrot.slane %v4575, 7
      %v4578 = vshll.u32 %v4469, 16
      %v4580 = vor.u32 %v4577, %v4578
      %v4581 = vsel %vm943, %v4574, %v4580
      %v4582 = vshrl.u32 %v4471, 16
      %v4584 = vrot.slane %v4582, 7
      %v4585 = vshrl.u32 %v4473, 16
      %v4587 = vrot.slane %v4585, 7
      %v4588 = vshll.u32 %v4473, 16
      %v4590 = vor.u32 %v4587, %v4588
      %v4591 = vsel %vm943, %v4584, %v4590
      %v4592 = vshrl.u32 %v4475, 16
      %v4594 = vrot.slane %v4592, 7
      %v4595 = vshrl.u32 %v4477, 16
      %v4597 = vrot.slane %v4595, 7
      %v4598 = vshll.u32 %v4477, 16
      %v4600 = vor.u32 %v4597, %v4598
      %v4601 = vsel %vm943, %v4594, %v4600
      %v4602 = vshrl.u32 %v4479, 16
      %v4604 = vrot.slane %v4602, 7
      %v4605 = vshrl.u32 %v4481, 16
      %v4607 = vrot.slane %v4605, 7
      %v4608 = vshll.u32 %v4481, 16
      %v4610 = vor.u32 %v4607, %v4608
      %v4611 = vsel %vm943, %v4604, %v4610
      %v4612 = vshrl.u32 %v4483, 16
      %v4614 = vrot.slane %v4612, 7
      %v4615 = vshrl.u32 %v4485, 16
      %v4617 = vrot.slane %v4615, 7
      %v4618 = vshll.u32 %v4485, 16
      %v4620 = vor.u32 %v4617, %v4618
      %v4621 = vsel %vm943, %v4614, %v4620
      %v4622 = vshrl.u32 %v4487, 16
      %v4624 = vrot.slane %v4622, 7
      %v4625 = vshrl.u32 %v4489, 16
      %v4627 = vrot.slane %v4625, 7
      %v4628 = vshll.u32 %v4489, 16
      %v4630 = vor.u32 %v4627, %v4628
      %v4631 = vsel %vm943, %v4624, %v4630
      %v4632 = vshrl.u32 %v4491, 16
      %v4634 = vrot.slane %v4632, 7
      %v4635 = vshrl.u32 %v4493, 16
      %v4637 = vrot.slane %v4635, 7
      %v4638 = vshll.u32 %v4493, 16
      %v4640 = vor.u32 %v4637, %v4638
      %v4641 = vsel %vm943, %v4634, %v4640
      %v4642 = vshrl.u32 %v4495, 16
      %v4644 = vrot.slane %v4642, 7
      %v4645 = vshrl.u32 %v4497, 16
      %v4647 = vrot.slane %v4645, 7
      %v4648 = vshll.u32 %v4497, 16
      %v4650 = vor.u32 %v4647, %v4648
      %v4651 = vsel %vm943, %v4644, %v4650
      %v4652 = vshrl.u32 %v4499, 16
      %v4654 = vrot.slane %v4652, 7
      %v4655 = vshrl.u32 %v4501, 16
      %v4657 = vrot.slane %v4655, 7
      %v4658 = vshll.u32 %v4501, 16
      %v4660 = vor.u32 %v4657, %v4658
      %v4661 = vsel %vm943, %v4654, %v4660
      %v4663 = vsel %vm1785, %v4511, 0
      %v4666 = vsel %vm1785, %v4521, 0
      %v4669 = vsel %vm1785, %v4531, 0
      %v4672 = vsel %vm1785, %v4541, 0
      %v4675 = vsel %vm1785, %v4551, 0
      %v4678 = vsel %vm1785, %v4561, 0
      %v4681 = vsel %vm1785, %v4571, 0
      %v4684 = vsel %vm1785, %v4581, 0
      %v4687 = vsel %vm1785, %v4591, 0
      %v4690 = vsel %vm1785, %v4601, 0
      %v4693 = vsel %vm1785, %v4611, 0
      %v4696 = vsel %vm1785, %v4621, 0
      %v4699 = vsel %vm1785, %v4631, 0
      %v4702 = vsel %vm1785, %v4641, 0
      %v4705 = vsel %vm1785, %v4651, 0
      %v4708 = vsel %vm1785, %v4661, 0
      %4710 = vmatprep.subr.bf16.mxu0 0
      %4711 = vmatpush1.bf16.msra.mxu0 %v1782
      %4712 = vmatprep.subr.bf16.mxu0 0
      %4713 = vmatpush1.bf16.msra.mxu0 %v1836
      %4714 = vmatprep.subr.bf16.mxu0 0
      %4715 = vmatpush1.bf16.msra.mxu0 0
      %4716 = vmatprep.subr.bf16.mxu0 0
      %4717 = vmatpush1.bf16.msra.mxu0 0
      %4718 = vmatprep.subr.bf16.mxu0 0
      %4719 = vmatpush1.bf16.msra.mxu0 0
      %4720 = vmatprep.subr.bf16.mxu0 0
      %4721 = vmatpush1.bf16.msra.mxu0 0
      %4722 = vmatprep.subr.bf16.mxu0 0
      %4723 = vmatpush1.bf16.msra.mxu0 0
      %4724 = vmatprep.subr.bf16.mxu0 0
      %4725 = vmatpush1.bf16.msra.mxu0 0
      %4726 = vmatprep.subr.bf16.mxu0 0
      %4727 = vmatpush1.bf16.msra.mxu0 0
      %4728 = vmatprep.subr.bf16.mxu0 0
      %4729 = vmatpush1.bf16.msra.mxu0 0
      %4730 = vmatprep.subr.bf16.mxu0 0
      %4731 = vmatpush1.bf16.msra.mxu0 0
      %4732 = vmatprep.subr.bf16.mxu0 0
      %4733 = vmatpush1.bf16.msra.mxu0 0
      %4734 = vmatprep.subr.bf16.mxu0 0
      %4735 = vmatpush1.bf16.msra.mxu0 0
      %4736 = vmatprep.subr.bf16.mxu0 0
      %4737 = vmatpush1.bf16.msra.mxu0 0
      %4738 = vmatprep.subr.bf16.mxu0 0
      %4739 = vmatpush1.bf16.msra.mxu0 0
      %4740 = vmatprep.subr.bf16.mxu0 0
      %4741 = vmatpush1.bf16.msra.mxu0 0
      %4742 = vmatprep.mubr.bf16.mxu0 0
      %4743 = vmatmul.mubr.bf16.gmra.mrb[0].mxu0 %v4663
      %v4744 = vpop.f32.mrb[0].mxu0
      %v4745 = vadd.f32 0.0, %v4744
      %v4746 = vpop.f32.mrb[0].mxu0
      %v4747 = vpop.f32.mrb[0].mxu0
      %v4748 = vadd.f32 0.0, %v4747
      %v4749 = vpop.f32.mrb[0].mxu0
      %4750 = vmatprep.mubr.bf16.mxu0 0
      %4751 = vmatmul.mubr.bf16.gmra.mrb[0].mxu0 %v4666
      %v4752 = vpop.f32.mrb[0].mxu0
      %v4753 = vadd.f32 0.0, %v4752
      %v4754 = vpop.f32.mrb[0].mxu0
      %v4755 = vpop.f32.mrb[0].mxu0
      %v4756 = vadd.f32 0.0, %v4755
      %v4757 = vpop.f32.mrb[0].mxu0
      %4758 = vmatprep.mubr.bf16.mxu0 0
      %4759 = vmatmul.mubr.bf16.gmra.mrb[0].mxu0 %v4669
      %v4760 = vpop.f32.mrb[0].mxu0
      %v4761 = vadd.f32 0.0, %v4760
      %v4762 = vpop.f32.mrb[0].mxu0
      %v4763 = vpop.f32.mrb[0].mxu0
      %v4764 = vadd.f32 0.0, %v4763
      %v4765 = vpop.f32.mrb[0].mxu0
      %4766 = vmatprep.mubr.bf16.mxu0 0
      %4767 = vmatmul.mubr.bf16.gmra.mrb[0].mxu0 %v4672
      %v4768 = vpop.f32.mrb[0].mxu0
      %v4769 = vadd.f32 0.0, %v4768
      %v4770 = vpop.f32.mrb[0].mxu0
      %v4771 = vpop.f32.mrb[0].mxu0
      %v4772 = vadd.f32 0.0, %v4771
      %v4773 = vpop.f32.mrb[0].mxu0
      %4774 = vmatprep.mubr.bf16.mxu0 0
      %4775 = vmatmul.mubr.bf16.gmra.mrb[0].mxu0 %v4675
      %v4776 = vpop.f32.mrb[0].mxu0
      %v4777 = vadd.f32 0.0, %v4776
      %v4778 = vpop.f32.mrb[0].mxu0
      %v4779 = vpop.f32.mrb[0].mxu0
      %v4780 = vadd.f32 0.0, %v4779
      %v4781 = vpop.f32.mrb[0].mxu0
      %4782 = vmatprep.mubr.bf16.mxu0 0
      %4783 = vmatmul.mubr.bf16.gmra.mrb[0].mxu0 %v4678
      %v4784 = vpop.f32.mrb[0].mxu0
      %v4785 = vadd.f32 0.0, %v4784
      %v4786 = vpop.f32.mrb[0].mxu0
      %v4787 = vpop.f32.mrb[0].mxu0
      %v4788 = vadd.f32 0.0, %v4787
      %v4789 = vpop.f32.mrb[0].mxu0
      %4790 = vmatprep.mubr.bf16.mxu0 0
      %4791 = vmatmul.mubr.bf16.gmra.mrb[0].mxu0 %v4681
      %v4792 = vpop.f32.mrb[0].mxu0
      %v4793 = vadd.f32 0.0, %v4792
      %v4794 = vpop.f32.mrb[0].mxu0
      %v4795 = vpop.f32.mrb[0].mxu0
      %v4796 = vadd.f32 0.0, %v4795
      %v4797 = vpop.f32.mrb[0].mxu0
      %4798 = vmatprep.mubr.bf16.mxu0 0
      %4799 = vmatmul.mubr.bf16.gmra.mrb[0].mxu0 %v4684
      %v4800 = vpop.f32.mrb[0].mxu0
      %v4801 = vadd.f32 0.0, %v4800
      %v4802 = vpop.f32.mrb[0].mxu0
      %v4803 = vpop.f32.mrb[0].mxu0
      %v4804 = vadd.f32 0.0, %v4803
      %v4805 = vpop.f32.mrb[0].mxu0
      %4806 = vmatprep.mubr.bf16.mxu0 0
      %4807 = vmatmul.mubr.bf16.gmra.mrb[0].mxu0 %v4687
      %v4808 = vpop.f32.mrb[0].mxu0
      %v4809 = vadd.f32 0.0, %v4808
      %v4810 = vpop.f32.mrb[0].mxu0
      %v4811 = vpop.f32.mrb[0].mxu0
      %v4812 = vadd.f32 0.0, %v4811
      %v4813 = vpop.f32.mrb[0].mxu0
      %4814 = vmatprep.mubr.bf16.mxu0 0
      %4815 = vmatmul.mubr.bf16.gmra.mrb[0].mxu0 %v4690
      %v4816 = vpop.f32.mrb[0].mxu0
      %v4817 = vadd.f32 0.0, %v4816
      %v4818 = vpop.f32.mrb[0].mxu0
      %v4819 = vpop.f32.mrb[0].mxu0
      %v4820 = vadd.f32 0.0, %v4819
      %v4821 = vpop.f32.mrb[0].mxu0
      %4822 = vmatprep.mubr.bf16.mxu0 0
      %4823 = vmatmul.mubr.bf16.gmra.mrb[0].mxu0 %v4693
      %v4824 = vpop.f32.mrb[0].mxu0
      %v4825 = vadd.f32 0.0, %v4824
      %v4826 = vpop.f32.mrb[0].mxu0
      %v4827 = vpop.f32.mrb[0].mxu0
      %v4828 = vadd.f32 0.0, %v4827
      %v4829 = vpop.f32.mrb[0].mxu0
      %4830 = vmatprep.mubr.bf16.mxu0 0
      %4831 = vmatmul.mubr.bf16.gmra.mrb[0].mxu0 %v4696
      %v4832 = vpop.f32.mrb[0].mxu0
      %v4833 = vadd.f32 0.0, %v4832
      %v4834 = vpop.f32.mrb[0].mxu0
      %v4835 = vpop.f32.mrb[0].mxu0
      %v4836 = vadd.f32 0.0, %v4835
      %v4837 = vpop.f32.mrb[0].mxu0
      %4838 = vmatprep.mubr.bf16.mxu0 0
      %4839 = vmatmul.mubr.bf16.gmra.mrb[0].mxu0 %v4699
      %v4840 = vpop.f32.mrb[0].mxu0
      %v4841 = vadd.f32 0.0, %v4840
      %v4842 = vpop.f32.mrb[0].mxu0
      %v4843 = vpop.f32.mrb[0].mxu0
      %v4844 = vadd.f32 0.0, %v4843
      %v4845 = vpop.f32.mrb[0].mxu0
      %4846 = vmatprep.mubr.bf16.mxu0 0
      %4847 = vmatmul.mubr.bf16.gmra.mrb[0].mxu0 %v4702
      %v4848 = vpop.f32.mrb[0].mxu0
      %v4849 = vadd.f32 0.0, %v4848
      %v4850 = vpop.f32.mrb[0].mxu0
      %v4851 = vpop.f32.mrb[0].mxu0
      %v4852 = vadd.f32 0.0, %v4851
      %v4853 = vpop.f32.mrb[0].mxu0
      %4854 = vmatprep.mubr.bf16.mxu0 0
      %4855 = vmatmul.mubr.bf16.gmra.mrb[0].mxu0 %v4705
      %v4856 = vpop.f32.mrb[0].mxu0
      %v4857 = vadd.f32 0.0, %v4856
      %v4858 = vpop.f32.mrb[0].mxu0
      %v4859 = vpop.f32.mrb[0].mxu0
      %v4860 = vadd.f32 0.0, %v4859
      %v4861 = vpop.f32.mrb[0].mxu0
      %4862 = vmatprep.mubr.bf16.mxu0 0
      %4863 = vmatmul.mubr.bf16.gmra.mrb[0].mxu0 %v4708
      %v4864 = vpop.f32.mrb[0].mxu0
      %v4865 = vadd.f32 0.0, %v4864
      %v4866 = vpop.f32.mrb[0].mxu0
      %v4867 = vpop.f32.mrb[0].mxu0
      %v4868 = vadd.f32 0.0, %v4867
      %v4869 = vpop.f32.mrb[0].mxu0
      %4870 = vdwg.mxu0
      %v4872 = vsel %vm1785, %v3839, 0
      %v4875 = vsel %vm1785, %v3849, 0
      %v4878 = vsel %vm1785, %v3859, 0
      %v4881 = vsel %vm1785, %v3869, 0
      %v4884 = vsel %vm1785, %v3879, 0
      %v4887 = vsel %vm1785, %v3889, 0
      %v4890 = vsel %vm1785, %v3899, 0
      %v4893 = vsel %vm1785, %v3909, 0
      %v4896 = vsel %vm1785, %v3919, 0
      %v4899 = vsel %vm1785, %v3929, 0
      %v4902 = vsel %vm1785, %v3939, 0
      %v4905 = vsel %vm1785, %v3949, 0
      %v4908 = vsel %vm1785, %v3959, 0
      %v4911 = vsel %vm1785, %v3969, 0
      %v4914 = vsel %vm1785, %v3979, 0
      %v4917 = vsel %vm1785, %v3989, 0
      %4919 = vmatprep.subr.bf16.mxu0 0
      %4920 = vmatpush1.bf16.msra.mxu0 %v2005
      %4921 = vmatprep.subr.bf16.mxu0 0
      %4922 = vmatpush1.bf16.msra.mxu0 %v2057
      %4923 = vmatprep.subr.bf16.mxu0 0
      %4924 = vmatpush1.bf16.msra.mxu0 0
      %4925 = vmatprep.subr.bf16.mxu0 0
      %4926 = vmatpush1.bf16.msra.mxu0 0
      %4927 = vmatprep.subr.bf16.mxu0 0
      %4928 = vmatpush1.bf16.msra.mxu0 0
      %4929 = vmatprep.subr.bf16.mxu0 0
      %4930 = vmatpush1.bf16.msra.mxu0 0
      %4931 = vmatprep.subr.bf16.mxu0 0
      %4932 = vmatpush1.bf16.msra.mxu0 0
      %4933 = vmatprep.subr.bf16.mxu0 0
      %4934 = vmatpush1.bf16.msra.mxu0 0
      %4935 = vmatprep.subr.bf16.mxu0 0
      %4936 = vmatpush1.bf16.msra.mxu0 0
      %4937 = vmatprep.subr.bf16.mxu0 0
      %4938 = vmatpush1.bf16.msra.mxu0 0
      %4939 = vmatprep.subr.bf16.mxu0 0
      %4940 = vmatpush1.bf16.msra.mxu0 0
      %4941 = vmatprep.subr.bf16.mxu0 0
      %4942 = vmatpush1.bf16.msra.mxu0 0
      %4943 = vmatprep.subr.bf16.mxu0 0
      %4944 = vmatpush1.bf16.msra.mxu0 0
      %4945 = vmatprep.subr.bf16.mxu0 0
      %4946 = vmatpush1.bf16.msra.mxu0 0
      %4947 = vmatprep.subr.bf16.mxu0 0
      %4948 = vmatpush1.bf16.msra.mxu0 0
      %4949 = vmatprep.subr.bf16.mxu0 0
      %4950 = vmatpush1.bf16.msra.mxu0 0
      %4951 = vmatprep.mubr.bf16.mxu0 0
      %4952 = vmatmul.mubr.bf16.gmra.mrb[0].mxu0 %v4872
      %v4953 = vpop.f32.mrb[0].mxu0
      %v4954 = vadd.f32 %v4745, %v4953
      %v4955 = vpop.f32.mrb[0].mxu0
      %v4956 = vpop.f32.mrb[0].mxu0
      %v4957 = vadd.f32 %v4748, %v4956
      %v4958 = vpop.f32.mrb[0].mxu0
      %4959 = vmatprep.mubr.bf16.mxu0 0
      %4960 = vmatmul.mubr.bf16.gmra.mrb[0].mxu0 %v4875
      %v4961 = vpop.f32.mrb[0].mxu0
      %v4962 = vadd.f32 %v4753, %v4961
      %v4963 = vpop.f32.mrb[0].mxu0
      %v4964 = vpop.f32.mrb[0].mxu0
      %v4965 = vadd.f32 %v4756, %v4964
      %v4966 = vpop.f32.mrb[0].mxu0
      %4967 = vmatprep.mubr.bf16.mxu0 0
      %4968 = vmatmul.mubr.bf16.gmra.mrb[0].mxu0 %v4878
      %v4969 = vpop.f32.mrb[0].mxu0
      %v4970 = vadd.f32 %v4761, %v4969
      %v4971 = vpop.f32.mrb[0].mxu0
      %v4972 = vpop.f32.mrb[0].mxu0
      %v4973 = vadd.f32 %v4764, %v4972
      %v4974 = vpop.f32.mrb[0].mxu0
      %4975 = vmatprep.mubr.bf16.mxu0 0
      %4976 = vmatmul.mubr.bf16.gmra.mrb[0].mxu0 %v4881
      %v4977 = vpop.f32.mrb[0].mxu0
      %v4978 = vadd.f32 %v4769, %v4977
      %v4979 = vpop.f32.mrb[0].mxu0
      %v4980 = vpop.f32.mrb[0].mxu0
      %v4981 = vadd.f32 %v4772, %v4980
      %v4982 = vpop.f32.mrb[0].mxu0
      %4983 = vmatprep.mubr.bf16.mxu0 0
      %4984 = vmatmul.mubr.bf16.gmra.mrb[0].mxu0 %v4884
      %v4985 = vpop.f32.mrb[0].mxu0
      %v4986 = vadd.f32 %v4777, %v4985
      %v4987 = vpop.f32.mrb[0].mxu0
      %v4988 = vpop.f32.mrb[0].mxu0
      %v4989 = vadd.f32 %v4780, %v4988
      %v4990 = vpop.f32.mrb[0].mxu0
      %4991 = vmatprep.mubr.bf16.mxu0 0
      %4992 = vmatmul.mubr.bf16.gmra.mrb[0].mxu0 %v4887
      %v4993 = vpop.f32.mrb[0].mxu0
      %v4994 = vadd.f32 %v4785, %v4993
      %v4995 = vpop.f32.mrb[0].mxu0
      %v4996 = vpop.f32.mrb[0].mxu0
      %v4997 = vadd.f32 %v4788, %v4996
      %v4998 = vpop.f32.mrb[0].mxu0
      %4999 = vmatprep.mubr.bf16.mxu0 0
      %5000 = vmatmul.mubr.bf16.gmra.mrb[0].mxu0 %v4890
      %v5001 = vpop.f32.mrb[0].mxu0
      %v5002 = vadd.f32 %v4793, %v5001
      %v5003 = vpop.f32.mrb[0].mxu0
      %v5004 = vpop.f32.mrb[0].mxu0
      %v5005 = vadd.f32 %v4796, %v5004
      %v5006 = vpop.f32.mrb[0].mxu0
      %5007 = vmatprep.mubr.bf16.mxu0 0
      %5008 = vmatmul.mubr.bf16.gmra.mrb[0].mxu0 %v4893
      %v5009 = vpop.f32.mrb[0].mxu0
      %v5010 = vadd.f32 %v4801, %v5009
      %v5011 = vpop.f32.mrb[0].mxu0
      %v5012 = vpop.f32.mrb[0].mxu0
      %v5013 = vadd.f32 %v4804, %v5012
      %v5014 = vpop.f32.mrb[0].mxu0
      %5015 = vmatprep.mubr.bf16.mxu0 0
      %5016 = vmatmul.mubr.bf16.gmra.mrb[0].mxu0 %v4896
      %v5017 = vpop.f32.mrb[0].mxu0
      %v5018 = vadd.f32 %v4809, %v5017
      %v5019 = vpop.f32.mrb[0].mxu0
      %v5020 = vpop.f32.mrb[0].mxu0
      %v5021 = vadd.f32 %v4812, %v5020
      %v5022 = vpop.f32.mrb[0].mxu0
      %5023 = vmatprep.mubr.bf16.mxu0 0
      %5024 = vmatmul.mubr.bf16.gmra.mrb[0].mxu0 %v4899
      %v5025 = vpop.f32.mrb[0].mxu0
      %v5026 = vadd.f32 %v4817, %v5025
      %v5027 = vpop.f32.mrb[0].mxu0
      %v5028 = vpop.f32.mrb[0].mxu0
      %v5029 = vadd.f32 %v4820, %v5028
      %v5030 = vpop.f32.mrb[0].mxu0
      %5031 = vmatprep.mubr.bf16.mxu0 0
      %5032 = vmatmul.mubr.bf16.gmra.mrb[0].mxu0 %v4902
      %v5033 = vpop.f32.mrb[0].mxu0
      %v5034 = vadd.f32 %v4825, %v5033
      %v5035 = vpop.f32.mrb[0].mxu0
      %v5036 = vpop.f32.mrb[0].mxu0
      %v5037 = vadd.f32 %v4828, %v5036
      %v5038 = vpop.f32.mrb[0].mxu0
      %5039 = vmatprep.mubr.bf16.mxu0 0
      %5040 = vmatmul.mubr.bf16.gmra.mrb[0].mxu0 %v4905
      %v5041 = vpop.f32.mrb[0].mxu0
      %v5042 = vadd.f32 %v4833, %v5041
      %v5043 = vpop.f32.mrb[0].mxu0
      %v5044 = vpop.f32.mrb[0].mxu0
      %v5045 = vadd.f32 %v4836, %v5044
      %v5046 = vpop.f32.mrb[0].mxu0
      %5047 = vmatprep.mubr.bf16.mxu0 0
      %5048 = vmatmul.mubr.bf16.gmra.mrb[0].mxu0 %v4908
      %v5049 = vpop.f32.mrb[0].mxu0
      %v5050 = vadd.f32 %v4841, %v5049
      %v5051 = vpop.f32.mrb[0].mxu0
      %v5052 = vpop.f32.mrb[0].mxu0
      %v5053 = vadd.f32 %v4844, %v5052
      %v5054 = vpop.f32.mrb[0].mxu0
      %5055 = vmatprep.mubr.bf16.mxu0 0
      %5056 = vmatmul.mubr.bf16.gmra.mrb[0].mxu0 %v4911
      %v5057 = vpop.f32.mrb[0].mxu0
      %v5058 = vadd.f32 %v4849, %v5057
      %v5059 = vpop.f32.mrb[0].mxu0
      %v5060 = vpop.f32.mrb[0].mxu0
      %v5061 = vadd.f32 %v4852, %v5060
      %v5062 = vpop.f32.mrb[0].mxu0
      %5063 = vmatprep.mubr.bf16.mxu0 0
      %5064 = vmatmul.mubr.bf16.gmra.mrb[0].mxu0 %v4914
      %v5065 = vpop.f32.mrb[0].mxu0
      %v5066 = vadd.f32 %v4857, %v5065
      %v5067 = vpop.f32.mrb[0].mxu0
      %v5068 = vpop.f32.mrb[0].mxu0
      %v5069 = vadd.f32 %v4860, %v5068
      %v5070 = vpop.f32.mrb[0].mxu0
      %5071 = vmatprep.mubr.bf16.mxu0 0
      %5072 = vmatmul.mubr.bf16.gmra.mrb[0].mxu0 %v4917
      %v5073 = vpop.f32.mrb[0].mxu0
      %v5074 = vadd.f32 %v4865, %v5073
      %v5075 = vpop.f32.mrb[0].mxu0
      %v5076 = vpop.f32.mrb[0].mxu0
      %v5077 = vadd.f32 %v4868, %v5076
      %v5078 = vpop.f32.mrb[0].mxu0
      %5079 = vdwg.mxu0
      %v5080 = vld [vmem:[%s2220] sm:$0xff]
      %v5081 = vld [vmem:[%s2220 + $0x8] sm:$0xff]
      %v5082 = vld [vmem:[%s2220 + $0x10] sm:$0xff]
      %v5083 = vld [vmem:[%s2220 + $0x18] sm:$0xff]
      %v5084 = vld [vmem:[%s2220 + $0x20] sm:$0xff]
      %v5085 = vld [vmem:[%s2220 + $0x28] sm:$0xff]
      %v5086 = vld [vmem:[%s2220 + $0x30] sm:$0xff]
      %v5087 = vld [vmem:[%s2220 + $0x38] sm:$0xff]
      %v5088 = vld [vmem:[%s2220 + $0x40] sm:$0xff]
      %v5089 = vld [vmem:[%s2220 + $0x48] sm:$0xff]
      %v5090 = vld [vmem:[%s2220 + $0x50] sm:$0xff]
      %v5091 = vld [vmem:[%s2220 + $0x58] sm:$0xff]
      %v5092 = vld [vmem:[%s2220 + $0x60] sm:$0xff]
      %v5093 = vld [vmem:[%s2220 + $0x68] sm:$0xff]
      %v5094 = vld [vmem:[%s2220 + $0x70] sm:$0xff]
      %v5095 = vld [vmem:[%s2220 + $0x78] sm:$0xff]
      %v5096 = vld [vmem:[%s2220 + $0x80] sm:$0xff]
      %v5097 = vld [vmem:[%s2220 + $0x88] sm:$0xff]
      %v5098 = vld [vmem:[%s2220 + $0x90] sm:$0xff]
      %v5099 = vld [vmem:[%s2220 + $0x98] sm:$0xff]
      %v5100 = vld [vmem:[%s2220 + $0xa0] sm:$0xff]
      %v5101 = vld [vmem:[%s2220 + $0xa8] sm:$0xff]
      %v5102 = vld [vmem:[%s2220 + $0xb0] sm:$0xff]
      %v5103 = vld [vmem:[%s2220 + $0xb8] sm:$0xff]
      %v5104 = vld [vmem:[%s2220 + $0xc0] sm:$0xff]
      %v5105 = vld [vmem:[%s2220 + $0xc8] sm:$0xff]
      %v5106 = vld [vmem:[%s2220 + $0xd0] sm:$0xff]
      %v5107 = vld [vmem:[%s2220 + $0xd8] sm:$0xff]
      %v5108 = vld [vmem:[%s2220 + $0xe0] sm:$0xff]
      %v5109 = vld [vmem:[%s2220 + $0xe8] sm:$0xff]
      %v5110 = vld [vmem:[%s2220 + $0xf0] sm:$0xff]
      %v5111 = vld [vmem:[%s2220 + $0xf8] sm:$0xff]
      %v5112 = vld [vmem:[%s2220 + $0x100] sm:$0xff]
      %v5113 = vld [vmem:[%s2220 + $0x108] sm:$0xff]
      %v5114 = vld [vmem:[%s2220 + $0x110] sm:$0xff]
      %v5115 = vld [vmem:[%s2220 + $0x118] sm:$0xff]
      %v5116 = vld [vmem:[%s2220 + $0x120] sm:$0xff]
      %v5117 = vld [vmem:[%s2220 + $0x128] sm:$0xff]
      %v5118 = vld [vmem:[%s2220 + $0x130] sm:$0xff]
      %v5119 = vld [vmem:[%s2220 + $0x138] sm:$0xff]
      %v5120 = vld [vmem:[%s2220 + $0x140] sm:$0xff]
      %v5121 = vld [vmem:[%s2220 + $0x148] sm:$0xff]
      %v5122 = vld [vmem:[%s2220 + $0x150] sm:$0xff]
      %v5123 = vld [vmem:[%s2220 + $0x158] sm:$0xff]
      %v5124 = vld [vmem:[%s2220 + $0x160] sm:$0xff]
      %v5125 = vld [vmem:[%s2220 + $0x168] sm:$0xff]
      %v5126 = vld [vmem:[%s2220 + $0x170] sm:$0xff]
      %v5127 = vld [vmem:[%s2220 + $0x178] sm:$0xff]
      %v5129 = vshll.u32 %v5081, 16
      %v5131 = vrot.slane %v5129, 1
      %v5132 = vshrl.u32 %v5081, 16
      %v5134 = vor.u32 %v5132, %v5131
      %v5136 = vshll.u32 %v5084, 16
      %v5138 = vrot.slane %v5136, 1
      %v5139 = vshrl.u32 %v5084, 16
      %v5141 = vor.u32 %v5139, %v5138
      %v5143 = vshll.u32 %v5087, 16
      %v5145 = vrot.slane %v5143, 1
      %v5146 = vshrl.u32 %v5087, 16
      %v5148 = vor.u32 %v5146, %v5145
      %v5150 = vshll.u32 %v5090, 16
      %v5152 = vrot.slane %v5150, 1
      %v5153 = vshrl.u32 %v5090, 16
      %v5155 = vor.u32 %v5153, %v5152
      %v5157 = vshll.u32 %v5093, 16
      %v5159 = vrot.slane %v5157, 1
      %v5160 = vshrl.u32 %v5093, 16
      %v5162 = vor.u32 %v5160, %v5159
      %v5164 = vshll.u32 %v5096, 16
      %v5166 = vrot.slane %v5164, 1
      %v5167 = vshrl.u32 %v5096, 16
      %v5169 = vor.u32 %v5167, %v5166
      %v5171 = vshll.u32 %v5099, 16
      %v5173 = vrot.slane %v5171, 1
      %v5174 = vshrl.u32 %v5099, 16
      %v5176 = vor.u32 %v5174, %v5173
      %v5178 = vshll.u32 %v5102, 16
      %v5180 = vrot.slane %v5178, 1
      %v5181 = vshrl.u32 %v5102, 16
      %v5183 = vor.u32 %v5181, %v5180
      %v5185 = vshll.u32 %v5105, 16
      %v5187 = vrot.slane %v5185, 1
      %v5188 = vshrl.u32 %v5105, 16
      %v5190 = vor.u32 %v5188, %v5187
      %v5192 = vshll.u32 %v5108, 16
      %v5194 = vrot.slane %v5192, 1
      %v5195 = vshrl.u32 %v5108, 16
      %v5197 = vor.u32 %v5195, %v5194
      %v5199 = vshll.u32 %v5111, 16
      %v5201 = vrot.slane %v5199, 1
      %v5202 = vshrl.u32 %v5111, 16
      %v5204 = vor.u32 %v5202, %v5201
      %v5206 = vshll.u32 %v5114, 16
      %v5208 = vrot.slane %v5206, 1
      %v5209 = vshrl.u32 %v5114, 16
      %v5211 = vor.u32 %v5209, %v5208
      %v5213 = vshll.u32 %v5117, 16
      %v5215 = vrot.slane %v5213, 1
      %v5216 = vshrl.u32 %v5117, 16
      %v5218 = vor.u32 %v5216, %v5215
      %v5220 = vshll.u32 %v5120, 16
      %v5222 = vrot.slane %v5220, 1
      %v5223 = vshrl.u32 %v5120, 16
      %v5225 = vor.u32 %v5223, %v5222
      %v5227 = vshll.u32 %v5123, 16
      %v5229 = vrot.slane %v5227, 1
      %v5230 = vshrl.u32 %v5123, 16
      %v5232 = vor.u32 %v5230, %v5229
      %v5234 = vshll.u32 %v5126, 16
      %v5236 = vrot.slane %v5234, 1
      %v5237 = vshrl.u32 %v5126, 16
      %v5239 = vor.u32 %v5237, %v5236
      %5240 = vrot.lane.b32.xlu0 %v5131, 8
      %v5241 = vpop.permute.xlu0 %5240
      %5242 = vrot.lane.b32.xlu0 %v5134, 8
      %v5243 = vpop.permute.xlu0 %5242
      %5244 = vrot.lane.b32.xlu0 %v5138, 8
      %v5245 = vpop.permute.xlu0 %5244
      %5246 = vrot.lane.b32.xlu0 %v5141, 8
      %v5247 = vpop.permute.xlu0 %5246
      %5248 = vrot.lane.b32.xlu0 %v5145, 8
      %v5249 = vpop.permute.xlu0 %5248
      %5250 = vrot.lane.b32.xlu0 %v5148, 8
      %v5251 = vpop.permute.xlu0 %5250
      %5252 = vrot.lane.b32.xlu0 %v5152, 8
      %v5253 = vpop.permute.xlu0 %5252
      %5254 = vrot.lane.b32.xlu0 %v5155, 8
      %v5255 = vpop.permute.xlu0 %5254
      %5256 = vrot.lane.b32.xlu0 %v5159, 8
      %v5257 = vpop.permute.xlu0 %5256
      %5258 = vrot.lane.b32.xlu0 %v5162, 8
      %v5259 = vpop.permute.xlu0 %5258
      %5260 = vrot.lane.b32.xlu0 %v5166, 8
      %v5261 = vpop.permute.xlu0 %5260
      %5262 = vrot.lane.b32.xlu0 %v5169, 8
      %v5263 = vpop.permute.xlu0 %5262
      %5264 = vrot.lane.b32.xlu0 %v5173, 8
      %v5265 = vpop.permute.xlu0 %5264
      %5266 = vrot.lane.b32.xlu0 %v5176, 8
      %v5267 = vpop.permute.xlu0 %5266
      %5268 = vrot.lane.b32.xlu0 %v5180, 8
      %v5269 = vpop.permute.xlu0 %5268
      %5270 = vrot.lane.b32.xlu0 %v5183, 8
      %v5271 = vpop.permute.xlu0 %5270
      %5272 = vrot.lane.b32.xlu0 %v5187, 8
      %v5273 = vpop.permute.xlu0 %5272
      %5274 = vrot.lane.b32.xlu0 %v5190, 8
      %v5275 = vpop.permute.xlu0 %5274
      %5276 = vrot.lane.b32.xlu0 %v5194, 8
      %v5277 = vpop.permute.xlu0 %5276
      %5278 = vrot.lane.b32.xlu0 %v5197, 8
      %v5279 = vpop.permute.xlu0 %5278
      %5280 = vrot.lane.b32.xlu0 %v5201, 8
      %v5281 = vpop.permute.xlu0 %5280
      %5282 = vrot.lane.b32.xlu0 %v5204, 8
      %v5283 = vpop.permute.xlu0 %5282
      %5284 = vrot.lane.b32.xlu0 %v5208, 8
      %v5285 = vpop.permute.xlu0 %5284
      %5286 = vrot.lane.b32.xlu0 %v5211, 8
      %v5287 = vpop.permute.xlu0 %5286
      %5288 = vrot.lane.b32.xlu0 %v5215, 8
      %v5289 = vpop.permute.xlu0 %5288
      %5290 = vrot.lane.b32.xlu0 %v5218, 8
      %v5291 = vpop.permute.xlu0 %5290
      %5292 = vrot.lane.b32.xlu0 %v5222, 8
      %v5293 = vpop.permute.xlu0 %5292
      %5294 = vrot.lane.b32.xlu0 %v5225, 8
      %v5295 = vpop.permute.xlu0 %5294
      %5296 = vrot.lane.b32.xlu0 %v5229, 8
      %v5297 = vpop.permute.xlu0 %5296
      %5298 = vrot.lane.b32.xlu0 %v5232, 8
      %v5299 = vpop.permute.xlu0 %5298
      %5300 = vrot.lane.b32.xlu0 %v5236, 8
      %v5301 = vpop.permute.xlu0 %5300
      %5302 = vrot.lane.b32.xlu0 %v5239, 8
      %v5303 = vpop.permute.xlu0 %5302
      %v5336 = vrot.slane %v5081, 1
      %v5337 = vrot.slane %v5082, 1
      %v5338 = vsel %vm685, %v5336, %v5337
      %v5339 = vrot.slane %v5084, 1
      %v5340 = vrot.slane %v5085, 1
      %v5341 = vsel %vm685, %v5339, %v5340
      %v5342 = vrot.slane %v5087, 1
      %v5343 = vrot.slane %v5088, 1
      %v5344 = vsel %vm685, %v5342, %v5343
      %v5345 = vrot.slane %v5090, 1
      %v5346 = vrot.slane %v5091, 1
      %v5347 = vsel %vm685, %v5345, %v5346
      %v5348 = vrot.slane %v5093, 1
      %v5349 = vrot.slane %v5094, 1
      %v5350 = vsel %vm685, %v5348, %v5349
      %v5351 = vrot.slane %v5096, 1
      %v5352 = vrot.slane %v5097, 1
      %v5353 = vsel %vm685, %v5351, %v5352
      %v5354 = vrot.slane %v5099, 1
      %v5355 = vrot.slane %v5100, 1
      %v5356 = vsel %vm685, %v5354, %v5355
      %v5357 = vrot.slane %v5102, 1
      %v5358 = vrot.slane %v5103, 1
      %v5359 = vsel %vm685, %v5357, %v5358
      %v5360 = vrot.slane %v5105, 1
      %v5361 = vrot.slane %v5106, 1
      %v5362 = vsel %vm685, %v5360, %v5361
      %v5363 = vrot.slane %v5108, 1
      %v5364 = vrot.slane %v5109, 1
      %v5365 = vsel %vm685, %v5363, %v5364
      %v5366 = vrot.slane %v5111, 1
      %v5367 = vrot.slane %v5112, 1
      %v5368 = vsel %vm685, %v5366, %v5367
      %v5369 = vrot.slane %v5114, 1
      %v5370 = vrot.slane %v5115, 1
      %v5371 = vsel %vm685, %v5369, %v5370
      %v5372 = vrot.slane %v5117, 1
      %v5373 = vrot.slane %v5118, 1
      %v5374 = vsel %vm685, %v5372, %v5373
      %v5375 = vrot.slane %v5120, 1
      %v5376 = vrot.slane %v5121, 1
      %v5377 = vsel %vm685, %v5375, %v5376
      %v5378 = vrot.slane %v5123, 1
      %v5379 = vrot.slane %v5124, 1
      %v5380 = vsel %vm685, %v5378, %v5379
      %v5381 = vrot.slane %v5126, 1
      %v5382 = vrot.slane %v5127, 1
      %v5383 = vsel %vm685, %v5381, %v5382
      %5384 = vrot.lane.b32.xlu0 %v5336, 16
      %v5385 = vpop.permute.xlu0 %5384
      %5386 = vrot.lane.b32.xlu0 %v5338, 16
      %v5387 = vpop.permute.xlu0 %5386
      %5388 = vrot.lane.b32.xlu0 %v5339, 16
      %v5389 = vpop.permute.xlu0 %5388
      %5390 = vrot.lane.b32.xlu0 %v5341, 16
      %v5391 = vpop.permute.xlu0 %5390
      %5392 = vrot.lane.b32.xlu0 %v5342, 16
      %v5393 = vpop.permute.xlu0 %5392
      %5394 = vrot.lane.b32.xlu0 %v5344, 16
      %v5395 = vpop.permute.xlu0 %5394
      %5396 = vrot.lane.b32.xlu0 %v5345, 16
      %v5397 = vpop.permute.xlu0 %5396
      %5398 = vrot.lane.b32.xlu0 %v5347, 16
      %v5399 = vpop.permute.xlu0 %5398
      %5400 = vrot.lane.b32.xlu0 %v5348, 16
      %v5401 = vpop.permute.xlu0 %5400
      %5402 = vrot.lane.b32.xlu0 %v5350, 16
      %v5403 = vpop.permute.xlu0 %5402
      %5404 = vrot.lane.b32.xlu0 %v5351, 16
      %v5405 = vpop.permute.xlu0 %5404
      %5406 = vrot.lane.b32.xlu0 %v5353, 16
      %v5407 = vpop.permute.xlu0 %5406
      %5408 = vrot.lane.b32.xlu0 %v5354, 16
      %v5409 = vpop.permute.xlu0 %5408
      %5410 = vrot.lane.b32.xlu0 %v5356, 16
      %v5411 = vpop.permute.xlu0 %5410
      %5412 = vrot.lane.b32.xlu0 %v5357, 16
      %v5413 = vpop.permute.xlu0 %5412
      %5414 = vrot.lane.b32.xlu0 %v5359, 16
      %v5415 = vpop.permute.xlu0 %5414
      %5416 = vrot.lane.b32.xlu0 %v5360, 16
      %v5417 = vpop.permute.xlu0 %5416
      %5418 = vrot.lane.b32.xlu0 %v5362, 16
      %v5419 = vpop.permute.xlu0 %5418
      %5420 = vrot.lane.b32.xlu0 %v5363, 16
      %v5421 = vpop.permute.xlu0 %5420
      %5422 = vrot.lane.b32.xlu0 %v5365, 16
      %v5423 = vpop.permute.xlu0 %5422
      %5424 = vrot.lane.b32.xlu0 %v5366, 16
      %v5425 = vpop.permute.xlu0 %5424
      %5426 = vrot.lane.b32.xlu0 %v5368, 16
      %v5427 = vpop.permute.xlu0 %5426
      %5428 = vrot.lane.b32.xlu0 %v5369, 16
      %v5429 = vpop.permute.xlu0 %5428
      %5430 = vrot.lane.b32.xlu0 %v5371, 16
      %v5431 = vpop.permute.xlu0 %5430
      %5432 = vrot.lane.b32.xlu0 %v5372, 16
      %v5433 = vpop.permute.xlu0 %5432
      %5434 = vrot.lane.b32.xlu0 %v5374, 16
      %v5435 = vpop.permute.xlu0 %5434
      %5436 = vrot.lane.b32.xlu0 %v5375, 16
      %v5437 = vpop.permute.xlu0 %5436
      %5438 = vrot.lane.b32.xlu0 %v5377, 16
      %v5439 = vpop.permute.xlu0 %5438
      %5440 = vrot.lane.b32.xlu0 %v5378, 16
      %v5441 = vpop.permute.xlu0 %5440
      %5442 = vrot.lane.b32.xlu0 %v5380, 16
      %v5443 = vpop.permute.xlu0 %5442
      %5444 = vrot.lane.b32.xlu0 %v5381, 16
      %v5445 = vpop.permute.xlu0 %5444
      %5446 = vrot.lane.b32.xlu0 %v5383, 16
      %v5447 = vpop.permute.xlu0 %5446
      %v5450 = vsel %vm199, %v5080, %v5241
      %v5452 = vsel %vm199, %v5081, %v5243
      %v5455 = vsel %vm199, %v5083, %v5245
      %v5457 = vsel %vm199, %v5084, %v5247
      %v5460 = vsel %vm199, %v5086, %v5249
      %v5462 = vsel %vm199, %v5087, %v5251
      %v5465 = vsel %vm199, %v5089, %v5253
      %v5467 = vsel %vm199, %v5090, %v5255
      %v5470 = vsel %vm199, %v5092, %v5257
      %v5472 = vsel %vm199, %v5093, %v5259
      %v5475 = vsel %vm199, %v5095, %v5261
      %v5477 = vsel %vm199, %v5096, %v5263
      %v5480 = vsel %vm199, %v5098, %v5265
      %v5482 = vsel %vm199, %v5099, %v5267
      %v5485 = vsel %vm199, %v5101, %v5269
      %v5487 = vsel %vm199, %v5102, %v5271
      %v5490 = vsel %vm199, %v5104, %v5273
      %v5492 = vsel %vm199, %v5105, %v5275
      %v5495 = vsel %vm199, %v5107, %v5277
      %v5497 = vsel %vm199, %v5108, %v5279
      %v5500 = vsel %vm199, %v5110, %v5281
      %v5502 = vsel %vm199, %v5111, %v5283
      %v5505 = vsel %vm199, %v5113, %v5285
      %v5507 = vsel %vm199, %v5114, %v5287
      %v5510 = vsel %vm199, %v5116, %v5289
      %v5512 = vsel %vm199, %v5117, %v5291
      %v5515 = vsel %vm199, %v5119, %v5293
      %v5517 = vsel %vm199, %v5120, %v5295
      %v5520 = vsel %vm199, %v5122, %v5297
      %v5522 = vsel %vm199, %v5123, %v5299
      %v5525 = vsel %vm199, %v5125, %v5301
      %v5527 = vsel %vm199, %v5126, %v5303
      %v5529 = vsel %vm878, %v5450, %v5385
      %v5531 = vsel %vm878, %v5452, %v5387
      %v5533 = vsel %vm878, %v5455, %v5389
      %v5535 = vsel %vm878, %v5457, %v5391
      %v5537 = vsel %vm878, %v5460, %v5393
      %v5539 = vsel %vm878, %v5462, %v5395
      %v5541 = vsel %vm878, %v5465, %v5397
      %v5543 = vsel %vm878, %v5467, %v5399
      %v5545 = vsel %vm878, %v5470, %v5401
      %v5547 = vsel %vm878, %v5472, %v5403
      %v5549 = vsel %vm878, %v5475, %v5405
      %v5551 = vsel %vm878, %v5477, %v5407
      %v5553 = vsel %vm878, %v5480, %v5409
      %v5555 = vsel %vm878, %v5482, %v5411
      %v5557 = vsel %vm878, %v5485, %v5413
      %v5559 = vsel %vm878, %v5487, %v5415
      %v5561 = vsel %vm878, %v5490, %v5417
      %v5563 = vsel %vm878, %v5492, %v5419
      %v5565 = vsel %vm878, %v5495, %v5421
      %v5567 = vsel %vm878, %v5497, %v5423
      %v5569 = vsel %vm878, %v5500, %v5425
      %v5571 = vsel %vm878, %v5502, %v5427
      %v5573 = vsel %vm878, %v5505, %v5429
      %v5575 = vsel %vm878, %v5507, %v5431
      %v5577 = vsel %vm878, %v5510, %v5433
      %v5579 = vsel %vm878, %v5512, %v5435
      %v5581 = vsel %vm878, %v5515, %v5437
      %v5583 = vsel %vm878, %v5517, %v5439
      %v5585 = vsel %vm878, %v5520, %v5441
      %v5587 = vsel %vm878, %v5522, %v5443
      %v5589 = vsel %vm878, %v5525, %v5445
      %v5591 = vsel %vm878, %v5527, %v5447
      %v5592 = vshrl.u32 %v5529, 16
      %v5594 = vrot.slane %v5592, 7
      %v5595 = vshrl.u32 %v5531, 16
      %v5597 = vrot.slane %v5595, 7
      %v5598 = vshll.u32 %v5531, 16
      %v5600 = vor.u32 %v5597, %v5598
      %v5601 = vsel %vm943, %v5594, %v5600
      %v5602 = vshrl.u32 %v5533, 16
      %v5604 = vrot.slane %v5602, 7
      %v5605 = vshrl.u32 %v5535, 16
      %v5607 = vrot.slane %v5605, 7
      %v5608 = vshll.u32 %v5535, 16
      %v5610 = vor.u32 %v5607, %v5608
      %v5611 = vsel %vm943, %v5604, %v5610
      %v5612 = vshrl.u32 %v5537, 16
      %v5614 = vrot.slane %v5612, 7
      %v5615 = vshrl.u32 %v5539, 16
      %v5617 = vrot.slane %v5615, 7
      %v5618 = vshll.u32 %v5539, 16
      %v5620 = vor.u32 %v5617, %v5618
      %v5621 = vsel %vm943, %v5614, %v5620
      %v5622 = vshrl.u32 %v5541, 16
      %v5624 = vrot.slane %v5622, 7
      %v5625 = vshrl.u32 %v5543, 16
      %v5627 = vrot.slane %v5625, 7
      %v5628 = vshll.u32 %v5543, 16
      %v5630 = vor.u32 %v5627, %v5628
      %v5631 = vsel %vm943, %v5624, %v5630
      %v5632 = vshrl.u32 %v5545, 16
      %v5634 = vrot.slane %v5632, 7
      %v5635 = vshrl.u32 %v5547, 16
      %v5637 = vrot.slane %v5635, 7
      %v5638 = vshll.u32 %v5547, 16
      %v5640 = vor.u32 %v5637, %v5638
      %v5641 = vsel %vm943, %v5634, %v5640
      %v5642 = vshrl.u32 %v5549, 16
      %v5644 = vrot.slane %v5642, 7
      %v5645 = vshrl.u32 %v5551, 16
      %v5647 = vrot.slane %v5645, 7
      %v5648 = vshll.u32 %v5551, 16
      %v5650 = vor.u32 %v5647, %v5648
      %v5651 = vsel %vm943, %v5644, %v5650
      %v5652 = vshrl.u32 %v5553, 16
      %v5654 = vrot.slane %v5652, 7
      %v5655 = vshrl.u32 %v5555, 16
      %v5657 = vrot.slane %v5655, 7
      %v5658 = vshll.u32 %v5555, 16
      %v5660 = vor.u32 %v5657, %v5658
      %v5661 = vsel %vm943, %v5654, %v5660
      %v5662 = vshrl.u32 %v5557, 16
      %v5664 = vrot.slane %v5662, 7
      %v5665 = vshrl.u32 %v5559, 16
      %v5667 = vrot.slane %v5665, 7
      %v5668 = vshll.u32 %v5559, 16
      %v5670 = vor.u32 %v5667, %v5668
      %v5671 = vsel %vm943, %v5664, %v5670
      %v5672 = vshrl.u32 %v5561, 16
      %v5674 = vrot.slane %v5672, 7
      %v5675 = vshrl.u32 %v5563, 16
      %v5677 = vrot.slane %v5675, 7
      %v5678 = vshll.u32 %v5563, 16
      %v5680 = vor.u32 %v5677, %v5678
      %v5681 = vsel %vm943, %v5674, %v5680
      %v5682 = vshrl.u32 %v5565, 16
      %v5684 = vrot.slane %v5682, 7
      %v5685 = vshrl.u32 %v5567, 16
      %v5687 = vrot.slane %v5685, 7
      %v5688 = vshll.u32 %v5567, 16
      %v5690 = vor.u32 %v5687, %v5688
      %v5691 = vsel %vm943, %v5684, %v5690
      %v5692 = vshrl.u32 %v5569, 16
      %v5694 = vrot.slane %v5692, 7
      %v5695 = vshrl.u32 %v5571, 16
      %v5697 = vrot.slane %v5695, 7
      %v5698 = vshll.u32 %v5571, 16
      %v5700 = vor.u32 %v5697, %v5698
      %v5701 = vsel %vm943, %v5694, %v5700
      %v5702 = vshrl.u32 %v5573, 16
      %v5704 = vrot.slane %v5702, 7
      %v5705 = vshrl.u32 %v5575, 16
      %v5707 = vrot.slane %v5705, 7
      %v5708 = vshll.u32 %v5575, 16
      %v5710 = vor.u32 %v5707, %v5708
      %v5711 = vsel %vm943, %v5704, %v5710
      %v5712 = vshrl.u32 %v5577, 16
      %v5714 = vrot.slane %v5712, 7
      %v5715 = vshrl.u32 %v5579, 16
      %v5717 = vrot.slane %v5715, 7
      %v5718 = vshll.u32 %v5579, 16
      %v5720 = vor.u32 %v5717, %v5718
      %v5721 = vsel %vm943, %v5714, %v5720
      %v5722 = vshrl.u32 %v5581, 16
      %v5724 = vrot.slane %v5722, 7
      %v5725 = vshrl.u32 %v5583, 16
      %v5727 = vrot.slane %v5725, 7
      %v5728 = vshll.u32 %v5583, 16
      %v5730 = vor.u32 %v5727, %v5728
      %v5731 = vsel %vm943, %v5724, %v5730
      %v5732 = vshrl.u32 %v5585, 16
      %v5734 = vrot.slane %v5732, 7
      %v5735 = vshrl.u32 %v5587, 16
      %v5737 = vrot.slane %v5735, 7
      %v5738 = vshll.u32 %v5587, 16
      %v5740 = vor.u32 %v5737, %v5738
      %v5741 = vsel %vm943, %v5734, %v5740
      %v5742 = vshrl.u32 %v5589, 16
      %v5744 = vrot.slane %v5742, 7
      %v5745 = vshrl.u32 %v5591, 16
      %v5747 = vrot.slane %v5745, 7
      %v5748 = vshll.u32 %v5591, 16
      %v5750 = vor.u32 %v5747, %v5748
      %v5751 = vsel %vm943, %v5744, %v5750
      %v5753 = vsel %vm1785, %v5601, 0
      %v5756 = vsel %vm1785, %v5611, 0
      %v5759 = vsel %vm1785, %v5621, 0
      %v5762 = vsel %vm1785, %v5631, 0
      %v5765 = vsel %vm1785, %v5641, 0
      %v5768 = vsel %vm1785, %v5651, 0
      %v5771 = vsel %vm1785, %v5661, 0
      %v5774 = vsel %vm1785, %v5671, 0
      %v5777 = vsel %vm1785, %v5681, 0
      %v5780 = vsel %vm1785, %v5691, 0
      %v5783 = vsel %vm1785, %v5701, 0
      %v5786 = vsel %vm1785, %v5711, 0
      %v5789 = vsel %vm1785, %v5721, 0
      %v5792 = vsel %vm1785, %v5731, 0
      %v5795 = vsel %vm1785, %v5741, 0
      %v5798 = vsel %vm1785, %v5751, 0
      %5800 = vmatprep.subr.bf16.mxu0 0
      %5801 = vmatpush1.bf16.msra.mxu0 %v2899
      %5802 = vmatprep.subr.bf16.mxu0 0
      %5803 = vmatpush1.bf16.msra.mxu0 %v2951
      %5804 = vmatprep.subr.bf16.mxu0 0
      %5805 = vmatpush1.bf16.msra.mxu0 0
      %5806 = vmatprep.subr.bf16.mxu0 0
      %5807 = vmatpush1.bf16.msra.mxu0 0
      %5808 = vmatprep.subr.bf16.mxu0 0
      %5809 = vmatpush1.bf16.msra.mxu0 0
      %5810 = vmatprep.subr.bf16.mxu0 0
      %5811 = vmatpush1.bf16.msra.mxu0 0
      %5812 = vmatprep.subr.bf16.mxu0 0
      %5813 = vmatpush1.bf16.msra.mxu0 0
      %5814 = vmatprep.subr.bf16.mxu0 0
      %5815 = vmatpush1.bf16.msra.mxu0 0
      %5816 = vmatprep.subr.bf16.mxu0 0
      %5817 = vmatpush1.bf16.msra.mxu0 0
      %5818 = vmatprep.subr.bf16.mxu0 0
      %5819 = vmatpush1.bf16.msra.mxu0 0
      %5820 = vmatprep.subr.bf16.mxu0 0
      %5821 = vmatpush1.bf16.msra.mxu0 0
      %5822 = vmatprep.subr.bf16.mxu0 0
      %5823 = vmatpush1.bf16.msra.mxu0 0
      %5824 = vmatprep.subr.bf16.mxu0 0
      %5825 = vmatpush1.bf16.msra.mxu0 0
      %5826 = vmatprep.subr.bf16.mxu0 0
      %5827 = vmatpush1.bf16.msra.mxu0 0
      %5828 = vmatprep.subr.bf16.mxu0 0
      %5829 = vmatpush1.bf16.msra.mxu0 0
      %5830 = vmatprep.subr.bf16.mxu0 0
      %5831 = vmatpush1.bf16.msra.mxu0 0
      %5832 = vmatprep.mubr.bf16.mxu0 0
      %5833 = vmatmul.mubr.bf16.gmra.mrb[0].mxu0 %v5753
      %v5834 = vpop.f32.mrb[0].mxu0
      %v5835 = vadd.f32 0.0, %v5834
      %v5836 = vpop.f32.mrb[0].mxu0
      %v5837 = vpop.f32.mrb[0].mxu0
      %v5838 = vadd.f32 0.0, %v5837
      %v5839 = vpop.f32.mrb[0].mxu0
      %5840 = vmatprep.mubr.bf16.mxu0 0
      %5841 = vmatmul.mubr.bf16.gmra.mrb[0].mxu0 %v5756
      %v5842 = vpop.f32.mrb[0].mxu0
      %v5843 = vadd.f32 0.0, %v5842
      %v5844 = vpop.f32.mrb[0].mxu0
      %v5845 = vpop.f32.mrb[0].mxu0
      %v5846 = vadd.f32 0.0, %v5845
      %v5847 = vpop.f32.mrb[0].mxu0
      %5848 = vmatprep.mubr.bf16.mxu0 0
      %5849 = vmatmul.mubr.bf16.gmra.mrb[0].mxu0 %v5759
      %v5850 = vpop.f32.mrb[0].mxu0
      %v5851 = vadd.f32 0.0, %v5850
      %v5852 = vpop.f32.mrb[0].mxu0
      %v5853 = vpop.f32.mrb[0].mxu0
      %v5854 = vadd.f32 0.0, %v5853
      %v5855 = vpop.f32.mrb[0].mxu0
      %5856 = vmatprep.mubr.bf16.mxu0 0
      %5857 = vmatmul.mubr.bf16.gmra.mrb[0].mxu0 %v5762
      %v5858 = vpop.f32.mrb[0].mxu0
      %v5859 = vadd.f32 0.0, %v5858
      %v5860 = vpop.f32.mrb[0].mxu0
      %v5861 = vpop.f32.mrb[0].mxu0
      %v5862 = vadd.f32 0.0, %v5861
      %v5863 = vpop.f32.mrb[0].mxu0
      %5864 = vmatprep.mubr.bf16.mxu0 0
      %5865 = vmatmul.mubr.bf16.gmra.mrb[0].mxu0 %v5765
      %v5866 = vpop.f32.mrb[0].mxu0
      %v5867 = vadd.f32 0.0, %v5866
      %v5868 = vpop.f32.mrb[0].mxu0
      %v5869 = vpop.f32.mrb[0].mxu0
      %v5870 = vadd.f32 0.0, %v5869
      %v5871 = vpop.f32.mrb[0].mxu0
      %5872 = vmatprep.mubr.bf16.mxu0 0
      %5873 = vmatmul.mubr.bf16.gmra.mrb[0].mxu0 %v5768
      %v5874 = vpop.f32.mrb[0].mxu0
      %v5875 = vadd.f32 0.0, %v5874
      %v5876 = vpop.f32.mrb[0].mxu0
      %v5877 = vpop.f32.mrb[0].mxu0
      %v5878 = vadd.f32 0.0, %v5877
      %v5879 = vpop.f32.mrb[0].mxu0
      %5880 = vmatprep.mubr.bf16.mxu0 0
      %5881 = vmatmul.mubr.bf16.gmra.mrb[0].mxu0 %v5771
      %v5882 = vpop.f32.mrb[0].mxu0
      %v5883 = vadd.f32 0.0, %v5882
      %v5884 = vpop.f32.mrb[0].mxu0
      %v5885 = vpop.f32.mrb[0].mxu0
      %v5886 = vadd.f32 0.0, %v5885
      %v5887 = vpop.f32.mrb[0].mxu0
      %5888 = vmatprep.mubr.bf16.mxu0 0
      %5889 = vmatmul.mubr.bf16.gmra.mrb[0].mxu0 %v5774
      %v5890 = vpop.f32.mrb[0].mxu0
      %v5891 = vadd.f32 0.0, %v5890
      %v5892 = vpop.f32.mrb[0].mxu0
      %v5893 = vpop.f32.mrb[0].mxu0
      %v5894 = vadd.f32 0.0, %v5893
      %v5895 = vpop.f32.mrb[0].mxu0
      %5896 = vmatprep.mubr.bf16.mxu0 0
      %5897 = vmatmul.mubr.bf16.gmra.mrb[0].mxu0 %v5777
      %v5898 = vpop.f32.mrb[0].mxu0
      %v5899 = vadd.f32 0.0, %v5898
      %v5900 = vpop.f32.mrb[0].mxu0
      %v5901 = vpop.f32.mrb[0].mxu0
      %v5902 = vadd.f32 0.0, %v5901
      %v5903 = vpop.f32.mrb[0].mxu0
      %5904 = vmatprep.mubr.bf16.mxu0 0
      %5905 = vmatmul.mubr.bf16.gmra.mrb[0].mxu0 %v5780
      %v5906 = vpop.f32.mrb[0].mxu0
      %v5907 = vadd.f32 0.0, %v5906
      %v5908 = vpop.f32.mrb[0].mxu0
      %v5909 = vpop.f32.mrb[0].mxu0
      %v5910 = vadd.f32 0.0, %v5909
      %v5911 = vpop.f32.mrb[0].mxu0
      %5912 = vmatprep.mubr.bf16.mxu0 0
      %5913 = vmatmul.mubr.bf16.gmra.mrb[0].mxu0 %v5783
      %v5914 = vpop.f32.mrb[0].mxu0
      %v5915 = vadd.f32 0.0, %v5914
      %v5916 = vpop.f32.mrb[0].mxu0
      %v5917 = vpop.f32.mrb[0].mxu0
      %v5918 = vadd.f32 0.0, %v5917
      %v5919 = vpop.f32.mrb[0].mxu0
      %5920 = vmatprep.mubr.bf16.mxu0 0
      %5921 = vmatmul.mubr.bf16.gmra.mrb[0].mxu0 %v5786
      %v5922 = vpop.f32.mrb[0].mxu0
      %v5923 = vadd.f32 0.0, %v5922
      %v5924 = vpop.f32.mrb[0].mxu0
      %v5925 = vpop.f32.mrb[0].mxu0
      %v5926 = vadd.f32 0.0, %v5925
      %v5927 = vpop.f32.mrb[0].mxu0
      %5928 = vmatprep.mubr.bf16.mxu0 0
      %5929 = vmatmul.mubr.bf16.gmra.mrb[0].mxu0 %v5789
      %v5930 = vpop.f32.mrb[0].mxu0
      %v5931 = vadd.f32 0.0, %v5930
      %v5932 = vpop.f32.mrb[0].mxu0
      %v5933 = vpop.f32.mrb[0].mxu0
      %v5934 = vadd.f32 0.0, %v5933
      %v5935 = vpop.f32.mrb[0].mxu0
      %5936 = vmatprep.mubr.bf16.mxu0 0
      %5937 = vmatmul.mubr.bf16.gmra.mrb[0].mxu0 %v5792
      %v5938 = vpop.f32.mrb[0].mxu0
      %v5939 = vadd.f32 0.0, %v5938
      %v5940 = vpop.f32.mrb[0].mxu0
      %v5941 = vpop.f32.mrb[0].mxu0
      %v5942 = vadd.f32 0.0, %v5941
      %v5943 = vpop.f32.mrb[0].mxu0
      %5944 = vmatprep.mubr.bf16.mxu0 0
      %5945 = vmatmul.mubr.bf16.gmra.mrb[0].mxu0 %v5795
      %v5946 = vpop.f32.mrb[0].mxu0
      %v5947 = vadd.f32 0.0, %v5946
      %v5948 = vpop.f32.mrb[0].mxu0
      %v5949 = vpop.f32.mrb[0].mxu0
      %v5950 = vadd.f32 0.0, %v5949
      %v5951 = vpop.f32.mrb[0].mxu0
      %5952 = vmatprep.mubr.bf16.mxu0 0
      %5953 = vmatmul.mubr.bf16.gmra.mrb[0].mxu0 %v5798
      %v5954 = vpop.f32.mrb[0].mxu0
      %v5955 = vadd.f32 0.0, %v5954
      %v5956 = vpop.f32.mrb[0].mxu0
      %v5957 = vpop.f32.mrb[0].mxu0
      %v5958 = vadd.f32 0.0, %v5957
      %v5959 = vpop.f32.mrb[0].mxu0
      %5960 = vdwg.mxu0
      %v5961 = vadd.f32 %v4954, %v5835
      %v5962 = vadd.f32 %v4957, %v5838
      %v5963 = vadd.f32 %v4962, %v5843
      %v5964 = vadd.f32 %v4965, %v5846
      %v5965 = vadd.f32 %v4970, %v5851
      %v5966 = vadd.f32 %v4973, %v5854
      %v5967 = vadd.f32 %v4978, %v5859
      %v5968 = vadd.f32 %v4981, %v5862
      %v5969 = vadd.f32 %v4986, %v5867
      %v5970 = vadd.f32 %v4989, %v5870
      %v5971 = vadd.f32 %v4994, %v5875
      %v5972 = vadd.f32 %v4997, %v5878
      %v5973 = vadd.f32 %v5002, %v5883
      %v5974 = vadd.f32 %v5005, %v5886
      %v5975 = vadd.f32 %v5010, %v5891
      %v5976 = vadd.f32 %v5013, %v5894
      %v5977 = vadd.f32 %v5018, %v5899
      %v5978 = vadd.f32 %v5021, %v5902
      %v5979 = vadd.f32 %v5026, %v5907
      %v5980 = vadd.f32 %v5029, %v5910
      %v5981 = vadd.f32 %v5034, %v5915
      %v5982 = vadd.f32 %v5037, %v5918
      %v5983 = vadd.f32 %v5042, %v5923
      %v5984 = vadd.f32 %v5045, %v5926
      %v5985 = vadd.f32 %v5050, %v5931
      %v5986 = vadd.f32 %v5053, %v5934
      %v5987 = vadd.f32 %v5058, %v5939
      %v5988 = vadd.f32 %v5061, %v5942
      %v5989 = vadd.f32 %v5066, %v5947
      %v5990 = vadd.f32 %v5069, %v5950
      %v5991 = vadd.f32 %v5074, %v5955
      %v5992 = vadd.f32 %v5077, %v5958
      %v5993 = vmul.f32 %v5961, %v3150
      %v5994 = vmul.f32 %v5962, %v3150
      %v5995 = vmul.f32 %v5963, %v3150
      %v5996 = vmul.f32 %v5964, %v3150
      %v5997 = vmul.f32 %v5965, %v3150
      %v5998 = vmul.f32 %v5966, %v3150
      %v5999 = vmul.f32 %v5967, %v3150
      %v6000 = vmul.f32 %v5968, %v3150
      %v6001 = vmul.f32 %v5969, %v3150
      %v6002 = vmul.f32 %v5970, %v3150
      %v6003 = vmul.f32 %v5971, %v3150
      %v6004 = vmul.f32 %v5972, %v3150
      %v6005 = vmul.f32 %v5973, %v3150
      %v6006 = vmul.f32 %v5974, %v3150
      %v6007 = vmul.f32 %v5975, %v3150
      %v6008 = vmul.f32 %v5976, %v3150
      %v6009 = vmul.f32 %v5977, %v3150
      %v6010 = vmul.f32 %v5978, %v3150
      %v6011 = vmul.f32 %v5979, %v3150
      %v6012 = vmul.f32 %v5980, %v3150
      %v6013 = vmul.f32 %v5981, %v3150
      %v6014 = vmul.f32 %v5982, %v3150
      %v6015 = vmul.f32 %v5983, %v3150
      %v6016 = vmul.f32 %v5984, %v3150
      %v6017 = vmul.f32 %v5985, %v3150
      %v6018 = vmul.f32 %v5986, %v3150
      %v6019 = vmul.f32 %v5987, %v3150
      %v6020 = vmul.f32 %v5988, %v3150
      %v6021 = vmul.f32 %v5989, %v3150
      %v6022 = vmul.f32 %v5990, %v3150
      %v6023 = vmul.f32 %v5991, %v3150
      %v6024 = vmul.f32 %v5992, %v3150
      %v6025 = vadd.f32 %v5993, %v3188
      %v6026 = vadd.f32 %v5994, %v3188
      %v6027 = vadd.f32 %v5995, %v3188
      %v6028 = vadd.f32 %v5996, %v3188
      %v6029 = vadd.f32 %v5997, %v3188
      %v6030 = vadd.f32 %v5998, %v3188
      %v6031 = vadd.f32 %v5999, %v3188
      %v6032 = vadd.f32 %v6000, %v3188
      %v6033 = vadd.f32 %v6001, %v3188
      %v6034 = vadd.f32 %v6002, %v3188
      %v6035 = vadd.f32 %v6003, %v3188
      %v6036 = vadd.f32 %v6004, %v3188
      %v6037 = vadd.f32 %v6005, %v3188
      %v6038 = vadd.f32 %v6006, %v3188
      %v6039 = vadd.f32 %v6007, %v3188
      %v6040 = vadd.f32 %v6008, %v3188
      %v6041 = vadd.f32 %v6009, %v3188
      %v6042 = vadd.f32 %v6010, %v3188
      %v6043 = vadd.f32 %v6011, %v3188
      %v6044 = vadd.f32 %v6012, %v3188
      %v6045 = vadd.f32 %v6013, %v3188
      %v6046 = vadd.f32 %v6014, %v3188
      %v6047 = vadd.f32 %v6015, %v3188
      %v6048 = vadd.f32 %v6016, %v3188
      %v6049 = vadd.f32 %v6017, %v3188
      %v6050 = vadd.f32 %v6018, %v3188
      %v6051 = vadd.f32 %v6019, %v3188
      %v6052 = vadd.f32 %v6020, %v3188
      %v6053 = vadd.f32 %v6021, %v3188
      %v6054 = vadd.f32 %v6022, %v3188
      %v6055 = vadd.f32 %v6023, %v3188
      %v6056 = vadd.f32 %v6024, %v3188
      %v6057 = vmax.f32 %v6025, 0.0
      %v6058 = vmax.f32 %v6026, 0.0
      %v6059 = vmax.f32 %v6027, 0.0
      %v6060 = vmax.f32 %v6028, 0.0
      %v6061 = vmax.f32 %v6029, 0.0
      %v6062 = vmax.f32 %v6030, 0.0
      %v6063 = vmax.f32 %v6031, 0.0
      %v6064 = vmax.f32 %v6032, 0.0
      %v6065 = vmax.f32 %v6033, 0.0
      %v6066 = vmax.f32 %v6034, 0.0
      %v6067 = vmax.f32 %v6035, 0.0
      %v6068 = vmax.f32 %v6036, 0.0
      %v6069 = vmax.f32 %v6037, 0.0
      %v6070 = vmax.f32 %v6038, 0.0
      %v6071 = vmax.f32 %v6039, 0.0
      %v6072 = vmax.f32 %v6040, 0.0
      %v6073 = vmax.f32 %v6041, 0.0
      %v6074 = vmax.f32 %v6042, 0.0
      %v6075 = vmax.f32 %v6043, 0.0
      %v6076 = vmax.f32 %v6044, 0.0
      %v6077 = vmax.f32 %v6045, 0.0
      %v6078 = vmax.f32 %v6046, 0.0
      %v6079 = vmax.f32 %v6047, 0.0
      %v6080 = vmax.f32 %v6048, 0.0
      %v6081 = vmax.f32 %v6049, 0.0
      %v6082 = vmax.f32 %v6050, 0.0
      %v6083 = vmax.f32 %v6051, 0.0
      %v6084 = vmax.f32 %v6052, 0.0
      %v6085 = vmax.f32 %v6053, 0.0
      %v6086 = vmax.f32 %v6054, 0.0
      %v6087 = vmax.f32 %v6055, 0.0
      %v6088 = vmax.f32 %v6056, 0.0
      %v6089 = vadd.f32 %v284, %v6057
      %v6090 = vadd.f32 %v285, %v6058
      %v6091 = vadd.f32 %v286, %v6059
      %v6092 = vadd.f32 %v287, %v6060
      %v6093 = vadd.f32 %v288, %v6061
      %v6094 = vadd.f32 %v289, %v6062
      %v6095 = vadd.f32 %v290, %v6063
      %v6096 = vadd.f32 %v291, %v6064
      %v6097 = vadd.f32 %v292, %v6065
      %v6098 = vadd.f32 %v293, %v6066
      %v6099 = vadd.f32 %v294, %v6067
      %v6100 = vadd.f32 %v295, %v6068
      %v6101 = vadd.f32 %v296, %v6069
      %v6102 = vadd.f32 %v297, %v6070
      %v6103 = vadd.f32 %v298, %v6071
      %v6104 = vadd.f32 %v299, %v6072
      %v6105 = vadd.f32 %v300, %v6073
      %v6106 = vadd.f32 %v301, %v6074
      %v6107 = vadd.f32 %v302, %v6075
      %v6108 = vadd.f32 %v303, %v6076
      %v6109 = vadd.f32 %v304, %v6077
      %v6110 = vadd.f32 %v305, %v6078
      %v6111 = vadd.f32 %v306, %v6079
      %v6112 = vadd.f32 %v307, %v6080
      %v6113 = vadd.f32 %v308, %v6081
      %v6114 = vadd.f32 %v309, %v6082
      %v6115 = vadd.f32 %v310, %v6083
      %v6116 = vadd.f32 %v311, %v6084
      %v6117 = vadd.f32 %v312, %v6085
      %v6118 = vadd.f32 %v313, %v6086
      %v6119 = vadd.f32 %v314, %v6087
      %v6120 = vadd.f32 %v315, %v6088
      %v6121 = vpack.c.bf16 %v6090, %v6089
      %v6122 = vpack.c.bf16 %v6092, %v6091
      %v6123 = vpack.c.bf16 %v6094, %v6093
      %v6124 = vpack.c.bf16 %v6096, %v6095
      %v6125 = vpack.c.bf16 %v6098, %v6097
      %v6126 = vpack.c.bf16 %v6100, %v6099
      %v6127 = vpack.c.bf16 %v6102, %v6101
      %v6128 = vpack.c.bf16 %v6104, %v6103
      %v6129 = vpack.c.bf16 %v6106, %v6105
      %v6130 = vpack.c.bf16 %v6108, %v6107
      %v6131 = vpack.c.bf16 %v6110, %v6109
      %v6132 = vpack.c.bf16 %v6112, %v6111
      %v6133 = vpack.c.bf16 %v6114, %v6113
      %v6134 = vpack.c.bf16 %v6116, %v6115
      %v6135 = vpack.c.bf16 %v6118, %v6117
      %v6136 = vpack.c.bf16 %v6120, %v6119
      %6137 = vst.msk [vmem:[%s412 + $0x8] sm:$0xff] %vm199, %v6121
      %6138 = vst.msk [vmem:[%s412 + $0x20] sm:$0xff] %vm199, %v6122
      %6139 = vst.msk [vmem:[%s412 + $0x38] sm:$0xff] %vm199, %v6123
      %6140 = vst.msk [vmem:[%s412 + $0x50] sm:$0xff] %vm199, %v6124
      %6141 = vst.msk [vmem:[%s412 + $0x68] sm:$0xff] %vm199, %v6125
      %6142 = vst.msk [vmem:[%s412 + $0x80] sm:$0xff] %vm199, %v6126
      %6143 = vst.msk [vmem:[%s412 + $0x98] sm:$0xff] %vm199, %v6127
      %6144 = vst.msk [vmem:[%s412 + $0xb0] sm:$0xff] %vm199, %v6128
      %6145 = vst.msk [vmem:[%s412 + $0xc8] sm:$0xff] %vm199, %v6129
      %6146 = vst.msk [vmem:[%s412 + $0xe0] sm:$0xff] %vm199, %v6130
      %6147 = vst.msk [vmem:[%s412 + $0xf8] sm:$0xff] %vm199, %v6131
      %6148 = vst.msk [vmem:[%s412 + $0x110] sm:$0xff] %vm199, %v6132
      %6149 = vst.msk [vmem:[%s412 + $0x128] sm:$0xff] %vm199, %v6133
      %6150 = vst.msk [vmem:[%s412 + $0x140] sm:$0xff] %vm199, %v6134
      %6151 = vst.msk [vmem:[%s412 + $0x158] sm:$0xff] %vm199, %v6135
      %6152 = vst.msk [vmem:[%s412 + $0x170] sm:$0xff] %vm199, %v6136
      %v6153 = vld [vmem:[#allocation2] sm:$0xff]
      %v6154 = vld [vmem:[#allocation2 + $0x8] sm:$0xff]
      %v6155 = vld [vmem:[#allocation2 + $0x10] sm:$0xff]
      %v6156 = vld [vmem:[#allocation2 + $0x18] sm:$0xff]
      %v6157 = vld [vmem:[#allocation2 + $0x20] sm:$0xff]
      %v6158 = vld [vmem:[#allocation2 + $0x28] sm:$0xff]
      %v6159 = vld [vmem:[#allocation2 + $0x30] sm:$0xff]
      %v6160 = vld [vmem:[#allocation2 + $0x38] sm:$0xff]
      %v6161 = vld [vmem:[#allocation2 + $0x40] sm:$0xff]
      %v6162 = vld [vmem:[#allocation2 + $0x48] sm:$0xff]
      %v6163 = vld [vmem:[#allocation2 + $0x50] sm:$0xff]
      %v6164 = vld [vmem:[#allocation2 + $0x58] sm:$0xff]
      %v6165 = vld [vmem:[#allocation2 + $0x60] sm:$0xff]
      %v6166 = vld [vmem:[#allocation2 + $0x68] sm:$0xff]
      %v6167 = vld [vmem:[#allocation2 + $0x70] sm:$0xff]
      %v6168 = vld [vmem:[#allocation2 + $0x78] sm:$0xff]
      %v6169 = vld [vmem:[#allocation2 + $0x80] sm:$0xff]
      %v6170 = vld [vmem:[#allocation2 + $0x88] sm:$0xff]
      %v6171 = vld [vmem:[#allocation2 + $0x90] sm:$0xff]
      %v6172 = vld [vmem:[#allocation2 + $0x98] sm:$0xff]
      %v6173 = vld [vmem:[#allocation2 + $0xa0] sm:$0xff]
      %v6174 = vld [vmem:[#allocation2 + $0xa8] sm:$0xff]
      %v6175 = vld [vmem:[#allocation2 + $0xb0] sm:$0xff]
      %v6176 = vld [vmem:[#allocation2 + $0xb8] sm:$0xff]
      %v6177 = vld [vmem:[#allocation2 + $0xc0] sm:$0xff]
      %v6178 = vld [vmem:[#allocation2 + $0xc8] sm:$0xff]
      %v6179 = vld [vmem:[#allocation2 + $0xd0] sm:$0xff]
      %v6180 = vld [vmem:[#allocation2 + $0xd8] sm:$0xff]
      %v6181 = vld [vmem:[#allocation2 + $0xe0] sm:$0xff]
      %v6182 = vld [vmem:[#allocation2 + $0xe8] sm:$0xff]
      %v6183 = vld [vmem:[#allocation2 + $0xf0] sm:$0xff]
      %v6184 = vld [vmem:[#allocation2 + $0xf8] sm:$0xff]
      %v6185 = vld [vmem:[#allocation2 + $0x100] sm:$0xff]
      %v6186 = vld [vmem:[#allocation2 + $0x108] sm:$0xff]
      %v6187 = vld [vmem:[#allocation2 + $0x110] sm:$0xff]
      %v6188 = vld [vmem:[#allocation2 + $0x118] sm:$0xff]
      %v6189 = vld [vmem:[#allocation2 + $0x120] sm:$0xff]
      %v6190 = vld [vmem:[#allocation2 + $0x128] sm:$0xff]
      %v6191 = vld [vmem:[#allocation2 + $0x130] sm:$0xff]
      %v6192 = vld [vmem:[#allocation2 + $0x138] sm:$0xff]
      %v6193 = vld [vmem:[#allocation2 + $0x140] sm:$0xff]
      %v6194 = vld [vmem:[#allocation2 + $0x148] sm:$0xff]
      %v6195 = vld [vmem:[#allocation2 + $0x150] sm:$0xff]
      %v6196 = vld [vmem:[#allocation2 + $0x158] sm:$0xff]
      %v6197 = vld [vmem:[#allocation2 + $0x160] sm:$0xff]
      %v6198 = vld [vmem:[#allocation2 + $0x168] sm:$0xff]
      %v6199 = vld [vmem:[#allocation2 + $0x170] sm:$0xff]
      %v6200 = vld [vmem:[#allocation2 + $0x178] sm:$0xff]
      %v6202 = vshll.u32 %v6154, 16
      %v6204 = vrot.slane %v6202, 1
      %v6205 = vshrl.u32 %v6154, 16
      %v6207 = vor.u32 %v6205, %v6204
      %v6209 = vshll.u32 %v6157, 16
      %v6211 = vrot.slane %v6209, 1
      %v6212 = vshrl.u32 %v6157, 16
      %v6214 = vor.u32 %v6212, %v6211
      %v6216 = vshll.u32 %v6160, 16
      %v6218 = vrot.slane %v6216, 1
      %v6219 = vshrl.u32 %v6160, 16
      %v6221 = vor.u32 %v6219, %v6218
      %v6223 = vshll.u32 %v6163, 16
      %v6225 = vrot.slane %v6223, 1
      %v6226 = vshrl.u32 %v6163, 16
      %v6228 = vor.u32 %v6226, %v6225
      %v6230 = vshll.u32 %v6166, 16
      %v6232 = vrot.slane %v6230, 1
      %v6233 = vshrl.u32 %v6166, 16
      %v6235 = vor.u32 %v6233, %v6232
      %v6237 = vshll.u32 %v6169, 16
      %v6239 = vrot.slane %v6237, 1
      %v6240 = vshrl.u32 %v6169, 16
      %v6242 = vor.u32 %v6240, %v6239
      %v6244 = vshll.u32 %v6172, 16
      %v6246 = vrot.slane %v6244, 1
      %v6247 = vshrl.u32 %v6172, 16
      %v6249 = vor.u32 %v6247, %v6246
      %v6251 = vshll.u32 %v6175, 16
      %v6253 = vrot.slane %v6251, 1
      %v6254 = vshrl.u32 %v6175, 16
      %v6256 = vor.u32 %v6254, %v6253
      %v6258 = vshll.u32 %v6178, 16
      %v6260 = vrot.slane %v6258, 1
      %v6261 = vshrl.u32 %v6178, 16
      %v6263 = vor.u32 %v6261, %v6260
      %v6265 = vshll.u32 %v6181, 16
      %v6267 = vrot.slane %v6265, 1
      %v6268 = vshrl.u32 %v6181, 16
      %v6270 = vor.u32 %v6268, %v6267
      %v6272 = vshll.u32 %v6184, 16
      %v6274 = vrot.slane %v6272, 1
      %v6275 = vshrl.u32 %v6184, 16
      %v6277 = vor.u32 %v6275, %v6274
      %v6279 = vshll.u32 %v6187, 16
      %v6281 = vrot.slane %v6279, 1
      %v6282 = vshrl.u32 %v6187, 16
      %v6284 = vor.u32 %v6282, %v6281
      %v6286 = vshll.u32 %v6190, 16
      %v6288 = vrot.slane %v6286, 1
      %v6289 = vshrl.u32 %v6190, 16
      %v6291 = vor.u32 %v6289, %v6288
      %v6293 = vshll.u32 %v6193, 16
      %v6295 = vrot.slane %v6293, 1
      %v6296 = vshrl.u32 %v6193, 16
      %v6298 = vor.u32 %v6296, %v6295
      %v6300 = vshll.u32 %v6196, 16
      %v6302 = vrot.slane %v6300, 1
      %v6303 = vshrl.u32 %v6196, 16
      %v6305 = vor.u32 %v6303, %v6302
      %v6307 = vshll.u32 %v6199, 16
      %v6309 = vrot.slane %v6307, 1
      %v6310 = vshrl.u32 %v6199, 16
      %v6312 = vor.u32 %v6310, %v6309
      %6313 = vrot.lane.b32.xlu0 %v6204, 8
      %v6314 = vpop.permute.xlu0 %6313
      %6315 = vrot.lane.b32.xlu0 %v6207, 8
      %v6316 = vpop.permute.xlu0 %6315
      %6317 = vrot.lane.b32.xlu0 %v6211, 8
      %v6318 = vpop.permute.xlu0 %6317
      %6319 = vrot.lane.b32.xlu0 %v6214, 8
      %v6320 = vpop.permute.xlu0 %6319
      %6321 = vrot.lane.b32.xlu0 %v6218, 8
      %v6322 = vpop.permute.xlu0 %6321
      %6323 = vrot.lane.b32.xlu0 %v6221, 8
      %v6324 = vpop.permute.xlu0 %6323
      %6325 = vrot.lane.b32.xlu0 %v6225, 8
      %v6326 = vpop.permute.xlu0 %6325
      %6327 = vrot.lane.b32.xlu0 %v6228, 8
      %v6328 = vpop.permute.xlu0 %6327
      %6329 = vrot.lane.b32.xlu0 %v6232, 8
      %v6330 = vpop.permute.xlu0 %6329
      %6331 = vrot.lane.b32.xlu0 %v6235, 8
      %v6332 = vpop.permute.xlu0 %6331
      %6333 = vrot.lane.b32.xlu0 %v6239, 8
      %v6334 = vpop.permute.xlu0 %6333
      %6335 = vrot.lane.b32.xlu0 %v6242, 8
      %v6336 = vpop.permute.xlu0 %6335
      %6337 = vrot.lane.b32.xlu0 %v6246, 8
      %v6338 = vpop.permute.xlu0 %6337
      %6339 = vrot.lane.b32.xlu0 %v6249, 8
      %v6340 = vpop.permute.xlu0 %6339
      %6341 = vrot.lane.b32.xlu0 %v6253, 8
      %v6342 = vpop.permute.xlu0 %6341
      %6343 = vrot.lane.b32.xlu0 %v6256, 8
      %v6344 = vpop.permute.xlu0 %6343
      %6345 = vrot.lane.b32.xlu0 %v6260, 8
      %v6346 = vpop.permute.xlu0 %6345
      %6347 = vrot.lane.b32.xlu0 %v6263, 8
      %v6348 = vpop.permute.xlu0 %6347
      %6349 = vrot.lane.b32.xlu0 %v6267, 8
      %v6350 = vpop.permute.xlu0 %6349
      %6351 = vrot.lane.b32.xlu0 %v6270, 8
      %v6352 = vpop.permute.xlu0 %6351
      %6353 = vrot.lane.b32.xlu0 %v6274, 8
      %v6354 = vpop.permute.xlu0 %6353
      %6355 = vrot.lane.b32.xlu0 %v6277, 8
      %v6356 = vpop.permute.xlu0 %6355
      %6357 = vrot.lane.b32.xlu0 %v6281, 8
      %v6358 = vpop.permute.xlu0 %6357
      %6359 = vrot.lane.b32.xlu0 %v6284, 8
      %v6360 = vpop.permute.xlu0 %6359
      %6361 = vrot.lane.b32.xlu0 %v6288, 8
      %v6362 = vpop.permute.xlu0 %6361
      %6363 = vrot.lane.b32.xlu0 %v6291, 8
      %v6364 = vpop.permute.xlu0 %6363
      %6365 = vrot.lane.b32.xlu0 %v6295, 8
      %v6366 = vpop.permute.xlu0 %6365
      %6367 = vrot.lane.b32.xlu0 %v6298, 8
      %v6368 = vpop.permute.xlu0 %6367
      %6369 = vrot.lane.b32.xlu0 %v6302, 8
      %v6370 = vpop.permute.xlu0 %6369
      %6371 = vrot.lane.b32.xlu0 %v6305, 8
      %v6372 = vpop.permute.xlu0 %6371
      %6373 = vrot.lane.b32.xlu0 %v6309, 8
      %v6374 = vpop.permute.xlu0 %6373
      %6375 = vrot.lane.b32.xlu0 %v6312, 8
      %v6376 = vpop.permute.xlu0 %6375
      %v6409 = vrot.slane %v6154, 1
      %v6410 = vrot.slane %v6155, 1
      %v6411 = vsel %vm685, %v6409, %v6410
      %v6412 = vrot.slane %v6157, 1
      %v6413 = vrot.slane %v6158, 1
      %v6414 = vsel %vm685, %v6412, %v6413
      %v6415 = vrot.slane %v6160, 1
      %v6416 = vrot.slane %v6161, 1
      %v6417 = vsel %vm685, %v6415, %v6416
      %v6418 = vrot.slane %v6163, 1
      %v6419 = vrot.slane %v6164, 1
      %v6420 = vsel %vm685, %v6418, %v6419
      %v6421 = vrot.slane %v6166, 1
      %v6422 = vrot.slane %v6167, 1
      %v6423 = vsel %vm685, %v6421, %v6422
      %v6424 = vrot.slane %v6169, 1
      %v6425 = vrot.slane %v6170, 1
      %v6426 = vsel %vm685, %v6424, %v6425
      %v6427 = vrot.slane %v6172, 1
      %v6428 = vrot.slane %v6173, 1
      %v6429 = vsel %vm685, %v6427, %v6428
      %v6430 = vrot.slane %v6175, 1
      %v6431 = vrot.slane %v6176, 1
      %v6432 = vsel %vm685, %v6430, %v6431
      %v6433 = vrot.slane %v6178, 1
      %v6434 = vrot.slane %v6179, 1
      %v6435 = vsel %vm685, %v6433, %v6434
      %v6436 = vrot.slane %v6181, 1
      %v6437 = vrot.slane %v6182, 1
      %v6438 = vsel %vm685, %v6436, %v6437
      %v6439 = vrot.slane %v6184, 1
      %v6440 = vrot.slane %v6185, 1
      %v6441 = vsel %vm685, %v6439, %v6440
      %v6442 = vrot.slane %v6187, 1
      %v6443 = vrot.slane %v6188, 1
      %v6444 = vsel %vm685, %v6442, %v6443
      %v6445 = vrot.slane %v6190, 1
      %v6446 = vrot.slane %v6191, 1
      %v6447 = vsel %vm685, %v6445, %v6446
      %v6448 = vrot.slane %v6193, 1
      %v6449 = vrot.slane %v6194, 1
      %v6450 = vsel %vm685, %v6448, %v6449
      %v6451 = vrot.slane %v6196, 1
      %v6452 = vrot.slane %v6197, 1
      %v6453 = vsel %vm685, %v6451, %v6452
      %v6454 = vrot.slane %v6199, 1
      %v6455 = vrot.slane %v6200, 1
      %v6456 = vsel %vm685, %v6454, %v6455
      %6457 = vrot.lane.b32.xlu0 %v6409, 16
      %v6458 = vpop.permute.xlu0 %6457
      %6459 = vrot.lane.b32.xlu0 %v6411, 16
      %v6460 = vpop.permute.xlu0 %6459
      %6461 = vrot.lane.b32.xlu0 %v6412, 16
      %v6462 = vpop.permute.xlu0 %6461
      %6463 = vrot.lane.b32.xlu0 %v6414, 16
      %v6464 = vpop.permute.xlu0 %6463
      %6465 = vrot.lane.b32.xlu0 %v6415, 16
      %v6466 = vpop.permute.xlu0 %6465
      %6467 = vrot.lane.b32.xlu0 %v6417, 16
      %v6468 = vpop.permute.xlu0 %6467
      %6469 = vrot.lane.b32.xlu0 %v6418, 16
      %v6470 = vpop.permute.xlu0 %6469
      %6471 = vrot.lane.b32.xlu0 %v6420, 16
      %v6472 = vpop.permute.xlu0 %6471
      %6473 = vrot.lane.b32.xlu0 %v6421, 16
      %v6474 = vpop.permute.xlu0 %6473
      %6475 = vrot.lane.b32.xlu0 %v6423, 16
      %v6476 = vpop.permute.xlu0 %6475
      %6477 = vrot.lane.b32.xlu0 %v6424, 16
      %v6478 = vpop.permute.xlu0 %6477
      %6479 = vrot.lane.b32.xlu0 %v6426, 16
      %v6480 = vpop.permute.xlu0 %6479
      %6481 = vrot.lane.b32.xlu0 %v6427, 16
      %v6482 = vpop.permute.xlu0 %6481
      %6483 = vrot.lane.b32.xlu0 %v6429, 16
      %v6484 = vpop.permute.xlu0 %6483
      %6485 = vrot.lane.b32.xlu0 %v6430, 16
      %v6486 = vpop.permute.xlu0 %6485
      %6487 = vrot.lane.b32.xlu0 %v6432, 16
      %v6488 = vpop.permute.xlu0 %6487
      %6489 = vrot.lane.b32.xlu0 %v6433, 16
      %v6490 = vpop.permute.xlu0 %6489
      %6491 = vrot.lane.b32.xlu0 %v6435, 16
      %v6492 = vpop.permute.xlu0 %6491
      %6493 = vrot.lane.b32.xlu0 %v6436, 16
      %v6494 = vpop.permute.xlu0 %6493
      %6495 = vrot.lane.b32.xlu0 %v6438, 16
      %v6496 = vpop.permute.xlu0 %6495
      %6497 = vrot.lane.b32.xlu0 %v6439, 16
      %v6498 = vpop.permute.xlu0 %6497
      %6499 = vrot.lane.b32.xlu0 %v6441, 16
      %v6500 = vpop.permute.xlu0 %6499
      %6501 = vrot.lane.b32.xlu0 %v6442, 16
      %v6502 = vpop.permute.xlu0 %6501
      %6503 = vrot.lane.b32.xlu0 %v6444, 16
      %v6504 = vpop.permute.xlu0 %6503
      %6505 = vrot.lane.b32.xlu0 %v6445, 16
      %v6506 = vpop.permute.xlu0 %6505
      %6507 = vrot.lane.b32.xlu0 %v6447, 16
      %v6508 = vpop.permute.xlu0 %6507
      %6509 = vrot.lane.b32.xlu0 %v6448, 16
      %v6510 = vpop.permute.xlu0 %6509
      %6511 = vrot.lane.b32.xlu0 %v6450, 16
      %v6512 = vpop.permute.xlu0 %6511
      %6513 = vrot.lane.b32.xlu0 %v6451, 16
      %v6514 = vpop.permute.xlu0 %6513
      %6515 = vrot.lane.b32.xlu0 %v6453, 16
      %v6516 = vpop.permute.xlu0 %6515
      %6517 = vrot.lane.b32.xlu0 %v6454, 16
      %v6518 = vpop.permute.xlu0 %6517
      %6519 = vrot.lane.b32.xlu0 %v6456, 16
      %v6520 = vpop.permute.xlu0 %6519
      %v6523 = vsel %vm199, %v6153, %v6314
      %v6525 = vsel %vm199, %v6154, %v6316
      %v6528 = vsel %vm199, %v6156, %v6318
      %v6530 = vsel %vm199, %v6157, %v6320
      %v6533 = vsel %vm199, %v6159, %v6322
      %v6535 = vsel %vm199, %v6160, %v6324
      %v6538 = vsel %vm199, %v6162, %v6326
      %v6540 = vsel %vm199, %v6163, %v6328
      %v6543 = vsel %vm199, %v6165, %v6330
      %v6545 = vsel %vm199, %v6166, %v6332
      %v6548 = vsel %vm199, %v6168, %v6334
      %v6550 = vsel %vm199, %v6169, %v6336
      %v6553 = vsel %vm199, %v6171, %v6338
      %v6555 = vsel %vm199, %v6172, %v6340
      %v6558 = vsel %vm199, %v6174, %v6342
      %v6560 = vsel %vm199, %v6175, %v6344
      %v6563 = vsel %vm199, %v6177, %v6346
      %v6565 = vsel %vm199, %v6178, %v6348
      %v6568 = vsel %vm199, %v6180, %v6350
      %v6570 = vsel %vm199, %v6181, %v6352
      %v6573 = vsel %vm199, %v6183, %v6354
      %v6575 = vsel %vm199, %v6184, %v6356
      %v6578 = vsel %vm199, %v6186, %v6358
      %v6580 = vsel %vm199, %v6187, %v6360
      %v6583 = vsel %vm199, %v6189, %v6362
      %v6585 = vsel %vm199, %v6190, %v6364
      %v6588 = vsel %vm199, %v6192, %v6366
      %v6590 = vsel %vm199, %v6193, %v6368
      %v6593 = vsel %vm199, %v6195, %v6370
      %v6595 = vsel %vm199, %v6196, %v6372
      %v6598 = vsel %vm199, %v6198, %v6374
      %v6600 = vsel %vm199, %v6199, %v6376
      %v6602 = vsel %vm878, %v6523, %v6458
      %v6604 = vsel %vm878, %v6525, %v6460
      %v6606 = vsel %vm878, %v6528, %v6462
      %v6608 = vsel %vm878, %v6530, %v6464
      %v6610 = vsel %vm878, %v6533, %v6466
      %v6612 = vsel %vm878, %v6535, %v6468
      %v6614 = vsel %vm878, %v6538, %v6470
      %v6616 = vsel %vm878, %v6540, %v6472
      %v6618 = vsel %vm878, %v6543, %v6474
      %v6620 = vsel %vm878, %v6545, %v6476
      %v6622 = vsel %vm878, %v6548, %v6478
      %v6624 = vsel %vm878, %v6550, %v6480
      %v6626 = vsel %vm878, %v6553, %v6482
      %v6628 = vsel %vm878, %v6555, %v6484
      %v6630 = vsel %vm878, %v6558, %v6486
      %v6632 = vsel %vm878, %v6560, %v6488
      %v6634 = vsel %vm878, %v6563, %v6490
      %v6636 = vsel %vm878, %v6565, %v6492
      %v6638 = vsel %vm878, %v6568, %v6494
      %v6640 = vsel %vm878, %v6570, %v6496
      %v6642 = vsel %vm878, %v6573, %v6498
      %v6644 = vsel %vm878, %v6575, %v6500
      %v6646 = vsel %vm878, %v6578, %v6502
      %v6648 = vsel %vm878, %v6580, %v6504
      %v6650 = vsel %vm878, %v6583, %v6506
      %v6652 = vsel %vm878, %v6585, %v6508
      %v6654 = vsel %vm878, %v6588, %v6510
      %v6656 = vsel %vm878, %v6590, %v6512
      %v6658 = vsel %vm878, %v6593, %v6514
      %v6660 = vsel %vm878, %v6595, %v6516
      %v6662 = vsel %vm878, %v6598, %v6518
      %v6664 = vsel %vm878, %v6600, %v6520
      %v6665 = vshrl.u32 %v6602, 16
      %v6667 = vrot.slane %v6665, 7
      %v6668 = vshrl.u32 %v6604, 16
      %v6670 = vrot.slane %v6668, 7
      %v6671 = vshll.u32 %v6604, 16
      %v6673 = vor.u32 %v6670, %v6671
      %v6674 = vsel %vm943, %v6667, %v6673
      %v6675 = vshrl.u32 %v6606, 16
      %v6677 = vrot.slane %v6675, 7
      %v6678 = vshrl.u32 %v6608, 16
      %v6680 = vrot.slane %v6678, 7
      %v6681 = vshll.u32 %v6608, 16
      %v6683 = vor.u32 %v6680, %v6681
      %v6684 = vsel %vm943, %v6677, %v6683
      %v6685 = vshrl.u32 %v6610, 16
      %v6687 = vrot.slane %v6685, 7
      %v6688 = vshrl.u32 %v6612, 16
      %v6690 = vrot.slane %v6688, 7
      %v6691 = vshll.u32 %v6612, 16
      %v6693 = vor.u32 %v6690, %v6691
      %v6694 = vsel %vm943, %v6687, %v6693
      %v6695 = vshrl.u32 %v6614, 16
      %v6697 = vrot.slane %v6695, 7
      %v6698 = vshrl.u32 %v6616, 16
      %v6700 = vrot.slane %v6698, 7
      %v6701 = vshll.u32 %v6616, 16
      %v6703 = vor.u32 %v6700, %v6701
      %v6704 = vsel %vm943, %v6697, %v6703
      %v6705 = vshrl.u32 %v6618, 16
      %v6707 = vrot.slane %v6705, 7
      %v6708 = vshrl.u32 %v6620, 16
      %v6710 = vrot.slane %v6708, 7
      %v6711 = vshll.u32 %v6620, 16
      %v6713 = vor.u32 %v6710, %v6711
      %v6714 = vsel %vm943, %v6707, %v6713
      %v6715 = vshrl.u32 %v6622, 16
      %v6717 = vrot.slane %v6715, 7
      %v6718 = vshrl.u32 %v6624, 16
      %v6720 = vrot.slane %v6718, 7
      %v6721 = vshll.u32 %v6624, 16
      %v6723 = vor.u32 %v6720, %v6721
      %v6724 = vsel %vm943, %v6717, %v6723
      %v6725 = vshrl.u32 %v6626, 16
      %v6727 = vrot.slane %v6725, 7
      %v6728 = vshrl.u32 %v6628, 16
      %v6730 = vrot.slane %v6728, 7
      %v6731 = vshll.u32 %v6628, 16
      %v6733 = vor.u32 %v6730, %v6731
      %v6734 = vsel %vm943, %v6727, %v6733
      %v6735 = vshrl.u32 %v6630, 16
      %v6737 = vrot.slane %v6735, 7
      %v6738 = vshrl.u32 %v6632, 16
      %v6740 = vrot.slane %v6738, 7
      %v6741 = vshll.u32 %v6632, 16
      %v6743 = vor.u32 %v6740, %v6741
      %v6744 = vsel %vm943, %v6737, %v6743
      %v6745 = vshrl.u32 %v6634, 16
      %v6747 = vrot.slane %v6745, 7
      %v6748 = vshrl.u32 %v6636, 16
      %v6750 = vrot.slane %v6748, 7
      %v6751 = vshll.u32 %v6636, 16
      %v6753 = vor.u32 %v6750, %v6751
      %v6754 = vsel %vm943, %v6747, %v6753
      %v6755 = vshrl.u32 %v6638, 16
      %v6757 = vrot.slane %v6755, 7
      %v6758 = vshrl.u32 %v6640, 16
      %v6760 = vrot.slane %v6758, 7
      %v6761 = vshll.u32 %v6640, 16
      %v6763 = vor.u32 %v6760, %v6761
      %v6764 = vsel %vm943, %v6757, %v6763
      %v6765 = vshrl.u32 %v6642, 16
      %v6767 = vrot.slane %v6765, 7
      %v6768 = vshrl.u32 %v6644, 16
      %v6770 = vrot.slane %v6768, 7
      %v6771 = vshll.u32 %v6644, 16
      %v6773 = vor.u32 %v6770, %v6771
      %v6774 = vsel %vm943, %v6767, %v6773
      %v6775 = vshrl.u32 %v6646, 16
      %v6777 = vrot.slane %v6775, 7
      %v6778 = vshrl.u32 %v6648, 16
      %v6780 = vrot.slane %v6778, 7
      %v6781 = vshll.u32 %v6648, 16
      %v6783 = vor.u32 %v6780, %v6781
      %v6784 = vsel %vm943, %v6777, %v6783
      %v6785 = vshrl.u32 %v6650, 16
      %v6787 = vrot.slane %v6785, 7
      %v6788 = vshrl.u32 %v6652, 16
      %v6790 = vrot.slane %v6788, 7
      %v6791 = vshll.u32 %v6652, 16
      %v6793 = vor.u32 %v6790, %v6791
      %v6794 = vsel %vm943, %v6787, %v6793
      %v6795 = vshrl.u32 %v6654, 16
      %v6797 = vrot.slane %v6795, 7
      %v6798 = vshrl.u32 %v6656, 16
      %v6800 = vrot.slane %v6798, 7
      %v6801 = vshll.u32 %v6656, 16
      %v6803 = vor.u32 %v6800, %v6801
      %v6804 = vsel %vm943, %v6797, %v6803
      %v6805 = vshrl.u32 %v6658, 16
      %v6807 = vrot.slane %v6805, 7
      %v6808 = vshrl.u32 %v6660, 16
      %v6810 = vrot.slane %v6808, 7
      %v6811 = vshll.u32 %v6660, 16
      %v6813 = vor.u32 %v6810, %v6811
      %v6814 = vsel %vm943, %v6807, %v6813
      %v6815 = vshrl.u32 %v6662, 16
      %v6817 = vrot.slane %v6815, 7
      %v6818 = vshrl.u32 %v6664, 16
      %v6820 = vrot.slane %v6818, 7
      %v6821 = vshll.u32 %v6664, 16
      %v6823 = vor.u32 %v6820, %v6821
      %v6824 = vsel %vm943, %v6817, %v6823
      %v6825 = vld [vmem:[%s412] sm:$0xff]
      %v6826 = vld [vmem:[%s412 + $0x8] sm:$0xff]
      %v6827 = vld [vmem:[%s412 + $0x10] sm:$0xff]
      %v6828 = vld [vmem:[%s412 + $0x18] sm:$0xff]
      %v6829 = vld [vmem:[%s412 + $0x20] sm:$0xff]
      %v6830 = vld [vmem:[%s412 + $0x28] sm:$0xff]
      %v6831 = vld [vmem:[%s412 + $0x30] sm:$0xff]
      %v6832 = vld [vmem:[%s412 + $0x38] sm:$0xff]
      %v6833 = vld [vmem:[%s412 + $0x40] sm:$0xff]
      %v6834 = vld [vmem:[%s412 + $0x48] sm:$0xff]
      %v6835 = vld [vmem:[%s412 + $0x50] sm:$0xff]
      %v6836 = vld [vmem:[%s412 + $0x58] sm:$0xff]
      %v6837 = vld [vmem:[%s412 + $0x60] sm:$0xff]
      %v6838 = vld [vmem:[%s412 + $0x68] sm:$0xff]
      %v6839 = vld [vmem:[%s412 + $0x70] sm:$0xff]
      %v6840 = vld [vmem:[%s412 + $0x78] sm:$0xff]
      %v6841 = vld [vmem:[%s412 + $0x80] sm:$0xff]
      %v6842 = vld [vmem:[%s412 + $0x88] sm:$0xff]
      %v6843 = vld [vmem:[%s412 + $0x90] sm:$0xff]
      %v6844 = vld [vmem:[%s412 + $0x98] sm:$0xff]
      %v6845 = vld [vmem:[%s412 + $0xa0] sm:$0xff]
      %v6846 = vld [vmem:[%s412 + $0xa8] sm:$0xff]
      %v6847 = vld [vmem:[%s412 + $0xb0] sm:$0xff]
      %v6848 = vld [vmem:[%s412 + $0xb8] sm:$0xff]
      %v6849 = vld [vmem:[%s412 + $0xc0] sm:$0xff]
      %v6850 = vld [vmem:[%s412 + $0xc8] sm:$0xff]
      %v6851 = vld [vmem:[%s412 + $0xd0] sm:$0xff]
      %v6852 = vld [vmem:[%s412 + $0xd8] sm:$0xff]
      %v6853 = vld [vmem:[%s412 + $0xe0] sm:$0xff]
      %v6854 = vld [vmem:[%s412 + $0xe8] sm:$0xff]
      %v6855 = vld [vmem:[%s412 + $0xf0] sm:$0xff]
      %v6856 = vld [vmem:[%s412 + $0xf8] sm:$0xff]
      %v6857 = vld [vmem:[%s412 + $0x100] sm:$0xff]
      %v6858 = vld [vmem:[%s412 + $0x108] sm:$0xff]
      %v6859 = vld [vmem:[%s412 + $0x110] sm:$0xff]
      %v6860 = vld [vmem:[%s412 + $0x118] sm:$0xff]
      %v6861 = vld [vmem:[%s412 + $0x120] sm:$0xff]
      %v6862 = vld [vmem:[%s412 + $0x128] sm:$0xff]
      %v6863 = vld [vmem:[%s412 + $0x130] sm:$0xff]
      %v6864 = vld [vmem:[%s412 + $0x138] sm:$0xff]
      %v6865 = vld [vmem:[%s412 + $0x140] sm:$0xff]
      %v6866 = vld [vmem:[%s412 + $0x148] sm:$0xff]
      %v6867 = vld [vmem:[%s412 + $0x150] sm:$0xff]
      %v6868 = vld [vmem:[%s412 + $0x158] sm:$0xff]
      %v6869 = vld [vmem:[%s412 + $0x160] sm:$0xff]
      %v6870 = vld [vmem:[%s412 + $0x168] sm:$0xff]
      %v6871 = vld [vmem:[%s412 + $0x170] sm:$0xff]
      %v6872 = vld [vmem:[%s412 + $0x178] sm:$0xff]
      %v6874 = vshll.u32 %v6826, 16
      %v6876 = vrot.slane %v6874, 1
      %v6877 = vshrl.u32 %v6826, 16
      %v6879 = vor.u32 %v6877, %v6876
      %v6881 = vshll.u32 %v6829, 16
      %v6883 = vrot.slane %v6881, 1
      %v6884 = vshrl.u32 %v6829, 16
      %v6886 = vor.u32 %v6884, %v6883
      %v6888 = vshll.u32 %v6832, 16
      %v6890 = vrot.slane %v6888, 1
      %v6891 = vshrl.u32 %v6832, 16
      %v6893 = vor.u32 %v6891, %v6890
      %v6895 = vshll.u32 %v6835, 16
      %v6897 = vrot.slane %v6895, 1
      %v6898 = vshrl.u32 %v6835, 16
      %v6900 = vor.u32 %v6898, %v6897
      %v6902 = vshll.u32 %v6838, 16
      %v6904 = vrot.slane %v6902, 1
      %v6905 = vshrl.u32 %v6838, 16
      %v6907 = vor.u32 %v6905, %v6904
      %v6909 = vshll.u32 %v6841, 16
      %v6911 = vrot.slane %v6909, 1
      %v6912 = vshrl.u32 %v6841, 16
      %v6914 = vor.u32 %v6912, %v6911
      %v6916 = vshll.u32 %v6844, 16
      %v6918 = vrot.slane %v6916, 1
      %v6919 = vshrl.u32 %v6844, 16
      %v6921 = vor.u32 %v6919, %v6918
      %v6923 = vshll.u32 %v6847, 16
      %v6925 = vrot.slane %v6923, 1
      %v6926 = vshrl.u32 %v6847, 16
      %v6928 = vor.u32 %v6926, %v6925
      %v6930 = vshll.u32 %v6850, 16
      %v6932 = vrot.slane %v6930, 1
      %v6933 = vshrl.u32 %v6850, 16
      %v6935 = vor.u32 %v6933, %v6932
      %v6937 = vshll.u32 %v6853, 16
      %v6939 = vrot.slane %v6937, 1
      %v6940 = vshrl.u32 %v6853, 16
      %v6942 = vor.u32 %v6940, %v6939
      %v6944 = vshll.u32 %v6856, 16
      %v6946 = vrot.slane %v6944, 1
      %v6947 = vshrl.u32 %v6856, 16
      %v6949 = vor.u32 %v6947, %v6946
      %v6951 = vshll.u32 %v6859, 16
      %v6953 = vrot.slane %v6951, 1
      %v6954 = vshrl.u32 %v6859, 16
      %v6956 = vor.u32 %v6954, %v6953
      %v6958 = vshll.u32 %v6862, 16
      %v6960 = vrot.slane %v6958, 1
      %v6961 = vshrl.u32 %v6862, 16
      %v6963 = vor.u32 %v6961, %v6960
      %v6965 = vshll.u32 %v6865, 16
      %v6967 = vrot.slane %v6965, 1
      %v6968 = vshrl.u32 %v6865, 16
      %v6970 = vor.u32 %v6968, %v6967
      %v6972 = vshll.u32 %v6868, 16
      %v6974 = vrot.slane %v6972, 1
      %v6975 = vshrl.u32 %v6868, 16
      %v6977 = vor.u32 %v6975, %v6974
      %v6979 = vshll.u32 %v6871, 16
      %v6981 = vrot.slane %v6979, 1
      %v6982 = vshrl.u32 %v6871, 16
      %v6984 = vor.u32 %v6982, %v6981
      %6985 = vrot.lane.b32.xlu0 %v6876, 8
      %v6986 = vpop.permute.xlu0 %6985
      %6987 = vrot.lane.b32.xlu0 %v6879, 8
      %v6988 = vpop.permute.xlu0 %6987
      %6989 = vrot.lane.b32.xlu0 %v6883, 8
      %v6990 = vpop.permute.xlu0 %6989
      %6991 = vrot.lane.b32.xlu0 %v6886, 8
      %v6992 = vpop.permute.xlu0 %6991
      %6993 = vrot.lane.b32.xlu0 %v6890, 8
      %v6994 = vpop.permute.xlu0 %6993
      %6995 = vrot.lane.b32.xlu0 %v6893, 8
      %v6996 = vpop.permute.xlu0 %6995
      %6997 = vrot.lane.b32.xlu0 %v6897, 8
      %v6998 = vpop.permute.xlu0 %6997
      %6999 = vrot.lane.b32.xlu0 %v6900, 8
      %v7000 = vpop.permute.xlu0 %6999
      %7001 = vrot.lane.b32.xlu0 %v6904, 8
      %v7002 = vpop.permute.xlu0 %7001
      %7003 = vrot.lane.b32.xlu0 %v6907, 8
      %v7004 = vpop.permute.xlu0 %7003
      %7005 = vrot.lane.b32.xlu0 %v6911, 8
      %v7006 = vpop.permute.xlu0 %7005
      %7007 = vrot.lane.b32.xlu0 %v6914, 8
      %v7008 = vpop.permute.xlu0 %7007
      %7009 = vrot.lane.b32.xlu0 %v6918, 8
      %v7010 = vpop.permute.xlu0 %7009
      %7011 = vrot.lane.b32.xlu0 %v6921, 8
      %v7012 = vpop.permute.xlu0 %7011
      %7013 = vrot.lane.b32.xlu0 %v6925, 8
      %v7014 = vpop.permute.xlu0 %7013
      %7015 = vrot.lane.b32.xlu0 %v6928, 8
      %v7016 = vpop.permute.xlu0 %7015
      %7017 = vrot.lane.b32.xlu0 %v6932, 8
      %v7018 = vpop.permute.xlu0 %7017
      %7019 = vrot.lane.b32.xlu0 %v6935, 8
      %v7020 = vpop.permute.xlu0 %7019
      %7021 = vrot.lane.b32.xlu0 %v6939, 8
      %v7022 = vpop.permute.xlu0 %7021
      %7023 = vrot.lane.b32.xlu0 %v6942, 8
      %v7024 = vpop.permute.xlu0 %7023
      %7025 = vrot.lane.b32.xlu0 %v6946, 8
      %v7026 = vpop.permute.xlu0 %7025
      %7027 = vrot.lane.b32.xlu0 %v6949, 8
      %v7028 = vpop.permute.xlu0 %7027
      %7029 = vrot.lane.b32.xlu0 %v6953, 8
      %v7030 = vpop.permute.xlu0 %7029
      %7031 = vrot.lane.b32.xlu0 %v6956, 8
      %v7032 = vpop.permute.xlu0 %7031
      %7033 = vrot.lane.b32.xlu0 %v6960, 8
      %v7034 = vpop.permute.xlu0 %7033
      %7035 = vrot.lane.b32.xlu0 %v6963, 8
      %v7036 = vpop.permute.xlu0 %7035
      %7037 = vrot.lane.b32.xlu0 %v6967, 8
      %v7038 = vpop.permute.xlu0 %7037
      %7039 = vrot.lane.b32.xlu0 %v6970, 8
      %v7040 = vpop.permute.xlu0 %7039
      %7041 = vrot.lane.b32.xlu0 %v6974, 8
      %v7042 = vpop.permute.xlu0 %7041
      %7043 = vrot.lane.b32.xlu0 %v6977, 8
      %v7044 = vpop.permute.xlu0 %7043
      %7045 = vrot.lane.b32.xlu0 %v6981, 8
      %v7046 = vpop.permute.xlu0 %7045
      %7047 = vrot.lane.b32.xlu0 %v6984, 8
      %v7048 = vpop.permute.xlu0 %7047
      %v7081 = vrot.slane %v6826, 1
      %v7082 = vrot.slane %v6827, 1
      %v7083 = vsel %vm685, %v7081, %v7082
      %v7084 = vrot.slane %v6829, 1
      %v7085 = vrot.slane %v6830, 1
      %v7086 = vsel %vm685, %v7084, %v7085
      %v7087 = vrot.slane %v6832, 1
      %v7088 = vrot.slane %v6833, 1
      %v7089 = vsel %vm685, %v7087, %v7088
      %v7090 = vrot.slane %v6835, 1
      %v7091 = vrot.slane %v6836, 1
      %v7092 = vsel %vm685, %v7090, %v7091
      %v7093 = vrot.slane %v6838, 1
      %v7094 = vrot.slane %v6839, 1
      %v7095 = vsel %vm685, %v7093, %v7094
      %v7096 = vrot.slane %v6841, 1
      %v7097 = vrot.slane %v6842, 1
      %v7098 = vsel %vm685, %v7096, %v7097
      %v7099 = vrot.slane %v6844, 1
      %v7100 = vrot.slane %v6845, 1
      %v7101 = vsel %vm685, %v7099, %v7100
      %v7102 = vrot.slane %v6847, 1
      %v7103 = vrot.slane %v6848, 1
      %v7104 = vsel %vm685, %v7102, %v7103
      %v7105 = vrot.slane %v6850, 1
      %v7106 = vrot.slane %v6851, 1
      %v7107 = vsel %vm685, %v7105, %v7106
      %v7108 = vrot.slane %v6853, 1
      %v7109 = vrot.slane %v6854, 1
      %v7110 = vsel %vm685, %v7108, %v7109
      %v7111 = vrot.slane %v6856, 1
      %v7112 = vrot.slane %v6857, 1
      %v7113 = vsel %vm685, %v7111, %v7112
      %v7114 = vrot.slane %v6859, 1
      %v7115 = vrot.slane %v6860, 1
      %v7116 = vsel %vm685, %v7114, %v7115
      %v7117 = vrot.slane %v6862, 1
      %v7118 = vrot.slane %v6863, 1
      %v7119 = vsel %vm685, %v7117, %v7118
      %v7120 = vrot.slane %v6865, 1
      %v7121 = vrot.slane %v6866, 1
      %v7122 = vsel %vm685, %v7120, %v7121
      %v7123 = vrot.slane %v6868, 1
      %v7124 = vrot.slane %v6869, 1
      %v7125 = vsel %vm685, %v7123, %v7124
      %v7126 = vrot.slane %v6871, 1
      %v7127 = vrot.slane %v6872, 1
      %v7128 = vsel %vm685, %v7126, %v7127
      %7129 = vrot.lane.b32.xlu0 %v7081, 16
      %v7130 = vpop.permute.xlu0 %7129
      %7131 = vrot.lane.b32.xlu0 %v7083, 16
      %v7132 = vpop.permute.xlu0 %7131
      %7133 = vrot.lane.b32.xlu0 %v7084, 16
      %v7134 = vpop.permute.xlu0 %7133
      %7135 = vrot.lane.b32.xlu0 %v7086, 16
      %v7136 = vpop.permute.xlu0 %7135
      %7137 = vrot.lane.b32.xlu0 %v7087, 16
      %v7138 = vpop.permute.xlu0 %7137
      %7139 = vrot.lane.b32.xlu0 %v7089, 16
      %v7140 = vpop.permute.xlu0 %7139
      %7141 = vrot.lane.b32.xlu0 %v7090, 16
      %v7142 = vpop.permute.xlu0 %7141
      %7143 = vrot.lane.b32.xlu0 %v7092, 16
      %v7144 = vpop.permute.xlu0 %7143
      %7145 = vrot.lane.b32.xlu0 %v7093, 16
      %v7146 = vpop.permute.xlu0 %7145
      %7147 = vrot.lane.b32.xlu0 %v7095, 16
      %v7148 = vpop.permute.xlu0 %7147
      %7149 = vrot.lane.b32.xlu0 %v7096, 16
      %v7150 = vpop.permute.xlu0 %7149
      %7151 = vrot.lane.b32.xlu0 %v7098, 16
      %v7152 = vpop.permute.xlu0 %7151
      %7153 = vrot.lane.b32.xlu0 %v7099, 16
      %v7154 = vpop.permute.xlu0 %7153
      %7155 = vrot.lane.b32.xlu0 %v7101, 16
      %v7156 = vpop.permute.xlu0 %7155
      %7157 = vrot.lane.b32.xlu0 %v7102, 16
      %v7158 = vpop.permute.xlu0 %7157
      %7159 = vrot.lane.b32.xlu0 %v7104, 16
      %v7160 = vpop.permute.xlu0 %7159
      %7161 = vrot.lane.b32.xlu0 %v7105, 16
      %v7162 = vpop.permute.xlu0 %7161
      %7163 = vrot.lane.b32.xlu0 %v7107, 16
      %v7164 = vpop.permute.xlu0 %7163
      %7165 = vrot.lane.b32.xlu0 %v7108, 16
      %v7166 = vpop.permute.xlu0 %7165
      %7167 = vrot.lane.b32.xlu0 %v7110, 16
      %v7168 = vpop.permute.xlu0 %7167
      %7169 = vrot.lane.b32.xlu0 %v7111, 16
      %v7170 = vpop.permute.xlu0 %7169
      %7171 = vrot.lane.b32.xlu0 %v7113, 16
      %v7172 = vpop.permute.xlu0 %7171
      %7173 = vrot.lane.b32.xlu0 %v7114, 16
      %v7174 = vpop.permute.xlu0 %7173
      %7175 = vrot.lane.b32.xlu0 %v7116, 16
      %v7176 = vpop.permute.xlu0 %7175
      %7177 = vrot.lane.b32.xlu0 %v7117, 16
      %v7178 = vpop.permute.xlu0 %7177
      %7179 = vrot.lane.b32.xlu0 %v7119, 16
      %v7180 = vpop.permute.xlu0 %7179
      %7181 = vrot.lane.b32.xlu0 %v7120, 16
      %v7182 = vpop.permute.xlu0 %7181
      %7183 = vrot.lane.b32.xlu0 %v7122, 16
      %v7184 = vpop.permute.xlu0 %7183
      %7185 = vrot.lane.b32.xlu0 %v7123, 16
      %v7186 = vpop.permute.xlu0 %7185
      %7187 = vrot.lane.b32.xlu0 %v7125, 16
      %v7188 = vpop.permute.xlu0 %7187
      %7189 = vrot.lane.b32.xlu0 %v7126, 16
      %v7190 = vpop.permute.xlu0 %7189
      %7191 = vrot.lane.b32.xlu0 %v7128, 16
      %v7192 = vpop.permute.xlu0 %7191
      %v7195 = vsel %vm199, %v6825, %v6986
      %v7197 = vsel %vm199, %v6826, %v6988
      %v7200 = vsel %vm199, %v6828, %v6990
      %v7202 = vsel %vm199, %v6829, %v6992
      %v7205 = vsel %vm199, %v6831, %v6994
      %v7207 = vsel %vm199, %v6832, %v6996
      %v7210 = vsel %vm199, %v6834, %v6998
      %v7212 = vsel %vm199, %v6835, %v7000
      %v7215 = vsel %vm199, %v6837, %v7002
      %v7217 = vsel %vm199, %v6838, %v7004
      %v7220 = vsel %vm199, %v6840, %v7006
      %v7222 = vsel %vm199, %v6841, %v7008
      %v7225 = vsel %vm199, %v6843, %v7010
      %v7227 = vsel %vm199, %v6844, %v7012
      %v7230 = vsel %vm199, %v6846, %v7014
      %v7232 = vsel %vm199, %v6847, %v7016
      %v7235 = vsel %vm199, %v6849, %v7018
      %v7237 = vsel %vm199, %v6850, %v7020
      %v7240 = vsel %vm199, %v6852, %v7022
      %v7242 = vsel %vm199, %v6853, %v7024
      %v7245 = vsel %vm199, %v6855, %v7026
      %v7247 = vsel %vm199, %v6856, %v7028
      %v7250 = vsel %vm199, %v6858, %v7030
      %v7252 = vsel %vm199, %v6859, %v7032
      %v7255 = vsel %vm199, %v6861, %v7034
      %v7257 = vsel %vm199, %v6862, %v7036
      %v7260 = vsel %vm199, %v6864, %v7038
      %v7262 = vsel %vm199, %v6865, %v7040
      %v7265 = vsel %vm199, %v6867, %v7042
      %v7267 = vsel %vm199, %v6868, %v7044
      %v7270 = vsel %vm199, %v6870, %v7046
      %v7272 = vsel %vm199, %v6871, %v7048
      %v7274 = vsel %vm878, %v7195, %v7130
      %v7276 = vsel %vm878, %v7197, %v7132
      %v7278 = vsel %vm878, %v7200, %v7134
      %v7280 = vsel %vm878, %v7202, %v7136
      %v7282 = vsel %vm878, %v7205, %v7138
      %v7284 = vsel %vm878, %v7207, %v7140
      %v7286 = vsel %vm878, %v7210, %v7142
      %v7288 = vsel %vm878, %v7212, %v7144
      %v7290 = vsel %vm878, %v7215, %v7146
      %v7292 = vsel %vm878, %v7217, %v7148
      %v7294 = vsel %vm878, %v7220, %v7150
      %v7296 = vsel %vm878, %v7222, %v7152
      %v7298 = vsel %vm878, %v7225, %v7154
      %v7300 = vsel %vm878, %v7227, %v7156
      %v7302 = vsel %vm878, %v7230, %v7158
      %v7304 = vsel %vm878, %v7232, %v7160
      %v7306 = vsel %vm878, %v7235, %v7162
      %v7308 = vsel %vm878, %v7237, %v7164
      %v7310 = vsel %vm878, %v7240, %v7166
      %v7312 = vsel %vm878, %v7242, %v7168
      %v7314 = vsel %vm878, %v7245, %v7170
      %v7316 = vsel %vm878, %v7247, %v7172
      %v7318 = vsel %vm878, %v7250, %v7174
      %v7320 = vsel %vm878, %v7252, %v7176
      %v7322 = vsel %vm878, %v7255, %v7178
      %v7324 = vsel %vm878, %v7257, %v7180
      %v7326 = vsel %vm878, %v7260, %v7182
      %v7328 = vsel %vm878, %v7262, %v7184
      %v7330 = vsel %vm878, %v7265, %v7186
      %v7332 = vsel %vm878, %v7267, %v7188
      %v7334 = vsel %vm878, %v7270, %v7190
      %v7336 = vsel %vm878, %v7272, %v7192
      %v7337 = vshrl.u32 %v7274, 16
      %v7339 = vrot.slane %v7337, 7
      %v7340 = vshrl.u32 %v7276, 16
      %v7342 = vrot.slane %v7340, 7
      %v7343 = vshll.u32 %v7276, 16
      %v7345 = vor.u32 %v7342, %v7343
      %v7346 = vsel %vm943, %v7339, %v7345
      %v7347 = vshrl.u32 %v7278, 16
      %v7349 = vrot.slane %v7347, 7
      %v7350 = vshrl.u32 %v7280, 16
      %v7352 = vrot.slane %v7350, 7
      %v7353 = vshll.u32 %v7280, 16
      %v7355 = vor.u32 %v7352, %v7353
      %v7356 = vsel %vm943, %v7349, %v7355
      %v7357 = vshrl.u32 %v7282, 16
      %v7359 = vrot.slane %v7357, 7
      %v7360 = vshrl.u32 %v7284, 16
      %v7362 = vrot.slane %v7360, 7
      %v7363 = vshll.u32 %v7284, 16
      %v7365 = vor.u32 %v7362, %v7363
      %v7366 = vsel %vm943, %v7359, %v7365
      %v7367 = vshrl.u32 %v7286, 16
      %v7369 = vrot.slane %v7367, 7
      %v7370 = vshrl.u32 %v7288, 16
      %v7372 = vrot.slane %v7370, 7
      %v7373 = vshll.u32 %v7288, 16
      %v7375 = vor.u32 %v7372, %v7373
      %v7376 = vsel %vm943, %v7369, %v7375
      %v7377 = vshrl.u32 %v7290, 16
      %v7379 = vrot.slane %v7377, 7
      %v7380 = vshrl.u32 %v7292, 16
      %v7382 = vrot.slane %v7380, 7
      %v7383 = vshll.u32 %v7292, 16
      %v7385 = vor.u32 %v7382, %v7383
      %v7386 = vsel %vm943, %v7379, %v7385
      %v7387 = vshrl.u32 %v7294, 16
      %v7389 = vrot.slane %v7387, 7
      %v7390 = vshrl.u32 %v7296, 16
      %v7392 = vrot.slane %v7390, 7
      %v7393 = vshll.u32 %v7296, 16
      %v7395 = vor.u32 %v7392, %v7393
      %v7396 = vsel %vm943, %v7389, %v7395
      %v7397 = vshrl.u32 %v7298, 16
      %v7399 = vrot.slane %v7397, 7
      %v7400 = vshrl.u32 %v7300, 16
      %v7402 = vrot.slane %v7400, 7
      %v7403 = vshll.u32 %v7300, 16
      %v7405 = vor.u32 %v7402, %v7403
      %v7406 = vsel %vm943, %v7399, %v7405
      %v7407 = vshrl.u32 %v7302, 16
      %v7409 = vrot.slane %v7407, 7
      %v7410 = vshrl.u32 %v7304, 16
      %v7412 = vrot.slane %v7410, 7
      %v7413 = vshll.u32 %v7304, 16
      %v7415 = vor.u32 %v7412, %v7413
      %v7416 = vsel %vm943, %v7409, %v7415
      %v7417 = vshrl.u32 %v7306, 16
      %v7419 = vrot.slane %v7417, 7
      %v7420 = vshrl.u32 %v7308, 16
      %v7422 = vrot.slane %v7420, 7
      %v7423 = vshll.u32 %v7308, 16
      %v7425 = vor.u32 %v7422, %v7423
      %v7426 = vsel %vm943, %v7419, %v7425
      %v7427 = vshrl.u32 %v7310, 16
      %v7429 = vrot.slane %v7427, 7
      %v7430 = vshrl.u32 %v7312, 16
      %v7432 = vrot.slane %v7430, 7
      %v7433 = vshll.u32 %v7312, 16
      %v7435 = vor.u32 %v7432, %v7433
      %v7436 = vsel %vm943, %v7429, %v7435
      %v7437 = vshrl.u32 %v7314, 16
      %v7439 = vrot.slane %v7437, 7
      %v7440 = vshrl.u32 %v7316, 16
      %v7442 = vrot.slane %v7440, 7
      %v7443 = vshll.u32 %v7316, 16
      %v7445 = vor.u32 %v7442, %v7443
      %v7446 = vsel %vm943, %v7439, %v7445
      %v7447 = vshrl.u32 %v7318, 16
      %v7449 = vrot.slane %v7447, 7
      %v7450 = vshrl.u32 %v7320, 16
      %v7452 = vrot.slane %v7450, 7
      %v7453 = vshll.u32 %v7320, 16
      %v7455 = vor.u32 %v7452, %v7453
      %v7456 = vsel %vm943, %v7449, %v7455
      %v7457 = vshrl.u32 %v7322, 16
      %v7459 = vrot.slane %v7457, 7
      %v7460 = vshrl.u32 %v7324, 16
      %v7462 = vrot.slane %v7460, 7
      %v7463 = vshll.u32 %v7324, 16
      %v7465 = vor.u32 %v7462, %v7463
      %v7466 = vsel %vm943, %v7459, %v7465
      %v7467 = vshrl.u32 %v7326, 16
      %v7469 = vrot.slane %v7467, 7
      %v7470 = vshrl.u32 %v7328, 16
      %v7472 = vrot.slane %v7470, 7
      %v7473 = vshll.u32 %v7328, 16
      %v7475 = vor.u32 %v7472, %v7473
      %v7476 = vsel %vm943, %v7469, %v7475
      %v7477 = vshrl.u32 %v7330, 16
      %v7479 = vrot.slane %v7477, 7
      %v7480 = vshrl.u32 %v7332, 16
      %v7482 = vrot.slane %v7480, 7
      %v7483 = vshll.u32 %v7332, 16
      %v7485 = vor.u32 %v7482, %v7483
      %v7486 = vsel %vm943, %v7479, %v7485
      %v7487 = vshrl.u32 %v7334, 16
      %v7489 = vrot.slane %v7487, 7
      %v7490 = vshrl.u32 %v7336, 16
      %v7492 = vrot.slane %v7490, 7
      %v7493 = vshll.u32 %v7336, 16
      %v7495 = vor.u32 %v7492, %v7493
      %v7496 = vsel %vm943, %v7489, %v7495
      %v7498 = vsel %vm1785, %v7346, 0
      %v7501 = vsel %vm1785, %v7356, 0
      %v7504 = vsel %vm1785, %v7366, 0
      %v7507 = vsel %vm1785, %v7376, 0
      %v7510 = vsel %vm1785, %v7386, 0
      %v7513 = vsel %vm1785, %v7396, 0
      %v7516 = vsel %vm1785, %v7406, 0
      %v7519 = vsel %vm1785, %v7416, 0
      %v7522 = vsel %vm1785, %v7426, 0
      %v7525 = vsel %vm1785, %v7436, 0
      %v7528 = vsel %vm1785, %v7446, 0
      %v7531 = vsel %vm1785, %v7456, 0
      %v7534 = vsel %vm1785, %v7466, 0
      %v7537 = vsel %vm1785, %v7476, 0
      %v7540 = vsel %vm1785, %v7486, 0
      %v7543 = vsel %vm1785, %v7496, 0
      %7545 = vmatprep.subr.bf16.mxu0 0
      %7546 = vmatpush1.bf16.msra.mxu0 %v1782
      %7547 = vmatprep.subr.bf16.mxu0 0
      %7548 = vmatpush1.bf16.msra.mxu0 %v1836
      %7549 = vmatprep.subr.bf16.mxu0 0
      %7550 = vmatpush1.bf16.msra.mxu0 0
      %7551 = vmatprep.subr.bf16.mxu0 0
      %7552 = vmatpush1.bf16.msra.mxu0 0
      %7553 = vmatprep.subr.bf16.mxu0 0
      %7554 = vmatpush1.bf16.msra.mxu0 0
      %7555 = vmatprep.subr.bf16.mxu0 0
      %7556 = vmatpush1.bf16.msra.mxu0 0
      %7557 = vmatprep.subr.bf16.mxu0 0
      %7558 = vmatpush1.bf16.msra.mxu0 0
      %7559 = vmatprep.subr.bf16.mxu0 0
      %7560 = vmatpush1.bf16.msra.mxu0 0
      %7561 = vmatprep.subr.bf16.mxu0 0
      %7562 = vmatpush1.bf16.msra.mxu0 0
      %7563 = vmatprep.subr.bf16.mxu0 0
      %7564 = vmatpush1.bf16.msra.mxu0 0
      %7565 = vmatprep.subr.bf16.mxu0 0
      %7566 = vmatpush1.bf16.msra.mxu0 0
      %7567 = vmatprep.subr.bf16.mxu0 0
      %7568 = vmatpush1.bf16.msra.mxu0 0
      %7569 = vmatprep.subr.bf16.mxu0 0
      %7570 = vmatpush1.bf16.msra.mxu0 0
      %7571 = vmatprep.subr.bf16.mxu0 0
      %7572 = vmatpush1.bf16.msra.mxu0 0
      %7573 = vmatprep.subr.bf16.mxu0 0
      %7574 = vmatpush1.bf16.msra.mxu0 0
      %7575 = vmatprep.subr.bf16.mxu0 0
      %7576 = vmatpush1.bf16.msra.mxu0 0
      %7577 = vmatprep.mubr.bf16.mxu0 0
      %7578 = vmatmul.mubr.bf16.gmra.mrb[0].mxu0 %v7498
      %v7579 = vpop.f32.mrb[0].mxu0
      %v7580 = vadd.f32 0.0, %v7579
      %v7581 = vpop.f32.mrb[0].mxu0
      %v7582 = vpop.f32.mrb[0].mxu0
      %v7583 = vadd.f32 0.0, %v7582
      %v7584 = vpop.f32.mrb[0].mxu0
      %7585 = vmatprep.mubr.bf16.mxu0 0
      %7586 = vmatmul.mubr.bf16.gmra.mrb[0].mxu0 %v7501
      %v7587 = vpop.f32.mrb[0].mxu0
      %v7588 = vadd.f32 0.0, %v7587
      %v7589 = vpop.f32.mrb[0].mxu0
      %v7590 = vpop.f32.mrb[0].mxu0
      %v7591 = vadd.f32 0.0, %v7590
      %v7592 = vpop.f32.mrb[0].mxu0
      %7593 = vmatprep.mubr.bf16.mxu0 0
      %7594 = vmatmul.mubr.bf16.gmra.mrb[0].mxu0 %v7504
      %v7595 = vpop.f32.mrb[0].mxu0
      %v7596 = vadd.f32 0.0, %v7595
      %v7597 = vpop.f32.mrb[0].mxu0
      %v7598 = vpop.f32.mrb[0].mxu0
      %v7599 = vadd.f32 0.0, %v7598
      %v7600 = vpop.f32.mrb[0].mxu0
      %7601 = vmatprep.mubr.bf16.mxu0 0
      %7602 = vmatmul.mubr.bf16.gmra.mrb[0].mxu0 %v7507
      %v7603 = vpop.f32.mrb[0].mxu0
      %v7604 = vadd.f32 0.0, %v7603
      %v7605 = vpop.f32.mrb[0].mxu0
      %v7606 = vpop.f32.mrb[0].mxu0
      %v7607 = vadd.f32 0.0, %v7606
      %v7608 = vpop.f32.mrb[0].mxu0
      %7609 = vmatprep.mubr.bf16.mxu0 0
      %7610 = vmatmul.mubr.bf16.gmra.mrb[0].mxu0 %v7510
      %v7611 = vpop.f32.mrb[0].mxu0
      %v7612 = vadd.f32 0.0, %v7611
      %v7613 = vpop.f32.mrb[0].mxu0
      %v7614 = vpop.f32.mrb[0].mxu0
      %v7615 = vadd.f32 0.0, %v7614
      %v7616 = vpop.f32.mrb[0].mxu0
      %7617 = vmatprep.mubr.bf16.mxu0 0
      %7618 = vmatmul.mubr.bf16.gmra.mrb[0].mxu0 %v7513
      %v7619 = vpop.f32.mrb[0].mxu0
      %v7620 = vadd.f32 0.0, %v7619
      %v7621 = vpop.f32.mrb[0].mxu0
      %v7622 = vpop.f32.mrb[0].mxu0
      %v7623 = vadd.f32 0.0, %v7622
      %v7624 = vpop.f32.mrb[0].mxu0
      %7625 = vmatprep.mubr.bf16.mxu0 0
      %7626 = vmatmul.mubr.bf16.gmra.mrb[0].mxu0 %v7516
      %v7627 = vpop.f32.mrb[0].mxu0
      %v7628 = vadd.f32 0.0, %v7627
      %v7629 = vpop.f32.mrb[0].mxu0
      %v7630 = vpop.f32.mrb[0].mxu0
      %v7631 = vadd.f32 0.0, %v7630
      %v7632 = vpop.f32.mrb[0].mxu0
      %7633 = vmatprep.mubr.bf16.mxu0 0
      %7634 = vmatmul.mubr.bf16.gmra.mrb[0].mxu0 %v7519
      %v7635 = vpop.f32.mrb[0].mxu0
      %v7636 = vadd.f32 0.0, %v7635
      %v7637 = vpop.f32.mrb[0].mxu0
      %v7638 = vpop.f32.mrb[0].mxu0
      %v7639 = vadd.f32 0.0, %v7638
      %v7640 = vpop.f32.mrb[0].mxu0
      %7641 = vmatprep.mubr.bf16.mxu0 0
      %7642 = vmatmul.mubr.bf16.gmra.mrb[0].mxu0 %v7522
      %v7643 = vpop.f32.mrb[0].mxu0
      %v7644 = vadd.f32 0.0, %v7643
      %v7645 = vpop.f32.mrb[0].mxu0
      %v7646 = vpop.f32.mrb[0].mxu0
      %v7647 = vadd.f32 0.0, %v7646
      %v7648 = vpop.f32.mrb[0].mxu0
      %7649 = vmatprep.mubr.bf16.mxu0 0
      %7650 = vmatmul.mubr.bf16.gmra.mrb[0].mxu0 %v7525
      %v7651 = vpop.f32.mrb[0].mxu0
      %v7652 = vadd.f32 0.0, %v7651
      %v7653 = vpop.f32.mrb[0].mxu0
      %v7654 = vpop.f32.mrb[0].mxu0
      %v7655 = vadd.f32 0.0, %v7654
      %v7656 = vpop.f32.mrb[0].mxu0
      %7657 = vmatprep.mubr.bf16.mxu0 0
      %7658 = vmatmul.mubr.bf16.gmra.mrb[0].mxu0 %v7528
      %v7659 = vpop.f32.mrb[0].mxu0
      %v7660 = vadd.f32 0.0, %v7659
      %v7661 = vpop.f32.mrb[0].mxu0
      %v7662 = vpop.f32.mrb[0].mxu0
      %v7663 = vadd.f32 0.0, %v7662
      %v7664 = vpop.f32.mrb[0].mxu0
      %7665 = vmatprep.mubr.bf16.mxu0 0
      %7666 = vmatmul.mubr.bf16.gmra.mrb[0].mxu0 %v7531
      %v7667 = vpop.f32.mrb[0].mxu0
      %v7668 = vadd.f32 0.0, %v7667
      %v7669 = vpop.f32.mrb[0].mxu0
      %v7670 = vpop.f32.mrb[0].mxu0
      %v7671 = vadd.f32 0.0, %v7670
      %v7672 = vpop.f32.mrb[0].mxu0
      %7673 = vmatprep.mubr.bf16.mxu0 0
      %7674 = vmatmul.mubr.bf16.gmra.mrb[0].mxu0 %v7534
      %v7675 = vpop.f32.mrb[0].mxu0
      %v7676 = vadd.f32 0.0, %v7675
      %v7677 = vpop.f32.mrb[0].mxu0
      %v7678 = vpop.f32.mrb[0].mxu0
      %v7679 = vadd.f32 0.0, %v7678
      %v7680 = vpop.f32.mrb[0].mxu0
      %7681 = vmatprep.mubr.bf16.mxu0 0
      %7682 = vmatmul.mubr.bf16.gmra.mrb[0].mxu0 %v7537
      %v7683 = vpop.f32.mrb[0].mxu0
      %v7684 = vadd.f32 0.0, %v7683
      %v7685 = vpop.f32.mrb[0].mxu0
      %v7686 = vpop.f32.mrb[0].mxu0
      %v7687 = vadd.f32 0.0, %v7686
      %v7688 = vpop.f32.mrb[0].mxu0
      %7689 = vmatprep.mubr.bf16.mxu0 0
      %7690 = vmatmul.mubr.bf16.gmra.mrb[0].mxu0 %v7540
      %v7691 = vpop.f32.mrb[0].mxu0
      %v7692 = vadd.f32 0.0, %v7691
      %v7693 = vpop.f32.mrb[0].mxu0
      %v7694 = vpop.f32.mrb[0].mxu0
      %v7695 = vadd.f32 0.0, %v7694
      %v7696 = vpop.f32.mrb[0].mxu0
      %7697 = vmatprep.mubr.bf16.mxu0 0
      %7698 = vmatmul.mubr.bf16.gmra.mrb[0].mxu0 %v7543
      %v7699 = vpop.f32.mrb[0].mxu0
      %v7700 = vadd.f32 0.0, %v7699
      %v7701 = vpop.f32.mrb[0].mxu0
      %v7702 = vpop.f32.mrb[0].mxu0
      %v7703 = vadd.f32 0.0, %v7702
      %v7704 = vpop.f32.mrb[0].mxu0
      %7705 = vdwg.mxu0
      %v7707 = vsel %vm1785, %v6674, 0
      %v7710 = vsel %vm1785, %v6684, 0
      %v7713 = vsel %vm1785, %v6694, 0
      %v7716 = vsel %vm1785, %v6704, 0
      %v7719 = vsel %vm1785, %v6714, 0
      %v7722 = vsel %vm1785, %v6724, 0
      %v7725 = vsel %vm1785, %v6734, 0
      %v7728 = vsel %vm1785, %v6744, 0
      %v7731 = vsel %vm1785, %v6754, 0
      %v7734 = vsel %vm1785, %v6764, 0
      %v7737 = vsel %vm1785, %v6774, 0
      %v7740 = vsel %vm1785, %v6784, 0
      %v7743 = vsel %vm1785, %v6794, 0
      %v7746 = vsel %vm1785, %v6804, 0
      %v7749 = vsel %vm1785, %v6814, 0
      %v7752 = vsel %vm1785, %v6824, 0
      %7754 = vmatprep.subr.bf16.mxu0 0
      %7755 = vmatpush1.bf16.msra.mxu0 %v2005
      %7756 = vmatprep.subr.bf16.mxu0 0
      %7757 = vmatpush1.bf16.msra.mxu0 %v2057
      %7758 = vmatprep.subr.bf16.mxu0 0
      %7759 = vmatpush1.bf16.msra.mxu0 0
      %7760 = vmatprep.subr.bf16.mxu0 0
      %7761 = vmatpush1.bf16.msra.mxu0 0
      %7762 = vmatprep.subr.bf16.mxu0 0
      %7763 = vmatpush1.bf16.msra.mxu0 0
      %7764 = vmatprep.subr.bf16.mxu0 0
      %7765 = vmatpush1.bf16.msra.mxu0 0
      %7766 = vmatprep.subr.bf16.mxu0 0
      %7767 = vmatpush1.bf16.msra.mxu0 0
      %7768 = vmatprep.subr.bf16.mxu0 0
      %7769 = vmatpush1.bf16.msra.mxu0 0
      %7770 = vmatprep.subr.bf16.mxu0 0
      %7771 = vmatpush1.bf16.msra.mxu0 0
      %7772 = vmatprep.subr.bf16.mxu0 0
      %7773 = vmatpush1.bf16.msra.mxu0 0
      %7774 = vmatprep.subr.bf16.mxu0 0
      %7775 = vmatpush1.bf16.msra.mxu0 0
      %7776 = vmatprep.subr.bf16.mxu0 0
      %7777 = vmatpush1.bf16.msra.mxu0 0
      %7778 = vmatprep.subr.bf16.mxu0 0
      %7779 = vmatpush1.bf16.msra.mxu0 0
      %7780 = vmatprep.subr.bf16.mxu0 0
      %7781 = vmatpush1.bf16.msra.mxu0 0
      %7782 = vmatprep.subr.bf16.mxu0 0
      %7783 = vmatpush1.bf16.msra.mxu0 0
      %7784 = vmatprep.subr.bf16.mxu0 0
      %7785 = vmatpush1.bf16.msra.mxu0 0
      %7786 = vmatprep.mubr.bf16.mxu0 0
      %7787 = vmatmul.mubr.bf16.gmra.mrb[0].mxu0 %v7707
      %v7788 = vpop.f32.mrb[0].mxu0
      %v7789 = vadd.f32 %v7580, %v7788
      %v7790 = vpop.f32.mrb[0].mxu0
      %v7791 = vpop.f32.mrb[0].mxu0
      %v7792 = vadd.f32 %v7583, %v7791
      %v7793 = vpop.f32.mrb[0].mxu0
      %7794 = vmatprep.mubr.bf16.mxu0 0
      %7795 = vmatmul.mubr.bf16.gmra.mrb[0].mxu0 %v7710
      %v7796 = vpop.f32.mrb[0].mxu0
      %v7797 = vadd.f32 %v7588, %v7796
      %v7798 = vpop.f32.mrb[0].mxu0
      %v7799 = vpop.f32.mrb[0].mxu0
      %v7800 = vadd.f32 %v7591, %v7799
      %v7801 = vpop.f32.mrb[0].mxu0
      %7802 = vmatprep.mubr.bf16.mxu0 0
      %7803 = vmatmul.mubr.bf16.gmra.mrb[0].mxu0 %v7713
      %v7804 = vpop.f32.mrb[0].mxu0
      %v7805 = vadd.f32 %v7596, %v7804
      %v7806 = vpop.f32.mrb[0].mxu0
      %v7807 = vpop.f32.mrb[0].mxu0
      %v7808 = vadd.f32 %v7599, %v7807
      %v7809 = vpop.f32.mrb[0].mxu0
      %7810 = vmatprep.mubr.bf16.mxu0 0
      %7811 = vmatmul.mubr.bf16.gmra.mrb[0].mxu0 %v7716
      %v7812 = vpop.f32.mrb[0].mxu0
      %v7813 = vadd.f32 %v7604, %v7812
      %v7814 = vpop.f32.mrb[0].mxu0
      %v7815 = vpop.f32.mrb[0].mxu0
      %v7816 = vadd.f32 %v7607, %v7815
      %v7817 = vpop.f32.mrb[0].mxu0
      %7818 = vmatprep.mubr.bf16.mxu0 0
      %7819 = vmatmul.mubr.bf16.gmra.mrb[0].mxu0 %v7719
      %v7820 = vpop.f32.mrb[0].mxu0
      %v7821 = vadd.f32 %v7612, %v7820
      %v7822 = vpop.f32.mrb[0].mxu0
      %v7823 = vpop.f32.mrb[0].mxu0
      %v7824 = vadd.f32 %v7615, %v7823
      %v7825 = vpop.f32.mrb[0].mxu0
      %7826 = vmatprep.mubr.bf16.mxu0 0
      %7827 = vmatmul.mubr.bf16.gmra.mrb[0].mxu0 %v7722
      %v7828 = vpop.f32.mrb[0].mxu0
      %v7829 = vadd.f32 %v7620, %v7828
      %v7830 = vpop.f32.mrb[0].mxu0
      %v7831 = vpop.f32.mrb[0].mxu0
      %v7832 = vadd.f32 %v7623, %v7831
      %v7833 = vpop.f32.mrb[0].mxu0
      %7834 = vmatprep.mubr.bf16.mxu0 0
      %7835 = vmatmul.mubr.bf16.gmra.mrb[0].mxu0 %v7725
      %v7836 = vpop.f32.mrb[0].mxu0
      %v7837 = vadd.f32 %v7628, %v7836
      %v7838 = vpop.f32.mrb[0].mxu0
      %v7839 = vpop.f32.mrb[0].mxu0
      %v7840 = vadd.f32 %v7631, %v7839
      %v7841 = vpop.f32.mrb[0].mxu0
      %7842 = vmatprep.mubr.bf16.mxu0 0
      %7843 = vmatmul.mubr.bf16.gmra.mrb[0].mxu0 %v7728
      %v7844 = vpop.f32.mrb[0].mxu0
      %v7845 = vadd.f32 %v7636, %v7844
      %v7846 = vpop.f32.mrb[0].mxu0
      %v7847 = vpop.f32.mrb[0].mxu0
      %v7848 = vadd.f32 %v7639, %v7847
      %v7849 = vpop.f32.mrb[0].mxu0
      %7850 = vmatprep.mubr.bf16.mxu0 0
      %7851 = vmatmul.mubr.bf16.gmra.mrb[0].mxu0 %v7731
      %v7852 = vpop.f32.mrb[0].mxu0
      %v7853 = vadd.f32 %v7644, %v7852
      %v7854 = vpop.f32.mrb[0].mxu0
      %v7855 = vpop.f32.mrb[0].mxu0
      %v7856 = vadd.f32 %v7647, %v7855
      %v7857 = vpop.f32.mrb[0].mxu0
      %7858 = vmatprep.mubr.bf16.mxu0 0
      %7859 = vmatmul.mubr.bf16.gmra.mrb[0].mxu0 %v7734
      %v7860 = vpop.f32.mrb[0].mxu0
      %v7861 = vadd.f32 %v7652, %v7860
      %v7862 = vpop.f32.mrb[0].mxu0
      %v7863 = vpop.f32.mrb[0].mxu0
      %v7864 = vadd.f32 %v7655, %v7863
      %v7865 = vpop.f32.mrb[0].mxu0
      %7866 = vmatprep.mubr.bf16.mxu0 0
      %7867 = vmatmul.mubr.bf16.gmra.mrb[0].mxu0 %v7737
      %v7868 = vpop.f32.mrb[0].mxu0
      %v7869 = vadd.f32 %v7660, %v7868
      %v7870 = vpop.f32.mrb[0].mxu0
      %v7871 = vpop.f32.mrb[0].mxu0
      %v7872 = vadd.f32 %v7663, %v7871
      %v7873 = vpop.f32.mrb[0].mxu0
      %7874 = vmatprep.mubr.bf16.mxu0 0
      %7875 = vmatmul.mubr.bf16.gmra.mrb[0].mxu0 %v7740
      %v7876 = vpop.f32.mrb[0].mxu0
      %v7877 = vadd.f32 %v7668, %v7876
      %v7878 = vpop.f32.mrb[0].mxu0
      %v7879 = vpop.f32.mrb[0].mxu0
      %v7880 = vadd.f32 %v7671, %v7879
      %v7881 = vpop.f32.mrb[0].mxu0
      %7882 = vmatprep.mubr.bf16.mxu0 0
      %7883 = vmatmul.mubr.bf16.gmra.mrb[0].mxu0 %v7743
      %v7884 = vpop.f32.mrb[0].mxu0
      %v7885 = vadd.f32 %v7676, %v7884
      %v7886 = vpop.f32.mrb[0].mxu0
      %v7887 = vpop.f32.mrb[0].mxu0
      %v7888 = vadd.f32 %v7679, %v7887
      %v7889 = vpop.f32.mrb[0].mxu0
      %7890 = vmatprep.mubr.bf16.mxu0 0
      %7891 = vmatmul.mubr.bf16.gmra.mrb[0].mxu0 %v7746
      %v7892 = vpop.f32.mrb[0].mxu0
      %v7893 = vadd.f32 %v7684, %v7892
      %v7894 = vpop.f32.mrb[0].mxu0
      %v7895 = vpop.f32.mrb[0].mxu0
      %v7896 = vadd.f32 %v7687, %v7895
      %v7897 = vpop.f32.mrb[0].mxu0
      %7898 = vmatprep.mubr.bf16.mxu0 0
      %7899 = vmatmul.mubr.bf16.gmra.mrb[0].mxu0 %v7749
      %v7900 = vpop.f32.mrb[0].mxu0
      %v7901 = vadd.f32 %v7692, %v7900
      %v7902 = vpop.f32.mrb[0].mxu0
      %v7903 = vpop.f32.mrb[0].mxu0
      %v7904 = vadd.f32 %v7695, %v7903
      %v7905 = vpop.f32.mrb[0].mxu0
      %7906 = vmatprep.mubr.bf16.mxu0 0
      %7907 = vmatmul.mubr.bf16.gmra.mrb[0].mxu0 %v7752
      %v7908 = vpop.f32.mrb[0].mxu0
      %v7909 = vadd.f32 %v7700, %v7908
      %v7910 = vpop.f32.mrb[0].mxu0
      %v7911 = vpop.f32.mrb[0].mxu0
      %v7912 = vadd.f32 %v7703, %v7911
      %v7913 = vpop.f32.mrb[0].mxu0
      %7914 = vdwg.mxu0
      %v7915 = vld [vmem:[%s2220] sm:$0xff]
      %v7916 = vld [vmem:[%s2220 + $0x8] sm:$0xff]
      %v7917 = vld [vmem:[%s2220 + $0x10] sm:$0xff]
      %v7918 = vld [vmem:[%s2220 + $0x18] sm:$0xff]
      %v7919 = vld [vmem:[%s2220 + $0x20] sm:$0xff]
      %v7920 = vld [vmem:[%s2220 + $0x28] sm:$0xff]
      %v7921 = vld [vmem:[%s2220 + $0x30] sm:$0xff]
      %v7922 = vld [vmem:[%s2220 + $0x38] sm:$0xff]
      %v7923 = vld [vmem:[%s2220 + $0x40] sm:$0xff]
      %v7924 = vld [vmem:[%s2220 + $0x48] sm:$0xff]
      %v7925 = vld [vmem:[%s2220 + $0x50] sm:$0xff]
      %v7926 = vld [vmem:[%s2220 + $0x58] sm:$0xff]
      %v7927 = vld [vmem:[%s2220 + $0x60] sm:$0xff]
      %v7928 = vld [vmem:[%s2220 + $0x68] sm:$0xff]
      %v7929 = vld [vmem:[%s2220 + $0x70] sm:$0xff]
      %v7930 = vld [vmem:[%s2220 + $0x78] sm:$0xff]
      %v7931 = vld [vmem:[%s2220 + $0x80] sm:$0xff]
      %v7932 = vld [vmem:[%s2220 + $0x88] sm:$0xff]
      %v7933 = vld [vmem:[%s2220 + $0x90] sm:$0xff]
      %v7934 = vld [vmem:[%s2220 + $0x98] sm:$0xff]
      %v7935 = vld [vmem:[%s2220 + $0xa0] sm:$0xff]
      %v7936 = vld [vmem:[%s2220 + $0xa8] sm:$0xff]
      %v7937 = vld [vmem:[%s2220 + $0xb0] sm:$0xff]
      %v7938 = vld [vmem:[%s2220 + $0xb8] sm:$0xff]
      %v7939 = vld [vmem:[%s2220 + $0xc0] sm:$0xff]
      %v7940 = vld [vmem:[%s2220 + $0xc8] sm:$0xff]
      %v7941 = vld [vmem:[%s2220 + $0xd0] sm:$0xff]
      %v7942 = vld [vmem:[%s2220 + $0xd8] sm:$0xff]
      %v7943 = vld [vmem:[%s2220 + $0xe0] sm:$0xff]
      %v7944 = vld [vmem:[%s2220 + $0xe8] sm:$0xff]
      %v7945 = vld [vmem:[%s2220 + $0xf0] sm:$0xff]
      %v7946 = vld [vmem:[%s2220 + $0xf8] sm:$0xff]
      %v7947 = vld [vmem:[%s2220 + $0x100] sm:$0xff]
      %v7948 = vld [vmem:[%s2220 + $0x108] sm:$0xff]
      %v7949 = vld [vmem:[%s2220 + $0x110] sm:$0xff]
      %v7950 = vld [vmem:[%s2220 + $0x118] sm:$0xff]
      %v7951 = vld [vmem:[%s2220 + $0x120] sm:$0xff]
      %v7952 = vld [vmem:[%s2220 + $0x128] sm:$0xff]
      %v7953 = vld [vmem:[%s2220 + $0x130] sm:$0xff]
      %v7954 = vld [vmem:[%s2220 + $0x138] sm:$0xff]
      %v7955 = vld [vmem:[%s2220 + $0x140] sm:$0xff]
      %v7956 = vld [vmem:[%s2220 + $0x148] sm:$0xff]
      %v7957 = vld [vmem:[%s2220 + $0x150] sm:$0xff]
      %v7958 = vld [vmem:[%s2220 + $0x158] sm:$0xff]
      %v7959 = vld [vmem:[%s2220 + $0x160] sm:$0xff]
      %v7960 = vld [vmem:[%s2220 + $0x168] sm:$0xff]
      %v7961 = vld [vmem:[%s2220 + $0x170] sm:$0xff]
      %v7962 = vld [vmem:[%s2220 + $0x178] sm:$0xff]
      %v7964 = vshll.u32 %v7916, 16
      %v7966 = vrot.slane %v7964, 1
      %v7967 = vshrl.u32 %v7916, 16
      %v7969 = vor.u32 %v7967, %v7966
      %v7971 = vshll.u32 %v7919, 16
      %v7973 = vrot.slane %v7971, 1
      %v7974 = vshrl.u32 %v7919, 16
      %v7976 = vor.u32 %v7974, %v7973
      %v7978 = vshll.u32 %v7922, 16
      %v7980 = vrot.slane %v7978, 1
      %v7981 = vshrl.u32 %v7922, 16
      %v7983 = vor.u32 %v7981, %v7980
      %v7985 = vshll.u32 %v7925, 16
      %v7987 = vrot.slane %v7985, 1
      %v7988 = vshrl.u32 %v7925, 16
      %v7990 = vor.u32 %v7988, %v7987
      %v7992 = vshll.u32 %v7928, 16
      %v7994 = vrot.slane %v7992, 1
      %v7995 = vshrl.u32 %v7928, 16
      %v7997 = vor.u32 %v7995, %v7994
      %v7999 = vshll.u32 %v7931, 16
      %v8001 = vrot.slane %v7999, 1
      %v8002 = vshrl.u32 %v7931, 16
      %v8004 = vor.u32 %v8002, %v8001
      %v8006 = vshll.u32 %v7934, 16
      %v8008 = vrot.slane %v8006, 1
      %v8009 = vshrl.u32 %v7934, 16
      %v8011 = vor.u32 %v8009, %v8008
      %v8013 = vshll.u32 %v7937, 16
      %v8015 = vrot.slane %v8013, 1
      %v8016 = vshrl.u32 %v7937, 16
      %v8018 = vor.u32 %v8016, %v8015
      %v8020 = vshll.u32 %v7940, 16
      %v8022 = vrot.slane %v8020, 1
      %v8023 = vshrl.u32 %v7940, 16
      %v8025 = vor.u32 %v8023, %v8022
      %v8027 = vshll.u32 %v7943, 16
      %v8029 = vrot.slane %v8027, 1
      %v8030 = vshrl.u32 %v7943, 16
      %v8032 = vor.u32 %v8030, %v8029
      %v8034 = vshll.u32 %v7946, 16
      %v8036 = vrot.slane %v8034, 1
      %v8037 = vshrl.u32 %v7946, 16
      %v8039 = vor.u32 %v8037, %v8036
      %v8041 = vshll.u32 %v7949, 16
      %v8043 = vrot.slane %v8041, 1
      %v8044 = vshrl.u32 %v7949, 16
      %v8046 = vor.u32 %v8044, %v8043
      %v8048 = vshll.u32 %v7952, 16
      %v8050 = vrot.slane %v8048, 1
      %v8051 = vshrl.u32 %v7952, 16
      %v8053 = vor.u32 %v8051, %v8050
      %v8055 = vshll.u32 %v7955, 16
      %v8057 = vrot.slane %v8055, 1
      %v8058 = vshrl.u32 %v7955, 16
      %v8060 = vor.u32 %v8058, %v8057
      %v8062 = vshll.u32 %v7958, 16
      %v8064 = vrot.slane %v8062, 1
      %v8065 = vshrl.u32 %v7958, 16
      %v8067 = vor.u32 %v8065, %v8064
      %v8069 = vshll.u32 %v7961, 16
      %v8071 = vrot.slane %v8069, 1
      %v8072 = vshrl.u32 %v7961, 16
      %v8074 = vor.u32 %v8072, %v8071
      %8075 = vrot.lane.b32.xlu0 %v7966, 8
      %v8076 = vpop.permute.xlu0 %8075
      %8077 = vrot.lane.b32.xlu0 %v7969, 8
      %v8078 = vpop.permute.xlu0 %8077
      %8079 = vrot.lane.b32.xlu0 %v7973, 8
      %v8080 = vpop.permute.xlu0 %8079
      %8081 = vrot.lane.b32.xlu0 %v7976, 8
      %v8082 = vpop.permute.xlu0 %8081
      %8083 = vrot.lane.b32.xlu0 %v7980, 8
      %v8084 = vpop.permute.xlu0 %8083
      %8085 = vrot.lane.b32.xlu0 %v7983, 8
      %v8086 = vpop.permute.xlu0 %8085
      %8087 = vrot.lane.b32.xlu0 %v7987, 8
      %v8088 = vpop.permute.xlu0 %8087
      %8089 = vrot.lane.b32.xlu0 %v7990, 8
      %v8090 = vpop.permute.xlu0 %8089
      %8091 = vrot.lane.b32.xlu0 %v7994, 8
      %v8092 = vpop.permute.xlu0 %8091
      %8093 = vrot.lane.b32.xlu0 %v7997, 8
      %v8094 = vpop.permute.xlu0 %8093
      %8095 = vrot.lane.b32.xlu0 %v8001, 8
      %v8096 = vpop.permute.xlu0 %8095
      %8097 = vrot.lane.b32.xlu0 %v8004, 8
      %v8098 = vpop.permute.xlu0 %8097
      %8099 = vrot.lane.b32.xlu0 %v8008, 8
      %v8100 = vpop.permute.xlu0 %8099
      %8101 = vrot.lane.b32.xlu0 %v8011, 8
      %v8102 = vpop.permute.xlu0 %8101
      %8103 = vrot.lane.b32.xlu0 %v8015, 8
      %v8104 = vpop.permute.xlu0 %8103
      %8105 = vrot.lane.b32.xlu0 %v8018, 8
      %v8106 = vpop.permute.xlu0 %8105
      %8107 = vrot.lane.b32.xlu0 %v8022, 8
      %v8108 = vpop.permute.xlu0 %8107
      %8109 = vrot.lane.b32.xlu0 %v8025, 8
      %v8110 = vpop.permute.xlu0 %8109
      %8111 = vrot.lane.b32.xlu0 %v8029, 8
      %v8112 = vpop.permute.xlu0 %8111
      %8113 = vrot.lane.b32.xlu0 %v8032, 8
      %v8114 = vpop.permute.xlu0 %8113
      %8115 = vrot.lane.b32.xlu0 %v8036, 8
      %v8116 = vpop.permute.xlu0 %8115
      %8117 = vrot.lane.b32.xlu0 %v8039, 8
      %v8118 = vpop.permute.xlu0 %8117
      %8119 = vrot.lane.b32.xlu0 %v8043, 8
      %v8120 = vpop.permute.xlu0 %8119
      %8121 = vrot.lane.b32.xlu0 %v8046, 8
      %v8122 = vpop.permute.xlu0 %8121
      %8123 = vrot.lane.b32.xlu0 %v8050, 8
      %v8124 = vpop.permute.xlu0 %8123
      %8125 = vrot.lane.b32.xlu0 %v8053, 8
      %v8126 = vpop.permute.xlu0 %8125
      %8127 = vrot.lane.b32.xlu0 %v8057, 8
      %v8128 = vpop.permute.xlu0 %8127
      %8129 = vrot.lane.b32.xlu0 %v8060, 8
      %v8130 = vpop.permute.xlu0 %8129
      %8131 = vrot.lane.b32.xlu0 %v8064, 8
      %v8132 = vpop.permute.xlu0 %8131
      %8133 = vrot.lane.b32.xlu0 %v8067, 8
      %v8134 = vpop.permute.xlu0 %8133
      %8135 = vrot.lane.b32.xlu0 %v8071, 8
      %v8136 = vpop.permute.xlu0 %8135
      %8137 = vrot.lane.b32.xlu0 %v8074, 8
      %v8138 = vpop.permute.xlu0 %8137
      %v8171 = vrot.slane %v7916, 1
      %v8172 = vrot.slane %v7917, 1
      %v8173 = vsel %vm685, %v8171, %v8172
      %v8174 = vrot.slane %v7919, 1
      %v8175 = vrot.slane %v7920, 1
      %v8176 = vsel %vm685, %v8174, %v8175
      %v8177 = vrot.slane %v7922, 1
      %v8178 = vrot.slane %v7923, 1
      %v8179 = vsel %vm685, %v8177, %v8178
      %v8180 = vrot.slane %v7925, 1
      %v8181 = vrot.slane %v7926, 1
      %v8182 = vsel %vm685, %v8180, %v8181
      %v8183 = vrot.slane %v7928, 1
      %v8184 = vrot.slane %v7929, 1
      %v8185 = vsel %vm685, %v8183, %v8184
      %v8186 = vrot.slane %v7931, 1
      %v8187 = vrot.slane %v7932, 1
      %v8188 = vsel %vm685, %v8186, %v8187
      %v8189 = vrot.slane %v7934, 1
      %v8190 = vrot.slane %v7935, 1
      %v8191 = vsel %vm685, %v8189, %v8190
      %v8192 = vrot.slane %v7937, 1
      %v8193 = vrot.slane %v7938, 1
      %v8194 = vsel %vm685, %v8192, %v8193
      %v8195 = vrot.slane %v7940, 1
      %v8196 = vrot.slane %v7941, 1
      %v8197 = vsel %vm685, %v8195, %v8196
      %v8198 = vrot.slane %v7943, 1
      %v8199 = vrot.slane %v7944, 1
      %v8200 = vsel %vm685, %v8198, %v8199
      %v8201 = vrot.slane %v7946, 1
      %v8202 = vrot.slane %v7947, 1
      %v8203 = vsel %vm685, %v8201, %v8202
      %v8204 = vrot.slane %v7949, 1
      %v8205 = vrot.slane %v7950, 1
      %v8206 = vsel %vm685, %v8204, %v8205
      %v8207 = vrot.slane %v7952, 1
      %v8208 = vrot.slane %v7953, 1
      %v8209 = vsel %vm685, %v8207, %v8208
      %v8210 = vrot.slane %v7955, 1
      %v8211 = vrot.slane %v7956, 1
      %v8212 = vsel %vm685, %v8210, %v8211
      %v8213 = vrot.slane %v7958, 1
      %v8214 = vrot.slane %v7959, 1
      %v8215 = vsel %vm685, %v8213, %v8214
      %v8216 = vrot.slane %v7961, 1
      %v8217 = vrot.slane %v7962, 1
      %v8218 = vsel %vm685, %v8216, %v8217
      %8219 = vrot.lane.b32.xlu0 %v8171, 16
      %v8220 = vpop.permute.xlu0 %8219
      %8221 = vrot.lane.b32.xlu0 %v8173, 16
      %v8222 = vpop.permute.xlu0 %8221
      %8223 = vrot.lane.b32.xlu0 %v8174, 16
      %v8224 = vpop.permute.xlu0 %8223
      %8225 = vrot.lane.b32.xlu0 %v8176, 16
      %v8226 = vpop.permute.xlu0 %8225
      %8227 = vrot.lane.b32.xlu0 %v8177, 16
      %v8228 = vpop.permute.xlu0 %8227
      %8229 = vrot.lane.b32.xlu0 %v8179, 16
      %v8230 = vpop.permute.xlu0 %8229
      %8231 = vrot.lane.b32.xlu0 %v8180, 16
      %v8232 = vpop.permute.xlu0 %8231
      %8233 = vrot.lane.b32.xlu0 %v8182, 16
      %v8234 = vpop.permute.xlu0 %8233
      %8235 = vrot.lane.b32.xlu0 %v8183, 16
      %v8236 = vpop.permute.xlu0 %8235
      %8237 = vrot.lane.b32.xlu0 %v8185, 16
      %v8238 = vpop.permute.xlu0 %8237
      %8239 = vrot.lane.b32.xlu0 %v8186, 16
      %v8240 = vpop.permute.xlu0 %8239
      %8241 = vrot.lane.b32.xlu0 %v8188, 16
      %v8242 = vpop.permute.xlu0 %8241
      %8243 = vrot.lane.b32.xlu0 %v8189, 16
      %v8244 = vpop.permute.xlu0 %8243
      %8245 = vrot.lane.b32.xlu0 %v8191, 16
      %v8246 = vpop.permute.xlu0 %8245
      %8247 = vrot.lane.b32.xlu0 %v8192, 16
      %v8248 = vpop.permute.xlu0 %8247
      %8249 = vrot.lane.b32.xlu0 %v8194, 16
      %v8250 = vpop.permute.xlu0 %8249
      %8251 = vrot.lane.b32.xlu0 %v8195, 16
      %v8252 = vpop.permute.xlu0 %8251
      %8253 = vrot.lane.b32.xlu0 %v8197, 16
      %v8254 = vpop.permute.xlu0 %8253
      %8255 = vrot.lane.b32.xlu0 %v8198, 16
      %v8256 = vpop.permute.xlu0 %8255
      %8257 = vrot.lane.b32.xlu0 %v8200, 16
      %v8258 = vpop.permute.xlu0 %8257
      %8259 = vrot.lane.b32.xlu0 %v8201, 16
      %v8260 = vpop.permute.xlu0 %8259
      %8261 = vrot.lane.b32.xlu0 %v8203, 16
      %v8262 = vpop.permute.xlu0 %8261
      %8263 = vrot.lane.b32.xlu0 %v8204, 16
      %v8264 = vpop.permute.xlu0 %8263
      %8265 = vrot.lane.b32.xlu0 %v8206, 16
      %v8266 = vpop.permute.xlu0 %8265
      %8267 = vrot.lane.b32.xlu0 %v8207, 16
      %v8268 = vpop.permute.xlu0 %8267
      %8269 = vrot.lane.b32.xlu0 %v8209, 16
      %v8270 = vpop.permute.xlu0 %8269
      %8271 = vrot.lane.b32.xlu0 %v8210, 16
      %v8272 = vpop.permute.xlu0 %8271
      %8273 = vrot.lane.b32.xlu0 %v8212, 16
      %v8274 = vpop.permute.xlu0 %8273
      %8275 = vrot.lane.b32.xlu0 %v8213, 16
      %v8276 = vpop.permute.xlu0 %8275
      %8277 = vrot.lane.b32.xlu0 %v8215, 16
      %v8278 = vpop.permute.xlu0 %8277
      %8279 = vrot.lane.b32.xlu0 %v8216, 16
      %v8280 = vpop.permute.xlu0 %8279
      %8281 = vrot.lane.b32.xlu0 %v8218, 16
      %v8282 = vpop.permute.xlu0 %8281
      %v8285 = vsel %vm199, %v7915, %v8076
      %v8287 = vsel %vm199, %v7916, %v8078
      %v8290 = vsel %vm199, %v7918, %v8080
      %v8292 = vsel %vm199, %v7919, %v8082
      %v8295 = vsel %vm199, %v7921, %v8084
      %v8297 = vsel %vm199, %v7922, %v8086
      %v8300 = vsel %vm199, %v7924, %v8088
      %v8302 = vsel %vm199, %v7925, %v8090
      %v8305 = vsel %vm199, %v7927, %v8092
      %v8307 = vsel %vm199, %v7928, %v8094
      %v8310 = vsel %vm199, %v7930, %v8096
      %v8312 = vsel %vm199, %v7931, %v8098
      %v8315 = vsel %vm199, %v7933, %v8100
      %v8317 = vsel %vm199, %v7934, %v8102
      %v8320 = vsel %vm199, %v7936, %v8104
      %v8322 = vsel %vm199, %v7937, %v8106
      %v8325 = vsel %vm199, %v7939, %v8108
      %v8327 = vsel %vm199, %v7940, %v8110
      %v8330 = vsel %vm199, %v7942, %v8112
      %v8332 = vsel %vm199, %v7943, %v8114
      %v8335 = vsel %vm199, %v7945, %v8116
      %v8337 = vsel %vm199, %v7946, %v8118
      %v8340 = vsel %vm199, %v7948, %v8120
      %v8342 = vsel %vm199, %v7949, %v8122
      %v8345 = vsel %vm199, %v7951, %v8124
      %v8347 = vsel %vm199, %v7952, %v8126
      %v8350 = vsel %vm199, %v7954, %v8128
      %v8352 = vsel %vm199, %v7955, %v8130
      %v8355 = vsel %vm199, %v7957, %v8132
      %v8357 = vsel %vm199, %v7958, %v8134
      %v8360 = vsel %vm199, %v7960, %v8136
      %v8362 = vsel %vm199, %v7961, %v8138
      %v8364 = vsel %vm878, %v8285, %v8220
      %v8366 = vsel %vm878, %v8287, %v8222
      %v8368 = vsel %vm878, %v8290, %v8224
      %v8370 = vsel %vm878, %v8292, %v8226
      %v8372 = vsel %vm878, %v8295, %v8228
      %v8374 = vsel %vm878, %v8297, %v8230
      %v8376 = vsel %vm878, %v8300, %v8232
      %v8378 = vsel %vm878, %v8302, %v8234
      %v8380 = vsel %vm878, %v8305, %v8236
      %v8382 = vsel %vm878, %v8307, %v8238
      %v8384 = vsel %vm878, %v8310, %v8240
      %v8386 = vsel %vm878, %v8312, %v8242
      %v8388 = vsel %vm878, %v8315, %v8244
      %v8390 = vsel %vm878, %v8317, %v8246
      %v8392 = vsel %vm878, %v8320, %v8248
      %v8394 = vsel %vm878, %v8322, %v8250
      %v8396 = vsel %vm878, %v8325, %v8252
      %v8398 = vsel %vm878, %v8327, %v8254
      %v8400 = vsel %vm878, %v8330, %v8256
      %v8402 = vsel %vm878, %v8332, %v8258
      %v8404 = vsel %vm878, %v8335, %v8260
      %v8406 = vsel %vm878, %v8337, %v8262
      %v8408 = vsel %vm878, %v8340, %v8264
      %v8410 = vsel %vm878, %v8342, %v8266
      %v8412 = vsel %vm878, %v8345, %v8268
      %v8414 = vsel %vm878, %v8347, %v8270
      %v8416 = vsel %vm878, %v8350, %v8272
      %v8418 = vsel %vm878, %v8352, %v8274
      %v8420 = vsel %vm878, %v8355, %v8276
      %v8422 = vsel %vm878, %v8357, %v8278
      %v8424 = vsel %vm878, %v8360, %v8280
      %v8426 = vsel %vm878, %v8362, %v8282
      %v8427 = vshrl.u32 %v8364, 16
      %v8429 = vrot.slane %v8427, 7
      %v8430 = vshrl.u32 %v8366, 16
      %v8432 = vrot.slane %v8430, 7
      %v8433 = vshll.u32 %v8366, 16
      %v8435 = vor.u32 %v8432, %v8433
      %v8436 = vsel %vm943, %v8429, %v8435
      %v8437 = vshrl.u32 %v8368, 16
      %v8439 = vrot.slane %v8437, 7
      %v8440 = vshrl.u32 %v8370, 16
      %v8442 = vrot.slane %v8440, 7
      %v8443 = vshll.u32 %v8370, 16
      %v8445 = vor.u32 %v8442, %v8443
      %v8446 = vsel %vm943, %v8439, %v8445
      %v8447 = vshrl.u32 %v8372, 16
      %v8449 = vrot.slane %v8447, 7
      %v8450 = vshrl.u32 %v8374, 16
      %v8452 = vrot.slane %v8450, 7
      %v8453 = vshll.u32 %v8374, 16
      %v8455 = vor.u32 %v8452, %v8453
      %v8456 = vsel %vm943, %v8449, %v8455
      %v8457 = vshrl.u32 %v8376, 16
      %v8459 = vrot.slane %v8457, 7
      %v8460 = vshrl.u32 %v8378, 16
      %v8462 = vrot.slane %v8460, 7
      %v8463 = vshll.u32 %v8378, 16
      %v8465 = vor.u32 %v8462, %v8463
      %v8466 = vsel %vm943, %v8459, %v8465
      %v8467 = vshrl.u32 %v8380, 16
      %v8469 = vrot.slane %v8467, 7
      %v8470 = vshrl.u32 %v8382, 16
      %v8472 = vrot.slane %v8470, 7
      %v8473 = vshll.u32 %v8382, 16
      %v8475 = vor.u32 %v8472, %v8473
      %v8476 = vsel %vm943, %v8469, %v8475
      %v8477 = vshrl.u32 %v8384, 16
      %v8479 = vrot.slane %v8477, 7
      %v8480 = vshrl.u32 %v8386, 16
      %v8482 = vrot.slane %v8480, 7
      %v8483 = vshll.u32 %v8386, 16
      %v8485 = vor.u32 %v8482, %v8483
      %v8486 = vsel %vm943, %v8479, %v8485
      %v8487 = vshrl.u32 %v8388, 16
      %v8489 = vrot.slane %v8487, 7
      %v8490 = vshrl.u32 %v8390, 16
      %v8492 = vrot.slane %v8490, 7
      %v8493 = vshll.u32 %v8390, 16
      %v8495 = vor.u32 %v8492, %v8493
      %v8496 = vsel %vm943, %v8489, %v8495
      %v8497 = vshrl.u32 %v8392, 16
      %v8499 = vrot.slane %v8497, 7
      %v8500 = vshrl.u32 %v8394, 16
      %v8502 = vrot.slane %v8500, 7
      %v8503 = vshll.u32 %v8394, 16
      %v8505 = vor.u32 %v8502, %v8503
      %v8506 = vsel %vm943, %v8499, %v8505
      %v8507 = vshrl.u32 %v8396, 16
      %v8509 = vrot.slane %v8507, 7
      %v8510 = vshrl.u32 %v8398, 16
      %v8512 = vrot.slane %v8510, 7
      %v8513 = vshll.u32 %v8398, 16
      %v8515 = vor.u32 %v8512, %v8513
      %v8516 = vsel %vm943, %v8509, %v8515
      %v8517 = vshrl.u32 %v8400, 16
      %v8519 = vrot.slane %v8517, 7
      %v8520 = vshrl.u32 %v8402, 16
      %v8522 = vrot.slane %v8520, 7
      %v8523 = vshll.u32 %v8402, 16
      %v8525 = vor.u32 %v8522, %v8523
      %v8526 = vsel %vm943, %v8519, %v8525
      %v8527 = vshrl.u32 %v8404, 16
      %v8529 = vrot.slane %v8527, 7
      %v8530 = vshrl.u32 %v8406, 16
      %v8532 = vrot.slane %v8530, 7
      %v8533 = vshll.u32 %v8406, 16
      %v8535 = vor.u32 %v8532, %v8533
      %v8536 = vsel %vm943, %v8529, %v8535
      %v8537 = vshrl.u32 %v8408, 16
      %v8539 = vrot.slane %v8537, 7
      %v8540 = vshrl.u32 %v8410, 16
      %v8542 = vrot.slane %v8540, 7
      %v8543 = vshll.u32 %v8410, 16
      %v8545 = vor.u32 %v8542, %v8543
      %v8546 = vsel %vm943, %v8539, %v8545
      %v8547 = vshrl.u32 %v8412, 16
      %v8549 = vrot.slane %v8547, 7
      %v8550 = vshrl.u32 %v8414, 16
      %v8552 = vrot.slane %v8550, 7
      %v8553 = vshll.u32 %v8414, 16
      %v8555 = vor.u32 %v8552, %v8553
      %v8556 = vsel %vm943, %v8549, %v8555
      %v8557 = vshrl.u32 %v8416, 16
      %v8559 = vrot.slane %v8557, 7
      %v8560 = vshrl.u32 %v8418, 16
      %v8562 = vrot.slane %v8560, 7
      %v8563 = vshll.u32 %v8418, 16
      %v8565 = vor.u32 %v8562, %v8563
      %v8566 = vsel %vm943, %v8559, %v8565
      %v8567 = vshrl.u32 %v8420, 16
      %v8569 = vrot.slane %v8567, 7
      %v8570 = vshrl.u32 %v8422, 16
      %v8572 = vrot.slane %v8570, 7
      %v8573 = vshll.u32 %v8422, 16
      %v8575 = vor.u32 %v8572, %v8573
      %v8576 = vsel %vm943, %v8569, %v8575
      %v8577 = vshrl.u32 %v8424, 16
      %v8579 = vrot.slane %v8577, 7
      %v8580 = vshrl.u32 %v8426, 16
      %v8582 = vrot.slane %v8580, 7
      %v8583 = vshll.u32 %v8426, 16
      %v8585 = vor.u32 %v8582, %v8583
      %v8586 = vsel %vm943, %v8579, %v8585
      %v8588 = vsel %vm1785, %v8436, 0
      %v8591 = vsel %vm1785, %v8446, 0
      %v8594 = vsel %vm1785, %v8456, 0
      %v8597 = vsel %vm1785, %v8466, 0
      %v8600 = vsel %vm1785, %v8476, 0
      %v8603 = vsel %vm1785, %v8486, 0
      %v8606 = vsel %vm1785, %v8496, 0
      %v8609 = vsel %vm1785, %v8506, 0
      %v8612 = vsel %vm1785, %v8516, 0
      %v8615 = vsel %vm1785, %v8526, 0
      %v8618 = vsel %vm1785, %v8536, 0
      %v8621 = vsel %vm1785, %v8546, 0
      %v8624 = vsel %vm1785, %v8556, 0
      %v8627 = vsel %vm1785, %v8566, 0
      %v8630 = vsel %vm1785, %v8576, 0
      %v8633 = vsel %vm1785, %v8586, 0
      %8635 = vmatprep.subr.bf16.mxu0 0
      %8636 = vmatpush1.bf16.msra.mxu0 %v2899
      %8637 = vmatprep.subr.bf16.mxu0 0
      %8638 = vmatpush1.bf16.msra.mxu0 %v2951
      %8639 = vmatprep.subr.bf16.mxu0 0
      %8640 = vmatpush1.bf16.msra.mxu0 0
      %8641 = vmatprep.subr.bf16.mxu0 0
      %8642 = vmatpush1.bf16.msra.mxu0 0
      %8643 = vmatprep.subr.bf16.mxu0 0
      %8644 = vmatpush1.bf16.msra.mxu0 0
      %8645 = vmatprep.subr.bf16.mxu0 0
      %8646 = vmatpush1.bf16.msra.mxu0 0
      %8647 = vmatprep.subr.bf16.mxu0 0
      %8648 = vmatpush1.bf16.msra.mxu0 0
      %8649 = vmatprep.subr.bf16.mxu0 0
      %8650 = vmatpush1.bf16.msra.mxu0 0
      %8651 = vmatprep.subr.bf16.mxu0 0
      %8652 = vmatpush1.bf16.msra.mxu0 0
      %8653 = vmatprep.subr.bf16.mxu0 0
      %8654 = vmatpush1.bf16.msra.mxu0 0
      %8655 = vmatprep.subr.bf16.mxu0 0
      %8656 = vmatpush1.bf16.msra.mxu0 0
      %8657 = vmatprep.subr.bf16.mxu0 0
      %8658 = vmatpush1.bf16.msra.mxu0 0
      %8659 = vmatprep.subr.bf16.mxu0 0
      %8660 = vmatpush1.bf16.msra.mxu0 0
      %8661 = vmatprep.subr.bf16.mxu0 0
      %8662 = vmatpush1.bf16.msra.mxu0 0
      %8663 = vmatprep.subr.bf16.mxu0 0
      %8664 = vmatpush1.bf16.msra.mxu0 0
      %8665 = vmatprep.subr.bf16.mxu0 0
      %8666 = vmatpush1.bf16.msra.mxu0 0
      %8667 = vmatprep.mubr.bf16.mxu0 0
      %8668 = vmatmul.mubr.bf16.gmra.mrb[0].mxu0 %v8588
      %v8669 = vpop.f32.mrb[0].mxu0
      %v8670 = vadd.f32 0.0, %v8669
      %v8671 = vpop.f32.mrb[0].mxu0
      %v8672 = vpop.f32.mrb[0].mxu0
      %v8673 = vadd.f32 0.0, %v8672
      %v8674 = vpop.f32.mrb[0].mxu0
      %8675 = vmatprep.mubr.bf16.mxu0 0
      %8676 = vmatmul.mubr.bf16.gmra.mrb[0].mxu0 %v8591
      %v8677 = vpop.f32.mrb[0].mxu0
      %v8678 = vadd.f32 0.0, %v8677
      %v8679 = vpop.f32.mrb[0].mxu0
      %v8680 = vpop.f32.mrb[0].mxu0
      %v8681 = vadd.f32 0.0, %v8680
      %v8682 = vpop.f32.mrb[0].mxu0
      %8683 = vmatprep.mubr.bf16.mxu0 0
      %8684 = vmatmul.mubr.bf16.gmra.mrb[0].mxu0 %v8594
      %v8685 = vpop.f32.mrb[0].mxu0
      %v8686 = vadd.f32 0.0, %v8685
      %v8687 = vpop.f32.mrb[0].mxu0
      %v8688 = vpop.f32.mrb[0].mxu0
      %v8689 = vadd.f32 0.0, %v8688
      %v8690 = vpop.f32.mrb[0].mxu0
      %8691 = vmatprep.mubr.bf16.mxu0 0
      %8692 = vmatmul.mubr.bf16.gmra.mrb[0].mxu0 %v8597
      %v8693 = vpop.f32.mrb[0].mxu0
      %v8694 = vadd.f32 0.0, %v8693
      %v8695 = vpop.f32.mrb[0].mxu0
      %v8696 = vpop.f32.mrb[0].mxu0
      %v8697 = vadd.f32 0.0, %v8696
      %v8698 = vpop.f32.mrb[0].mxu0
      %8699 = vmatprep.mubr.bf16.mxu0 0
      %8700 = vmatmul.mubr.bf16.gmra.mrb[0].mxu0 %v8600
      %v8701 = vpop.f32.mrb[0].mxu0
      %v8702 = vadd.f32 0.0, %v8701
      %v8703 = vpop.f32.mrb[0].mxu0
      %v8704 = vpop.f32.mrb[0].mxu0
      %v8705 = vadd.f32 0.0, %v8704
      %v8706 = vpop.f32.mrb[0].mxu0
      %8707 = vmatprep.mubr.bf16.mxu0 0
      %8708 = vmatmul.mubr.bf16.gmra.mrb[0].mxu0 %v8603
      %v8709 = vpop.f32.mrb[0].mxu0
      %v8710 = vadd.f32 0.0, %v8709
      %v8711 = vpop.f32.mrb[0].mxu0
      %v8712 = vpop.f32.mrb[0].mxu0
      %v8713 = vadd.f32 0.0, %v8712
      %v8714 = vpop.f32.mrb[0].mxu0
      %8715 = vmatprep.mubr.bf16.mxu0 0
      %8716 = vmatmul.mubr.bf16.gmra.mrb[0].mxu0 %v8606
      %v8717 = vpop.f32.mrb[0].mxu0
      %v8718 = vadd.f32 0.0, %v8717
      %v8719 = vpop.f32.mrb[0].mxu0
      %v8720 = vpop.f32.mrb[0].mxu0
      %v8721 = vadd.f32 0.0, %v8720
      %v8722 = vpop.f32.mrb[0].mxu0
      %8723 = vmatprep.mubr.bf16.mxu0 0
      %8724 = vmatmul.mubr.bf16.gmra.mrb[0].mxu0 %v8609
      %v8725 = vpop.f32.mrb[0].mxu0
      %v8726 = vadd.f32 0.0, %v8725
      %v8727 = vpop.f32.mrb[0].mxu0
      %v8728 = vpop.f32.mrb[0].mxu0
      %v8729 = vadd.f32 0.0, %v8728
      %v8730 = vpop.f32.mrb[0].mxu0
      %8731 = vmatprep.mubr.bf16.mxu0 0
      %8732 = vmatmul.mubr.bf16.gmra.mrb[0].mxu0 %v8612
      %v8733 = vpop.f32.mrb[0].mxu0
      %v8734 = vadd.f32 0.0, %v8733
      %v8735 = vpop.f32.mrb[0].mxu0
      %v8736 = vpop.f32.mrb[0].mxu0
      %v8737 = vadd.f32 0.0, %v8736
      %v8738 = vpop.f32.mrb[0].mxu0
      %8739 = vmatprep.mubr.bf16.mxu0 0
      %8740 = vmatmul.mubr.bf16.gmra.mrb[0].mxu0 %v8615
      %v8741 = vpop.f32.mrb[0].mxu0
      %v8742 = vadd.f32 0.0, %v8741
      %v8743 = vpop.f32.mrb[0].mxu0
      %v8744 = vpop.f32.mrb[0].mxu0
      %v8745 = vadd.f32 0.0, %v8744
      %v8746 = vpop.f32.mrb[0].mxu0
      %8747 = vmatprep.mubr.bf16.mxu0 0
      %8748 = vmatmul.mubr.bf16.gmra.mrb[0].mxu0 %v8618
      %v8749 = vpop.f32.mrb[0].mxu0
      %v8750 = vadd.f32 0.0, %v8749
      %v8751 = vpop.f32.mrb[0].mxu0
      %v8752 = vpop.f32.mrb[0].mxu0
      %v8753 = vadd.f32 0.0, %v8752
      %v8754 = vpop.f32.mrb[0].mxu0
      %8755 = vmatprep.mubr.bf16.mxu0 0
      %8756 = vmatmul.mubr.bf16.gmra.mrb[0].mxu0 %v8621
      %v8757 = vpop.f32.mrb[0].mxu0
      %v8758 = vadd.f32 0.0, %v8757
      %v8759 = vpop.f32.mrb[0].mxu0
      %v8760 = vpop.f32.mrb[0].mxu0
      %v8761 = vadd.f32 0.0, %v8760
      %v8762 = vpop.f32.mrb[0].mxu0
      %8763 = vmatprep.mubr.bf16.mxu0 0
      %8764 = vmatmul.mubr.bf16.gmra.mrb[0].mxu0 %v8624
      %v8765 = vpop.f32.mrb[0].mxu0
      %v8766 = vadd.f32 0.0, %v8765
      %v8767 = vpop.f32.mrb[0].mxu0
      %v8768 = vpop.f32.mrb[0].mxu0
      %v8769 = vadd.f32 0.0, %v8768
      %v8770 = vpop.f32.mrb[0].mxu0
      %8771 = vmatprep.mubr.bf16.mxu0 0
      %8772 = vmatmul.mubr.bf16.gmra.mrb[0].mxu0 %v8627
      %v8773 = vpop.f32.mrb[0].mxu0
      %v8774 = vadd.f32 0.0, %v8773
      %v8775 = vpop.f32.mrb[0].mxu0
      %v8776 = vpop.f32.mrb[0].mxu0
      %v8777 = vadd.f32 0.0, %v8776
      %v8778 = vpop.f32.mrb[0].mxu0
      %8779 = vmatprep.mubr.bf16.mxu0 0
      %8780 = vmatmul.mubr.bf16.gmra.mrb[0].mxu0 %v8630
      %v8781 = vpop.f32.mrb[0].mxu0
      %v8782 = vadd.f32 0.0, %v8781
      %v8783 = vpop.f32.mrb[0].mxu0
      %v8784 = vpop.f32.mrb[0].mxu0
      %v8785 = vadd.f32 0.0, %v8784
      %v8786 = vpop.f32.mrb[0].mxu0
      %8787 = vmatprep.mubr.bf16.mxu0 0
      %8788 = vmatmul.mubr.bf16.gmra.mrb[0].mxu0 %v8633
      %v8789 = vpop.f32.mrb[0].mxu0
      %v8790 = vadd.f32 0.0, %v8789
      %v8791 = vpop.f32.mrb[0].mxu0
      %v8792 = vpop.f32.mrb[0].mxu0
      %v8793 = vadd.f32 0.0, %v8792
      %v8794 = vpop.f32.mrb[0].mxu0
      %8795 = vdwg.mxu0
      %v8796 = vadd.f32 %v7789, %v8670
      %v8797 = vadd.f32 %v7792, %v8673
      %v8798 = vadd.f32 %v7797, %v8678
      %v8799 = vadd.f32 %v7800, %v8681
      %v8800 = vadd.f32 %v7805, %v8686
      %v8801 = vadd.f32 %v7808, %v8689
      %v8802 = vadd.f32 %v7813, %v8694
      %v8803 = vadd.f32 %v7816, %v8697
      %v8804 = vadd.f32 %v7821, %v8702
      %v8805 = vadd.f32 %v7824, %v8705
      %v8806 = vadd.f32 %v7829, %v8710
      %v8807 = vadd.f32 %v7832, %v8713
      %v8808 = vadd.f32 %v7837, %v8718
      %v8809 = vadd.f32 %v7840, %v8721
      %v8810 = vadd.f32 %v7845, %v8726
      %v8811 = vadd.f32 %v7848, %v8729
      %v8812 = vadd.f32 %v7853, %v8734
      %v8813 = vadd.f32 %v7856, %v8737
      %v8814 = vadd.f32 %v7861, %v8742
      %v8815 = vadd.f32 %v7864, %v8745
      %v8816 = vadd.f32 %v7869, %v8750
      %v8817 = vadd.f32 %v7872, %v8753
      %v8818 = vadd.f32 %v7877, %v8758
      %v8819 = vadd.f32 %v7880, %v8761
      %v8820 = vadd.f32 %v7885, %v8766
      %v8821 = vadd.f32 %v7888, %v8769
      %v8822 = vadd.f32 %v7893, %v8774
      %v8823 = vadd.f32 %v7896, %v8777
      %v8824 = vadd.f32 %v7901, %v8782
      %v8825 = vadd.f32 %v7904, %v8785
      %v8826 = vadd.f32 %v7909, %v8790
      %v8827 = vadd.f32 %v7912, %v8793
      %v8828 = vmul.f32 %v8796, %v3150
      %v8829 = vmul.f32 %v8797, %v3150
      %v8830 = vmul.f32 %v8798, %v3150
      %v8831 = vmul.f32 %v8799, %v3150
      %v8832 = vmul.f32 %v8800, %v3150
      %v8833 = vmul.f32 %v8801, %v3150
      %v8834 = vmul.f32 %v8802, %v3150
      %v8835 = vmul.f32 %v8803, %v3150
      %v8836 = vmul.f32 %v8804, %v3150
      %v8837 = vmul.f32 %v8805, %v3150
      %v8838 = vmul.f32 %v8806, %v3150
      %v8839 = vmul.f32 %v8807, %v3150
      %v8840 = vmul.f32 %v8808, %v3150
      %v8841 = vmul.f32 %v8809, %v3150
      %v8842 = vmul.f32 %v8810, %v3150
      %v8843 = vmul.f32 %v8811, %v3150
      %v8844 = vmul.f32 %v8812, %v3150
      %v8845 = vmul.f32 %v8813, %v3150
      %v8846 = vmul.f32 %v8814, %v3150
      %v8847 = vmul.f32 %v8815, %v3150
      %v8848 = vmul.f32 %v8816, %v3150
      %v8849 = vmul.f32 %v8817, %v3150
      %v8850 = vmul.f32 %v8818, %v3150
      %v8851 = vmul.f32 %v8819, %v3150
      %v8852 = vmul.f32 %v8820, %v3150
      %v8853 = vmul.f32 %v8821, %v3150
      %v8854 = vmul.f32 %v8822, %v3150
      %v8855 = vmul.f32 %v8823, %v3150
      %v8856 = vmul.f32 %v8824, %v3150
      %v8857 = vmul.f32 %v8825, %v3150
      %v8858 = vmul.f32 %v8826, %v3150
      %v8859 = vmul.f32 %v8827, %v3150
      %v8860 = vadd.f32 %v8828, %v3188
      %v8861 = vadd.f32 %v8829, %v3188
      %v8862 = vadd.f32 %v8830, %v3188
      %v8863 = vadd.f32 %v8831, %v3188
      %v8864 = vadd.f32 %v8832, %v3188
      %v8865 = vadd.f32 %v8833, %v3188
      %v8866 = vadd.f32 %v8834, %v3188
      %v8867 = vadd.f32 %v8835, %v3188
      %v8868 = vadd.f32 %v8836, %v3188
      %v8869 = vadd.f32 %v8837, %v3188
      %v8870 = vadd.f32 %v8838, %v3188
      %v8871 = vadd.f32 %v8839, %v3188
      %v8872 = vadd.f32 %v8840, %v3188
      %v8873 = vadd.f32 %v8841, %v3188
      %v8874 = vadd.f32 %v8842, %v3188
      %v8875 = vadd.f32 %v8843, %v3188
      %v8876 = vadd.f32 %v8844, %v3188
      %v8877 = vadd.f32 %v8845, %v3188
      %v8878 = vadd.f32 %v8846, %v3188
      %v8879 = vadd.f32 %v8847, %v3188
      %v8880 = vadd.f32 %v8848, %v3188
      %v8881 = vadd.f32 %v8849, %v3188
      %v8882 = vadd.f32 %v8850, %v3188
      %v8883 = vadd.f32 %v8851, %v3188
      %v8884 = vadd.f32 %v8852, %v3188
      %v8885 = vadd.f32 %v8853, %v3188
      %v8886 = vadd.f32 %v8854, %v3188
      %v8887 = vadd.f32 %v8855, %v3188
      %v8888 = vadd.f32 %v8856, %v3188
      %v8889 = vadd.f32 %v8857, %v3188
      %v8890 = vadd.f32 %v8858, %v3188
      %v8891 = vadd.f32 %v8859, %v3188
      %v8892 = vmax.f32 %v8860, 0.0
      %v8893 = vmax.f32 %v8861, 0.0
      %v8894 = vmax.f32 %v8862, 0.0
      %v8895 = vmax.f32 %v8863, 0.0
      %v8896 = vmax.f32 %v8864, 0.0
      %v8897 = vmax.f32 %v8865, 0.0
      %v8898 = vmax.f32 %v8866, 0.0
      %v8899 = vmax.f32 %v8867, 0.0
      %v8900 = vmax.f32 %v8868, 0.0
      %v8901 = vmax.f32 %v8869, 0.0
      %v8902 = vmax.f32 %v8870, 0.0
      %v8903 = vmax.f32 %v8871, 0.0
      %v8904 = vmax.f32 %v8872, 0.0
      %v8905 = vmax.f32 %v8873, 0.0
      %v8906 = vmax.f32 %v8874, 0.0
      %v8907 = vmax.f32 %v8875, 0.0
      %v8908 = vmax.f32 %v8876, 0.0
      %v8909 = vmax.f32 %v8877, 0.0
      %v8910 = vmax.f32 %v8878, 0.0
      %v8911 = vmax.f32 %v8879, 0.0
      %v8912 = vmax.f32 %v8880, 0.0
      %v8913 = vmax.f32 %v8881, 0.0
      %v8914 = vmax.f32 %v8882, 0.0
      %v8915 = vmax.f32 %v8883, 0.0
      %v8916 = vmax.f32 %v8884, 0.0
      %v8917 = vmax.f32 %v8885, 0.0
      %v8918 = vmax.f32 %v8886, 0.0
      %v8919 = vmax.f32 %v8887, 0.0
      %v8920 = vmax.f32 %v8888, 0.0
      %v8921 = vmax.f32 %v8889, 0.0
      %v8922 = vmax.f32 %v8890, 0.0
      %v8923 = vmax.f32 %v8891, 0.0
      %8924 = vst.msk [vmem:[%s197] sm:$0xff] %vm199, %v8892
      %8925 = vst.msk [vmem:[%s197 + $0x8] sm:$0xff] %vm199, %v8893
      %8926 = vst.msk [vmem:[%s197 + $0x10] sm:$0xff] %vm199, %v8894
      %8927 = vst.msk [vmem:[%s197 + $0x18] sm:$0xff] %vm199, %v8895
      %8928 = vst.msk [vmem:[%s197 + $0x20] sm:$0xff] %vm199, %v8896
      %8929 = vst.msk [vmem:[%s197 + $0x28] sm:$0xff] %vm199, %v8897
      %8930 = vst.msk [vmem:[%s197 + $0x30] sm:$0xff] %vm199, %v8898
      %8931 = vst.msk [vmem:[%s197 + $0x38] sm:$0xff] %vm199, %v8899
      %8932 = vst.msk [vmem:[%s197 + $0x40] sm:$0xff] %vm199, %v8900
      %8933 = vst.msk [vmem:[%s197 + $0x48] sm:$0xff] %vm199, %v8901
      %8934 = vst.msk [vmem:[%s197 + $0x50] sm:$0xff] %vm199, %v8902
      %8935 = vst.msk [vmem:[%s197 + $0x58] sm:$0xff] %vm199, %v8903
      %8936 = vst.msk [vmem:[%s197 + $0x60] sm:$0xff] %vm199, %v8904
      %8937 = vst.msk [vmem:[%s197 + $0x68] sm:$0xff] %vm199, %v8905
      %8938 = vst.msk [vmem:[%s197 + $0x70] sm:$0xff] %vm199, %v8906
      %8939 = vst.msk [vmem:[%s197 + $0x78] sm:$0xff] %vm199, %v8907
      %8940 = vst.msk [vmem:[%s197 + $0x80] sm:$0xff] %vm199, %v8908
      %8941 = vst.msk [vmem:[%s197 + $0x88] sm:$0xff] %vm199, %v8909
      %8942 = vst.msk [vmem:[%s197 + $0x90] sm:$0xff] %vm199, %v8910
      %8943 = vst.msk [vmem:[%s197 + $0x98] sm:$0xff] %vm199, %v8911
      %8944 = vst.msk [vmem:[%s197 + $0xa0] sm:$0xff] %vm199, %v8912
      %8945 = vst.msk [vmem:[%s197 + $0xa8] sm:$0xff] %vm199, %v8913
      %8946 = vst.msk [vmem:[%s197 + $0xb0] sm:$0xff] %vm199, %v8914
      %8947 = vst.msk [vmem:[%s197 + $0xb8] sm:$0xff] %vm199, %v8915
      %8948 = vst.msk [vmem:[%s197 + $0xc0] sm:$0xff] %vm199, %v8916
      %8949 = vst.msk [vmem:[%s197 + $0xc8] sm:$0xff] %vm199, %v8917
      %8950 = vst.msk [vmem:[%s197 + $0xd0] sm:$0xff] %vm199, %v8918
      %8951 = vst.msk [vmem:[%s197 + $0xd8] sm:$0xff] %vm199, %v8919
      %8952 = vst.msk [vmem:[%s197 + $0xe0] sm:$0xff] %vm199, %v8920
      %8953 = vst.msk [vmem:[%s197 + $0xe8] sm:$0xff] %vm199, %v8921
      %8954 = vst.msk [vmem:[%s197 + $0xf0] sm:$0xff] %vm199, %v8922
      %8955 = vst.msk [vmem:[%s197 + $0xf8] sm:$0xff] %vm199, %v8923
      %p8956 = scmp.lt.s32.totalorder %s15, 1
      %s8957 = scalar_select %p8956, %s15, 1
      %s8958 = smul.addr %s8957, 32
      %s8959 = smul.addr %s8958, 8
      %s8960 = scalar_lea.vmem %s4, %s8959
      // Predicated region
      $region37: #{recurrent_conv.1} parent=35 // pred_check
        %p8961 = pneg %p122
      $region38: #{recurrent_conv.1} parent=35 // pred_check_branch
        %8963 = sbr.rel (%p8961) target = $region40
      $region39: #{recurrent_conv.1} parent=35 // pred_region
        _
      $region40: #{recurrent_conv.1} parent=35 // pred_fallthru
        _
    $region36: #{recurrent_conv.1} parent=5 // pred_fallthru
      _
    %p8964 = scmp.le.s32.totalorder 2, %s10
    // Predicated region
    $region41: #{recurrent_conv.1} parent=5 // pred_check
      %p8965 = pneg %p8964
    $region42: #{recurrent_conv.1} parent=5 // pred_check_branch
      %8967 = sbr.rel (%p8965) target = $region44
    $region43: #{recurrent_conv.1} parent=5 // pred_region
      %s8968 = ssub.s32 %s10, 2
      // Predicated region
      $region45: #{recurrent_conv.1} parent=43 // pred_check
        %p8969 = pneg %p128
      $region46: #{recurrent_conv.1} parent=43 // pred_check_branch
        %8971 = sbr.rel (%p8969) target = $region48
      $region47: #{recurrent_conv.1} parent=43 // pred_region
        %p8972 = scmp.lt.s32.totalorder %s16, 1
        %s8973 = scalar_select %p8972, %s16, 1
        %s8974 = smul.addr %s8973, 32
        %s8975 = smul.addr %s8974, 8
        %s8976 = scalar_lea.vmem %s4, %s8975
      $region48: #{recurrent_conv.1} parent=43 // pred_fallthru
        _
    $region44: #{recurrent_conv.1} parent=5 // pred_fallthru
      _
  $region6: #{recurrent_conv.1} parent=0 // loop_footer
    %s14 = sadd.s32 1, %s10
  $region7: #{recurrent_conv.1} parent=0 // loop_footer_branch
    %9 = sbr.rel target = $region3
  $region8: #{recurrent_conv.1} parent=0 // loop_exit
    _

</llo_original>
